<compile_context>
chip_gen: v7x
topology: tpu7x:2x2x1
jax: 0.10.0
libtpu: 0.0.40
codegen_flags: <defaults>
</compile_context>

<pallas_src>
import functools
import math

import jax
import jax.numpy as jnp
from jax import lax
from jax.experimental import pallas as pl
from jax.experimental.pallas import tpu as pltpu

ACT_DTYPE = jnp.float32          # residual-stream activations between kernels
MXU_DTYPE = jnp.bfloat16         # stored weights / MXU operands / attention IO
LN_EPS = 1e-5
VMEM_LIMIT_BYTES = 48 * 1024 * 1024   # < 64 MiB so the same plan fits v7x

_M_TILES = (256, 128, 64, 32, 16, 8)
_N_TILES = (256, 128)
_K_TILES = (512, 256, 128)
_S_TILES = (128, 64)


def _pick_tile(dim, prefs):
    """Largest preferred tile that evenly divides `dim`; fall back to full dim."""
    for p in prefs:
        if p <= dim and dim % p == 0:
            return p
    return dim


def _cparams(semantics):
    return pltpu.CompilerParams(dimension_semantics=semantics,
                                vmem_limit_bytes=VMEM_LIMIT_BYTES)


def _ln_f32(x, g, b):
    x = x.astype(jnp.float32)
    mean = jnp.mean(x, axis=-1, keepdims=True)
    var = jnp.mean(jnp.square(x - mean), axis=-1, keepdims=True)
    return (x - mean) * lax.rsqrt(var + LN_EPS) * g + b


# ----------------------------------------------------------------------------
# Fused tiled linear:  y = [LN](x) @ W (+ bias) (+ QuickGELU) (+ residual) (+ L2)
# ----------------------------------------------------------------------------

def _linear_kernel(*refs, act, has_bias, has_ln, has_res, l2norm):
    idx = 0
    x_ref = refs[idx]; idx += 1
    w_ref = refs[idx]; idx += 1
    if has_ln:
        g_ref, gb_ref = refs[idx], refs[idx + 1]; idx += 2
    if has_bias:
        bias_ref = refs[idx]; idx += 1
    if has_res:
        res_ref = refs[idx]; idx += 1
    o_ref, acc_ref = refs[idx], refs[idx + 1]

    k = pl.program_id(2)

    x = x_ref[...]
    if has_ln:                                 # requires tk == K (enforced in wrapper)
        x = _ln_f32(x, g_ref[...], gb_ref[...])

    @pl.when(k == 0)
    def _():
        acc_ref[...] = jnp.zeros_like(acc_ref)

    acc_ref[...] += jnp.dot(x.astype(MXU_DTYPE), w_ref[...],
                            preferred_element_type=jnp.float32)

    @pl.when(k == pl.num_programs(2) - 1)
    def _():
        y = acc_ref[...]
        if has_bias:
            y = y + bias_ref[...]
        if act == "quick_gelu":                # CLIP QuickGELU: x * sigmoid(1.702 x)
            y = y * jax.nn.sigmoid(1.702 * y)
        if has_res:
            y = y + res_ref[...].astype(jnp.float32)
        if l2norm:                             # requires tn == N (enforced in wrapper)
            y = y * lax.rsqrt(jnp.sum(y * y, axis=-1, keepdims=True))
        o_ref[...] = y.astype(o_ref.dtype)


def pallas_linear(x, w, b=None, *, act=None, ln=None, residual=None, l2norm=False,
                  out_dtype=ACT_DTYPE):
    orig_shape = x.shape
    K = orig_shape[-1]
    N = w.shape[1]
    x2 = x.reshape(-1, K)
    M = x2.shape[0]

    tm = _pick_tile(M, _M_TILES)
    tn = N if l2norm else _pick_tile(N, _N_TILES)
    tk = K if ln is not None else _pick_tile(K, _K_TILES)
    grid = (M // tm, N // tn, K // tk)

    in_specs = [pl.BlockSpec((tm, tk), lambda i, j, k: (i, k)),
                pl.BlockSpec((tk, tn), lambda i, j, k: (k, j))]
    args = [x2, w.astype(MXU_DTYPE)]
    if ln is not None:
        g, gb = ln
        in_specs += [pl.BlockSpec((1, K), lambda i, j, k: (0, 0)),
                     pl.BlockSpec((1, K), lambda i, j, k: (0, 0))]
        args += [g.reshape(1, K), gb.reshape(1, K)]
    if b is not None:
        in_specs.append(pl.BlockSpec((1, tn), lambda i, j, k: (0, j)))
        args.append(b.reshape(1, N))
    if residual is not None:
        in_specs.append(pl.BlockSpec((tm, tn), lambda i, j, k: (i, j)))
        args.append(residual.reshape(-1, N))

    out = pl.pallas_call(
        functools.partial(_linear_kernel, act=act, has_bias=b is not None,
                          has_ln=ln is not None, has_res=residual is not None,
                          l2norm=l2norm),
        out_shape=jax.ShapeDtypeStruct((M, N), out_dtype),
        grid=grid,
        in_specs=in_specs,
        out_specs=pl.BlockSpec((tm, tn), lambda i, j, k: (i, j)),
        scratch_shapes=[pltpu.VMEM((tm, tn), jnp.float32)],
        compiler_params=_cparams(("parallel", "parallel", "arbitrary")),
    )(*args)
    return out.reshape(orig_shape[:-1] + (N,))


# ----------------------------------------------------------------------------
# Fused LN + Q/K/V projections (reads x once, three matmuls per tile, bf16 out)
# ----------------------------------------------------------------------------

def _ln_qkv_kernel(x_ref, g_ref, b_ref, wq_ref, wk_ref, wv_ref,
                   bq_ref, bk_ref, bv_ref, q_ref, k_ref, v_ref):
    xn = _ln_f32(x_ref[...], g_ref[...], b_ref[...]).astype(MXU_DTYPE)
    q_ref[...] = (jnp.dot(xn, wq_ref[...], preferred_element_type=jnp.float32)
                  + bq_ref[...]).astype(q_ref.dtype)
    k_ref[...] = (jnp.dot(xn, wk_ref[...], preferred_element_type=jnp.float32)
                  + bk_ref[...]).astype(k_ref.dtype)
    v_ref[...] = (jnp.dot(xn, wv_ref[...], preferred_element_type=jnp.float32)
                  + bv_ref[...]).astype(v_ref.dtype)


def pallas_ln_qkv(x, p):
    N, S, W = x.shape
    x2 = x.reshape(-1, W)
    M = x2.shape[0]
    tm = _pick_tile(M, _M_TILES)
    tn = _pick_tile(W, _N_TILES)
    grid = (M // tm, W // tn)

    x_spec = pl.BlockSpec((tm, W), lambda i, j: (i, 0))
    ln_spec = pl.BlockSpec((1, W), lambda i, j: (0, 0))
    w_spec = pl.BlockSpec((W, tn), lambda i, j: (0, j))
    b_spec = pl.BlockSpec((1, tn), lambda i, j: (0, j))
    out_spec = pl.BlockSpec((tm, tn), lambda i, j: (i, j))

    q, k, v = pl.pallas_call(
        _ln_qkv_kernel,
        out_shape=[jax.ShapeDtypeStruct((M, W), MXU_DTYPE)] * 3,
        grid=grid,
        in_specs=[x_spec, ln_spec, ln_spec, w_spec, w_spec, w_spec,
                  b_spec, b_spec, b_spec],
        out_specs=[out_spec] * 3,
        compiler_params=_cparams(("parallel", "parallel")),
    )(x2,
      p["ln1_g"].reshape(1, W), p["ln1_b"].reshape(1, W),
      p["wq"].astype(MXU_DTYPE), p["wk"].astype(MXU_DTYPE), p["wv"].astype(MXU_DTYPE),
      p["bq"].reshape(1, W), p["bk"].reshape(1, W), p["bv"].reshape(1, W))
    return q.reshape(N, S, W), k.reshape(N, S, W), v.reshape(N, S, W)


# ----------------------------------------------------------------------------
# Flash-style attention, grid (batch, q_tiles, kv_tiles), online softmax.
# q/k/v/out stay in (N, S, W) layout (lane-dense blocks); the head split is
# done inside the kernel with static lane slices -> no XLA transposes at all.
# ----------------------------------------------------------------------------

def _flash_attn_kernel(q_ref, k_ref, v_ref, o_ref, m_sc, l_sc, acc_sc,
                       *, scale, causal, n_heads):
    kv = pl.program_id(2)
    _, tq, W = q_ref.shape
    tkv = k_ref.shape[1]
    dh = W // n_heads

    @pl.when(kv == 0)
    def _():
        m_sc[...] = jnp.full(m_sc.shape, -jnp.inf, jnp.float32)
        l_sc[...] = jnp.zeros_like(l_sc)
        acc_sc[...] = jnp.zeros_like(acc_sc)

    q = q_ref[0]                               # (tq, W)  bf16
    k = k_ref[0]                               # (tkv, W) bf16
    v = v_ref[0]                               # (tkv, W) bf16

    if causal:                                 # static flag: vision path has no mask
        row = pl.program_id(1) * tq + lax.broadcasted_iota(jnp.int32, (tq, tkv), 0)
        col = kv * tkv + lax.broadcasted_iota(jnp.int32, (tq, tkv), 1)
        neg = jnp.where(col > row, -1e30, 0.0).astype(jnp.float32)

    for h in range(n_heads):                   # static unrolled head loop
        sl = slice(h * dh, (h + 1) * dh)
        qh = q[:, sl].astype(MXU_DTYPE)
        kh = k[:, sl].astype(MXU_DTYPE)
        vh = v[:, sl].astype(MXU_DTYPE)

        s = jnp.einsum("qd,kd->qk", qh, kh,
                       preferred_element_type=jnp.float32) * scale
        if causal:
            s = s + neg

        m_prev = m_sc[h]                       # (tq, 1) f32
        m_new = jnp.maximum(m_prev, jnp.max(s, axis=-1, keepdims=True))
        alpha = jnp.exp(m_prev - m_new)
        p = jnp.exp(s - m_new)
        l_sc[h] = alpha * l_sc[h] + jnp.sum(p, axis=-1, keepdims=True)
        acc_sc[h] = alpha * acc_sc[h] + jnp.dot(
            p.astype(MXU_DTYPE), vh, preferred_element_type=jnp.float32)
        m_sc[h] = m_new

    @pl.when(kv == pl.num_programs(2) - 1)
    def _():
        outs = [acc_sc[h] * pl.reciprocal(l_sc[h], approx=True)
                for h in range(n_heads)]
        o_ref[0] = jnp.concatenate(outs, axis=-1).astype(o_ref.dtype)


def pallas_flash_attention(q, k, v, *, n_heads, scale, causal):
    N, S, W = q.shape
    dh = W // n_heads
    tq = _pick_tile(S, _S_TILES)
    tkv = _pick_tile(S, _S_TILES)
    grid = (N, S // tq, S // tkv)
    q_spec = pl.BlockSpec((1, tq, W), lambda n, qi, ki: (n, qi, 0))
    kv_spec = pl.BlockSpec((1, tkv, W), lambda n, qi, ki: (n, ki, 0))
    return pl.pallas_call(
        functools.partial(_flash_attn_kernel, scale=scale, causal=causal,
                          n_heads=n_heads),
        out_shape=jax.ShapeDtypeStruct((N, S, W), MXU_DTYPE),
        grid=grid,
        in_specs=[q_spec, kv_spec, kv_spec],
        out_specs=pl.BlockSpec((1, tq, W), lambda n, qi, ki: (n, qi, 0)),
        scratch_shapes=[pltpu.VMEM((n_heads, tq, 1), jnp.float32),
                        pltpu.VMEM((n_heads, tq, 1), jnp.float32),
                        pltpu.VMEM((n_heads, tq, dh), jnp.float32)],
        compiler_params=_cparams(("parallel", "parallel", "arbitrary")),
    )(q, k, v)


# ----------------------------------------------------------------------------
# Fused MLP: ln2 -> fc1 -> QuickGELU -> fc2 -> (+bias) -> (+residual)
# Hidden activation never leaves VMEM (reduction over hidden tiles).
# ----------------------------------------------------------------------------

def _mlp_kernel(x_ref, g_ref, be_ref, w1_ref, b1_ref, w2_ref, b2_ref,
                o_ref, acc_ref):
    j = pl.program_id(1)
    x = x_ref[...]
    xn = _ln_f32(x, g_ref[...], be_ref[...]).astype(MXU_DTYPE)

    @pl.when(j == 0)
    def _():
        acc_ref[...] = jnp.zeros_like(acc_ref)

    h = jnp.dot(xn, w1_ref[...], preferred_element_type=jnp.float32) + b1_ref[...]
    h = h * jax.nn.sigmoid(1.702 * h)
    acc_ref[...] += jnp.dot(h.astype(MXU_DTYPE), w2_ref[...],
                            preferred_element_type=jnp.float32)

    @pl.when(j == pl.num_programs(1) - 1)
    def _():
        o_ref[...] = (acc_ref[...] + b2_ref[...] + x).astype(o_ref.dtype)


def pallas_mlp(x, p):
    shape = x.shape
    W = shape[-1]
    x2 = x.reshape(-1, W)
    M = x2.shape[0]
    Hid = p["fc1_w"].shape[1]
    tm = _pick_tile(M, _M_TILES)
    th = _pick_tile(Hid, _K_TILES)
    grid = (M // tm, Hid // th)

    out = pl.pallas_call(
        _mlp_kernel,
        out_shape=jax.ShapeDtypeStruct((M, W), ACT_DTYPE),
        grid=grid,
        in_specs=[pl.BlockSpec((tm, W), lambda i, j: (i, 0)),
                  pl.BlockSpec((1, W), lambda i, j: (0, 0)),
                  pl.BlockSpec((1, W), lambda i, j: (0, 0)),
                  pl.BlockSpec((W, th), lambda i, j: (0, j)),
                  pl.BlockSpec((1, th), lambda i, j: (0, j)),
                  pl.BlockSpec((th, W), lambda i, j: (j, 0)),
                  pl.BlockSpec((1, W), lambda i, j: (0, 0))],
        out_specs=pl.BlockSpec((tm, W), lambda i, j: (i, 0)),
        scratch_shapes=[pltpu.VMEM((tm, W), jnp.float32)],
        compiler_params=_cparams(("parallel", "arbitrary")),
    )(x2, p["ln2_g"].reshape(1, W), p["ln2_b"].reshape(1, W),
      p["fc1_w"].astype(MXU_DTYPE), p["fc1_b"].reshape(1, Hid),
      p["fc2_w"].astype(MXU_DTYPE), p["fc2_b"].reshape(1, W))
    return out.reshape(shape)


# ----------------------------------------------------------------------------
# Fused (x + pos_emb) -> LayerNorm (ln_pre) and temporal mean + L2 normalize
# ----------------------------------------------------------------------------

def _ln_add_kernel(x_ref, a_ref, g_ref, b_ref, o_ref):
    x = x_ref[0] + a_ref[...]
    o_ref[0] = _ln_f32(x, g_ref[...], b_ref[...]).astype(o_ref.dtype)


def pallas_layernorm_add(x, add, g, b):
    N, S, W = x.shape
    return pl.pallas_call(
        _ln_add_kernel,
        out_shape=jax.ShapeDtypeStruct((N, S, W), ACT_DTYPE),
        grid=(N,),
        in_specs=[pl.BlockSpec((1, S, W), lambda i: (i, 0, 0)),
                  pl.BlockSpec((S, W), lambda i: (0, 0)),
                  pl.BlockSpec((1, W), lambda i: (0, 0)),
                  pl.BlockSpec((1, W), lambda i: (0, 0))],
        out_specs=pl.BlockSpec((1, S, W), lambda i: (i, 0, 0)),
        compiler_params=_cparams(("parallel",)),
    )(x, add.astype(ACT_DTYPE), g.reshape(1, W), b.reshape(1, W))


def _mean_norm_kernel(x_ref, o_ref):
    x = x_ref[...]                               # (tb, t, D)
    m = jnp.mean(x, axis=1)
    o_ref[...] = (m * lax.rsqrt(jnp.sum(m * m, axis=-1, keepdims=True))
                  ).astype(o_ref.dtype)


def pallas_mean_l2norm(x):
    b, t, D = x.shape
    tb = _pick_tile(b, _M_TILES)
    return pl.pallas_call(
        _mean_norm_kernel,
        out_shape=jax.ShapeDtypeStruct((b, D), ACT_DTYPE),
        grid=(b // tb,),
        in_specs=[pl.BlockSpec((tb, t, D), lambda i: (i, 0, 0))],
        out_specs=pl.BlockSpec((tb, D), lambda i: (i, 0)),
        compiler_params=_cparams(("parallel",)),
    )(x)


# ----------------------------------------------------------------------------
# Transformer composition
# ----------------------------------------------------------------------------

def multihead_attention(x, p, n_heads, causal):
    N, S, W = x.shape
    dh = W // n_heads
    q, k, v = pallas_ln_qkv(x, p)                       # fused ln1 + Q/K/V, bf16
    o = pallas_flash_attention(q, k, v, n_heads=n_heads,
                               scale=1.0 / math.sqrt(dh), causal=causal)
    # fused out-projection + bias + residual add
    return pallas_linear(o, p["out_w"], p["out_b"], residual=x)


def residual_block(x, p, n_heads, causal):
    x = multihead_attention(x, p, n_heads, causal)      # x + attn(ln1(x))
    x = pallas_mlp(x, p)                                # x + mlp(ln2(x))
    return x


def image_encoder(image_flat, vp):
    N, C, H, W_img = image_flat.shape
    P = vp["patch_size"]
    width = vp["width"]
    Gh, Gw = H // P, W_img // P
    # Patch-embedding conv (kernel == stride == P, no bias) as patch extraction
    # + tiled Pallas matmul (bias-free).
    # TODO(synk): do the patch extraction inside the patch-embed kernel via a
    # strided DMA / index_map instead of this XLA 6-D transpose.
    patches = image_flat.reshape(N, C, Gh, P, Gw, P).transpose(0, 2, 4, 1, 3, 5)
    patches = patches.reshape(N * Gh * Gw, C * P * P)
    x = pallas_linear(patches, vp["conv_w"])
    x = x.reshape(N, Gh * Gw, width)
    cls = jnp.broadcast_to(vp["class_emb"].reshape(1, 1, width), (N, 1, width))
    x = jnp.concatenate([cls, x], axis=1)
    # fused (x + pos_emb) -> ln_pre
    x = pallas_layernorm_add(x, vp["pos_emb"], vp["ln_pre_g"], vp["ln_pre_b"])
    for blk in vp["blocks"]:
        x = residual_block(x, blk, vp["heads"], causal=False)   # no mask for vision
    cls_tok = x[:, 0, :]
    # ln_post + (bias-free) projection fused in one kernel
    return pallas_linear(cls_tok, vp["proj"], ln=(vp["ln_post_g"], vp["ln_post_b"]))


def text_encoder(prompts, tokenized_prompts, tp):
    x = prompts.astype(ACT_DTYPE) + tp["pos_emb"][None]
    for blk in tp["blocks"]:
        x = residual_block(x, blk, tp["heads"], causal=True)
    eot = jnp.argmax(tokenized_prompts, axis=-1)        # EOT token position
    x_eot = x[jnp.arange(x.shape[0]), eot]              # (n_cls, ctx_dim)
    # ln_final + text projection + L2 normalize fused (LayerNorm is row-wise,
    # so selecting the EOT row before ln_final matches the reference order).
    return pallas_linear(x_eot, tp["text_proj"],
                         ln=(tp["ln_final_g"], tp["ln_final_b"]), l2norm=True)


def vifi_clip_forward(image, params):
    """ViFiCLIP.forward with hyperformer_data=None -> (image_features, text_features)."""
    b, t, c, h, w = image.shape
    image_flat = image.reshape(b * t, c, h, w).astype(ACT_DTYPE)
    img = image_encoder(image_flat, params["visual"])           # (b*t, D)
    D = img.shape[-1]
    image_features = pallas_mean_l2norm(img.reshape(b, t, D))   # mean over t + L2

    prompts = params["complete_text_embeddings"]                # prompt_learner()
    text_features = text_encoder(prompts, params["tokenized_prompts"],
                                 params["text"])
    # The reference forward computes image_text_logits but does not return it on
    # the hyperformer_data=None path, so it is omitted here as well.
    return image_features, text_features


# ----------------------------------------------------------------------------
# Deterministic synthetic parameter initialization
# ----------------------------------------------------------------------------

def init_block(key, width, std=0.02):
    ks = jax.random.split(key, 6)
    f32, wd = jnp.float32, MXU_DTYPE
    return dict(
        ln1_g=jnp.ones((width,), f32), ln1_b=jnp.zeros((width,), f32),
        wq=(jax.random.normal(ks[0], (width, width)) * std).astype(wd),
        wk=(jax.random.normal(ks[1], (width, width)) * std).astype(wd),
        wv=(jax.random.normal(ks[2], (width, width)) * std).astype(wd),
        bq=jnp.zeros((width,), f32),
        bk=jnp.zeros((width,), f32),
        bv=jnp.zeros((width,), f32),
        out_w=(jax.random.normal(ks[3], (width, width)) * std).astype(wd),
        out_b=jnp.zeros((width,), f32),
        ln2_g=jnp.ones((width,), f32), ln2_b=jnp.zeros((width,), f32),
        fc1_w=(jax.random.normal(ks[4], (width, 4 * width)) * std).astype(wd),
        fc1_b=jnp.zeros((4 * width,), f32),
        fc2_w=(jax.random.normal(ks[5], (4 * width, width)) * std).astype(wd),
        fc2_b=jnp.zeros((width,), f32),
    )


def init_params(key, *, c, h, w, patch, v_width, v_heads, v_layers,
                n_cls, ctx_len, t_width, t_heads, t_layers, embed_dim):
    f32, wd = jnp.float32, MXU_DTYPE
    keys = jax.random.split(key, 10)
    Gh, Gw = h // patch, w // patch
    v_seq = 1 + Gh * Gw

    visual = dict(
        patch_size=patch, width=v_width, heads=v_heads,
        conv_w=(jax.random.normal(keys[0], (c * patch * patch, v_width)) * 0.02).astype(wd),
        class_emb=(jax.random.normal(keys[1], (v_width,)) * 0.02).astype(f32),
        pos_emb=(jax.random.normal(keys[2], (v_seq, v_width)) * 0.02).astype(f32),
        ln_pre_g=jnp.ones((v_width,), f32), ln_pre_b=jnp.zeros((v_width,), f32),
        ln_post_g=jnp.ones((v_width,), f32), ln_post_b=jnp.zeros((v_width,), f32),
        proj=(jax.random.normal(keys[3], (v_width, embed_dim)) * 0.02).astype(wd),
        blocks=[init_block(kk, v_width) for kk in jax.random.split(keys[4], v_layers)],
    )

    text = dict(
        heads=t_heads,
        pos_emb=(jax.random.normal(keys[5], (ctx_len, t_width)) * 0.02).astype(f32),
        ln_final_g=jnp.ones((t_width,), f32), ln_final_b=jnp.zeros((t_width,), f32),
        text_proj=(jax.random.normal(keys[6], (t_width, embed_dim)) * 0.02).astype(wd),
        blocks=[init_block(kk, t_width) for kk in jax.random.split(keys[7], t_layers)],
    )

    # prompt_learner buffers: complete_text_embeddings + tokenized_prompts
    complete_text_embeddings = (jax.random.normal(
        keys[8], (n_cls, ctx_len, t_width)) * 0.02).astype(f32)
    tok = jnp.zeros((n_cls, ctx_len), jnp.int32)
    tok = tok.at[:, 0].set(1)
    eot_positions = jnp.array([3, 4, 5], jnp.int32)[:n_cls]
    tok = tok.at[jnp.arange(n_cls), eot_positions].set(400)

    return dict(visual=visual, text=text,
                complete_text_embeddings=complete_text_embeddings,
                tokenized_prompts=tok)


# ----------------------------------------------------------------------------
# Main
# ----------------------------------------------------------------------------

if __name__ == "__main__":
    key = jax.random.PRNGKey(0)
    k_img, k_par = jax.random.split(key)

    # Small shapes consistent with the forward: image (b, t, c, h, w)
    b, t, c, h, w = 2, 2, 3, 16, 16
    patch = 8
    n_cls, ctx_len = 3, 8
    embed_dim = 32

    params = init_params(
        k_par, c=c, h=h, w=w, patch=patch,
        v_width=32, v_heads=4, v_layers=2,
        n_cls=n_cls, ctx_len=ctx_len, t_width=32, t_heads=4, t_layers=2,
        embed_dim=embed_dim,
    )

    image = jax.random.normal(k_img, (b, t, c, h, w), dtype=jnp.float32)

    forward = jax.jit(lambda img: vifi_clip_forward(img, params))
    image_features, text_features = forward(image)
    jax.block_until_ready((image_features, text_features))

    assert image_features.shape == (b, embed_dim)
    assert text_features.shape == (n_cls, embed_dim)
    assert bool(jnp.all(jnp.isfinite(image_features)))
    assert bool(jnp.all(jnp.isfinite(text_features)))
    print("KERNEL_OK")
</pallas_src>

<mosaic_0001>
module attributes {stable_mosaic.version = 11 : i64} {
  func.func @_linear_kernel(%arg0: i32, %arg1: i32, %arg2: i32, %arg3: memref<16x192xf32, #tpu.memory_space<vmem>>, %arg4: memref<192x32xbf16, #tpu.memory_space<vmem>>, %arg5: memref<16x32xf32, #tpu.memory_space<vmem>>, %arg6: memref<16x32xf32, #tpu.memory_space<vmem>>) attributes {dimension_semantics = [#tpu.dimension_semantics<parallel>, #tpu.dimension_semantics<parallel>, #tpu.dimension_semantics<arbitrary>], iteration_bounds = array<i64: 1, 1, 1>, scalar_prefetch = 0 : i64, scratch_operands = 1 : i64, tpu.core_type = #tpu.core_type<tc>, window_params = [{transform_indices = @transform_0, window_bounds = array<i64: 16, 192>}, {transform_indices = @transform_1, window_bounds = array<i64: 192, 32>}, {transform_indices = @transform_2, window_bounds = array<i64: 16, 32>}]} {
    %c0 = arith.constant 0 : index
    %c0_0 = arith.constant 0 : index
    %0 = vector.load %arg3[%c0, %c0_0] : memref<16x192xf32, #tpu.memory_space<vmem>>, vector<16x192xf32>
    %c0_i32 = arith.constant 0 : i32
    %1 = arith.cmpi eq, %arg2, %c0_i32 : i32
    %2 = arith.extui %1 : i1 to i32
    %c0_i32_1 = arith.constant 0 : i32
    %3 = arith.cmpi ne, %2, %c0_i32_1 : i32
    scf.if %3 {
      %cst_10 = arith.constant 0.000000e+00 : f32
      %13 = vector.broadcast %cst_10 : f32 to vector<16x32xf32>
      %c0_11 = arith.constant 0 : index
      %c0_12 = arith.constant 0 : index
      %14 = vector.load %arg6[%c0_11, %c0_12] : memref<16x32xf32, #tpu.memory_space<vmem>>, vector<16x32xf32>
      tpu.vector_store %arg6[%c0_11, %c0_12], %13 {strides = array<i32>} : memref<16x32xf32, #tpu.memory_space<vmem>>, vector<16x32xf32>,
    } else {
    }
    %c0_2 = arith.constant 0 : index
    %c0_3 = arith.constant 0 : index
    %4 = vector.load %arg6[%c0_2, %c0_3] : memref<16x32xf32, #tpu.memory_space<vmem>>, vector<16x32xf32>
    %5 = arith.truncf %0 : vector<16x192xf32> to vector<16x192xbf16>
    %c0_4 = arith.constant 0 : index
    %c0_5 = arith.constant 0 : index
    %6 = vector.load %arg4[%c0_4, %c0_5] : memref<192x32xbf16, #tpu.memory_space<vmem>>, vector<192x32xbf16>
    %cst = arith.constant dense<0.000000e+00> : vector<16x32xf32>
    %7 = tpu.matmul %5, %6, %cst {dimension_numbers = #tpu.dot_dimension_numbers<[1], [0], [0], [1], [0, 0, 1, 1], [], []>} : vector<16x192xbf16>, vector<192x32xbf16>, vector<16x32xf32> -> vector<16x32xf32>
    %8 = arith.addf %4, %7 : vector<16x32xf32>
    %c0_6 = arith.constant 0 : index
    %c0_7 = arith.constant 0 : index
    %9 = vector.load %arg6[%c0_6, %c0_7] : memref<16x32xf32, #tpu.memory_space<vmem>>, vector<16x32xf32>
    tpu.vector_store %arg6[%c0_6, %c0_7], %8 {strides = array<i32>} : memref<16x32xf32, #tpu.memory_space<vmem>>, vector<16x32xf32>,
    %c0_i32_8 = arith.constant 0 : i32
    %10 = arith.cmpi eq, %arg2, %c0_i32_8 : i32
    %11 = arith.extui %10 : i1 to i32
    %c0_i32_9 = arith.constant 0 : i32
    %12 = arith.cmpi ne, %11, %c0_i32_9 : i32
    scf.if %12 {
      %c0_10 = arith.constant 0 : index
      %c0_11 = arith.constant 0 : index
      %13 = vector.load %arg6[%c0_10, %c0_11] : memref<16x32xf32, #tpu.memory_space<vmem>>, vector<16x32xf32>
      %c0_12 = arith.constant 0 : index
      %c0_13 = arith.constant 0 : index
      %14 = vector.load %arg5[%c0_12, %c0_13] : memref<16x32xf32, #tpu.memory_space<vmem>>, vector<16x32xf32>
      tpu.vector_store %arg5[%c0_12, %c0_13], %13 {strides = array<i32>} : memref<16x32xf32, #tpu.memory_space<vmem>>, vector<16x32xf32>,
    } else {
    }
    return
  }
  func.func @transform_0(%arg0: i32, %arg1: i32, %arg2: i32) -> (i32, i32) {
    %c0_i32 = arith.constant 0 : i32
    return %arg0, %arg2 : i32, i32
  }
  func.func @transform_1(%arg0: i32, %arg1: i32, %arg2: i32) -> (i32, i32) {
    %c0_i32 = arith.constant 0 : i32
    return %arg2, %arg1 : i32, i32
  }
  func.func @transform_2(%arg0: i32, %arg1: i32, %arg2: i32) -> (i32, i32) {
    %c0_i32 = arith.constant 0 : i32
    return %arg0, %arg1 : i32, i32
  }
}

module attributes {stable_mosaic.version = 11 : i64} {
  func.func @_ln_add_kernel(%arg0: i32, %arg1: memref<1x5x32xf32, #tpu.memory_space<vmem>>, %arg2: memref<5x32xf32, #tpu.memory_space<vmem>>, %arg3: memref<1x32xf32, #tpu.memory_space<vmem>>, %arg4: memref<1x32xf32, #tpu.memory_space<vmem>>, %arg5: memref<1x5x32xf32, #tpu.memory_space<vmem>>) attributes {dimension_semantics = [#tpu.dimension_semantics<parallel>], iteration_bounds = array<i64: 4>, scalar_prefetch = 0 : i64, scratch_operands = 0 : i64, tpu.core_type = #tpu.core_type<tc>, window_params = [{transform_indices = @transform_0, window_bounds = array<i64: 1, 5, 32>}, {pipeline_mode = #tpu.pipeline_mode<synchronous>, transform_indices = @transform_1, window_bounds = array<i64: 5, 32>}, {pipeline_mode = #tpu.pipeline_mode<synchronous>, transform_indices = @transform_2, window_bounds = array<i64: 1, 32>}, {pipeline_mode = #tpu.pipeline_mode<synchronous>, transform_indices = @transform_3, window_bounds = array<i64: 1, 32>}, {transform_indices = @transform_4, window_bounds = array<i64: 1, 5, 32>}]} {
    %c0 = arith.constant 0 : index
    %c0_0 = arith.constant 0 : index
    %c0_1 = arith.constant 0 : index
    %0 = vector.load %arg1[%c0, %c0_0, %c0_1] : memref<1x5x32xf32, #tpu.memory_space<vmem>>, vector<1x5x32xf32>
    %1 = vector.shape_cast %0 : vector<1x5x32xf32> to vector<5x32xf32>
    %c0_2 = arith.constant 0 : index
    %c0_3 = arith.constant 0 : index
    %2 = vector.load %arg2[%c0_2, %c0_3] : memref<5x32xf32, #tpu.memory_space<vmem>>, vector<5x32xf32>
    %3 = arith.addf %1, %2 : vector<5x32xf32>
    %c0_4 = arith.constant 0 : index
    %c0_5 = arith.constant 0 : index
    %4 = vector.load %arg3[%c0_4, %c0_5] : memref<1x32xf32, #tpu.memory_space<vmem>>, vector<1x32xf32>
    %c0_6 = arith.constant 0 : index
    %c0_7 = arith.constant 0 : index
    %5 = vector.load %arg4[%c0_6, %c0_7] : memref<1x32xf32, #tpu.memory_space<vmem>>, vector<1x32xf32>
    %cst = arith.constant dense<0.000000e+00> : vector<5xf32>
    %6 = vector.multi_reduction <add>, %3, %cst [1] : vector<5x32xf32> to vector<5xf32>
    %7 = vector.shape_cast %6 : vector<5xf32> to vector<5x1xf32>
    %cst_8 = arith.constant 3.200000e+01 : f32
    %8 = vector.broadcast %cst_8 : f32 to vector<5x1xf32>
    %9 = arith.divf %7, %8 : vector<5x1xf32>
    %10 = vector.broadcast %9 : vector<5x1xf32> to vector<5x32xf32>
    %11 = arith.subf %3, %10 : vector<5x32xf32>
    %12 = arith.mulf %11, %11 : vector<5x32xf32>
    %cst_9 = arith.constant dense<0.000000e+00> : vector<5xf32>
    %13 = vector.multi_reduction <add>, %12, %cst_9 [1] : vector<5x32xf32> to vector<5xf32>
    %14 = vector.shape_cast %13 : vector<5xf32> to vector<5x1xf32>
    %cst_10 = arith.constant 3.200000e+01 : f32
    %15 = vector.broadcast %cst_10 : f32 to vector<5x1xf32>
    %16 = arith.divf %14, %15 : vector<5x1xf32>
    %17 = vector.broadcast %9 : vector<5x1xf32> to vector<5x32xf32>
    %18 = arith.subf %3, %17 : vector<5x32xf32>
    %cst_11 = arith.constant 9.99999974E-6 : f32
    %19 = vector.broadcast %cst_11 : f32 to vector<5x1xf32>
    %20 = arith.addf %16, %19 : vector<5x1xf32>
    %21 = math.rsqrt %20 : vector<5x1xf32>
    %22 = vector.broadcast %21 : vector<5x1xf32> to vector<5x32xf32>
    %23 = arith.mulf %18, %22 : vector<5x32xf32>
    %24 = vector.broadcast %4 : vector<1x32xf32> to vector<5x32xf32>
    %25 = arith.mulf %23, %24 : vector<5x32xf32>
    %26 = vector.broadcast %5 : vector<1x32xf32> to vector<5x32xf32>
    %27 = arith.addf %25, %26 : vector<5x32xf32>
    %c0_12 = arith.constant 0 : index
    %c0_13 = arith.constant 0 : index
    %c0_14 = arith.constant 0 : index
    %28 = vector.load %arg5[%c0_12, %c0_13, %c0_14] : memref<1x5x32xf32, #tpu.memory_space<vmem>>, vector<1x5x32xf32>
    %29 = vector.shape_cast %28 : vector<1x5x32xf32> to vector<5x32xf32>
    %30 = vector.shape_cast %27 : vector<5x32xf32> to vector<1x5x32xf32>
    tpu.vector_store %arg5[%c0_12, %c0_13, %c0_14], %30 {strides = array<i32>} : memref<1x5x32xf32, #tpu.memory_space<vmem>>, vector<1x5x32xf32>,
    return
  }
  func.func @transform_0(%arg0: i32) -> (i32, i32, i32) {
    %c0_i32 = arith.constant 0 : i32
    %c0_i32_0 = arith.constant 0 : i32
    %c0_i32_1 = arith.constant 0 : i32
    return %arg0, %c0_i32, %c0_i32_0 : i32, i32, i32
  }
  func.func @transform_1(%arg0: i32) -> (i32, i32) {
    %c0_i32 = arith.constant 0 : i32
    %c0_i32_0 = arith.constant 0 : i32
    %c0_i32_1 = arith.constant 0 : i32
    return %c0_i32, %c0_i32_0 : i32, i32
  }
  func.func @transform_2(%arg0: i32) -> (i32, i32) {
    %c0_i32 = arith.constant 0 : i32
    %c0_i32_0 = arith.constant 0 : i32
    %c0_i32_1 = arith.constant 0 : i32
    return %c0_i32, %c0_i32_0 : i32, i32
  }
  func.func @transform_3(%arg0: i32) -> (i32, i32) {
    %c0_i32 = arith.constant 0 : i32
    %c0_i32_0 = arith.constant 0 : i32
    %c0_i32_1 = arith.constant 0 : i32
    return %c0_i32, %c0_i32_0 : i32, i32
  }
  func.func @transform_4(%arg0: i32) -> (i32, i32, i32) {
    %c0_i32 = arith.constant 0 : i32
    %c0_i32_0 = arith.constant 0 : i32
    %c0_i32_1 = arith.constant 0 : i32
    return %arg0, %c0_i32, %c0_i32_0 : i32, i32, i32
  }
}

module attributes {stable_mosaic.version = 11 : i64} {
  func.func @_linear_kernel(%arg0: i32, %arg1: i32, %arg2: i32, %arg3: memref<20x32xbf16, #tpu.memory_space<vmem>>, %arg4: memref<32x32xbf16, #tpu.memory_space<vmem>>, %arg5: memref<1x32xf32, #tpu.memory_space<vmem>>, %arg6: memref<20x32xf32, #tpu.memory_space<vmem>>, %arg7: memref<20x32xf32, #tpu.memory_space<vmem>>, %arg8: memref<20x32xf32, #tpu.memory_space<vmem>>) attributes {dimension_semantics = [#tpu.dimension_semantics<parallel>, #tpu.dimension_semantics<parallel>, #tpu.dimension_semantics<arbitrary>], iteration_bounds = array<i64: 1, 1, 1>, scalar_prefetch = 0 : i64, scratch_operands = 1 : i64, tpu.core_type = #tpu.core_type<tc>, window_params = [{transform_indices = @transform_0, window_bounds = array<i64: 20, 32>}, {transform_indices = @transform_1, window_bounds = array<i64: 32, 32>}, {transform_indices = @transform_2, window_bounds = array<i64: 1, 32>}, {transform_indices = @transform_3, window_bounds = array<i64: 20, 32>}, {transform_indices = @transform_4, window_bounds = array<i64: 20, 32>}]} {
    %c0 = arith.constant 0 : index
    %c0_0 = arith.constant 0 : index
    %0 = vector.load %arg3[%c0, %c0_0] : memref<20x32xbf16, #tpu.memory_space<vmem>>, vector<20x32xbf16>
    %c0_i32 = arith.constant 0 : i32
    %1 = arith.cmpi eq, %arg2, %c0_i32 : i32
    %2 = arith.extui %1 : i1 to i32
    %c0_i32_1 = arith.constant 0 : i32
    %3 = arith.cmpi ne, %2, %c0_i32_1 : i32
    scf.if %3 {
      %cst_10 = arith.constant 0.000000e+00 : f32
      %12 = vector.broadcast %cst_10 : f32 to vector<20x32xf32>
      %c0_11 = arith.constant 0 : index
      %c0_12 = arith.constant 0 : index
      %13 = vector.load %arg8[%c0_11, %c0_12] : memref<20x32xf32, #tpu.memory_space<vmem>>, vector<20x32xf32>
      tpu.vector_store %arg8[%c0_11, %c0_12], %12 {strides = array<i32>} : memref<20x32xf32, #tpu.memory_space<vmem>>, vector<20x32xf32>,
    } else {
    }
    %c0_2 = arith.constant 0 : index
    %c0_3 = arith.constant 0 : index
    %4 = vector.load %arg8[%c0_2, %c0_3] : memref<20x32xf32, #tpu.memory_space<vmem>>, vector<20x32xf32>
    %c0_4 = arith.constant 0 : index
    %c0_5 = arith.constant 0 : index
    %5 = vector.load %arg4[%c0_4, %c0_5] : memref<32x32xbf16, #tpu.memory_space<vmem>>, vector<32x32xbf16>
    %cst = arith.constant dense<0.000000e+00> : vector<20x32xf32>
    %6 = tpu.matmul %0, %5, %cst {dimension_numbers = #tpu.dot_dimension_numbers<[1], [0], [0], [1], [0, 0, 1, 1], [], []>} : vector<20x32xbf16>, vector<32x32xbf16>, vector<20x32xf32> -> vector<20x32xf32>
    %7 = arith.addf %4, %6 : vector<20x32xf32>
    %c0_6 = arith.constant 0 : index
    %c0_7 = arith.constant 0 : index
    %8 = vector.load %arg8[%c0_6, %c0_7] : memref<20x32xf32, #tpu.memory_space<vmem>>, vector<20x32xf32>
    tpu.vector_store %arg8[%c0_6, %c0_7], %7 {strides = array<i32>} : memref<20x32xf32, #tpu.memory_space<vmem>>, vector<20x32xf32>,
    %c0_i32_8 = arith.constant 0 : i32
    %9 = arith.cmpi eq, %arg2, %c0_i32_8 : i32
    %10 = arith.extui %9 : i1 to i32
    %c0_i32_9 = arith.constant 0 : i32
    %11 = arith.cmpi ne, %10, %c0_i32_9 : i32
    scf.if %11 {
      %c0_10 = arith.constant 0 : index
      %c0_11 = arith.constant 0 : index
      %12 = vector.load %arg8[%c0_10, %c0_11] : memref<20x32xf32, #tpu.memory_space<vmem>>, vector<20x32xf32>
      %c0_12 = arith.constant 0 : index
      %c0_13 = arith.constant 0 : index
      %13 = vector.load %arg5[%c0_12, %c0_13] : memref<1x32xf32, #tpu.memory_space<vmem>>, vector<1x32xf32>
      %14 = vector.broadcast %13 : vector<1x32xf32> to vector<20x32xf32>
      %15 = arith.addf %12, %14 : vector<20x32xf32>
      %c0_14 = arith.constant 0 : index
      %c0_15 = arith.constant 0 : index
      %16 = vector.load %arg6[%c0_14, %c0_15] : memref<20x32xf32, #tpu.memory_space<vmem>>, vector<20x32xf32>
      %17 = arith.addf %15, %16 : vector<20x32xf32>
      %c0_16 = arith.constant 0 : index
      %c0_17 = arith.constant 0 : index
      %18 = vector.load %arg7[%c0_16, %c0_17] : memref<20x32xf32, #tpu.memory_space<vmem>>, vector<20x32xf32>
      tpu.vector_store %arg7[%c0_16, %c0_17], %17 {strides = array<i32>} : memref<20x32xf32, #tpu.memory_space<vmem>>, vector<20x32xf32>,
    } else {
    }
    return
  }
  func.func @transform_0(%arg0: i32, %arg1: i32, %arg2: i32) -> (i32, i32) {
    %c0_i32 = arith.constant 0 : i32
    return %arg0, %arg2 : i32, i32
  }
  func.func @transform_1(%arg0: i32, %arg1: i32, %arg2: i32) -> (i32, i32) {
    %c0_i32 = arith.constant 0 : i32
    return %arg2, %arg1 : i32, i32
  }
  func.func @transform_2(%arg0: i32, %arg1: i32, %arg2: i32) -> (i32, i32) {
    %c0_i32 = arith.constant 0 : i32
    %c0_i32_0 = arith.constant 0 : i32
    return %c0_i32, %arg1 : i32, i32
  }
  func.func @transform_3(%arg0: i32, %arg1: i32, %arg2: i32) -> (i32, i32) {
    %c0_i32 = arith.constant 0 : i32
    return %arg0, %arg1 : i32, i32
  }
  func.func @transform_4(%arg0: i32, %arg1: i32, %arg2: i32) -> (i32, i32) {
    %c0_i32 = arith.constant 0 : i32
    return %arg0, %arg1 : i32, i32
  }
}

module attributes {stable_mosaic.version = 11 : i64} {
  func.func @_ln_qkv_kernel(%arg0: i32, %arg1: i32, %arg2: memref<20x32xf32, #tpu.memory_space<vmem>>, %arg3: memref<1x32xf32, #tpu.memory_space<vmem>>, %arg4: memref<1x32xf32, #tpu.memory_space<vmem>>, %arg5: memref<32x32xbf16, #tpu.memory_space<vmem>>, %arg6: memref<32x32xbf16, #tpu.memory_space<vmem>>, %arg7: memref<32x32xbf16, #tpu.memory_space<vmem>>, %arg8: memref<1x32xf32, #tpu.memory_space<vmem>>, %arg9: memref<1x32xf32, #tpu.memory_space<vmem>>, %arg10: memref<1x32xf32, #tpu.memory_space<vmem>>, %arg11: memref<20x32xbf16, #tpu.memory_space<vmem>>, %arg12: memref<20x32xbf16, #tpu.memory_space<vmem>>, %arg13: memref<20x32xbf16, #tpu.memory_space<vmem>>) attributes {dimension_semantics = [#tpu.dimension_semantics<parallel>, #tpu.dimension_semantics<parallel>], iteration_bounds = array<i64: 1, 1>, scalar_prefetch = 0 : i64, scratch_operands = 0 : i64, tpu.core_type = #tpu.core_type<tc>, window_params = [{transform_indices = @transform_0, window_bounds = array<i64: 20, 32>}, {pipeline_mode = #tpu.pipeline_mode<synchronous>, transform_indices = @transform_1, window_bounds = array<i64: 1, 32>}, {pipeline_mode = #tpu.pipeline_mode<synchronous>, transform_indices = @transform_2, window_bounds = array<i64: 1, 32>}, {transform_indices = @transform_3, window_bounds = array<i64: 32, 32>}, {transform_indices = @transform_4, window_bounds = array<i64: 32, 32>}, {transform_indices = @transform_5, window_bounds = array<i64: 32, 32>}, {transform_indices = @transform_6, window_bounds = array<i64: 1, 32>}, {transform_indices = @transform_7, window_bounds = array<i64: 1, 32>}, {transform_indices = @transform_8, window_bounds = array<i64: 1, 32>}, {transform_indices = @transform_9, window_bounds = array<i64: 20, 32>}, {transform_indices = @transform_10, window_bounds = array<i64: 20, 32>}, {transform_indices = @transform_11, window_bounds = array<i64: 20, 32>}]} {
    %c0 = arith.constant 0 : index
    %c0_0 = arith.constant 0 : index
    %0 = vector.load %arg2[%c0, %c0_0] : memref<20x32xf32, #tpu.memory_space<vmem>>, vector<20x32xf32>
    %c0_1 = arith.constant 0 : index
    %c0_2 = arith.constant 0 : index
    %1 = vector.load %arg3[%c0_1, %c0_2] : memref<1x32xf32, #tpu.memory_space<vmem>>, vector<1x32xf32>
    %c0_3 = arith.constant 0 : index
    %c0_4 = arith.constant 0 : index
    %2 = vector.load %arg4[%c0_3, %c0_4] : memref<1x32xf32, #tpu.memory_space<vmem>>, vector<1x32xf32>
    %cst = arith.constant dense<0.000000e+00> : vector<20xf32>
    %3 = vector.multi_reduction <add>, %0, %cst [1] : vector<20x32xf32> to vector<20xf32>
    %4 = vector.shape_cast %3 : vector<20xf32> to vector<20x1xf32>
    %cst_5 = arith.constant 3.200000e+01 : f32
    %5 = vector.broadcast %cst_5 : f32 to vector<20x1xf32>
    %6 = arith.divf %4, %5 : vector<20x1xf32>
    %7 = vector.broadcast %6 : vector<20x1xf32> to vector<20x32xf32>
    %8 = arith.subf %0, %7 : vector<20x32xf32>
    %9 = arith.mulf %8, %8 : vector<20x32xf32>
    %cst_6 = arith.constant dense<0.000000e+00> : vector<20xf32>
    %10 = vector.multi_reduction <add>, %9, %cst_6 [1] : vector<20x32xf32> to vector<20xf32>
    %11 = vector.shape_cast %10 : vector<20xf32> to vector<20x1xf32>
    %cst_7 = arith.constant 3.200000e+01 : f32
    %12 = vector.broadcast %cst_7 : f32 to vector<20x1xf32>
    %13 = arith.divf %11, %12 : vector<20x1xf32>
    %14 = vector.broadcast %6 : vector<20x1xf32> to vector<20x32xf32>
    %15 = arith.subf %0, %14 : vector<20x32xf32>
    %cst_8 = arith.constant 9.99999974E-6 : f32
    %16 = vector.broadcast %cst_8 : f32 to vector<20x1xf32>
    %17 = arith.addf %13, %16 : vector<20x1xf32>
    %18 = math.rsqrt %17 : vector<20x1xf32>
    %19 = vector.broadcast %18 : vector<20x1xf32> to vector<20x32xf32>
    %20 = arith.mulf %15, %19 : vector<20x32xf32>
    %21 = vector.broadcast %1 : vector<1x32xf32> to vector<20x32xf32>
    %22 = arith.mulf %20, %21 : vector<20x32xf32>
    %23 = vector.broadcast %2 : vector<1x32xf32> to vector<20x32xf32>
    %24 = arith.addf %22, %23 : vector<20x32xf32>
    %25 = arith.truncf %24 : vector<20x32xf32> to vector<20x32xbf16>
    %c0_9 = arith.constant 0 : index
    %c0_10 = arith.constant 0 : index
    %26 = vector.load %arg5[%c0_9, %c0_10] : memref<32x32xbf16, #tpu.memory_space<vmem>>, vector<32x32xbf16>
    %cst_11 = arith.constant dense<0.000000e+00> : vector<20x32xf32>
    %27 = tpu.matmul %25, %26, %cst_11 {dimension_numbers = #tpu.dot_dimension_numbers<[1], [0], [0], [1], [0, 0, 1, 1], [], []>} : vector<20x32xbf16>, vector<32x32xbf16>, vector<20x32xf32> -> vector<20x32xf32>
    %c0_12 = arith.constant 0 : index
    %c0_13 = arith.constant 0 : index
    %28 = vector.load %arg8[%c0_12, %c0_13] : memref<1x32xf32, #tpu.memory_space<vmem>>, vector<1x32xf32>
    %29 = vector.broadcast %28 : vector<1x32xf32> to vector<20x32xf32>
    %30 = arith.addf %27, %29 : vector<20x32xf32>
    %31 = arith.truncf %30 : vector<20x32xf32> to vector<20x32xbf16>
    %c0_14 = arith.constant 0 : index
    %c0_15 = arith.constant 0 : index
    %32 = vector.load %arg11[%c0_14, %c0_15] : memref<20x32xbf16, #tpu.memory_space<vmem>>, vector<20x32xbf16>
    tpu.vector_store %arg11[%c0_14, %c0_15], %31 {strides = array<i32>} : memref<20x32xbf16, #tpu.memory_space<vmem>>, vector<20x32xbf16>,
    %c0_16 = arith.constant 0 : index
    %c0_17 = arith.constant 0 : index
    %33 = vector.load %arg6[%c0_16, %c0_17] : memref<32x32xbf16, #tpu.memory_space<vmem>>, vector<32x32xbf16>
    %cst_18 = arith.constant dense<0.000000e+00> : vector<20x32xf32>
    %34 = tpu.matmul %25, %33, %cst_18 {dimension_numbers = #tpu.dot_dimension_numbers<[1], [0], [0], [1], [0, 0, 1, 1], [], []>} : vector<20x32xbf16>, vector<32x32xbf16>, vector<20x32xf32> -> vector<20x32xf32>
    %c0_19 = arith.constant 0 : index
    %c0_20 = arith.constant 0 : index
    %35 = vector.load %arg9[%c0_19, %c0_20] : memref<1x32xf32, #tpu.memory_space<vmem>>, vector<1x32xf32>
    %36 = vector.broadcast %35 : vector<1x32xf32> to vector<20x32xf32>
    %37 = arith.addf %34, %36 : vector<20x32xf32>
    %38 = arith.truncf %37 : vector<20x32xf32> to vector<20x32xbf16>
    %c0_21 = arith.constant 0 : index
    %c0_22 = arith.constant 0 : index
    %39 = vector.load %arg12[%c0_21, %c0_22] : memref<20x32xbf16, #tpu.memory_space<vmem>>, vector<20x32xbf16>
    tpu.vector_store %arg12[%c0_21, %c0_22], %38 {strides = array<i32>} : memref<20x32xbf16, #tpu.memory_space<vmem>>, vector<20x32xbf16>,
    %c0_23 = arith.constant 0 : index
    %c0_24 = arith.constant 0 : index
    %40 = vector.load %arg7[%c0_23, %c0_24] : memref<32x32xbf16, #tpu.memory_space<vmem>>, vector<32x32xbf16>
    %cst_25 = arith.constant dense<0.000000e+00> : vector<20x32xf32>
    %41 = tpu.matmul %25, %40, %cst_25 {dimension_numbers = #tpu.dot_dimension_numbers<[1], [0], [0], [1], [0, 0, 1, 1], [], []>} : vector<20x32xbf16>, vector<32x32xbf16>, vector<20x32xf32> -> vector<20x32xf32>
    %c0_26 = arith.constant 0 : index
    %c0_27 = arith.constant 0 : index
    %42 = vector.load %arg10[%c0_26, %c0_27] : memref<1x32xf32, #tpu.memory_space<vmem>>, vector<1x32xf32>
    %43 = vector.broadcast %42 : vector<1x32xf32> to vector<20x32xf32>
    %44 = arith.addf %41, %43 : vector<20x32xf32>
    %45 = arith.truncf %44 : vector<20x32xf32> to vector<20x32xbf16>
    %c0_28 = arith.constant 0 : index
    %c0_29 = arith.constant 0 : index
    %46 = vector.load %arg13[%c0_28, %c0_29] : memref<20x32xbf16, #tpu.memory_space<vmem>>, vector<20x32xbf16>
    tpu.vector_store %arg13[%c0_28, %c0_29], %45 {strides = array<i32>} : memref<20x32xbf16, #tpu.memory_space<vmem>>, vector<20x32xbf16>,
    return
  }
  func.func @transform_0(%arg0: i32, %arg1: i32) -> (i32, i32) {
    %c0_i32 = arith.constant 0 : i32
    %c0_i32_0 = arith.constant 0 : i32
    return %arg0, %c0_i32 : i32, i32
  }
  func.func @transform_1(%arg0: i32, %arg1: i32) -> (i32, i32) {
    %c0_i32 = arith.constant 0 : i32
    %c0_i32_0 = arith.constant 0 : i32
    %c0_i32_1 = arith.constant 0 : i32
    return %c0_i32, %c0_i32_0 : i32, i32
  }
  func.func @transform_2(%arg0: i32, %arg1: i32) -> (i32, i32) {
    %c0_i32 = arith.constant 0 : i32
    %c0_i32_0 = arith.constant 0 : i32
    %c0_i32_1 = arith.constant 0 : i32
    return %c0_i32, %c0_i32_0 : i32, i32
  }
  func.func @transform_3(%arg0: i32, %arg1: i32) -> (i32, i32) {
    %c0_i32 = arith.constant 0 : i32
    %c0_i32_0 = arith.constant 0 : i32
    return %c0_i32, %arg1 : i32, i32
  }
  func.func @transform_4(%arg0: i32, %arg1: i32) -> (i32, i32) {
    %c0_i32 = arith.constant 0 : i32
    %c0_i32_0 = arith.constant 0 : i32
    return %c0_i32, %arg1 : i32, i32
  }
  func.func @transform_5(%arg0: i32, %arg1: i32) -> (i32, i32) {
    %c0_i32 = arith.constant 0 : i32
    %c0_i32_0 = arith.constant 0 : i32
    return %c0_i32, %arg1 : i32, i32
  }
  func.func @transform_6(%arg0: i32, %arg1: i32) -> (i32, i32) {
    %c0_i32 = arith.constant 0 : i32
    %c0_i32_0 = arith.constant 0 : i32
    return %c0_i32, %arg1 : i32, i32
  }
  func.func @transform_7(%arg0: i32, %arg1: i32) -> (i32, i32) {
    %c0_i32 = arith.constant 0 : i32
    %c0_i32_0 = arith.constant 0 : i32
    return %c0_i32, %arg1 : i32, i32
  }
  func.func @transform_8(%arg0: i32, %arg1: i32) -> (i32, i32) {
    %c0_i32 = arith.constant 0 : i32
    %c0_i32_0 = arith.constant 0 : i32
    return %c0_i32, %arg1 : i32, i32
  }
  func.func @transform_9(%arg0: i32, %arg1: i32) -> (i32, i32) {
    %c0_i32 = arith.constant 0 : i32
    return %arg0, %arg1 : i32, i32
  }
  func.func @transform_10(%arg0: i32, %arg1: i32) -> (i32, i32) {
    %c0_i32 = arith.constant 0 : i32
    return %arg0, %arg1 : i32, i32
  }
  func.func @transform_11(%arg0: i32, %arg1: i32) -> (i32, i32) {
    %c0_i32 = arith.constant 0 : i32
    return %arg0, %arg1 : i32, i32
  }
}

module attributes {stable_mosaic.version = 11 : i64} {
  func.func @_flash_attn_kernel(%arg0: i32, %arg1: i32, %arg2: i32, %arg3: memref<1x5x32xbf16, #tpu.memory_space<vmem>>, %arg4: memref<1x5x32xbf16, #tpu.memory_space<vmem>>, %arg5: memref<1x5x32xbf16, #tpu.memory_space<vmem>>, %arg6: memref<1x5x32xbf16, #tpu.memory_space<vmem>>, %arg7: memref<4x5x1xf32, #tpu.memory_space<vmem>>, %arg8: memref<4x5x1xf32, #tpu.memory_space<vmem>>, %arg9: memref<4x5x8xf32, #tpu.memory_space<vmem>>) attributes {dimension_semantics = [#tpu.dimension_semantics<parallel>, #tpu.dimension_semantics<parallel>, #tpu.dimension_semantics<arbitrary>], iteration_bounds = array<i64: 4, 1, 1>, scalar_prefetch = 0 : i64, scratch_operands = 3 : i64, tpu.core_type = #tpu.core_type<tc>, window_params = [{transform_indices = @transform_0, window_bounds = array<i64: 1, 5, 32>}, {transform_indices = @transform_1, window_bounds = array<i64: 1, 5, 32>}, {transform_indices = @transform_2, window_bounds = array<i64: 1, 5, 32>}, {transform_indices = @transform_3, window_bounds = array<i64: 1, 5, 32>}]} {
    %c0_i32 = arith.constant 0 : i32
    %0 = arith.cmpi eq, %arg2, %c0_i32 : i32
    %1 = arith.extui %0 : i1 to i32
    %c0_i32_0 = arith.constant 0 : i32
    %2 = arith.cmpi ne, %1, %c0_i32_0 : i32
    scf.if %2 {
      %cst_99 = arith.constant 0xFF800000 : f32
      %164 = vector.broadcast %cst_99 : f32 to vector<4x5x1xf32>
      %c0_100 = arith.constant 0 : index
      %c0_101 = arith.constant 0 : index
      %c0_102 = arith.constant 0 : index
      %165 = vector.load %arg7[%c0_100, %c0_101, %c0_102] : memref<4x5x1xf32, #tpu.memory_space<vmem>>, vector<4x5x1xf32>
      tpu.vector_store %arg7[%c0_100, %c0_101, %c0_102], %164 {strides = array<i32>} : memref<4x5x1xf32, #tpu.memory_space<vmem>>, vector<4x5x1xf32>,
      %cst_103 = arith.constant 0.000000e+00 : f32
      %166 = vector.broadcast %cst_103 : f32 to vector<4x5x1xf32>
      %c0_104 = arith.constant 0 : index
      %c0_105 = arith.constant 0 : index
      %c0_106 = arith.constant 0 : index
      %167 = vector.load %arg8[%c0_104, %c0_105, %c0_106] : memref<4x5x1xf32, #tpu.memory_space<vmem>>, vector<4x5x1xf32>
      tpu.vector_store %arg8[%c0_104, %c0_105, %c0_106], %166 {strides = array<i32>} : memref<4x5x1xf32, #tpu.memory_space<vmem>>, vector<4x5x1xf32>,
      %cst_107 = arith.constant 0.000000e+00 : f32
      %168 = vector.broadcast %cst_107 : f32 to vector<4x5x8xf32>
      %c0_108 = arith.constant 0 : index
      %c0_109 = arith.constant 0 : index
      %c0_110 = arith.constant 0 : index
      %169 = vector.load %arg9[%c0_108, %c0_109, %c0_110] : memref<4x5x8xf32, #tpu.memory_space<vmem>>, vector<4x5x8xf32>
      tpu.vector_store %arg9[%c0_108, %c0_109, %c0_110], %168 {strides = array<i32>} : memref<4x5x8xf32, #tpu.memory_space<vmem>>, vector<4x5x8xf32>,
    } else {
    }
    %c0 = arith.constant 0 : index
    %c0_1 = arith.constant 0 : index
    %c0_2 = arith.constant 0 : index
    %3 = vector.load %arg3[%c0, %c0_1, %c0_2] : memref<1x5x32xbf16, #tpu.memory_space<vmem>>, vector<1x5x32xbf16>
    %4 = vector.shape_cast %3 : vector<1x5x32xbf16> to vector<5x32xbf16>
    %c0_3 = arith.constant 0 : index
    %c0_4 = arith.constant 0 : index
    %c0_5 = arith.constant 0 : index
    %5 = vector.load %arg4[%c0_3, %c0_4, %c0_5] : memref<1x5x32xbf16, #tpu.memory_space<vmem>>, vector<1x5x32xbf16>
    %6 = vector.shape_cast %5 : vector<1x5x32xbf16> to vector<5x32xbf16>
    %c0_6 = arith.constant 0 : index
    %c0_7 = arith.constant 0 : index
    %c0_8 = arith.constant 0 : index
    %7 = vector.load %arg5[%c0_6, %c0_7, %c0_8] : memref<1x5x32xbf16, #tpu.memory_space<vmem>>, vector<1x5x32xbf16>
    %8 = vector.shape_cast %7 : vector<1x5x32xbf16> to vector<5x32xbf16>
    %9 = vector.extract_strided_slice %4 {offsets = [0, 0], sizes = [5, 8], strides = [1, 1]} : vector<5x32xbf16> to vector<5x8xbf16>
    %10 = vector.extract_strided_slice %6 {offsets = [0, 0], sizes = [5, 8], strides = [1, 1]} : vector<5x32xbf16> to vector<5x8xbf16>
    %11 = vector.extract_strided_slice %8 {offsets = [0, 0], sizes = [5, 8], strides = [1, 1]} : vector<5x32xbf16> to vector<5x8xbf16>
    "tpu.trace_start"() <{level = 10 : i32, message = "qd,kd->qk"}> : () -> ()
    %cst = arith.constant dense<0.000000e+00> : vector<5x5xf32>
    %12 = tpu.matmul %9, %10, %cst {dimension_numbers = #tpu.dot_dimension_numbers<[1], [1], [0], [0], [0, 0, 1, 0], [], []>} : vector<5x8xbf16>, vector<5x8xbf16>, vector<5x5xf32> -> vector<5x5xf32>
    "tpu.trace_stop"() : () -> ()
    %cst_9 = arith.constant 0.353553385 : f32
    %13 = vector.broadcast %cst_9 : f32 to vector<5x5xf32>
    %14 = arith.mulf %12, %13 : vector<5x5xf32>
    %c0_10 = arith.constant 0 : index
    %c0_11 = arith.constant 0 : index
    %c0_12 = arith.constant 0 : index
    %15 = vector.load %arg7[%c0_10, %c0_11, %c0_12] : memref<4x5x1xf32, #tpu.memory_space<vmem>>, vector<1x5x1xf32>
    %16 = vector.shape_cast %15 : vector<1x5x1xf32> to vector<5x1xf32>
    %cst_13 = arith.constant dense<0xFF800000> : vector<5xf32>
    %17 = vector.multi_reduction <maximumf>, %14, %cst_13 [1] : vector<5x5xf32> to vector<5xf32>
    %18 = vector.shape_cast %17 : vector<5xf32> to vector<5x1xf32>
    %19 = arith.maximumf %16, %18 : vector<5x1xf32>
    %20 = arith.subf %16, %19 : vector<5x1xf32>
    %21 = math.exp %20 : vector<5x1xf32>
    %22 = vector.broadcast %19 : vector<5x1xf32> to vector<5x5xf32>
    %23 = arith.subf %14, %22 : vector<5x5xf32>
    %24 = math.exp %23 : vector<5x5xf32>
    %c0_14 = arith.constant 0 : index
    %c0_15 = arith.constant 0 : index
    %c0_16 = arith.constant 0 : index
    %25 = vector.load %arg8[%c0_14, %c0_15, %c0_16] : memref<4x5x1xf32, #tpu.memory_space<vmem>>, vector<1x5x1xf32>
    %26 = vector.shape_cast %25 : vector<1x5x1xf32> to vector<5x1xf32>
    %27 = arith.mulf %21, %26 : vector<5x1xf32>
    %cst_17 = arith.constant dense<0.000000e+00> : vector<5xf32>
    %28 = vector.multi_reduction <add>, %24, %cst_17 [1] : vector<5x5xf32> to vector<5xf32>
    %29 = vector.shape_cast %28 : vector<5xf32> to vector<5x1xf32>
    %30 = arith.addf %27, %29 : vector<5x1xf32>
    %c0_18 = arith.constant 0 : index
    %c0_19 = arith.constant 0 : index
    %c0_20 = arith.constant 0 : index
    %31 = vector.load %arg8[%c0_18, %c0_19, %c0_20] : memref<4x5x1xf32, #tpu.memory_space<vmem>>, vector<1x5x1xf32>
    %32 = vector.shape_cast %31 : vector<1x5x1xf32> to vector<5x1xf32>
    %33 = vector.shape_cast %30 : vector<5x1xf32> to vector<1x5x1xf32>
    tpu.vector_store %arg8[%c0_18, %c0_19, %c0_20], %33 {strides = array<i32>} : memref<4x5x1xf32, #tpu.memory_space<vmem>>, vector<1x5x1xf32>,
    %c0_21 = arith.constant 0 : index
    %c0_22 = arith.constant 0 : index
    %c0_23 = arith.constant 0 : index
    %34 = vector.load %arg9[%c0_21, %c0_22, %c0_23] : memref<4x5x8xf32, #tpu.memory_space<vmem>>, vector<1x5x8xf32>
    %35 = vector.shape_cast %34 : vector<1x5x8xf32> to vector<5x8xf32>
    %36 = vector.broadcast %21 : vector<5x1xf32> to vector<5x8xf32>
    %37 = arith.mulf %36, %35 : vector<5x8xf32>
    %38 = arith.truncf %24 : vector<5x5xf32> to vector<5x5xbf16>
    %cst_24 = arith.constant dense<0.000000e+00> : vector<5x8xf32>
    %39 = tpu.matmul %38, %11, %cst_24 {dimension_numbers = #tpu.dot_dimension_numbers<[1], [0], [0], [1], [0, 0, 1, 1], [], []>} : vector<5x5xbf16>, vector<5x8xbf16>, vector<5x8xf32> -> vector<5x8xf32>
    %40 = arith.addf %37, %39 : vector<5x8xf32>
    %c0_25 = arith.constant 0 : index
    %c0_26 = arith.constant 0 : index
    %c0_27 = arith.constant 0 : index
    %41 = vector.load %arg9[%c0_25, %c0_26, %c0_27] : memref<4x5x8xf32, #tpu.memory_space<vmem>>, vector<1x5x8xf32>
    %42 = vector.shape_cast %41 : vector<1x5x8xf32> to vector<5x8xf32>
    %43 = vector.shape_cast %40 : vector<5x8xf32> to vector<1x5x8xf32>
    tpu.vector_store %arg9[%c0_25, %c0_26, %c0_27], %43 {strides = array<i32>} : memref<4x5x8xf32, #tpu.memory_space<vmem>>, vector<1x5x8xf32>,
    %c0_28 = arith.constant 0 : index
    %c0_29 = arith.constant 0 : index
    %c0_30 = arith.constant 0 : index
    %44 = vector.load %arg7[%c0_28, %c0_29, %c0_30] : memref<4x5x1xf32, #tpu.memory_space<vmem>>, vector<1x5x1xf32>
    %45 = vector.shape_cast %44 : vector<1x5x1xf32> to vector<5x1xf32>
    %46 = vector.shape_cast %19 : vector<5x1xf32> to vector<1x5x1xf32>
    tpu.vector_store %arg7[%c0_28, %c0_29, %c0_30], %46 {strides = array<i32>} : memref<4x5x1xf32, #tpu.memory_space<vmem>>, vector<1x5x1xf32>,
    %47 = vector.extract_strided_slice %4 {offsets = [0, 8], sizes = [5, 8], strides = [1, 1]} : vector<5x32xbf16> to vector<5x8xbf16>
    %48 = vector.extract_strided_slice %6 {offsets = [0, 8], sizes = [5, 8], strides = [1, 1]} : vector<5x32xbf16> to vector<5x8xbf16>
    %49 = vector.extract_strided_slice %8 {offsets = [0, 8], sizes = [5, 8], strides = [1, 1]} : vector<5x32xbf16> to vector<5x8xbf16>
    "tpu.trace_start"() <{level = 10 : i32, message = "qd,kd->qk"}> : () -> ()
    %cst_31 = arith.constant dense<0.000000e+00> : vector<5x5xf32>
    %50 = tpu.matmul %47, %48, %cst_31 {dimension_numbers = #tpu.dot_dimension_numbers<[1], [1], [0], [0], [0, 0, 1, 0], [], []>} : vector<5x8xbf16>, vector<5x8xbf16>, vector<5x5xf32> -> vector<5x5xf32>
    "tpu.trace_stop"() : () -> ()
    %cst_32 = arith.constant 0.353553385 : f32
    %51 = vector.broadcast %cst_32 : f32 to vector<5x5xf32>
    %52 = arith.mulf %50, %51 : vector<5x5xf32>
    %c1 = arith.constant 1 : index
    %c0_33 = arith.constant 0 : index
    %c0_34 = arith.constant 0 : index
    %53 = vector.load %arg7[%c1, %c0_33, %c0_34] : memref<4x5x1xf32, #tpu.memory_space<vmem>>, vector<1x5x1xf32>
    %54 = vector.shape_cast %53 : vector<1x5x1xf32> to vector<5x1xf32>
    %cst_35 = arith.constant dense<0xFF800000> : vector<5xf32>
    %55 = vector.multi_reduction <maximumf>, %52, %cst_35 [1] : vector<5x5xf32> to vector<5xf32>
    %56 = vector.shape_cast %55 : vector<5xf32> to vector<5x1xf32>
    %57 = arith.maximumf %54, %56 : vector<5x1xf32>
    %58 = arith.subf %54, %57 : vector<5x1xf32>
    %59 = math.exp %58 : vector<5x1xf32>
    %60 = vector.broadcast %57 : vector<5x1xf32> to vector<5x5xf32>
    %61 = arith.subf %52, %60 : vector<5x5xf32>
    %62 = math.exp %61 : vector<5x5xf32>
    %c1_36 = arith.constant 1 : index
    %c0_37 = arith.constant 0 : index
    %c0_38 = arith.constant 0 : index
    %63 = vector.load %arg8[%c1_36, %c0_37, %c0_38] : memref<4x5x1xf32, #tpu.memory_space<vmem>>, vector<1x5x1xf32>
    %64 = vector.shape_cast %63 : vector<1x5x1xf32> to vector<5x1xf32>
    %65 = arith.mulf %59, %64 : vector<5x1xf32>
    %cst_39 = arith.constant dense<0.000000e+00> : vector<5xf32>
    %66 = vector.multi_reduction <add>, %62, %cst_39 [1] : vector<5x5xf32> to vector<5xf32>
    %67 = vector.shape_cast %66 : vector<5xf32> to vector<5x1xf32>
    %68 = arith.addf %65, %67 : vector<5x1xf32>
    %c1_40 = arith.constant 1 : index
    %c0_41 = arith.constant 0 : index
    %c0_42 = arith.constant 0 : index
    %69 = vector.load %arg8[%c1_40, %c0_41, %c0_42] : memref<4x5x1xf32, #tpu.memory_space<vmem>>, vector<1x5x1xf32>
    %70 = vector.shape_cast %69 : vector<1x5x1xf32> to vector<5x1xf32>
    %71 = vector.shape_cast %68 : vector<5x1xf32> to vector<1x5x1xf32>
    tpu.vector_store %arg8[%c1_40, %c0_41, %c0_42], %71 {strides = array<i32>} : memref<4x5x1xf32, #tpu.memory_space<vmem>>, vector<1x5x1xf32>,
    %c1_43 = arith.constant 1 : index
    %c0_44 = arith.constant 0 : index
    %c0_45 = arith.constant 0 : index
    %72 = vector.load %arg9[%c1_43, %c0_44, %c0_45] : memref<4x5x8xf32, #tpu.memory_space<vmem>>, vector<1x5x8xf32>
    %73 = vector.shape_cast %72 : vector<1x5x8xf32> to vector<5x8xf32>
    %74 = vector.broadcast %59 : vector<5x1xf32> to vector<5x8xf32>
    %75 = arith.mulf %74, %73 : vector<5x8xf32>
    %76 = arith.truncf %62 : vector<5x5xf32> to vector<5x5xbf16>
    %cst_46 = arith.constant dense<0.000000e+00> : vector<5x8xf32>
    %77 = tpu.matmul %76, %49, %cst_46 {dimension_numbers = #tpu.dot_dimension_numbers<[1], [0], [0], [1], [0, 0, 1, 1], [], []>} : vector<5x5xbf16>, vector<5x8xbf16>, vector<5x8xf32> -> vector<5x8xf32>
    %78 = arith.addf %75, %77 : vector<5x8xf32>
    %c1_47 = arith.constant 1 : index
    %c0_48 = arith.constant 0 : index
    %c0_49 = arith.constant 0 : index
    %79 = vector.load %arg9[%c1_47, %c0_48, %c0_49] : memref<4x5x8xf32, #tpu.memory_space<vmem>>, vector<1x5x8xf32>
    %80 = vector.shape_cast %79 : vector<1x5x8xf32> to vector<5x8xf32>
    %81 = vector.shape_cast %78 : vector<5x8xf32> to vector<1x5x8xf32>
    tpu.vector_store %arg9[%c1_47, %c0_48, %c0_49], %81 {strides = array<i32>} : memref<4x5x8xf32, #tpu.memory_space<vmem>>, vector<1x5x8xf32>,
    %c1_50 = arith.constant 1 : index
    %c0_51 = arith.constant 0 : index
    %c0_52 = arith.constant 0 : index
    %82 = vector.load %arg7[%c1_50, %c0_51, %c0_52] : memref<4x5x1xf32, #tpu.memory_space<vmem>>, vector<1x5x1xf32>
    %83 = vector.shape_cast %82 : vector<1x5x1xf32> to vector<5x1xf32>
    %84 = vector.shape_cast %57 : vector<5x1xf32> to vector<1x5x1xf32>
    tpu.vector_store %arg7[%c1_50, %c0_51, %c0_52], %84 {strides = array<i32>} : memref<4x5x1xf32, #tpu.memory_space<vmem>>, vector<1x5x1xf32>,
    %85 = vector.extract_strided_slice %4 {offsets = [0, 16], sizes = [5, 8], strides = [1, 1]} : vector<5x32xbf16> to vector<5x8xbf16>
    %86 = vector.extract_strided_slice %6 {offsets = [0, 16], sizes = [5, 8], strides = [1, 1]} : vector<5x32xbf16> to vector<5x8xbf16>
    %87 = vector.extract_strided_slice %8 {offsets = [0, 16], sizes = [5, 8], strides = [1, 1]} : vector<5x32xbf16> to vector<5x8xbf16>
    "tpu.trace_start"() <{level = 10 : i32, message = "qd,kd->qk"}> : () -> ()
    %cst_53 = arith.constant dense<0.000000e+00> : vector<5x5xf32>
    %88 = tpu.matmul %85, %86, %cst_53 {dimension_numbers = #tpu.dot_dimension_numbers<[1], [1], [0], [0], [0, 0, 1, 0], [], []>} : vector<5x8xbf16>, vector<5x8xbf16>, vector<5x5xf32> -> vector<5x5xf32>
    "tpu.trace_stop"() : () -> ()
    %cst_54 = arith.constant 0.353553385 : f32
    %89 = vector.broadcast %cst_54 : f32 to vector<5x5xf32>
    %90 = arith.mulf %88, %89 : vector<5x5xf32>
    %c2 = arith.constant 2 : index
    %c0_55 = arith.constant 0 : index
    %c0_56 = arith.constant 0 : index
    %91 = vector.load %arg7[%c2, %c0_55, %c0_56] : memref<4x5x1xf32, #tpu.memory_space<vmem>>, vector<1x5x1xf32>
    %92 = vector.shape_cast %91 : vector<1x5x1xf32> to vector<5x1xf32>
    %cst_57 = arith.constant dense<0xFF800000> : vector<5xf32>
    %93 = vector.multi_reduction <maximumf>, %90, %cst_57 [1] : vector<5x5xf32> to vector<5xf32>
    %94 = vector.shape_cast %93 : vector<5xf32> to vector<5x1xf32>
    %95 = arith.maximumf %92, %94 : vector<5x1xf32>
    %96 = arith.subf %92, %95 : vector<5x1xf32>
    %97 = math.exp %96 : vector<5x1xf32>
    %98 = vector.broadcast %95 : vector<5x1xf32> to vector<5x5xf32>
    %99 = arith.subf %90, %98 : vector<5x5xf32>
    %100 = math.exp %99 : vector<5x5xf32>
    %c2_58 = arith.constant 2 : index
    %c0_59 = arith.constant 0 : index
    %c0_60 = arith.constant 0 : index
    %101 = vector.load %arg8[%c2_58, %c0_59, %c0_60] : memref<4x5x1xf32, #tpu.memory_space<vmem>>, vector<1x5x1xf32>
    %102 = vector.shape_cast %101 : vector<1x5x1xf32> to vector<5x1xf32>
    %103 = arith.mulf %97, %102 : vector<5x1xf32>
    %cst_61 = arith.constant dense<0.000000e+00> : vector<5xf32>
    %104 = vector.multi_reduction <add>, %100, %cst_61 [1] : vector<5x5xf32> to vector<5xf32>
    %105 = vector.shape_cast %104 : vector<5xf32> to vector<5x1xf32>
    %106 = arith.addf %103, %105 : vector<5x1xf32>
    %c2_62 = arith.constant 2 : index
    %c0_63 = arith.constant 0 : index
    %c0_64 = arith.constant 0 : index
    %107 = vector.load %arg8[%c2_62, %c0_63, %c0_64] : memref<4x5x1xf32, #tpu.memory_space<vmem>>, vector<1x5x1xf32>
    %108 = vector.shape_cast %107 : vector<1x5x1xf32> to vector<5x1xf32>
    %109 = vector.shape_cast %106 : vector<5x1xf32> to vector<1x5x1xf32>
    tpu.vector_store %arg8[%c2_62, %c0_63, %c0_64], %109 {strides = array<i32>} : memref<4x5x1xf32, #tpu.memory_space<vmem>>, vector<1x5x1xf32>,
    %c2_65 = arith.constant 2 : index
    %c0_66 = arith.constant 0 : index
    %c0_67 = arith.constant 0 : index
    %110 = vector.load %arg9[%c2_65, %c0_66, %c0_67] : memref<4x5x8xf32, #tpu.memory_space<vmem>>, vector<1x5x8xf32>
    %111 = vector.shape_cast %110 : vector<1x5x8xf32> to vector<5x8xf32>
    %112 = vector.broadcast %97 : vector<5x1xf32> to vector<5x8xf32>
    %113 = arith.mulf %112, %111 : vector<5x8xf32>
    %114 = arith.truncf %100 : vector<5x5xf32> to vector<5x5xbf16>
    %cst_68 = arith.constant dense<0.000000e+00> : vector<5x8xf32>
    %115 = tpu.matmul %114, %87, %cst_68 {dimension_numbers = #tpu.dot_dimension_numbers<[1], [0], [0], [1], [0, 0, 1, 1], [], []>} : vector<5x5xbf16>, vector<5x8xbf16>, vector<5x8xf32> -> vector<5x8xf32>
    %116 = arith.addf %113, %115 : vector<5x8xf32>
    %c2_69 = arith.constant 2 : index
    %c0_70 = arith.constant 0 : index
    %c0_71 = arith.constant 0 : index
    %117 = vector.load %arg9[%c2_69, %c0_70, %c0_71] : memref<4x5x8xf32, #tpu.memory_space<vmem>>, vector<1x5x8xf32>
    %118 = vector.shape_cast %117 : vector<1x5x8xf32> to vector<5x8xf32>
    %119 = vector.shape_cast %116 : vector<5x8xf32> to vector<1x5x8xf32>
    tpu.vector_store %arg9[%c2_69, %c0_70, %c0_71], %119 {strides = array<i32>} : memref<4x5x8xf32, #tpu.memory_space<vmem>>, vector<1x5x8xf32>,
    %c2_72 = arith.constant 2 : index
    %c0_73 = arith.constant 0 : index
    %c0_74 = arith.constant 0 : index
    %120 = vector.load %arg7[%c2_72, %c0_73, %c0_74] : memref<4x5x1xf32, #tpu.memory_space<vmem>>, vector<1x5x1xf32>
    %121 = vector.shape_cast %120 : vector<1x5x1xf32> to vector<5x1xf32>
    %122 = vector.shape_cast %95 : vector<5x1xf32> to vector<1x5x1xf32>
    tpu.vector_store %arg7[%c2_72, %c0_73, %c0_74], %122 {strides = array<i32>} : memref<4x5x1xf32, #tpu.memory_space<vmem>>, vector<1x5x1xf32>,
    %123 = vector.extract_strided_slice %4 {offsets = [0, 24], sizes = [5, 8], strides = [1, 1]} : vector<5x32xbf16> to vector<5x8xbf16>
    %124 = vector.extract_strided_slice %6 {offsets = [0, 24], sizes = [5, 8], strides = [1, 1]} : vector<5x32xbf16> to vector<5x8xbf16>
    %125 = vector.extract_strided_slice %8 {offsets = [0, 24], sizes = [5, 8], strides = [1, 1]} : vector<5x32xbf16> to vector<5x8xbf16>
    "tpu.trace_start"() <{level = 10 : i32, message = "qd,kd->qk"}> : () -> ()
    %cst_75 = arith.constant dense<0.000000e+00> : vector<5x5xf32>
    %126 = tpu.matmul %123, %124, %cst_75 {dimension_numbers = #tpu.dot_dimension_numbers<[1], [1], [0], [0], [0, 0, 1, 0], [], []>} : vector<5x8xbf16>, vector<5x8xbf16>, vector<5x5xf32> -> vector<5x5xf32>
    "tpu.trace_stop"() : () -> ()
    %cst_76 = arith.constant 0.353553385 : f32
    %127 = vector.broadcast %cst_76 : f32 to vector<5x5xf32>
    %128 = arith.mulf %126, %127 : vector<5x5xf32>
    %c3 = arith.constant 3 : index
    %c0_77 = arith.constant 0 : index
    %c0_78 = arith.constant 0 : index
    %129 = vector.load %arg7[%c3, %c0_77, %c0_78] : memref<4x5x1xf32, #tpu.memory_space<vmem>>, vector<1x5x1xf32>
    %130 = vector.shape_cast %129 : vector<1x5x1xf32> to vector<5x1xf32>
    %cst_79 = arith.constant dense<0xFF800000> : vector<5xf32>
    %131 = vector.multi_reduction <maximumf>, %128, %cst_79 [1] : vector<5x5xf32> to vector<5xf32>
    %132 = vector.shape_cast %131 : vector<5xf32> to vector<5x1xf32>
    %133 = arith.maximumf %130, %132 : vector<5x1xf32>
    %134 = arith.subf %130, %133 : vector<5x1xf32>
    %135 = math.exp %134 : vector<5x1xf32>
    %136 = vector.broadcast %133 : vector<5x1xf32> to vector<5x5xf32>
    %137 = arith.subf %128, %136 : vector<5x5xf32>
    %138 = math.exp %137 : vector<5x5xf32>
    %c3_80 = arith.constant 3 : index
    %c0_81 = arith.constant 0 : index
    %c0_82 = arith.constant 0 : index
    %139 = vector.load %arg8[%c3_80, %c0_81, %c0_82] : memref<4x5x1xf32, #tpu.memory_space<vmem>>, vector<1x5x1xf32>
    %140 = vector.shape_cast %139 : vector<1x5x1xf32> to vector<5x1xf32>
    %141 = arith.mulf %135, %140 : vector<5x1xf32>
    %cst_83 = arith.constant dense<0.000000e+00> : vector<5xf32>
    %142 = vector.multi_reduction <add>, %138, %cst_83 [1] : vector<5x5xf32> to vector<5xf32>
    %143 = vector.shape_cast %142 : vector<5xf32> to vector<5x1xf32>
    %144 = arith.addf %141, %143 : vector<5x1xf32>
    %c3_84 = arith.constant 3 : index
    %c0_85 = arith.constant 0 : index
    %c0_86 = arith.constant 0 : index
    %145 = vector.load %arg8[%c3_84, %c0_85, %c0_86] : memref<4x5x1xf32, #tpu.memory_space<vmem>>, vector<1x5x1xf32>
    %146 = vector.shape_cast %145 : vector<1x5x1xf32> to vector<5x1xf32>
    %147 = vector.shape_cast %144 : vector<5x1xf32> to vector<1x5x1xf32>
    tpu.vector_store %arg8[%c3_84, %c0_85, %c0_86], %147 {strides = array<i32>} : memref<4x5x1xf32, #tpu.memory_space<vmem>>, vector<1x5x1xf32>,
    %c3_87 = arith.constant 3 : index
    %c0_88 = arith.constant 0 : index
    %c0_89 = arith.constant 0 : index
    %148 = vector.load %arg9[%c3_87, %c0_88, %c0_89] : memref<4x5x8xf32, #tpu.memory_space<vmem>>, vector<1x5x8xf32>
    %149 = vector.shape_cast %148 : vector<1x5x8xf32> to vector<5x8xf32>
    %150 = vector.broadcast %135 : vector<5x1xf32> to vector<5x8xf32>
    %151 = arith.mulf %150, %149 : vector<5x8xf32>
    %152 = arith.truncf %138 : vector<5x5xf32> to vector<5x5xbf16>
    %cst_90 = arith.constant dense<0.000000e+00> : vector<5x8xf32>
    %153 = tpu.matmul %152, %125, %cst_90 {dimension_numbers = #tpu.dot_dimension_numbers<[1], [0], [0], [1], [0, 0, 1, 1], [], []>} : vector<5x5xbf16>, vector<5x8xbf16>, vector<5x8xf32> -> vector<5x8xf32>
    %154 = arith.addf %151, %153 : vector<5x8xf32>
    %c3_91 = arith.constant 3 : index
    %c0_92 = arith.constant 0 : index
    %c0_93 = arith.constant 0 : index
    %155 = vector.load %arg9[%c3_91, %c0_92, %c0_93] : memref<4x5x8xf32, #tpu.memory_space<vmem>>, vector<1x5x8xf32>
    %156 = vector.shape_cast %155 : vector<1x5x8xf32> to vector<5x8xf32>
    %157 = vector.shape_cast %154 : vector<5x8xf32> to vector<1x5x8xf32>
    tpu.vector_store %arg9[%c3_91, %c0_92, %c0_93], %157 {strides = array<i32>} : memref<4x5x8xf32, #tpu.memory_space<vmem>>, vector<1x5x8xf32>,
    %c3_94 = arith.constant 3 : index
    %c0_95 = arith.constant 0 : index
    %c0_96 = arith.constant 0 : index
    %158 = vector.load %arg7[%c3_94, %c0_95, %c0_96] : memref<4x5x1xf32, #tpu.memory_space<vmem>>, vector<1x5x1xf32>
    %159 = vector.shape_cast %158 : vector<1x5x1xf32> to vector<5x1xf32>
    %160 = vector.shape_cast %133 : vector<5x1xf32> to vector<1x5x1xf32>
    tpu.vector_store %arg7[%c3_94, %c0_95, %c0_96], %160 {strides = array<i32>} : memref<4x5x1xf32, #tpu.memory_space<vmem>>, vector<1x5x1xf32>,
    %c0_i32_97 = arith.constant 0 : i32
    %161 = arith.cmpi eq, %arg2, %c0_i32_97 : i32
    %162 = arith.extui %161 : i1 to i32
    %c0_i32_98 = arith.constant 0 : i32
    %163 = arith.cmpi ne, %162, %c0_i32_98 : i32
    scf.if %163 {
      %c0_99 = arith.constant 0 : index
      %c0_100 = arith.constant 0 : index
      %c0_101 = arith.constant 0 : index
      %164 = vector.load %arg9[%c0_99, %c0_100, %c0_101] : memref<4x5x8xf32, #tpu.memory_space<vmem>>, vector<1x5x8xf32>
      %165 = vector.shape_cast %164 : vector<1x5x8xf32> to vector<5x8xf32>
      %c0_102 = arith.constant 0 : index
      %c0_103 = arith.constant 0 : index
      %c0_104 = arith.constant 0 : index
      %166 = vector.load %arg8[%c0_102, %c0_103, %c0_104] : memref<4x5x1xf32, #tpu.memory_space<vmem>>, vector<1x5x1xf32>
      %167 = vector.shape_cast %166 : vector<1x5x1xf32> to vector<5x1xf32>
      %168 = tpu.reciprocal %167 {approx = true} : vector<5x1xf32> -> vector<5x1xf32>
      %169 = vector.broadcast %168 : vector<5x1xf32> to vector<5x8xf32>
      %170 = arith.mulf %165, %169 : vector<5x8xf32>
      %c1_105 = arith.constant 1 : index
      %c0_106 = arith.constant 0 : index
      %c0_107 = arith.constant 0 : index
      %171 = vector.load %arg9[%c1_105, %c0_106, %c0_107] : memref<4x5x8xf32, #tpu.memory_space<vmem>>, vector<1x5x8xf32>
      %172 = vector.shape_cast %171 : vector<1x5x8xf32> to vector<5x8xf32>
      %c1_108 = arith.constant 1 : index
      %c0_109 = arith.constant 0 : index
      %c0_110 = arith.constant 0 : index
      %173 = vector.load %arg8[%c1_108, %c0_109, %c0_110] : memref<4x5x1xf32, #tpu.memory_space<vmem>>, vector<1x5x1xf32>
      %174 = vector.shape_cast %173 : vector<1x5x1xf32> to vector<5x1xf32>
      %175 = tpu.reciprocal %174 {approx = true} : vector<5x1xf32> -> vector<5x1xf32>
      %176 = vector.broadcast %175 : vector<5x1xf32> to vector<5x8xf32>
      %177 = arith.mulf %172, %176 : vector<5x8xf32>
      %c2_111 = arith.constant 2 : index
      %c0_112 = arith.constant 0 : index
      %c0_113 = arith.constant 0 : index
      %178 = vector.load %arg9[%c2_111, %c0_112, %c0_113] : memref<4x5x8xf32, #tpu.memory_space<vmem>>, vector<1x5x8xf32>
      %179 = vector.shape_cast %178 : vector<1x5x8xf32> to vector<5x8xf32>
      %c2_114 = arith.constant 2 : index
      %c0_115 = arith.constant 0 : index
      %c0_116 = arith.constant 0 : index
      %180 = vector.load %arg8[%c2_114, %c0_115, %c0_116] : memref<4x5x1xf32, #tpu.memory_space<vmem>>, vector<1x5x1xf32>
      %181 = vector.shape_cast %180 : vector<1x5x1xf32> to vector<5x1xf32>
      %182 = tpu.reciprocal %181 {approx = true} : vector<5x1xf32> -> vector<5x1xf32>
      %183 = vector.broadcast %182 : vector<5x1xf32> to vector<5x8xf32>
      %184 = arith.mulf %179, %183 : vector<5x8xf32>
      %c3_117 = arith.constant 3 : index
      %c0_118 = arith.constant 0 : index
      %c0_119 = arith.constant 0 : index
      %185 = vector.load %arg9[%c3_117, %c0_118, %c0_119] : memref<4x5x8xf32, #tpu.memory_space<vmem>>, vector<1x5x8xf32>
      %186 = vector.shape_cast %185 : vector<1x5x8xf32> to vector<5x8xf32>
      %c3_120 = arith.constant 3 : index
      %c0_121 = arith.constant 0 : index
      %c0_122 = arith.constant 0 : index
      %187 = vector.load %arg8[%c3_120, %c0_121, %c0_122] : memref<4x5x1xf32, #tpu.memory_space<vmem>>, vector<1x5x1xf32>
      %188 = vector.shape_cast %187 : vector<1x5x1xf32> to vector<5x1xf32>
      %189 = tpu.reciprocal %188 {approx = true} : vector<5x1xf32> -> vector<5x1xf32>
      %190 = vector.broadcast %189 : vector<5x1xf32> to vector<5x8xf32>
      %191 = arith.mulf %186, %190 : vector<5x8xf32>
      %192 = tpu.concatenate %170, %177, %184, %191 in 1 : vector<5x8xf32>, vector<5x8xf32>, vector<5x8xf32>, vector<5x8xf32> -> vector<5x32xf32>
      %193 = arith.truncf %192 : vector<5x32xf32> to vector<5x32xbf16>
      %c0_123 = arith.constant 0 : index
      %c0_124 = arith.constant 0 : index
      %c0_125 = arith.constant 0 : index
      %194 = vector.load %arg6[%c0_123, %c0_124, %c0_125] : memref<1x5x32xbf16, #tpu.memory_space<vmem>>, vector<1x5x32xbf16>
      %195 = vector.shape_cast %194 : vector<1x5x32xbf16> to vector<5x32xbf16>
      %196 = vector.shape_cast %193 : vector<5x32xbf16> to vector<1x5x32xbf16>
      tpu.vector_store %arg6[%c0_123, %c0_124, %c0_125], %196 {strides = array<i32>} : memref<1x5x32xbf16, #tpu.memory_space<vmem>>, vector<1x5x32xbf16>,
    } else {
    }
    return
  }
  func.func @transform_0(%arg0: i32, %arg1: i32, %arg2: i32) -> (i32, i32, i32) {
    %c0_i32 = arith.constant 0 : i32
    %c0_i32_0 = arith.constant 0 : i32
    return %arg0, %arg1, %c0_i32 : i32, i32, i32
  }
  func.func @transform_1(%arg0: i32, %arg1: i32, %arg2: i32) -> (i32, i32, i32) {
    %c0_i32 = arith.constant 0 : i32
    %c0_i32_0 = arith.constant 0 : i32
    return %arg0, %arg2, %c0_i32 : i32, i32, i32
  }
  func.func @transform_2(%arg0: i32, %arg1: i32, %arg2: i32) -> (i32, i32, i32) {
    %c0_i32 = arith.constant 0 : i32
    %c0_i32_0 = arith.constant 0 : i32
    return %arg0, %arg2, %c0_i32 : i32, i32, i32
  }
  func.func @transform_3(%arg0: i32, %arg1: i32, %arg2: i32) -> (i32, i32, i32) {
    %c0_i32 = arith.constant 0 : i32
    %c0_i32_0 = arith.constant 0 : i32
    return %arg0, %arg1, %c0_i32 : i32, i32, i32
  }
}

module attributes {stable_mosaic.version = 11 : i64} {
  func.func @_mlp_kernel(%arg0: i32, %arg1: i32, %arg2: memref<20x32xf32, #tpu.memory_space<vmem>>, %arg3: memref<1x32xf32, #tpu.memory_space<vmem>>, %arg4: memref<1x32xf32, #tpu.memory_space<vmem>>, %arg5: memref<32x128xbf16, #tpu.memory_space<vmem>>, %arg6: memref<1x128xf32, #tpu.memory_space<vmem>>, %arg7: memref<128x32xbf16, #tpu.memory_space<vmem>>, %arg8: memref<1x32xf32, #tpu.memory_space<vmem>>, %arg9: memref<20x32xf32, #tpu.memory_space<vmem>>, %arg10: memref<20x32xf32, #tpu.memory_space<vmem>>) attributes {dimension_semantics = [#tpu.dimension_semantics<parallel>, #tpu.dimension_semantics<arbitrary>], iteration_bounds = array<i64: 1, 1>, scalar_prefetch = 0 : i64, scratch_operands = 1 : i64, tpu.core_type = #tpu.core_type<tc>, window_params = [{transform_indices = @transform_0, window_bounds = array<i64: 20, 32>}, {pipeline_mode = #tpu.pipeline_mode<synchronous>, transform_indices = @transform_1, window_bounds = array<i64: 1, 32>}, {pipeline_mode = #tpu.pipeline_mode<synchronous>, transform_indices = @transform_2, window_bounds = array<i64: 1, 32>}, {transform_indices = @transform_3, window_bounds = array<i64: 32, 128>}, {transform_indices = @transform_4, window_bounds = array<i64: 1, 128>}, {transform_indices = @transform_5, window_bounds = array<i64: 128, 32>}, {pipeline_mode = #tpu.pipeline_mode<synchronous>, transform_indices = @transform_6, window_bounds = array<i64: 1, 32>}, {transform_indices = @transform_7, window_bounds = array<i64: 20, 32>}]} {
    %c0 = arith.constant 0 : index
    %c0_0 = arith.constant 0 : index
    %0 = vector.load %arg2[%c0, %c0_0] : memref<20x32xf32, #tpu.memory_space<vmem>>, vector<20x32xf32>
    %c0_1 = arith.constant 0 : index
    %c0_2 = arith.constant 0 : index
    %1 = vector.load %arg3[%c0_1, %c0_2] : memref<1x32xf32, #tpu.memory_space<vmem>>, vector<1x32xf32>
    %c0_3 = arith.constant 0 : index
    %c0_4 = arith.constant 0 : index
    %2 = vector.load %arg4[%c0_3, %c0_4] : memref<1x32xf32, #tpu.memory_space<vmem>>, vector<1x32xf32>
    %cst = arith.constant dense<0.000000e+00> : vector<20xf32>
    %3 = vector.multi_reduction <add>, %0, %cst [1] : vector<20x32xf32> to vector<20xf32>
    %4 = vector.shape_cast %3 : vector<20xf32> to vector<20x1xf32>
    %cst_5 = arith.constant 3.200000e+01 : f32
    %5 = vector.broadcast %cst_5 : f32 to vector<20x1xf32>
    %6 = arith.divf %4, %5 : vector<20x1xf32>
    %7 = vector.broadcast %6 : vector<20x1xf32> to vector<20x32xf32>
    %8 = arith.subf %0, %7 : vector<20x32xf32>
    %9 = arith.mulf %8, %8 : vector<20x32xf32>
    %cst_6 = arith.constant dense<0.000000e+00> : vector<20xf32>
    %10 = vector.multi_reduction <add>, %9, %cst_6 [1] : vector<20x32xf32> to vector<20xf32>
    %11 = vector.shape_cast %10 : vector<20xf32> to vector<20x1xf32>
    %cst_7 = arith.constant 3.200000e+01 : f32
    %12 = vector.broadcast %cst_7 : f32 to vector<20x1xf32>
    %13 = arith.divf %11, %12 : vector<20x1xf32>
    %14 = vector.broadcast %6 : vector<20x1xf32> to vector<20x32xf32>
    %15 = arith.subf %0, %14 : vector<20x32xf32>
    %cst_8 = arith.constant 9.99999974E-6 : f32
    %16 = vector.broadcast %cst_8 : f32 to vector<20x1xf32>
    %17 = arith.addf %13, %16 : vector<20x1xf32>
    %18 = math.rsqrt %17 : vector<20x1xf32>
    %19 = vector.broadcast %18 : vector<20x1xf32> to vector<20x32xf32>
    %20 = arith.mulf %15, %19 : vector<20x32xf32>
    %21 = vector.broadcast %1 : vector<1x32xf32> to vector<20x32xf32>
    %22 = arith.mulf %20, %21 : vector<20x32xf32>
    %23 = vector.broadcast %2 : vector<1x32xf32> to vector<20x32xf32>
    %24 = arith.addf %22, %23 : vector<20x32xf32>
    %25 = arith.truncf %24 : vector<20x32xf32> to vector<20x32xbf16>
    %c0_i32 = arith.constant 0 : i32
    %26 = arith.cmpi eq, %arg1, %c0_i32 : i32
    %27 = arith.extui %26 : i1 to i32
    %c0_i32_9 = arith.constant 0 : i32
    %28 = arith.cmpi ne, %27, %c0_i32_9 : i32
    scf.if %28 {
      %cst_26 = arith.constant 0.000000e+00 : f32
      %51 = vector.broadcast %cst_26 : f32 to vector<20x32xf32>
      %c0_27 = arith.constant 0 : index
      %c0_28 = arith.constant 0 : index
      %52 = vector.load %arg10[%c0_27, %c0_28] : memref<20x32xf32, #tpu.memory_space<vmem>>, vector<20x32xf32>
      tpu.vector_store %arg10[%c0_27, %c0_28], %51 {strides = array<i32>} : memref<20x32xf32, #tpu.memory_space<vmem>>, vector<20x32xf32>,
    } else {
    }
    %c0_10 = arith.constant 0 : index
    %c0_11 = arith.constant 0 : index
    %29 = vector.load %arg5[%c0_10, %c0_11] : memref<32x128xbf16, #tpu.memory_space<vmem>>, vector<32x128xbf16>
    %cst_12 = arith.constant dense<0.000000e+00> : vector<20x128xf32>
    %30 = tpu.matmul %25, %29, %cst_12 {dimension_numbers = #tpu.dot_dimension_numbers<[1], [0], [0], [1], [0, 0, 1, 1], [], []>} : vector<20x32xbf16>, vector<32x128xbf16>, vector<20x128xf32> -> vector<20x128xf32>
    %c0_13 = arith.constant 0 : index
    %c0_14 = arith.constant 0 : index
    %31 = vector.load %arg6[%c0_13, %c0_14] : memref<1x128xf32, #tpu.memory_space<vmem>>, vector<1x128xf32>
    %32 = vector.broadcast %31 : vector<1x128xf32> to vector<20x128xf32>
    %33 = arith.addf %30, %32 : vector<20x128xf32>
    %cst_15 = arith.constant 1.702000e+00 : f32
    %34 = vector.broadcast %cst_15 : f32 to vector<20x128xf32>
    %35 = arith.mulf %34, %33 : vector<20x128xf32>
    %36 = arith.negf %35 : vector<20x128xf32>
    %37 = math.exp %36 : vector<20x128xf32>
    %cst_16 = arith.constant 1.000000e+00 : f32
    %38 = vector.broadcast %cst_16 : f32 to vector<20x128xf32>
    %39 = arith.addf %38, %37 : vector<20x128xf32>
    %40 = arith.divf %38, %39 : vector<20x128xf32>
    %41 = arith.mulf %33, %40 : vector<20x128xf32>
    %c0_17 = arith.constant 0 : index
    %c0_18 = arith.constant 0 : index
    %42 = vector.load %arg10[%c0_17, %c0_18] : memref<20x32xf32, #tpu.memory_space<vmem>>, vector<20x32xf32>
    %43 = arith.truncf %41 : vector<20x128xf32> to vector<20x128xbf16>
    %c0_19 = arith.constant 0 : index
    %c0_20 = arith.constant 0 : index
    %44 = vector.load %arg7[%c0_19, %c0_20] : memref<128x32xbf16, #tpu.memory_space<vmem>>, vector<128x32xbf16>
    %cst_21 = arith.constant dense<0.000000e+00> : vector<20x32xf32>
    %45 = tpu.matmul %43, %44, %cst_21 {dimension_numbers = #tpu.dot_dimension_numbers<[1], [0], [0], [1], [0, 0, 1, 1], [], []>} : vector<20x128xbf16>, vector<128x32xbf16>, vector<20x32xf32> -> vector<20x32xf32>
    %46 = arith.addf %42, %45 : vector<20x32xf32>
    %c0_22 = arith.constant 0 : index
    %c0_23 = arith.constant 0 : index
    %47 = vector.load %arg10[%c0_22, %c0_23] : memref<20x32xf32, #tpu.memory_space<vmem>>, vector<20x32xf32>
    tpu.vector_store %arg10[%c0_22, %c0_23], %46 {strides = array<i32>} : memref<20x32xf32, #tpu.memory_space<vmem>>, vector<20x32xf32>,
    %c0_i32_24 = arith.constant 0 : i32
    %48 = arith.cmpi eq, %arg1, %c0_i32_24 : i32
    %49 = arith.extui %48 : i1 to i32
    %c0_i32_25 = arith.constant 0 : i32
    %50 = arith.cmpi ne, %49, %c0_i32_25 : i32
    scf.if %50 {
      %c0_26 = arith.constant 0 : index
      %c0_27 = arith.constant 0 : index
      %51 = vector.load %arg10[%c0_26, %c0_27] : memref<20x32xf32, #tpu.memory_space<vmem>>, vector<20x32xf32>
      %c0_28 = arith.constant 0 : index
      %c0_29 = arith.constant 0 : index
      %52 = vector.load %arg8[%c0_28, %c0_29] : memref<1x32xf32, #tpu.memory_space<vmem>>, vector<1x32xf32>
      %53 = vector.broadcast %52 : vector<1x32xf32> to vector<20x32xf32>
      %54 = arith.addf %51, %53 : vector<20x32xf32>
      %55 = arith.addf %54, %0 : vector<20x32xf32>
      %c0_30 = arith.constant 0 : index
      %c0_31 = arith.constant 0 : index
      %56 = vector.load %arg9[%c0_30, %c0_31] : memref<20x32xf32, #tpu.memory_space<vmem>>, vector<20x32xf32>
      tpu.vector_store %arg9[%c0_30, %c0_31], %55 {strides = array<i32>} : memref<20x32xf32, #tpu.memory_space<vmem>>, vector<20x32xf32>,
    } else {
    }
    return
  }
  func.func @transform_0(%arg0: i32, %arg1: i32) -> (i32, i32) {
    %c0_i32 = arith.constant 0 : i32
    %c0_i32_0 = arith.constant 0 : i32
    return %arg0, %c0_i32 : i32, i32
  }
  func.func @transform_1(%arg0: i32, %arg1: i32) -> (i32, i32) {
    %c0_i32 = arith.constant 0 : i32
    %c0_i32_0 = arith.constant 0 : i32
    %c0_i32_1 = arith.constant 0 : i32
    return %c0_i32, %c0_i32_0 : i32, i32
  }
  func.func @transform_2(%arg0: i32, %arg1: i32) -> (i32, i32) {
    %c0_i32 = arith.constant 0 : i32
    %c0_i32_0 = arith.constant 0 : i32
    %c0_i32_1 = arith.constant 0 : i32
    return %c0_i32, %c0_i32_0 : i32, i32
  }
  func.func @transform_3(%arg0: i32, %arg1: i32) -> (i32, i32) {
    %c0_i32 = arith.constant 0 : i32
    %c0_i32_0 = arith.constant 0 : i32
    return %c0_i32, %arg1 : i32, i32
  }
  func.func @transform_4(%arg0: i32, %arg1: i32) -> (i32, i32) {
    %c0_i32 = arith.constant 0 : i32
    %c0_i32_0 = arith.constant 0 : i32
    return %c0_i32, %arg1 : i32, i32
  }
  func.func @transform_5(%arg0: i32, %arg1: i32) -> (i32, i32) {
    %c0_i32 = arith.constant 0 : i32
    %c0_i32_0 = arith.constant 0 : i32
    return %arg1, %c0_i32 : i32, i32
  }
  func.func @transform_6(%arg0: i32, %arg1: i32) -> (i32, i32) {
    %c0_i32 = arith.constant 0 : i32
    %c0_i32_0 = arith.constant 0 : i32
    %c0_i32_1 = arith.constant 0 : i32
    return %c0_i32, %c0_i32_0 : i32, i32
  }
  func.func @transform_7(%arg0: i32, %arg1: i32) -> (i32, i32) {
    %c0_i32 = arith.constant 0 : i32
    %c0_i32_0 = arith.constant 0 : i32
    return %arg0, %c0_i32 : i32, i32
  }
}

module attributes {stable_mosaic.version = 11 : i64} {
  func.func @_linear_kernel(%arg0: i32, %arg1: i32, %arg2: i32, %arg3: memref<4x32xf32, #tpu.memory_space<vmem>>, %arg4: memref<32x32xbf16, #tpu.memory_space<vmem>>, %arg5: memref<1x32xf32, #tpu.memory_space<vmem>>, %arg6: memref<1x32xf32, #tpu.memory_space<vmem>>, %arg7: memref<4x32xf32, #tpu.memory_space<vmem>>, %arg8: memref<4x32xf32, #tpu.memory_space<vmem>>) attributes {dimension_semantics = [#tpu.dimension_semantics<parallel>, #tpu.dimension_semantics<parallel>, #tpu.dimension_semantics<arbitrary>], iteration_bounds = array<i64: 1, 1, 1>, scalar_prefetch = 0 : i64, scratch_operands = 1 : i64, tpu.core_type = #tpu.core_type<tc>, window_params = [{transform_indices = @transform_0, window_bounds = array<i64: 4, 32>}, {transform_indices = @transform_1, window_bounds = array<i64: 32, 32>}, {pipeline_mode = #tpu.pipeline_mode<synchronous>, transform_indices = @transform_2, window_bounds = array<i64: 1, 32>}, {pipeline_mode = #tpu.pipeline_mode<synchronous>, transform_indices = @transform_3, window_bounds = array<i64: 1, 32>}, {transform_indices = @transform_4, window_bounds = array<i64: 4, 32>}]} {
    %c0 = arith.constant 0 : index
    %c0_0 = arith.constant 0 : index
    %0 = vector.load %arg3[%c0, %c0_0] : memref<4x32xf32, #tpu.memory_space<vmem>>, vector<4x32xf32>
    %c0_1 = arith.constant 0 : index
    %c0_2 = arith.constant 0 : index
    %1 = vector.load %arg5[%c0_1, %c0_2] : memref<1x32xf32, #tpu.memory_space<vmem>>, vector<1x32xf32>
    %c0_3 = arith.constant 0 : index
    %c0_4 = arith.constant 0 : index
    %2 = vector.load %arg6[%c0_3, %c0_4] : memref<1x32xf32, #tpu.memory_space<vmem>>, vector<1x32xf32>
    %cst = arith.constant dense<0.000000e+00> : vector<4xf32>
    %3 = vector.multi_reduction <add>, %0, %cst [1] : vector<4x32xf32> to vector<4xf32>
    %4 = vector.shape_cast %3 : vector<4xf32> to vector<4x1xf32>
    %cst_5 = arith.constant 3.200000e+01 : f32
    %5 = vector.broadcast %cst_5 : f32 to vector<4x1xf32>
    %6 = arith.divf %4, %5 : vector<4x1xf32>
    %7 = vector.broadcast %6 : vector<4x1xf32> to vector<4x32xf32>
    %8 = arith.subf %0, %7 : vector<4x32xf32>
    %9 = arith.mulf %8, %8 : vector<4x32xf32>
    %cst_6 = arith.constant dense<0.000000e+00> : vector<4xf32>
    %10 = vector.multi_reduction <add>, %9, %cst_6 [1] : vector<4x32xf32> to vector<4xf32>
    %11 = vector.shape_cast %10 : vector<4xf32> to vector<4x1xf32>
    %cst_7 = arith.constant 3.200000e+01 : f32
    %12 = vector.broadcast %cst_7 : f32 to vector<4x1xf32>
    %13 = arith.divf %11, %12 : vector<4x1xf32>
    %14 = vector.broadcast %6 : vector<4x1xf32> to vector<4x32xf32>
    %15 = arith.subf %0, %14 : vector<4x32xf32>
    %cst_8 = arith.constant 9.99999974E-6 : f32
    %16 = vector.broadcast %cst_8 : f32 to vector<4x1xf32>
    %17 = arith.addf %13, %16 : vector<4x1xf32>
    %18 = math.rsqrt %17 : vector<4x1xf32>
    %19 = vector.broadcast %18 : vector<4x1xf32> to vector<4x32xf32>
    %20 = arith.mulf %15, %19 : vector<4x32xf32>
    %21 = vector.broadcast %1 : vector<1x32xf32> to vector<4x32xf32>
    %22 = arith.mulf %20, %21 : vector<4x32xf32>
    %23 = vector.broadcast %2 : vector<1x32xf32> to vector<4x32xf32>
    %24 = arith.addf %22, %23 : vector<4x32xf32>
    %c0_i32 = arith.constant 0 : i32
    %25 = arith.cmpi eq, %arg2, %c0_i32 : i32
    %26 = arith.extui %25 : i1 to i32
    %c0_i32_9 = arith.constant 0 : i32
    %27 = arith.cmpi ne, %26, %c0_i32_9 : i32
    scf.if %27 {
      %cst_19 = arith.constant 0.000000e+00 : f32
      %37 = vector.broadcast %cst_19 : f32 to vector<4x32xf32>
      %c0_20 = arith.constant 0 : index
      %c0_21 = arith.constant 0 : index
      %38 = vector.load %arg8[%c0_20, %c0_21] : memref<4x32xf32, #tpu.memory_space<vmem>>, vector<4x32xf32>
      tpu.vector_store %arg8[%c0_20, %c0_21], %37 {strides = array<i32>} : memref<4x32xf32, #tpu.memory_space<vmem>>, vector<4x32xf32>,
    } else {
    }
    %c0_10 = arith.constant 0 : index
    %c0_11 = arith.constant 0 : index
    %28 = vector.load %arg8[%c0_10, %c0_11] : memref<4x32xf32, #tpu.memory_space<vmem>>, vector<4x32xf32>
    %29 = arith.truncf %24 : vector<4x32xf32> to vector<4x32xbf16>
    %c0_12 = arith.constant 0 : index
    %c0_13 = arith.constant 0 : index
    %30 = vector.load %arg4[%c0_12, %c0_13] : memref<32x32xbf16, #tpu.memory_space<vmem>>, vector<32x32xbf16>
    %cst_14 = arith.constant dense<0.000000e+00> : vector<4x32xf32>
    %31 = tpu.matmul %29, %30, %cst_14 {dimension_numbers = #tpu.dot_dimension_numbers<[1], [0], [0], [1], [0, 0, 1, 1], [], []>} : vector<4x32xbf16>, vector<32x32xbf16>, vector<4x32xf32> -> vector<4x32xf32>
    %32 = arith.addf %28, %31 : vector<4x32xf32>
    %c0_15 = arith.constant 0 : index
    %c0_16 = arith.constant 0 : index
    %33 = vector.load %arg8[%c0_15, %c0_16] : memref<4x32xf32, #tpu.memory_space<vmem>>, vector<4x32xf32>
    tpu.vector_store %arg8[%c0_15, %c0_16], %32 {strides = array<i32>} : memref<4x32xf32, #tpu.memory_space<vmem>>, vector<4x32xf32>,
    %c0_i32_17 = arith.constant 0 : i32
    %34 = arith.cmpi eq, %arg2, %c0_i32_17 : i32
    %35 = arith.extui %34 : i1 to i32
    %c0_i32_18 = arith.constant 0 : i32
    %36 = arith.cmpi ne, %35, %c0_i32_18 : i32
    scf.if %36 {
      %c0_19 = arith.constant 0 : index
      %c0_20 = arith.constant 0 : index
      %37 = vector.load %arg8[%c0_19, %c0_20] : memref<4x32xf32, #tpu.memory_space<vmem>>, vector<4x32xf32>
      %c0_21 = arith.constant 0 : index
      %c0_22 = arith.constant 0 : index
      %38 = vector.load %arg7[%c0_21, %c0_22] : memref<4x32xf32, #tpu.memory_space<vmem>>, vector<4x32xf32>
      tpu.vector_store %arg7[%c0_21, %c0_22], %37 {strides = array<i32>} : memref<4x32xf32, #tpu.memory_space<vmem>>, vector<4x32xf32>,
    } else {
    }
    return
  }
  func.func @transform_0(%arg0: i32, %arg1: i32, %arg2: i32) -> (i32, i32) {
    %c0_i32 = arith.constant 0 : i32
    return %arg0, %arg2 : i32, i32
  }
  func.func @transform_1(%arg0: i32, %arg1: i32, %arg2: i32) -> (i32, i32) {
    %c0_i32 = arith.constant 0 : i32
    return %arg2, %arg1 : i32, i32
  }
  func.func @transform_2(%arg0: i32, %arg1: i32, %arg2: i32) -> (i32, i32) {
    %c0_i32 = arith.constant 0 : i32
    %c0_i32_0 = arith.constant 0 : i32
    %c0_i32_1 = arith.constant 0 : i32
    return %c0_i32, %c0_i32_0 : i32, i32
  }
  func.func @transform_3(%arg0: i32, %arg1: i32, %arg2: i32) -> (i32, i32) {
    %c0_i32 = arith.constant 0 : i32
    %c0_i32_0 = arith.constant 0 : i32
    %c0_i32_1 = arith.constant 0 : i32
    return %c0_i32, %c0_i32_0 : i32, i32
  }
  func.func @transform_4(%arg0: i32, %arg1: i32, %arg2: i32) -> (i32, i32) {
    %c0_i32 = arith.constant 0 : i32
    return %arg0, %arg1 : i32, i32
  }
}

module attributes {stable_mosaic.version = 11 : i64} {
  func.func @_mean_norm_kernel(%arg0: i32, %arg1: memref<2x2x32xf32, #tpu.memory_space<vmem>>, %arg2: memref<2x32xf32, #tpu.memory_space<vmem>>) attributes {dimension_semantics = [#tpu.dimension_semantics<parallel>], iteration_bounds = array<i64: 1>, scalar_prefetch = 0 : i64, scratch_operands = 0 : i64, tpu.core_type = #tpu.core_type<tc>, window_params = [{transform_indices = @transform_0, window_bounds = array<i64: 2, 2, 32>}, {transform_indices = @transform_1, window_bounds = array<i64: 2, 32>}]} {
    %c0 = arith.constant 0 : index
    %c0_0 = arith.constant 0 : index
    %c0_1 = arith.constant 0 : index
    %0 = vector.load %arg1[%c0, %c0_0, %c0_1] : memref<2x2x32xf32, #tpu.memory_space<vmem>>, vector<2x2x32xf32>
    %cst = arith.constant dense<0.000000e+00> : vector<2x32xf32>
    %1 = vector.multi_reduction <add>, %0, %cst [1] : vector<2x2x32xf32> to vector<2x32xf32>
    %cst_2 = arith.constant 2.000000e+00 : f32
    %2 = vector.broadcast %cst_2 : f32 to vector<2x32xf32>
    %3 = arith.divf %1, %2 : vector<2x32xf32>
    %4 = arith.mulf %3, %3 : vector<2x32xf32>
    %cst_3 = arith.constant dense<0.000000e+00> : vector<2xf32>
    %5 = vector.multi_reduction <add>, %4, %cst_3 [1] : vector<2x32xf32> to vector<2xf32>
    %6 = vector.shape_cast %5 : vector<2xf32> to vector<2x1xf32>
    %7 = math.rsqrt %6 : vector<2x1xf32>
    %8 = vector.broadcast %7 : vector<2x1xf32> to vector<2x32xf32>
    %9 = arith.mulf %3, %8 : vector<2x32xf32>
    %c0_4 = arith.constant 0 : index
    %c0_5 = arith.constant 0 : index
    %10 = vector.load %arg2[%c0_4, %c0_5] : memref<2x32xf32, #tpu.memory_space<vmem>>, vector<2x32xf32>
    tpu.vector_store %arg2[%c0_4, %c0_5], %9 {strides = array<i32>} : memref<2x32xf32, #tpu.memory_space<vmem>>, vector<2x32xf32>,
    return
  }
  func.func @transform_0(%arg0: i32) -> (i32, i32, i32) {
    %c0_i32 = arith.constant 0 : i32
    %c0_i32_0 = arith.constant 0 : i32
    %c0_i32_1 = arith.constant 0 : i32
    return %arg0, %c0_i32, %c0_i32_0 : i32, i32, i32
  }
  func.func @transform_1(%arg0: i32) -> (i32, i32) {
    %c0_i32 = arith.constant 0 : i32
    %c0_i32_0 = arith.constant 0 : i32
    return %arg0, %c0_i32 : i32, i32
  }
}

module attributes {stable_mosaic.version = 11 : i64} {
  func.func @_ln_qkv_kernel(%arg0: i32, %arg1: i32, %arg2: memref<8x32xf32, #tpu.memory_space<vmem>>, %arg3: memref<1x32xf32, #tpu.memory_space<vmem>>, %arg4: memref<1x32xf32, #tpu.memory_space<vmem>>, %arg5: memref<32x32xbf16, #tpu.memory_space<vmem>>, %arg6: memref<32x32xbf16, #tpu.memory_space<vmem>>, %arg7: memref<32x32xbf16, #tpu.memory_space<vmem>>, %arg8: memref<1x32xf32, #tpu.memory_space<vmem>>, %arg9: memref<1x32xf32, #tpu.memory_space<vmem>>, %arg10: memref<1x32xf32, #tpu.memory_space<vmem>>, %arg11: memref<8x32xbf16, #tpu.memory_space<vmem>>, %arg12: memref<8x32xbf16, #tpu.memory_space<vmem>>, %arg13: memref<8x32xbf16, #tpu.memory_space<vmem>>) attributes {dimension_semantics = [#tpu.dimension_semantics<parallel>, #tpu.dimension_semantics<parallel>], iteration_bounds = array<i64: 3, 1>, scalar_prefetch = 0 : i64, scratch_operands = 0 : i64, tpu.core_type = #tpu.core_type<tc>, window_params = [{transform_indices = @transform_0, window_bounds = array<i64: 8, 32>}, {pipeline_mode = #tpu.pipeline_mode<synchronous>, transform_indices = @transform_1, window_bounds = array<i64: 1, 32>}, {pipeline_mode = #tpu.pipeline_mode<synchronous>, transform_indices = @transform_2, window_bounds = array<i64: 1, 32>}, {transform_indices = @transform_3, window_bounds = array<i64: 32, 32>}, {transform_indices = @transform_4, window_bounds = array<i64: 32, 32>}, {transform_indices = @transform_5, window_bounds = array<i64: 32, 32>}, {transform_indices = @transform_6, window_bounds = array<i64: 1, 32>}, {transform_indices = @transform_7, window_bounds = array<i64: 1, 32>}, {transform_indices = @transform_8, window_bounds = array<i64: 1, 32>}, {transform_indices = @transform_9, window_bounds = array<i64: 8, 32>}, {transform_indices = @transform_10, window_bounds = array<i64: 8, 32>}, {transform_indices = @transform_11, window_bounds = array<i64: 8, 32>}]} {
    %c0 = arith.constant 0 : index
    %c0_0 = arith.constant 0 : index
    %0 = vector.load %arg2[%c0, %c0_0] : memref<8x32xf32, #tpu.memory_space<vmem>>, vector<8x32xf32>
    %c0_1 = arith.constant 0 : index
    %c0_2 = arith.constant 0 : index
    %1 = vector.load %arg3[%c0_1, %c0_2] : memref<1x32xf32, #tpu.memory_space<vmem>>, vector<1x32xf32>
    %c0_3 = arith.constant 0 : index
    %c0_4 = arith.constant 0 : index
    %2 = vector.load %arg4[%c0_3, %c0_4] : memref<1x32xf32, #tpu.memory_space<vmem>>, vector<1x32xf32>
    %cst = arith.constant dense<0.000000e+00> : vector<8xf32>
    %3 = vector.multi_reduction <add>, %0, %cst [1] : vector<8x32xf32> to vector<8xf32>
    %4 = vector.shape_cast %3 : vector<8xf32> to vector<8x1xf32>
    %cst_5 = arith.constant 3.200000e+01 : f32
    %5 = vector.broadcast %cst_5 : f32 to vector<8x1xf32>
    %6 = arith.divf %4, %5 : vector<8x1xf32>
    %7 = vector.broadcast %6 : vector<8x1xf32> to vector<8x32xf32>
    %8 = arith.subf %0, %7 : vector<8x32xf32>
    %9 = arith.mulf %8, %8 : vector<8x32xf32>
    %cst_6 = arith.constant dense<0.000000e+00> : vector<8xf32>
    %10 = vector.multi_reduction <add>, %9, %cst_6 [1] : vector<8x32xf32> to vector<8xf32>
    %11 = vector.shape_cast %10 : vector<8xf32> to vector<8x1xf32>
    %cst_7 = arith.constant 3.200000e+01 : f32
    %12 = vector.broadcast %cst_7 : f32 to vector<8x1xf32>
    %13 = arith.divf %11, %12 : vector<8x1xf32>
    %14 = vector.broadcast %6 : vector<8x1xf32> to vector<8x32xf32>
    %15 = arith.subf %0, %14 : vector<8x32xf32>
    %cst_8 = arith.constant 9.99999974E-6 : f32
    %16 = vector.broadcast %cst_8 : f32 to vector<8x1xf32>
    %17 = arith.addf %13, %16 : vector<8x1xf32>
    %18 = math.rsqrt %17 : vector<8x1xf32>
    %19 = vector.broadcast %18 : vector<8x1xf32> to vector<8x32xf32>
    %20 = arith.mulf %15, %19 : vector<8x32xf32>
    %21 = vector.broadcast %1 : vector<1x32xf32> to vector<8x32xf32>
    %22 = arith.mulf %20, %21 : vector<8x32xf32>
    %23 = vector.broadcast %2 : vector<1x32xf32> to vector<8x32xf32>
    %24 = arith.addf %22, %23 : vector<8x32xf32>
    %25 = arith.truncf %24 : vector<8x32xf32> to vector<8x32xbf16>
    %c0_9 = arith.constant 0 : index
    %c0_10 = arith.constant 0 : index
    %26 = vector.load %arg5[%c0_9, %c0_10] : memref<32x32xbf16, #tpu.memory_space<vmem>>, vector<32x32xbf16>
    %cst_11 = arith.constant dense<0.000000e+00> : vector<8x32xf32>
    %27 = tpu.matmul %25, %26, %cst_11 {dimension_numbers = #tpu.dot_dimension_numbers<[1], [0], [0], [1], [0, 0, 1, 1], [], []>} : vector<8x32xbf16>, vector<32x32xbf16>, vector<8x32xf32> -> vector<8x32xf32>
    %c0_12 = arith.constant 0 : index
    %c0_13 = arith.constant 0 : index
    %28 = vector.load %arg8[%c0_12, %c0_13] : memref<1x32xf32, #tpu.memory_space<vmem>>, vector<1x32xf32>
    %29 = vector.broadcast %28 : vector<1x32xf32> to vector<8x32xf32>
    %30 = arith.addf %27, %29 : vector<8x32xf32>
    %31 = arith.truncf %30 : vector<8x32xf32> to vector<8x32xbf16>
    %c0_14 = arith.constant 0 : index
    %c0_15 = arith.constant 0 : index
    %32 = vector.load %arg11[%c0_14, %c0_15] : memref<8x32xbf16, #tpu.memory_space<vmem>>, vector<8x32xbf16>
    tpu.vector_store %arg11[%c0_14, %c0_15], %31 {strides = array<i32>} : memref<8x32xbf16, #tpu.memory_space<vmem>>, vector<8x32xbf16>,
    %c0_16 = arith.constant 0 : index
    %c0_17 = arith.constant 0 : index
    %33 = vector.load %arg6[%c0_16, %c0_17] : memref<32x32xbf16, #tpu.memory_space<vmem>>, vector<32x32xbf16>
    %cst_18 = arith.constant dense<0.000000e+00> : vector<8x32xf32>
    %34 = tpu.matmul %25, %33, %cst_18 {dimension_numbers = #tpu.dot_dimension_numbers<[1], [0], [0], [1], [0, 0, 1, 1], [], []>} : vector<8x32xbf16>, vector<32x32xbf16>, vector<8x32xf32> -> vector<8x32xf32>
    %c0_19 = arith.constant 0 : index
    %c0_20 = arith.constant 0 : index
    %35 = vector.load %arg9[%c0_19, %c0_20] : memref<1x32xf32, #tpu.memory_space<vmem>>, vector<1x32xf32>
    %36 = vector.broadcast %35 : vector<1x32xf32> to vector<8x32xf32>
    %37 = arith.addf %34, %36 : vector<8x32xf32>
    %38 = arith.truncf %37 : vector<8x32xf32> to vector<8x32xbf16>
    %c0_21 = arith.constant 0 : index
    %c0_22 = arith.constant 0 : index
    %39 = vector.load %arg12[%c0_21, %c0_22] : memref<8x32xbf16, #tpu.memory_space<vmem>>, vector<8x32xbf16>
    tpu.vector_store %arg12[%c0_21, %c0_22], %38 {strides = array<i32>} : memref<8x32xbf16, #tpu.memory_space<vmem>>, vector<8x32xbf16>,
    %c0_23 = arith.constant 0 : index
    %c0_24 = arith.constant 0 : index
    %40 = vector.load %arg7[%c0_23, %c0_24] : memref<32x32xbf16, #tpu.memory_space<vmem>>, vector<32x32xbf16>
    %cst_25 = arith.constant dense<0.000000e+00> : vector<8x32xf32>
    %41 = tpu.matmul %25, %40, %cst_25 {dimension_numbers = #tpu.dot_dimension_numbers<[1], [0], [0], [1], [0, 0, 1, 1], [], []>} : vector<8x32xbf16>, vector<32x32xbf16>, vector<8x32xf32> -> vector<8x32xf32>
    %c0_26 = arith.constant 0 : index
    %c0_27 = arith.constant 0 : index
    %42 = vector.load %arg10[%c0_26, %c0_27] : memref<1x32xf32, #tpu.memory_space<vmem>>, vector<1x32xf32>
    %43 = vector.broadcast %42 : vector<1x32xf32> to vector<8x32xf32>
    %44 = arith.addf %41, %43 : vector<8x32xf32>
    %45 = arith.truncf %44 : vector<8x32xf32> to vector<8x32xbf16>
    %c0_28 = arith.constant 0 : index
    %c0_29 = arith.constant 0 : index
    %46 = vector.load %arg13[%c0_28, %c0_29] : memref<8x32xbf16, #tpu.memory_space<vmem>>, vector<8x32xbf16>
    tpu.vector_store %arg13[%c0_28, %c0_29], %45 {strides = array<i32>} : memref<8x32xbf16, #tpu.memory_space<vmem>>, vector<8x32xbf16>,
    return
  }
  func.func @transform_0(%arg0: i32, %arg1: i32) -> (i32, i32) {
    %c0_i32 = arith.constant 0 : i32
    %c0_i32_0 = arith.constant 0 : i32
    return %arg0, %c0_i32 : i32, i32
  }
  func.func @transform_1(%arg0: i32, %arg1: i32) -> (i32, i32) {
    %c0_i32 = arith.constant 0 : i32
    %c0_i32_0 = arith.constant 0 : i32
    %c0_i32_1 = arith.constant 0 : i32
    return %c0_i32, %c0_i32_0 : i32, i32
  }
  func.func @transform_2(%arg0: i32, %arg1: i32) -> (i32, i32) {
    %c0_i32 = arith.constant 0 : i32
    %c0_i32_0 = arith.constant 0 : i32
    %c0_i32_1 = arith.constant 0 : i32
    return %c0_i32, %c0_i32_0 : i32, i32
  }
  func.func @transform_3(%arg0: i32, %arg1: i32) -> (i32, i32) {
    %c0_i32 = arith.constant 0 : i32
    %c0_i32_0 = arith.constant 0 : i32
    return %c0_i32, %arg1 : i32, i32
  }
  func.func @transform_4(%arg0: i32, %arg1: i32) -> (i32, i32) {
    %c0_i32 = arith.constant 0 : i32
    %c0_i32_0 = arith.constant 0 : i32
    return %c0_i32, %arg1 : i32, i32
  }
  func.func @transform_5(%arg0: i32, %arg1: i32) -> (i32, i32) {
    %c0_i32 = arith.constant 0 : i32
    %c0_i32_0 = arith.constant 0 : i32
    return %c0_i32, %arg1 : i32, i32
  }
  func.func @transform_6(%arg0: i32, %arg1: i32) -> (i32, i32) {
    %c0_i32 = arith.constant 0 : i32
    %c0_i32_0 = arith.constant 0 : i32
    return %c0_i32, %arg1 : i32, i32
  }
  func.func @transform_7(%arg0: i32, %arg1: i32) -> (i32, i32) {
    %c0_i32 = arith.constant 0 : i32
    %c0_i32_0 = arith.constant 0 : i32
    return %c0_i32, %arg1 : i32, i32
  }
  func.func @transform_8(%arg0: i32, %arg1: i32) -> (i32, i32) {
    %c0_i32 = arith.constant 0 : i32
    %c0_i32_0 = arith.constant 0 : i32
    return %c0_i32, %arg1 : i32, i32
  }
  func.func @transform_9(%arg0: i32, %arg1: i32) -> (i32, i32) {
    %c0_i32 = arith.constant 0 : i32
    return %arg0, %arg1 : i32, i32
  }
  func.func @transform_10(%arg0: i32, %arg1: i32) -> (i32, i32) {
    %c0_i32 = arith.constant 0 : i32
    return %arg0, %arg1 : i32, i32
  }
  func.func @transform_11(%arg0: i32, %arg1: i32) -> (i32, i32) {
    %c0_i32 = arith.constant 0 : i32
    return %arg0, %arg1 : i32, i32
  }
}

module attributes {stable_mosaic.version = 11 : i64} {
  func.func @_flash_attn_kernel(%arg0: i32, %arg1: i32, %arg2: i32, %arg3: memref<1x8x32xbf16, #tpu.memory_space<vmem>>, %arg4: memref<1x8x32xbf16, #tpu.memory_space<vmem>>, %arg5: memref<1x8x32xbf16, #tpu.memory_space<vmem>>, %arg6: memref<1x8x32xbf16, #tpu.memory_space<vmem>>, %arg7: memref<4x8x1xf32, #tpu.memory_space<vmem>>, %arg8: memref<4x8x1xf32, #tpu.memory_space<vmem>>, %arg9: memref<4x8x8xf32, #tpu.memory_space<vmem>>) attributes {dimension_semantics = [#tpu.dimension_semantics<parallel>, #tpu.dimension_semantics<parallel>, #tpu.dimension_semantics<arbitrary>], iteration_bounds = array<i64: 3, 1, 1>, scalar_prefetch = 0 : i64, scratch_operands = 3 : i64, tpu.core_type = #tpu.core_type<tc>, window_params = [{transform_indices = @transform_0, window_bounds = array<i64: 1, 8, 32>}, {transform_indices = @transform_1, window_bounds = array<i64: 1, 8, 32>}, {transform_indices = @transform_2, window_bounds = array<i64: 1, 8, 32>}, {transform_indices = @transform_3, window_bounds = array<i64: 1, 8, 32>}]} {
    %c0_i32 = arith.constant 0 : i32
    %0 = arith.cmpi eq, %arg2, %c0_i32 : i32
    %1 = arith.extui %0 : i1 to i32
    %c0_i32_0 = arith.constant 0 : i32
    %2 = arith.cmpi ne, %1, %c0_i32_0 : i32
    scf.if %2 {
      %cst_102 = arith.constant 0xFF800000 : f32
      %180 = vector.broadcast %cst_102 : f32 to vector<4x8x1xf32>
      %c0_103 = arith.constant 0 : index
      %c0_104 = arith.constant 0 : index
      %c0_105 = arith.constant 0 : index
      %181 = vector.load %arg7[%c0_103, %c0_104, %c0_105] : memref<4x8x1xf32, #tpu.memory_space<vmem>>, vector<4x8x1xf32>
      tpu.vector_store %arg7[%c0_103, %c0_104, %c0_105], %180 {strides = array<i32>} : memref<4x8x1xf32, #tpu.memory_space<vmem>>, vector<4x8x1xf32>,
      %cst_106 = arith.constant 0.000000e+00 : f32
      %182 = vector.broadcast %cst_106 : f32 to vector<4x8x1xf32>
      %c0_107 = arith.constant 0 : index
      %c0_108 = arith.constant 0 : index
      %c0_109 = arith.constant 0 : index
      %183 = vector.load %arg8[%c0_107, %c0_108, %c0_109] : memref<4x8x1xf32, #tpu.memory_space<vmem>>, vector<4x8x1xf32>
      tpu.vector_store %arg8[%c0_107, %c0_108, %c0_109], %182 {strides = array<i32>} : memref<4x8x1xf32, #tpu.memory_space<vmem>>, vector<4x8x1xf32>,
      %cst_110 = arith.constant 0.000000e+00 : f32
      %184 = vector.broadcast %cst_110 : f32 to vector<4x8x8xf32>
      %c0_111 = arith.constant 0 : index
      %c0_112 = arith.constant 0 : index
      %c0_113 = arith.constant 0 : index
      %185 = vector.load %arg9[%c0_111, %c0_112, %c0_113] : memref<4x8x8xf32, #tpu.memory_space<vmem>>, vector<4x8x8xf32>
      tpu.vector_store %arg9[%c0_111, %c0_112, %c0_113], %184 {strides = array<i32>} : memref<4x8x8xf32, #tpu.memory_space<vmem>>, vector<4x8x8xf32>,
    } else {
    }
    %c0 = arith.constant 0 : index
    %c0_1 = arith.constant 0 : index
    %c0_2 = arith.constant 0 : index
    %3 = vector.load %arg3[%c0, %c0_1, %c0_2] : memref<1x8x32xbf16, #tpu.memory_space<vmem>>, vector<1x8x32xbf16>
    %4 = vector.shape_cast %3 : vector<1x8x32xbf16> to vector<8x32xbf16>
    %c0_3 = arith.constant 0 : index
    %c0_4 = arith.constant 0 : index
    %c0_5 = arith.constant 0 : index
    %5 = vector.load %arg4[%c0_3, %c0_4, %c0_5] : memref<1x8x32xbf16, #tpu.memory_space<vmem>>, vector<1x8x32xbf16>
    %6 = vector.shape_cast %5 : vector<1x8x32xbf16> to vector<8x32xbf16>
    %c0_6 = arith.constant 0 : index
    %c0_7 = arith.constant 0 : index
    %c0_8 = arith.constant 0 : index
    %7 = vector.load %arg5[%c0_6, %c0_7, %c0_8] : memref<1x8x32xbf16, #tpu.memory_space<vmem>>, vector<1x8x32xbf16>
    %8 = vector.shape_cast %7 : vector<1x8x32xbf16> to vector<8x32xbf16>
    %c8_i32 = arith.constant 8 : i32
    %9 = arith.muli %arg1, %c8_i32 : i32
    %10 = tpu.iota {dimensions = array<i32: 0>} : vector<8x8xi32>
    %11 = vector.broadcast %9 : i32 to vector<8x8xi32>
    %12 = arith.addi %11, %10 : vector<8x8xi32>
    %c8_i32_9 = arith.constant 8 : i32
    %13 = arith.muli %arg2, %c8_i32_9 : i32
    %14 = tpu.iota {dimensions = array<i32: 1>} : vector<8x8xi32>
    %15 = vector.broadcast %13 : i32 to vector<8x8xi32>
    %16 = arith.addi %15, %14 : vector<8x8xi32>
    %17 = arith.cmpi sgt, %16, %12 : vector<8x8xi32>
    %cst = arith.constant -1.000000e+30 : f32
    %cst_10 = arith.constant 0.000000e+00 : f32
    %18 = vector.broadcast %cst : f32 to vector<8x8xf32>
    %19 = vector.broadcast %cst_10 : f32 to vector<8x8xf32>
    %20 = arith.select %17, %18, %19 : vector<8x8xi1>, vector<8x8xf32>
    %21 = vector.extract_strided_slice %4 {offsets = [0, 0], sizes = [8, 8], strides = [1, 1]} : vector<8x32xbf16> to vector<8x8xbf16>
    %22 = vector.extract_strided_slice %6 {offsets = [0, 0], sizes = [8, 8], strides = [1, 1]} : vector<8x32xbf16> to vector<8x8xbf16>
    %23 = vector.extract_strided_slice %8 {offsets = [0, 0], sizes = [8, 8], strides = [1, 1]} : vector<8x32xbf16> to vector<8x8xbf16>
    "tpu.trace_start"() <{level = 10 : i32, message = "qd,kd->qk"}> : () -> ()
    %cst_11 = arith.constant dense<0.000000e+00> : vector<8x8xf32>
    %24 = tpu.matmul %21, %22, %cst_11 {dimension_numbers = #tpu.dot_dimension_numbers<[1], [1], [0], [0], [0, 0, 1, 0], [], []>} : vector<8x8xbf16>, vector<8x8xbf16>, vector<8x8xf32> -> vector<8x8xf32>
    "tpu.trace_stop"() : () -> ()
    %cst_12 = arith.constant 0.353553385 : f32
    %25 = vector.broadcast %cst_12 : f32 to vector<8x8xf32>
    %26 = arith.mulf %24, %25 : vector<8x8xf32>
    %27 = arith.addf %26, %20 : vector<8x8xf32>
    %c0_13 = arith.constant 0 : index
    %c0_14 = arith.constant 0 : index
    %c0_15 = arith.constant 0 : index
    %28 = vector.load %arg7[%c0_13, %c0_14, %c0_15] : memref<4x8x1xf32, #tpu.memory_space<vmem>>, vector<1x8x1xf32>
    %29 = vector.shape_cast %28 : vector<1x8x1xf32> to vector<8x1xf32>
    %cst_16 = arith.constant dense<0xFF800000> : vector<8xf32>
    %30 = vector.multi_reduction <maximumf>, %27, %cst_16 [1] : vector<8x8xf32> to vector<8xf32>
    %31 = vector.shape_cast %30 : vector<8xf32> to vector<8x1xf32>
    %32 = arith.maximumf %29, %31 : vector<8x1xf32>
    %33 = arith.subf %29, %32 : vector<8x1xf32>
    %34 = math.exp %33 : vector<8x1xf32>
    %35 = vector.broadcast %32 : vector<8x1xf32> to vector<8x8xf32>
    %36 = arith.subf %27, %35 : vector<8x8xf32>
    %37 = math.exp %36 : vector<8x8xf32>
    %c0_17 = arith.constant 0 : index
    %c0_18 = arith.constant 0 : index
    %c0_19 = arith.constant 0 : index
    %38 = vector.load %arg8[%c0_17, %c0_18, %c0_19] : memref<4x8x1xf32, #tpu.memory_space<vmem>>, vector<1x8x1xf32>
    %39 = vector.shape_cast %38 : vector<1x8x1xf32> to vector<8x1xf32>
    %40 = arith.mulf %34, %39 : vector<8x1xf32>
    %cst_20 = arith.constant dense<0.000000e+00> : vector<8xf32>
    %41 = vector.multi_reduction <add>, %37, %cst_20 [1] : vector<8x8xf32> to vector<8xf32>
    %42 = vector.shape_cast %41 : vector<8xf32> to vector<8x1xf32>
    %43 = arith.addf %40, %42 : vector<8x1xf32>
    %c0_21 = arith.constant 0 : index
    %c0_22 = arith.constant 0 : index
    %c0_23 = arith.constant 0 : index
    %44 = vector.load %arg8[%c0_21, %c0_22, %c0_23] : memref<4x8x1xf32, #tpu.memory_space<vmem>>, vector<1x8x1xf32>
    %45 = vector.shape_cast %44 : vector<1x8x1xf32> to vector<8x1xf32>
    %46 = vector.shape_cast %43 : vector<8x1xf32> to vector<1x8x1xf32>
    tpu.vector_store %arg8[%c0_21, %c0_22, %c0_23], %46 {strides = array<i32>} : memref<4x8x1xf32, #tpu.memory_space<vmem>>, vector<1x8x1xf32>,
    %c0_24 = arith.constant 0 : index
    %c0_25 = arith.constant 0 : index
    %c0_26 = arith.constant 0 : index
    %47 = vector.load %arg9[%c0_24, %c0_25, %c0_26] : memref<4x8x8xf32, #tpu.memory_space<vmem>>, vector<1x8x8xf32>
    %48 = vector.shape_cast %47 : vector<1x8x8xf32> to vector<8x8xf32>
    %49 = vector.broadcast %34 : vector<8x1xf32> to vector<8x8xf32>
    %50 = arith.mulf %49, %48 : vector<8x8xf32>
    %51 = arith.truncf %37 : vector<8x8xf32> to vector<8x8xbf16>
    %cst_27 = arith.constant dense<0.000000e+00> : vector<8x8xf32>
    %52 = tpu.matmul %51, %23, %cst_27 {dimension_numbers = #tpu.dot_dimension_numbers<[1], [0], [0], [1], [0, 0, 1, 1], [], []>} : vector<8x8xbf16>, vector<8x8xbf16>, vector<8x8xf32> -> vector<8x8xf32>
    %53 = arith.addf %50, %52 : vector<8x8xf32>
    %c0_28 = arith.constant 0 : index
    %c0_29 = arith.constant 0 : index
    %c0_30 = arith.constant 0 : index
    %54 = vector.load %arg9[%c0_28, %c0_29, %c0_30] : memref<4x8x8xf32, #tpu.memory_space<vmem>>, vector<1x8x8xf32>
    %55 = vector.shape_cast %54 : vector<1x8x8xf32> to vector<8x8xf32>
    %56 = vector.shape_cast %53 : vector<8x8xf32> to vector<1x8x8xf32>
    tpu.vector_store %arg9[%c0_28, %c0_29, %c0_30], %56 {strides = array<i32>} : memref<4x8x8xf32, #tpu.memory_space<vmem>>, vector<1x8x8xf32>,
    %c0_31 = arith.constant 0 : index
    %c0_32 = arith.constant 0 : index
    %c0_33 = arith.constant 0 : index
    %57 = vector.load %arg7[%c0_31, %c0_32, %c0_33] : memref<4x8x1xf32, #tpu.memory_space<vmem>>, vector<1x8x1xf32>
    %58 = vector.shape_cast %57 : vector<1x8x1xf32> to vector<8x1xf32>
    %59 = vector.shape_cast %32 : vector<8x1xf32> to vector<1x8x1xf32>
    tpu.vector_store %arg7[%c0_31, %c0_32, %c0_33], %59 {strides = array<i32>} : memref<4x8x1xf32, #tpu.memory_space<vmem>>, vector<1x8x1xf32>,
    %60 = vector.extract_strided_slice %4 {offsets = [0, 8], sizes = [8, 8], strides = [1, 1]} : vector<8x32xbf16> to vector<8x8xbf16>
    %61 = vector.extract_strided_slice %6 {offsets = [0, 8], sizes = [8, 8], strides = [1, 1]} : vector<8x32xbf16> to vector<8x8xbf16>
    %62 = vector.extract_strided_slice %8 {offsets = [0, 8], sizes = [8, 8], strides = [1, 1]} : vector<8x32xbf16> to vector<8x8xbf16>
    "tpu.trace_start"() <{level = 10 : i32, message = "qd,kd->qk"}> : () -> ()
    %cst_34 = arith.constant dense<0.000000e+00> : vector<8x8xf32>
    %63 = tpu.matmul %60, %61, %cst_34 {dimension_numbers = #tpu.dot_dimension_numbers<[1], [1], [0], [0], [0, 0, 1, 0], [], []>} : vector<8x8xbf16>, vector<8x8xbf16>, vector<8x8xf32> -> vector<8x8xf32>
    "tpu.trace_stop"() : () -> ()
    %cst_35 = arith.constant 0.353553385 : f32
    %64 = vector.broadcast %cst_35 : f32 to vector<8x8xf32>
    %65 = arith.mulf %63, %64 : vector<8x8xf32>
    %66 = arith.addf %65, %20 : vector<8x8xf32>
    %c1 = arith.constant 1 : index
    %c0_36 = arith.constant 0 : index
    %c0_37 = arith.constant 0 : index
    %67 = vector.load %arg7[%c1, %c0_36, %c0_37] : memref<4x8x1xf32, #tpu.memory_space<vmem>>, vector<1x8x1xf32>
    %68 = vector.shape_cast %67 : vector<1x8x1xf32> to vector<8x1xf32>
    %cst_38 = arith.constant dense<0xFF800000> : vector<8xf32>
    %69 = vector.multi_reduction <maximumf>, %66, %cst_38 [1] : vector<8x8xf32> to vector<8xf32>
    %70 = vector.shape_cast %69 : vector<8xf32> to vector<8x1xf32>
    %71 = arith.maximumf %68, %70 : vector<8x1xf32>
    %72 = arith.subf %68, %71 : vector<8x1xf32>
    %73 = math.exp %72 : vector<8x1xf32>
    %74 = vector.broadcast %71 : vector<8x1xf32> to vector<8x8xf32>
    %75 = arith.subf %66, %74 : vector<8x8xf32>
    %76 = math.exp %75 : vector<8x8xf32>
    %c1_39 = arith.constant 1 : index
    %c0_40 = arith.constant 0 : index
    %c0_41 = arith.constant 0 : index
    %77 = vector.load %arg8[%c1_39, %c0_40, %c0_41] : memref<4x8x1xf32, #tpu.memory_space<vmem>>, vector<1x8x1xf32>
    %78 = vector.shape_cast %77 : vector<1x8x1xf32> to vector<8x1xf32>
    %79 = arith.mulf %73, %78 : vector<8x1xf32>
    %cst_42 = arith.constant dense<0.000000e+00> : vector<8xf32>
    %80 = vector.multi_reduction <add>, %76, %cst_42 [1] : vector<8x8xf32> to vector<8xf32>
    %81 = vector.shape_cast %80 : vector<8xf32> to vector<8x1xf32>
    %82 = arith.addf %79, %81 : vector<8x1xf32>
    %c1_43 = arith.constant 1 : index
    %c0_44 = arith.constant 0 : index
    %c0_45 = arith.constant 0 : index
    %83 = vector.load %arg8[%c1_43, %c0_44, %c0_45] : memref<4x8x1xf32, #tpu.memory_space<vmem>>, vector<1x8x1xf32>
    %84 = vector.shape_cast %83 : vector<1x8x1xf32> to vector<8x1xf32>
    %85 = vector.shape_cast %82 : vector<8x1xf32> to vector<1x8x1xf32>
    tpu.vector_store %arg8[%c1_43, %c0_44, %c0_45], %85 {strides = array<i32>} : memref<4x8x1xf32, #tpu.memory_space<vmem>>, vector<1x8x1xf32>,
    %c1_46 = arith.constant 1 : index
    %c0_47 = arith.constant 0 : index
    %c0_48 = arith.constant 0 : index
    %86 = vector.load %arg9[%c1_46, %c0_47, %c0_48] : memref<4x8x8xf32, #tpu.memory_space<vmem>>, vector<1x8x8xf32>
    %87 = vector.shape_cast %86 : vector<1x8x8xf32> to vector<8x8xf32>
    %88 = vector.broadcast %73 : vector<8x1xf32> to vector<8x8xf32>
    %89 = arith.mulf %88, %87 : vector<8x8xf32>
    %90 = arith.truncf %76 : vector<8x8xf32> to vector<8x8xbf16>
    %cst_49 = arith.constant dense<0.000000e+00> : vector<8x8xf32>
    %91 = tpu.matmul %90, %62, %cst_49 {dimension_numbers = #tpu.dot_dimension_numbers<[1], [0], [0], [1], [0, 0, 1, 1], [], []>} : vector<8x8xbf16>, vector<8x8xbf16>, vector<8x8xf32> -> vector<8x8xf32>
    %92 = arith.addf %89, %91 : vector<8x8xf32>
    %c1_50 = arith.constant 1 : index
    %c0_51 = arith.constant 0 : index
    %c0_52 = arith.constant 0 : index
    %93 = vector.load %arg9[%c1_50, %c0_51, %c0_52] : memref<4x8x8xf32, #tpu.memory_space<vmem>>, vector<1x8x8xf32>
    %94 = vector.shape_cast %93 : vector<1x8x8xf32> to vector<8x8xf32>
    %95 = vector.shape_cast %92 : vector<8x8xf32> to vector<1x8x8xf32>
    tpu.vector_store %arg9[%c1_50, %c0_51, %c0_52], %95 {strides = array<i32>} : memref<4x8x8xf32, #tpu.memory_space<vmem>>, vector<1x8x8xf32>,
    %c1_53 = arith.constant 1 : index
    %c0_54 = arith.constant 0 : index
    %c0_55 = arith.constant 0 : index
    %96 = vector.load %arg7[%c1_53, %c0_54, %c0_55] : memref<4x8x1xf32, #tpu.memory_space<vmem>>, vector<1x8x1xf32>
    %97 = vector.shape_cast %96 : vector<1x8x1xf32> to vector<8x1xf32>
    %98 = vector.shape_cast %71 : vector<8x1xf32> to vector<1x8x1xf32>
    tpu.vector_store %arg7[%c1_53, %c0_54, %c0_55], %98 {strides = array<i32>} : memref<4x8x1xf32, #tpu.memory_space<vmem>>, vector<1x8x1xf32>,
    %99 = vector.extract_strided_slice %4 {offsets = [0, 16], sizes = [8, 8], strides = [1, 1]} : vector<8x32xbf16> to vector<8x8xbf16>
    %100 = vector.extract_strided_slice %6 {offsets = [0, 16], sizes = [8, 8], strides = [1, 1]} : vector<8x32xbf16> to vector<8x8xbf16>
    %101 = vector.extract_strided_slice %8 {offsets = [0, 16], sizes = [8, 8], strides = [1, 1]} : vector<8x32xbf16> to vector<8x8xbf16>
    "tpu.trace_start"() <{level = 10 : i32, message = "qd,kd->qk"}> : () -> ()
    %cst_56 = arith.constant dense<0.000000e+00> : vector<8x8xf32>
    %102 = tpu.matmul %99, %100, %cst_56 {dimension_numbers = #tpu.dot_dimension_numbers<[1], [1], [0], [0], [0, 0, 1, 0], [], []>} : vector<8x8xbf16>, vector<8x8xbf16>, vector<8x8xf32> -> vector<8x8xf32>
    "tpu.trace_stop"() : () -> ()
    %cst_57 = arith.constant 0.353553385 : f32
    %103 = vector.broadcast %cst_57 : f32 to vector<8x8xf32>
    %104 = arith.mulf %102, %103 : vector<8x8xf32>
    %105 = arith.addf %104, %20 : vector<8x8xf32>
    %c2 = arith.constant 2 : index
    %c0_58 = arith.constant 0 : index
    %c0_59 = arith.constant 0 : index
    %106 = vector.load %arg7[%c2, %c0_58, %c0_59] : memref<4x8x1xf32, #tpu.memory_space<vmem>>, vector<1x8x1xf32>
    %107 = vector.shape_cast %106 : vector<1x8x1xf32> to vector<8x1xf32>
    %cst_60 = arith.constant dense<0xFF800000> : vector<8xf32>
    %108 = vector.multi_reduction <maximumf>, %105, %cst_60 [1] : vector<8x8xf32> to vector<8xf32>
    %109 = vector.shape_cast %108 : vector<8xf32> to vector<8x1xf32>
    %110 = arith.maximumf %107, %109 : vector<8x1xf32>
    %111 = arith.subf %107, %110 : vector<8x1xf32>
    %112 = math.exp %111 : vector<8x1xf32>
    %113 = vector.broadcast %110 : vector<8x1xf32> to vector<8x8xf32>
    %114 = arith.subf %105, %113 : vector<8x8xf32>
    %115 = math.exp %114 : vector<8x8xf32>
    %c2_61 = arith.constant 2 : index
    %c0_62 = arith.constant 0 : index
    %c0_63 = arith.constant 0 : index
    %116 = vector.load %arg8[%c2_61, %c0_62, %c0_63] : memref<4x8x1xf32, #tpu.memory_space<vmem>>, vector<1x8x1xf32>
    %117 = vector.shape_cast %116 : vector<1x8x1xf32> to vector<8x1xf32>
    %118 = arith.mulf %112, %117 : vector<8x1xf32>
    %cst_64 = arith.constant dense<0.000000e+00> : vector<8xf32>
    %119 = vector.multi_reduction <add>, %115, %cst_64 [1] : vector<8x8xf32> to vector<8xf32>
    %120 = vector.shape_cast %119 : vector<8xf32> to vector<8x1xf32>
    %121 = arith.addf %118, %120 : vector<8x1xf32>
    %c2_65 = arith.constant 2 : index
    %c0_66 = arith.constant 0 : index
    %c0_67 = arith.constant 0 : index
    %122 = vector.load %arg8[%c2_65, %c0_66, %c0_67] : memref<4x8x1xf32, #tpu.memory_space<vmem>>, vector<1x8x1xf32>
    %123 = vector.shape_cast %122 : vector<1x8x1xf32> to vector<8x1xf32>
    %124 = vector.shape_cast %121 : vector<8x1xf32> to vector<1x8x1xf32>
    tpu.vector_store %arg8[%c2_65, %c0_66, %c0_67], %124 {strides = array<i32>} : memref<4x8x1xf32, #tpu.memory_space<vmem>>, vector<1x8x1xf32>,
    %c2_68 = arith.constant 2 : index
    %c0_69 = arith.constant 0 : index
    %c0_70 = arith.constant 0 : index
    %125 = vector.load %arg9[%c2_68, %c0_69, %c0_70] : memref<4x8x8xf32, #tpu.memory_space<vmem>>, vector<1x8x8xf32>
    %126 = vector.shape_cast %125 : vector<1x8x8xf32> to vector<8x8xf32>
    %127 = vector.broadcast %112 : vector<8x1xf32> to vector<8x8xf32>
    %128 = arith.mulf %127, %126 : vector<8x8xf32>
    %129 = arith.truncf %115 : vector<8x8xf32> to vector<8x8xbf16>
    %cst_71 = arith.constant dense<0.000000e+00> : vector<8x8xf32>
    %130 = tpu.matmul %129, %101, %cst_71 {dimension_numbers = #tpu.dot_dimension_numbers<[1], [0], [0], [1], [0, 0, 1, 1], [], []>} : vector<8x8xbf16>, vector<8x8xbf16>, vector<8x8xf32> -> vector<8x8xf32>
    %131 = arith.addf %128, %130 : vector<8x8xf32>
    %c2_72 = arith.constant 2 : index
    %c0_73 = arith.constant 0 : index
    %c0_74 = arith.constant 0 : index
    %132 = vector.load %arg9[%c2_72, %c0_73, %c0_74] : memref<4x8x8xf32, #tpu.memory_space<vmem>>, vector<1x8x8xf32>
    %133 = vector.shape_cast %132 : vector<1x8x8xf32> to vector<8x8xf32>
    %134 = vector.shape_cast %131 : vector<8x8xf32> to vector<1x8x8xf32>
    tpu.vector_store %arg9[%c2_72, %c0_73, %c0_74], %134 {strides = array<i32>} : memref<4x8x8xf32, #tpu.memory_space<vmem>>, vector<1x8x8xf32>,
    %c2_75 = arith.constant 2 : index
    %c0_76 = arith.constant 0 : index
    %c0_77 = arith.constant 0 : index
    %135 = vector.load %arg7[%c2_75, %c0_76, %c0_77] : memref<4x8x1xf32, #tpu.memory_space<vmem>>, vector<1x8x1xf32>
    %136 = vector.shape_cast %135 : vector<1x8x1xf32> to vector<8x1xf32>
    %137 = vector.shape_cast %110 : vector<8x1xf32> to vector<1x8x1xf32>
    tpu.vector_store %arg7[%c2_75, %c0_76, %c0_77], %137 {strides = array<i32>} : memref<4x8x1xf32, #tpu.memory_space<vmem>>, vector<1x8x1xf32>,
    %138 = vector.extract_strided_slice %4 {offsets = [0, 24], sizes = [8, 8], strides = [1, 1]} : vector<8x32xbf16> to vector<8x8xbf16>
    %139 = vector.extract_strided_slice %6 {offsets = [0, 24], sizes = [8, 8], strides = [1, 1]} : vector<8x32xbf16> to vector<8x8xbf16>
    %140 = vector.extract_strided_slice %8 {offsets = [0, 24], sizes = [8, 8], strides = [1, 1]} : vector<8x32xbf16> to vector<8x8xbf16>
    "tpu.trace_start"() <{level = 10 : i32, message = "qd,kd->qk"}> : () -> ()
    %cst_78 = arith.constant dense<0.000000e+00> : vector<8x8xf32>
    %141 = tpu.matmul %138, %139, %cst_78 {dimension_numbers = #tpu.dot_dimension_numbers<[1], [1], [0], [0], [0, 0, 1, 0], [], []>} : vector<8x8xbf16>, vector<8x8xbf16>, vector<8x8xf32> -> vector<8x8xf32>
    "tpu.trace_stop"() : () -> ()
    %cst_79 = arith.constant 0.353553385 : f32
    %142 = vector.broadcast %cst_79 : f32 to vector<8x8xf32>
    %143 = arith.mulf %141, %142 : vector<8x8xf32>
    %144 = arith.addf %143, %20 : vector<8x8xf32>
    %c3 = arith.constant 3 : index
    %c0_80 = arith.constant 0 : index
    %c0_81 = arith.constant 0 : index
    %145 = vector.load %arg7[%c3, %c0_80, %c0_81] : memref<4x8x1xf32, #tpu.memory_space<vmem>>, vector<1x8x1xf32>
    %146 = vector.shape_cast %145 : vector<1x8x1xf32> to vector<8x1xf32>
    %cst_82 = arith.constant dense<0xFF800000> : vector<8xf32>
    %147 = vector.multi_reduction <maximumf>, %144, %cst_82 [1] : vector<8x8xf32> to vector<8xf32>
    %148 = vector.shape_cast %147 : vector<8xf32> to vector<8x1xf32>
    %149 = arith.maximumf %146, %148 : vector<8x1xf32>
    %150 = arith.subf %146, %149 : vector<8x1xf32>
    %151 = math.exp %150 : vector<8x1xf32>
    %152 = vector.broadcast %149 : vector<8x1xf32> to vector<8x8xf32>
    %153 = arith.subf %144, %152 : vector<8x8xf32>
    %154 = math.exp %153 : vector<8x8xf32>
    %c3_83 = arith.constant 3 : index
    %c0_84 = arith.constant 0 : index
    %c0_85 = arith.constant 0 : index
    %155 = vector.load %arg8[%c3_83, %c0_84, %c0_85] : memref<4x8x1xf32, #tpu.memory_space<vmem>>, vector<1x8x1xf32>
    %156 = vector.shape_cast %155 : vector<1x8x1xf32> to vector<8x1xf32>
    %157 = arith.mulf %151, %156 : vector<8x1xf32>
    %cst_86 = arith.constant dense<0.000000e+00> : vector<8xf32>
    %158 = vector.multi_reduction <add>, %154, %cst_86 [1] : vector<8x8xf32> to vector<8xf32>
    %159 = vector.shape_cast %158 : vector<8xf32> to vector<8x1xf32>
    %160 = arith.addf %157, %159 : vector<8x1xf32>
    %c3_87 = arith.constant 3 : index
    %c0_88 = arith.constant 0 : index
    %c0_89 = arith.constant 0 : index
    %161 = vector.load %arg8[%c3_87, %c0_88, %c0_89] : memref<4x8x1xf32, #tpu.memory_space<vmem>>, vector<1x8x1xf32>
    %162 = vector.shape_cast %161 : vector<1x8x1xf32> to vector<8x1xf32>
    %163 = vector.shape_cast %160 : vector<8x1xf32> to vector<1x8x1xf32>
    tpu.vector_store %arg8[%c3_87, %c0_88, %c0_89], %163 {strides = array<i32>} : memref<4x8x1xf32, #tpu.memory_space<vmem>>, vector<1x8x1xf32>,
    %c3_90 = arith.constant 3 : index
    %c0_91 = arith.constant 0 : index
    %c0_92 = arith.constant 0 : index
    %164 = vector.load %arg9[%c3_90, %c0_91, %c0_92] : memref<4x8x8xf32, #tpu.memory_space<vmem>>, vector<1x8x8xf32>
    %165 = vector.shape_cast %164 : vector<1x8x8xf32> to vector<8x8xf32>
    %166 = vector.broadcast %151 : vector<8x1xf32> to vector<8x8xf32>
    %167 = arith.mulf %166, %165 : vector<8x8xf32>
    %168 = arith.truncf %154 : vector<8x8xf32> to vector<8x8xbf16>
    %cst_93 = arith.constant dense<0.000000e+00> : vector<8x8xf32>
    %169 = tpu.matmul %168, %140, %cst_93 {dimension_numbers = #tpu.dot_dimension_numbers<[1], [0], [0], [1], [0, 0, 1, 1], [], []>} : vector<8x8xbf16>, vector<8x8xbf16>, vector<8x8xf32> -> vector<8x8xf32>
    %170 = arith.addf %167, %169 : vector<8x8xf32>
    %c3_94 = arith.constant 3 : index
    %c0_95 = arith.constant 0 : index
    %c0_96 = arith.constant 0 : index
    %171 = vector.load %arg9[%c3_94, %c0_95, %c0_96] : memref<4x8x8xf32, #tpu.memory_space<vmem>>, vector<1x8x8xf32>
    %172 = vector.shape_cast %171 : vector<1x8x8xf32> to vector<8x8xf32>
    %173 = vector.shape_cast %170 : vector<8x8xf32> to vector<1x8x8xf32>
    tpu.vector_store %arg9[%c3_94, %c0_95, %c0_96], %173 {strides = array<i32>} : memref<4x8x8xf32, #tpu.memory_space<vmem>>, vector<1x8x8xf32>,
    %c3_97 = arith.constant 3 : index
    %c0_98 = arith.constant 0 : index
    %c0_99 = arith.constant 0 : index
    %174 = vector.load %arg7[%c3_97, %c0_98, %c0_99] : memref<4x8x1xf32, #tpu.memory_space<vmem>>, vector<1x8x1xf32>
    %175 = vector.shape_cast %174 : vector<1x8x1xf32> to vector<8x1xf32>
    %176 = vector.shape_cast %149 : vector<8x1xf32> to vector<1x8x1xf32>
    tpu.vector_store %arg7[%c3_97, %c0_98, %c0_99], %176 {strides = array<i32>} : memref<4x8x1xf32, #tpu.memory_space<vmem>>, vector<1x8x1xf32>,
    %c0_i32_100 = arith.constant 0 : i32
    %177 = arith.cmpi eq, %arg2, %c0_i32_100 : i32
    %178 = arith.extui %177 : i1 to i32
    %c0_i32_101 = arith.constant 0 : i32
    %179 = arith.cmpi ne, %178, %c0_i32_101 : i32
    scf.if %179 {
      %c0_102 = arith.constant 0 : index
      %c0_103 = arith.constant 0 : index
      %c0_104 = arith.constant 0 : index
      %180 = vector.load %arg9[%c0_102, %c0_103, %c0_104] : memref<4x8x8xf32, #tpu.memory_space<vmem>>, vector<1x8x8xf32>
      %181 = vector.shape_cast %180 : vector<1x8x8xf32> to vector<8x8xf32>
      %c0_105 = arith.constant 0 : index
      %c0_106 = arith.constant 0 : index
      %c0_107 = arith.constant 0 : index
      %182 = vector.load %arg8[%c0_105, %c0_106, %c0_107] : memref<4x8x1xf32, #tpu.memory_space<vmem>>, vector<1x8x1xf32>
      %183 = vector.shape_cast %182 : vector<1x8x1xf32> to vector<8x1xf32>
      %184 = tpu.reciprocal %183 {approx = true} : vector<8x1xf32> -> vector<8x1xf32>
      %185 = vector.broadcast %184 : vector<8x1xf32> to vector<8x8xf32>
      %186 = arith.mulf %181, %185 : vector<8x8xf32>
      %c1_108 = arith.constant 1 : index
      %c0_109 = arith.constant 0 : index
      %c0_110 = arith.constant 0 : index
      %187 = vector.load %arg9[%c1_108, %c0_109, %c0_110] : memref<4x8x8xf32, #tpu.memory_space<vmem>>, vector<1x8x8xf32>
      %188 = vector.shape_cast %187 : vector<1x8x8xf32> to vector<8x8xf32>
      %c1_111 = arith.constant 1 : index
      %c0_112 = arith.constant 0 : index
      %c0_113 = arith.constant 0 : index
      %189 = vector.load %arg8[%c1_111, %c0_112, %c0_113] : memref<4x8x1xf32, #tpu.memory_space<vmem>>, vector<1x8x1xf32>
      %190 = vector.shape_cast %189 : vector<1x8x1xf32> to vector<8x1xf32>
      %191 = tpu.reciprocal %190 {approx = true} : vector<8x1xf32> -> vector<8x1xf32>
      %192 = vector.broadcast %191 : vector<8x1xf32> to vector<8x8xf32>
      %193 = arith.mulf %188, %192 : vector<8x8xf32>
      %c2_114 = arith.constant 2 : index
      %c0_115 = arith.constant 0 : index
      %c0_116 = arith.constant 0 : index
      %194 = vector.load %arg9[%c2_114, %c0_115, %c0_116] : memref<4x8x8xf32, #tpu.memory_space<vmem>>, vector<1x8x8xf32>
      %195 = vector.shape_cast %194 : vector<1x8x8xf32> to vector<8x8xf32>
      %c2_117 = arith.constant 2 : index
      %c0_118 = arith.constant 0 : index
      %c0_119 = arith.constant 0 : index
      %196 = vector.load %arg8[%c2_117, %c0_118, %c0_119] : memref<4x8x1xf32, #tpu.memory_space<vmem>>, vector<1x8x1xf32>
      %197 = vector.shape_cast %196 : vector<1x8x1xf32> to vector<8x1xf32>
      %198 = tpu.reciprocal %197 {approx = true} : vector<8x1xf32> -> vector<8x1xf32>
      %199 = vector.broadcast %198 : vector<8x1xf32> to vector<8x8xf32>
      %200 = arith.mulf %195, %199 : vector<8x8xf32>
      %c3_120 = arith.constant 3 : index
      %c0_121 = arith.constant 0 : index
      %c0_122 = arith.constant 0 : index
      %201 = vector.load %arg9[%c3_120, %c0_121, %c0_122] : memref<4x8x8xf32, #tpu.memory_space<vmem>>, vector<1x8x8xf32>
      %202 = vector.shape_cast %201 : vector<1x8x8xf32> to vector<8x8xf32>
      %c3_123 = arith.constant 3 : index
      %c0_124 = arith.constant 0 : index
      %c0_125 = arith.constant 0 : index
      %203 = vector.load %arg8[%c3_123, %c0_124, %c0_125] : memref<4x8x1xf32, #tpu.memory_space<vmem>>, vector<1x8x1xf32>
      %204 = vector.shape_cast %203 : vector<1x8x1xf32> to vector<8x1xf32>
      %205 = tpu.reciprocal %204 {approx = true} : vector<8x1xf32> -> vector<8x1xf32>
      %206 = vector.broadcast %205 : vector<8x1xf32> to vector<8x8xf32>
      %207 = arith.mulf %202, %206 : vector<8x8xf32>
      %208 = tpu.concatenate %186, %193, %200, %207 in 1 : vector<8x8xf32>, vector<8x8xf32>, vector<8x8xf32>, vector<8x8xf32> -> vector<8x32xf32>
      %209 = arith.truncf %208 : vector<8x32xf32> to vector<8x32xbf16>
      %c0_126 = arith.constant 0 : index
      %c0_127 = arith.constant 0 : index
      %c0_128 = arith.constant 0 : index
      %210 = vector.load %arg6[%c0_126, %c0_127, %c0_128] : memref<1x8x32xbf16, #tpu.memory_space<vmem>>, vector<1x8x32xbf16>
      %211 = vector.shape_cast %210 : vector<1x8x32xbf16> to vector<8x32xbf16>
      %212 = vector.shape_cast %209 : vector<8x32xbf16> to vector<1x8x32xbf16>
      tpu.vector_store %arg6[%c0_126, %c0_127, %c0_128], %212 {strides = array<i32>} : memref<1x8x32xbf16, #tpu.memory_space<vmem>>, vector<1x8x32xbf16>,
    } else {
    }
    return
  }
  func.func @transform_0(%arg0: i32, %arg1: i32, %arg2: i32) -> (i32, i32, i32) {
    %c0_i32 = arith.constant 0 : i32
    %c0_i32_0 = arith.constant 0 : i32
    return %arg0, %arg1, %c0_i32 : i32, i32, i32
  }
  func.func @transform_1(%arg0: i32, %arg1: i32, %arg2: i32) -> (i32, i32, i32) {
    %c0_i32 = arith.constant 0 : i32
    %c0_i32_0 = arith.constant 0 : i32
    return %arg0, %arg2, %c0_i32 : i32, i32, i32
  }
  func.func @transform_2(%arg0: i32, %arg1: i32, %arg2: i32) -> (i32, i32, i32) {
    %c0_i32 = arith.constant 0 : i32
    %c0_i32_0 = arith.constant 0 : i32
    return %arg0, %arg2, %c0_i32 : i32, i32, i32
  }
  func.func @transform_3(%arg0: i32, %arg1: i32, %arg2: i32) -> (i32, i32, i32) {
    %c0_i32 = arith.constant 0 : i32
    %c0_i32_0 = arith.constant 0 : i32
    return %arg0, %arg1, %c0_i32 : i32, i32, i32
  }
}

module attributes {stable_mosaic.version = 11 : i64} {
  func.func @_linear_kernel(%arg0: i32, %arg1: i32, %arg2: i32, %arg3: memref<8x32xbf16, #tpu.memory_space<vmem>>, %arg4: memref<32x32xbf16, #tpu.memory_space<vmem>>, %arg5: memref<1x32xf32, #tpu.memory_space<vmem>>, %arg6: memref<8x32xf32, #tpu.memory_space<vmem>>, %arg7: memref<8x32xf32, #tpu.memory_space<vmem>>, %arg8: memref<8x32xf32, #tpu.memory_space<vmem>>) attributes {dimension_semantics = [#tpu.dimension_semantics<parallel>, #tpu.dimension_semantics<parallel>, #tpu.dimension_semantics<arbitrary>], iteration_bounds = array<i64: 3, 1, 1>, scalar_prefetch = 0 : i64, scratch_operands = 1 : i64, tpu.core_type = #tpu.core_type<tc>, window_params = [{transform_indices = @transform_0, window_bounds = array<i64: 8, 32>}, {transform_indices = @transform_1, window_bounds = array<i64: 32, 32>}, {transform_indices = @transform_2, window_bounds = array<i64: 1, 32>}, {transform_indices = @transform_3, window_bounds = array<i64: 8, 32>}, {transform_indices = @transform_4, window_bounds = array<i64: 8, 32>}]} {
    %c0 = arith.constant 0 : index
    %c0_0 = arith.constant 0 : index
    %0 = vector.load %arg3[%c0, %c0_0] : memref<8x32xbf16, #tpu.memory_space<vmem>>, vector<8x32xbf16>
    %c0_i32 = arith.constant 0 : i32
    %1 = arith.cmpi eq, %arg2, %c0_i32 : i32
    %2 = arith.extui %1 : i1 to i32
    %c0_i32_1 = arith.constant 0 : i32
    %3 = arith.cmpi ne, %2, %c0_i32_1 : i32
    scf.if %3 {
      %cst_10 = arith.constant 0.000000e+00 : f32
      %12 = vector.broadcast %cst_10 : f32 to vector<8x32xf32>
      %c0_11 = arith.constant 0 : index
      %c0_12 = arith.constant 0 : index
      %13 = vector.load %arg8[%c0_11, %c0_12] : memref<8x32xf32, #tpu.memory_space<vmem>>, vector<8x32xf32>
      tpu.vector_store %arg8[%c0_11, %c0_12], %12 {strides = array<i32>} : memref<8x32xf32, #tpu.memory_space<vmem>>, vector<8x32xf32>,
    } else {
    }
    %c0_2 = arith.constant 0 : index
    %c0_3 = arith.constant 0 : index
    %4 = vector.load %arg8[%c0_2, %c0_3] : memref<8x32xf32, #tpu.memory_space<vmem>>, vector<8x32xf32>
    %c0_4 = arith.constant 0 : index
    %c0_5 = arith.constant 0 : index
    %5 = vector.load %arg4[%c0_4, %c0_5] : memref<32x32xbf16, #tpu.memory_space<vmem>>, vector<32x32xbf16>
    %cst = arith.constant dense<0.000000e+00> : vector<8x32xf32>
    %6 = tpu.matmul %0, %5, %cst {dimension_numbers = #tpu.dot_dimension_numbers<[1], [0], [0], [1], [0, 0, 1, 1], [], []>} : vector<8x32xbf16>, vector<32x32xbf16>, vector<8x32xf32> -> vector<8x32xf32>
    %7 = arith.addf %4, %6 : vector<8x32xf32>
    %c0_6 = arith.constant 0 : index
    %c0_7 = arith.constant 0 : index
    %8 = vector.load %arg8[%c0_6, %c0_7] : memref<8x32xf32, #tpu.memory_space<vmem>>, vector<8x32xf32>
    tpu.vector_store %arg8[%c0_6, %c0_7], %7 {strides = array<i32>} : memref<8x32xf32, #tpu.memory_space<vmem>>, vector<8x32xf32>,
    %c0_i32_8 = arith.constant 0 : i32
    %9 = arith.cmpi eq, %arg2, %c0_i32_8 : i32
    %10 = arith.extui %9 : i1 to i32
    %c0_i32_9 = arith.constant 0 : i32
    %11 = arith.cmpi ne, %10, %c0_i32_9 : i32
    scf.if %11 {
      %c0_10 = arith.constant 0 : index
      %c0_11 = arith.constant 0 : index
      %12 = vector.load %arg8[%c0_10, %c0_11] : memref<8x32xf32, #tpu.memory_space<vmem>>, vector<8x32xf32>
      %c0_12 = arith.constant 0 : index
      %c0_13 = arith.constant 0 : index
      %13 = vector.load %arg5[%c0_12, %c0_13] : memref<1x32xf32, #tpu.memory_space<vmem>>, vector<1x32xf32>
      %14 = vector.broadcast %13 : vector<1x32xf32> to vector<8x32xf32>
      %15 = arith.addf %12, %14 : vector<8x32xf32>
      %c0_14 = arith.constant 0 : index
      %c0_15 = arith.constant 0 : index
      %16 = vector.load %arg6[%c0_14, %c0_15] : memref<8x32xf32, #tpu.memory_space<vmem>>, vector<8x32xf32>
      %17 = arith.addf %15, %16 : vector<8x32xf32>
      %c0_16 = arith.constant 0 : index
      %c0_17 = arith.constant 0 : index
      %18 = vector.load %arg7[%c0_16, %c0_17] : memref<8x32xf32, #tpu.memory_space<vmem>>, vector<8x32xf32>
      tpu.vector_store %arg7[%c0_16, %c0_17], %17 {strides = array<i32>} : memref<8x32xf32, #tpu.memory_space<vmem>>, vector<8x32xf32>,
    } else {
    }
    return
  }
  func.func @transform_0(%arg0: i32, %arg1: i32, %arg2: i32) -> (i32, i32) {
    %c0_i32 = arith.constant 0 : i32
    return %arg0, %arg2 : i32, i32
  }
  func.func @transform_1(%arg0: i32, %arg1: i32, %arg2: i32) -> (i32, i32) {
    %c0_i32 = arith.constant 0 : i32
    return %arg2, %arg1 : i32, i32
  }
  func.func @transform_2(%arg0: i32, %arg1: i32, %arg2: i32) -> (i32, i32) {
    %c0_i32 = arith.constant 0 : i32
    %c0_i32_0 = arith.constant 0 : i32
    return %c0_i32, %arg1 : i32, i32
  }
  func.func @transform_3(%arg0: i32, %arg1: i32, %arg2: i32) -> (i32, i32) {
    %c0_i32 = arith.constant 0 : i32
    return %arg0, %arg1 : i32, i32
  }
  func.func @transform_4(%arg0: i32, %arg1: i32, %arg2: i32) -> (i32, i32) {
    %c0_i32 = arith.constant 0 : i32
    return %arg0, %arg1 : i32, i32
  }
}

module attributes {stable_mosaic.version = 11 : i64} {
  func.func @_mlp_kernel(%arg0: i32, %arg1: i32, %arg2: memref<8x32xf32, #tpu.memory_space<vmem>>, %arg3: memref<1x32xf32, #tpu.memory_space<vmem>>, %arg4: memref<1x32xf32, #tpu.memory_space<vmem>>, %arg5: memref<32x128xbf16, #tpu.memory_space<vmem>>, %arg6: memref<1x128xf32, #tpu.memory_space<vmem>>, %arg7: memref<128x32xbf16, #tpu.memory_space<vmem>>, %arg8: memref<1x32xf32, #tpu.memory_space<vmem>>, %arg9: memref<8x32xf32, #tpu.memory_space<vmem>>, %arg10: memref<8x32xf32, #tpu.memory_space<vmem>>) attributes {dimension_semantics = [#tpu.dimension_semantics<parallel>, #tpu.dimension_semantics<arbitrary>], iteration_bounds = array<i64: 3, 1>, scalar_prefetch = 0 : i64, scratch_operands = 1 : i64, tpu.core_type = #tpu.core_type<tc>, window_params = [{transform_indices = @transform_0, window_bounds = array<i64: 8, 32>}, {pipeline_mode = #tpu.pipeline_mode<synchronous>, transform_indices = @transform_1, window_bounds = array<i64: 1, 32>}, {pipeline_mode = #tpu.pipeline_mode<synchronous>, transform_indices = @transform_2, window_bounds = array<i64: 1, 32>}, {transform_indices = @transform_3, window_bounds = array<i64: 32, 128>}, {transform_indices = @transform_4, window_bounds = array<i64: 1, 128>}, {transform_indices = @transform_5, window_bounds = array<i64: 128, 32>}, {pipeline_mode = #tpu.pipeline_mode<synchronous>, transform_indices = @transform_6, window_bounds = array<i64: 1, 32>}, {transform_indices = @transform_7, window_bounds = array<i64: 8, 32>}]} {
    %c0 = arith.constant 0 : index
    %c0_0 = arith.constant 0 : index
    %0 = vector.load %arg2[%c0, %c0_0] : memref<8x32xf32, #tpu.memory_space<vmem>>, vector<8x32xf32>
    %c0_1 = arith.constant 0 : index
    %c0_2 = arith.constant 0 : index
    %1 = vector.load %arg3[%c0_1, %c0_2] : memref<1x32xf32, #tpu.memory_space<vmem>>, vector<1x32xf32>
    %c0_3 = arith.constant 0 : index
    %c0_4 = arith.constant 0 : index
    %2 = vector.load %arg4[%c0_3, %c0_4] : memref<1x32xf32, #tpu.memory_space<vmem>>, vector<1x32xf32>
    %cst = arith.constant dense<0.000000e+00> : vector<8xf32>
    %3 = vector.multi_reduction <add>, %0, %cst [1] : vector<8x32xf32> to vector<8xf32>
    %4 = vector.shape_cast %3 : vector<8xf32> to vector<8x1xf32>
    %cst_5 = arith.constant 3.200000e+01 : f32
    %5 = vector.broadcast %cst_5 : f32 to vector<8x1xf32>
    %6 = arith.divf %4, %5 : vector<8x1xf32>
    %7 = vector.broadcast %6 : vector<8x1xf32> to vector<8x32xf32>
    %8 = arith.subf %0, %7 : vector<8x32xf32>
    %9 = arith.mulf %8, %8 : vector<8x32xf32>
    %cst_6 = arith.constant dense<0.000000e+00> : vector<8xf32>
    %10 = vector.multi_reduction <add>, %9, %cst_6 [1] : vector<8x32xf32> to vector<8xf32>
    %11 = vector.shape_cast %10 : vector<8xf32> to vector<8x1xf32>
    %cst_7 = arith.constant 3.200000e+01 : f32
    %12 = vector.broadcast %cst_7 : f32 to vector<8x1xf32>
    %13 = arith.divf %11, %12 : vector<8x1xf32>
    %14 = vector.broadcast %6 : vector<8x1xf32> to vector<8x32xf32>
    %15 = arith.subf %0, %14 : vector<8x32xf32>
    %cst_8 = arith.constant 9.99999974E-6 : f32
    %16 = vector.broadcast %cst_8 : f32 to vector<8x1xf32>
    %17 = arith.addf %13, %16 : vector<8x1xf32>
    %18 = math.rsqrt %17 : vector<8x1xf32>
    %19 = vector.broadcast %18 : vector<8x1xf32> to vector<8x32xf32>
    %20 = arith.mulf %15, %19 : vector<8x32xf32>
    %21 = vector.broadcast %1 : vector<1x32xf32> to vector<8x32xf32>
    %22 = arith.mulf %20, %21 : vector<8x32xf32>
    %23 = vector.broadcast %2 : vector<1x32xf32> to vector<8x32xf32>
    %24 = arith.addf %22, %23 : vector<8x32xf32>
    %25 = arith.truncf %24 : vector<8x32xf32> to vector<8x32xbf16>
    %c0_i32 = arith.constant 0 : i32
    %26 = arith.cmpi eq, %arg1, %c0_i32 : i32
    %27 = arith.extui %26 : i1 to i32
    %c0_i32_9 = arith.constant 0 : i32
    %28 = arith.cmpi ne, %27, %c0_i32_9 : i32
    scf.if %28 {
      %cst_26 = arith.constant 0.000000e+00 : f32
      %51 = vector.broadcast %cst_26 : f32 to vector<8x32xf32>
      %c0_27 = arith.constant 0 : index
      %c0_28 = arith.constant 0 : index
      %52 = vector.load %arg10[%c0_27, %c0_28] : memref<8x32xf32, #tpu.memory_space<vmem>>, vector<8x32xf32>
      tpu.vector_store %arg10[%c0_27, %c0_28], %51 {strides = array<i32>} : memref<8x32xf32, #tpu.memory_space<vmem>>, vector<8x32xf32>,
    } else {
    }
    %c0_10 = arith.constant 0 : index
    %c0_11 = arith.constant 0 : index
    %29 = vector.load %arg5[%c0_10, %c0_11] : memref<32x128xbf16, #tpu.memory_space<vmem>>, vector<32x128xbf16>
    %cst_12 = arith.constant dense<0.000000e+00> : vector<8x128xf32>
    %30 = tpu.matmul %25, %29, %cst_12 {dimension_numbers = #tpu.dot_dimension_numbers<[1], [0], [0], [1], [0, 0, 1, 1], [], []>} : vector<8x32xbf16>, vector<32x128xbf16>, vector<8x128xf32> -> vector<8x128xf32>
    %c0_13 = arith.constant 0 : index
    %c0_14 = arith.constant 0 : index
    %31 = vector.load %arg6[%c0_13, %c0_14] : memref<1x128xf32, #tpu.memory_space<vmem>>, vector<1x128xf32>
    %32 = vector.broadcast %31 : vector<1x128xf32> to vector<8x128xf32>
    %33 = arith.addf %30, %32 : vector<8x128xf32>
    %cst_15 = arith.constant 1.702000e+00 : f32
    %34 = vector.broadcast %cst_15 : f32 to vector<8x128xf32>
    %35 = arith.mulf %34, %33 : vector<8x128xf32>
    %36 = arith.negf %35 : vector<8x128xf32>
    %37 = math.exp %36 : vector<8x128xf32>
    %cst_16 = arith.constant 1.000000e+00 : f32
    %38 = vector.broadcast %cst_16 : f32 to vector<8x128xf32>
    %39 = arith.addf %38, %37 : vector<8x128xf32>
    %40 = arith.divf %38, %39 : vector<8x128xf32>
    %41 = arith.mulf %33, %40 : vector<8x128xf32>
    %c0_17 = arith.constant 0 : index
    %c0_18 = arith.constant 0 : index
    %42 = vector.load %arg10[%c0_17, %c0_18] : memref<8x32xf32, #tpu.memory_space<vmem>>, vector<8x32xf32>
    %43 = arith.truncf %41 : vector<8x128xf32> to vector<8x128xbf16>
    %c0_19 = arith.constant 0 : index
    %c0_20 = arith.constant 0 : index
    %44 = vector.load %arg7[%c0_19, %c0_20] : memref<128x32xbf16, #tpu.memory_space<vmem>>, vector<128x32xbf16>
    %cst_21 = arith.constant dense<0.000000e+00> : vector<8x32xf32>
    %45 = tpu.matmul %43, %44, %cst_21 {dimension_numbers = #tpu.dot_dimension_numbers<[1], [0], [0], [1], [0, 0, 1, 1], [], []>} : vector<8x128xbf16>, vector<128x32xbf16>, vector<8x32xf32> -> vector<8x32xf32>
    %46 = arith.addf %42, %45 : vector<8x32xf32>
    %c0_22 = arith.constant 0 : index
    %c0_23 = arith.constant 0 : index
    %47 = vector.load %arg10[%c0_22, %c0_23] : memref<8x32xf32, #tpu.memory_space<vmem>>, vector<8x32xf32>
    tpu.vector_store %arg10[%c0_22, %c0_23], %46 {strides = array<i32>} : memref<8x32xf32, #tpu.memory_space<vmem>>, vector<8x32xf32>,
    %c0_i32_24 = arith.constant 0 : i32
    %48 = arith.cmpi eq, %arg1, %c0_i32_24 : i32
    %49 = arith.extui %48 : i1 to i32
    %c0_i32_25 = arith.constant 0 : i32
    %50 = arith.cmpi ne, %49, %c0_i32_25 : i32
    scf.if %50 {
      %c0_26 = arith.constant 0 : index
      %c0_27 = arith.constant 0 : index
      %51 = vector.load %arg10[%c0_26, %c0_27] : memref<8x32xf32, #tpu.memory_space<vmem>>, vector<8x32xf32>
      %c0_28 = arith.constant 0 : index
      %c0_29 = arith.constant 0 : index
      %52 = vector.load %arg8[%c0_28, %c0_29] : memref<1x32xf32, #tpu.memory_space<vmem>>, vector<1x32xf32>
      %53 = vector.broadcast %52 : vector<1x32xf32> to vector<8x32xf32>
      %54 = arith.addf %51, %53 : vector<8x32xf32>
      %55 = arith.addf %54, %0 : vector<8x32xf32>
      %c0_30 = arith.constant 0 : index
      %c0_31 = arith.constant 0 : index
      %56 = vector.load %arg9[%c0_30, %c0_31] : memref<8x32xf32, #tpu.memory_space<vmem>>, vector<8x32xf32>
      tpu.vector_store %arg9[%c0_30, %c0_31], %55 {strides = array<i32>} : memref<8x32xf32, #tpu.memory_space<vmem>>, vector<8x32xf32>,
    } else {
    }
    return
  }
  func.func @transform_0(%arg0: i32, %arg1: i32) -> (i32, i32) {
    %c0_i32 = arith.constant 0 : i32
    %c0_i32_0 = arith.constant 0 : i32
    return %arg0, %c0_i32 : i32, i32
  }
  func.func @transform_1(%arg0: i32, %arg1: i32) -> (i32, i32) {
    %c0_i32 = arith.constant 0 : i32
    %c0_i32_0 = arith.constant 0 : i32
    %c0_i32_1 = arith.constant 0 : i32
    return %c0_i32, %c0_i32_0 : i32, i32
  }
  func.func @transform_2(%arg0: i32, %arg1: i32) -> (i32, i32) {
    %c0_i32 = arith.constant 0 : i32
    %c0_i32_0 = arith.constant 0 : i32
    %c0_i32_1 = arith.constant 0 : i32
    return %c0_i32, %c0_i32_0 : i32, i32
  }
  func.func @transform_3(%arg0: i32, %arg1: i32) -> (i32, i32) {
    %c0_i32 = arith.constant 0 : i32
    %c0_i32_0 = arith.constant 0 : i32
    return %c0_i32, %arg1 : i32, i32
  }
  func.func @transform_4(%arg0: i32, %arg1: i32) -> (i32, i32) {
    %c0_i32 = arith.constant 0 : i32
    %c0_i32_0 = arith.constant 0 : i32
    return %c0_i32, %arg1 : i32, i32
  }
  func.func @transform_5(%arg0: i32, %arg1: i32) -> (i32, i32) {
    %c0_i32 = arith.constant 0 : i32
    %c0_i32_0 = arith.constant 0 : i32
    return %arg1, %c0_i32 : i32, i32
  }
  func.func @transform_6(%arg0: i32, %arg1: i32) -> (i32, i32) {
    %c0_i32 = arith.constant 0 : i32
    %c0_i32_0 = arith.constant 0 : i32
    %c0_i32_1 = arith.constant 0 : i32
    return %c0_i32, %c0_i32_0 : i32, i32
  }
  func.func @transform_7(%arg0: i32, %arg1: i32) -> (i32, i32) {
    %c0_i32 = arith.constant 0 : i32
    %c0_i32_0 = arith.constant 0 : i32
    return %arg0, %c0_i32 : i32, i32
  }
}

module attributes {stable_mosaic.version = 11 : i64} {
  func.func @_linear_kernel(%arg0: i32, %arg1: i32, %arg2: i32, %arg3: memref<3x32xf32, #tpu.memory_space<vmem>>, %arg4: memref<32x32xbf16, #tpu.memory_space<vmem>>, %arg5: memref<1x32xf32, #tpu.memory_space<vmem>>, %arg6: memref<1x32xf32, #tpu.memory_space<vmem>>, %arg7: memref<3x32xf32, #tpu.memory_space<vmem>>, %arg8: memref<3x32xf32, #tpu.memory_space<vmem>>) attributes {dimension_semantics = [#tpu.dimension_semantics<parallel>, #tpu.dimension_semantics<parallel>, #tpu.dimension_semantics<arbitrary>], iteration_bounds = array<i64: 1, 1, 1>, scalar_prefetch = 0 : i64, scratch_operands = 1 : i64, tpu.core_type = #tpu.core_type<tc>, window_params = [{transform_indices = @transform_0, window_bounds = array<i64: 3, 32>}, {transform_indices = @transform_1, window_bounds = array<i64: 32, 32>}, {pipeline_mode = #tpu.pipeline_mode<synchronous>, transform_indices = @transform_2, window_bounds = array<i64: 1, 32>}, {pipeline_mode = #tpu.pipeline_mode<synchronous>, transform_indices = @transform_3, window_bounds = array<i64: 1, 32>}, {transform_indices = @transform_4, window_bounds = array<i64: 3, 32>}]} {
    %c0 = arith.constant 0 : index
    %c0_0 = arith.constant 0 : index
    %0 = vector.load %arg3[%c0, %c0_0] : memref<3x32xf32, #tpu.memory_space<vmem>>, vector<3x32xf32>
    %c0_1 = arith.constant 0 : index
    %c0_2 = arith.constant 0 : index
    %1 = vector.load %arg5[%c0_1, %c0_2] : memref<1x32xf32, #tpu.memory_space<vmem>>, vector<1x32xf32>
    %c0_3 = arith.constant 0 : index
    %c0_4 = arith.constant 0 : index
    %2 = vector.load %arg6[%c0_3, %c0_4] : memref<1x32xf32, #tpu.memory_space<vmem>>, vector<1x32xf32>
    %cst = arith.constant dense<0.000000e+00> : vector<3xf32>
    %3 = vector.multi_reduction <add>, %0, %cst [1] : vector<3x32xf32> to vector<3xf32>
    %4 = vector.shape_cast %3 : vector<3xf32> to vector<3x1xf32>
    %cst_5 = arith.constant 3.200000e+01 : f32
    %5 = vector.broadcast %cst_5 : f32 to vector<3x1xf32>
    %6 = arith.divf %4, %5 : vector<3x1xf32>
    %7 = vector.broadcast %6 : vector<3x1xf32> to vector<3x32xf32>
    %8 = arith.subf %0, %7 : vector<3x32xf32>
    %9 = arith.mulf %8, %8 : vector<3x32xf32>
    %cst_6 = arith.constant dense<0.000000e+00> : vector<3xf32>
    %10 = vector.multi_reduction <add>, %9, %cst_6 [1] : vector<3x32xf32> to vector<3xf32>
    %11 = vector.shape_cast %10 : vector<3xf32> to vector<3x1xf32>
    %cst_7 = arith.constant 3.200000e+01 : f32
    %12 = vector.broadcast %cst_7 : f32 to vector<3x1xf32>
    %13 = arith.divf %11, %12 : vector<3x1xf32>
    %14 = vector.broadcast %6 : vector<3x1xf32> to vector<3x32xf32>
    %15 = arith.subf %0, %14 : vector<3x32xf32>
    %cst_8 = arith.constant 9.99999974E-6 : f32
    %16 = vector.broadcast %cst_8 : f32 to vector<3x1xf32>
    %17 = arith.addf %13, %16 : vector<3x1xf32>
    %18 = math.rsqrt %17 : vector<3x1xf32>
    %19 = vector.broadcast %18 : vector<3x1xf32> to vector<3x32xf32>
    %20 = arith.mulf %15, %19 : vector<3x32xf32>
    %21 = vector.broadcast %1 : vector<1x32xf32> to vector<3x32xf32>
    %22 = arith.mulf %20, %21 : vector<3x32xf32>
    %23 = vector.broadcast %2 : vector<1x32xf32> to vector<3x32xf32>
    %24 = arith.addf %22, %23 : vector<3x32xf32>
    %c0_i32 = arith.constant 0 : i32
    %25 = arith.cmpi eq, %arg2, %c0_i32 : i32
    %26 = arith.extui %25 : i1 to i32
    %c0_i32_9 = arith.constant 0 : i32
    %27 = arith.cmpi ne, %26, %c0_i32_9 : i32
    scf.if %27 {
      %cst_19 = arith.constant 0.000000e+00 : f32
      %37 = vector.broadcast %cst_19 : f32 to vector<3x32xf32>
      %c0_20 = arith.constant 0 : index
      %c0_21 = arith.constant 0 : index
      %38 = vector.load %arg8[%c0_20, %c0_21] : memref<3x32xf32, #tpu.memory_space<vmem>>, vector<3x32xf32>
      tpu.vector_store %arg8[%c0_20, %c0_21], %37 {strides = array<i32>} : memref<3x32xf32, #tpu.memory_space<vmem>>, vector<3x32xf32>,
    } else {
    }
    %c0_10 = arith.constant 0 : index
    %c0_11 = arith.constant 0 : index
    %28 = vector.load %arg8[%c0_10, %c0_11] : memref<3x32xf32, #tpu.memory_space<vmem>>, vector<3x32xf32>
    %29 = arith.truncf %24 : vector<3x32xf32> to vector<3x32xbf16>
    %c0_12 = arith.constant 0 : index
    %c0_13 = arith.constant 0 : index
    %30 = vector.load %arg4[%c0_12, %c0_13] : memref<32x32xbf16, #tpu.memory_space<vmem>>, vector<32x32xbf16>
    %cst_14 = arith.constant dense<0.000000e+00> : vector<3x32xf32>
    %31 = tpu.matmul %29, %30, %cst_14 {dimension_numbers = #tpu.dot_dimension_numbers<[1], [0], [0], [1], [0, 0, 1, 1], [], []>} : vector<3x32xbf16>, vector<32x32xbf16>, vector<3x32xf32> -> vector<3x32xf32>
    %32 = arith.addf %28, %31 : vector<3x32xf32>
    %c0_15 = arith.constant 0 : index
    %c0_16 = arith.constant 0 : index
    %33 = vector.load %arg8[%c0_15, %c0_16] : memref<3x32xf32, #tpu.memory_space<vmem>>, vector<3x32xf32>
    tpu.vector_store %arg8[%c0_15, %c0_16], %32 {strides = array<i32>} : memref<3x32xf32, #tpu.memory_space<vmem>>, vector<3x32xf32>,
    %c0_i32_17 = arith.constant 0 : i32
    %34 = arith.cmpi eq, %arg2, %c0_i32_17 : i32
    %35 = arith.extui %34 : i1 to i32
    %c0_i32_18 = arith.constant 0 : i32
    %36 = arith.cmpi ne, %35, %c0_i32_18 : i32
    scf.if %36 {
      %c0_19 = arith.constant 0 : index
      %c0_20 = arith.constant 0 : index
      %37 = vector.load %arg8[%c0_19, %c0_20] : memref<3x32xf32, #tpu.memory_space<vmem>>, vector<3x32xf32>
      %38 = arith.mulf %37, %37 : vector<3x32xf32>
      %cst_21 = arith.constant dense<0.000000e+00> : vector<3xf32>
      %39 = vector.multi_reduction <add>, %38, %cst_21 [1] : vector<3x32xf32> to vector<3xf32>
      %40 = vector.shape_cast %39 : vector<3xf32> to vector<3x1xf32>
      %41 = math.rsqrt %40 : vector<3x1xf32>
      %42 = vector.broadcast %41 : vector<3x1xf32> to vector<3x32xf32>
      %43 = arith.mulf %37, %42 : vector<3x32xf32>
      %c0_22 = arith.constant 0 : index
      %c0_23 = arith.constant 0 : index
      %44 = vector.load %arg7[%c0_22, %c0_23] : memref<3x32xf32, #tpu.memory_space<vmem>>, vector<3x32xf32>
      tpu.vector_store %arg7[%c0_22, %c0_23], %43 {strides = array<i32>} : memref<3x32xf32, #tpu.memory_space<vmem>>, vector<3x32xf32>,
    } else {
    }
    return
  }
  func.func @transform_0(%arg0: i32, %arg1: i32, %arg2: i32) -> (i32, i32) {
    %c0_i32 = arith.constant 0 : i32
    return %arg0, %arg2 : i32, i32
  }
  func.func @transform_1(%arg0: i32, %arg1: i32, %arg2: i32) -> (i32, i32) {
    %c0_i32 = arith.constant 0 : i32
    return %arg2, %arg1 : i32, i32
  }
  func.func @transform_2(%arg0: i32, %arg1: i32, %arg2: i32) -> (i32, i32) {
    %c0_i32 = arith.constant 0 : i32
    %c0_i32_0 = arith.constant 0 : i32
    %c0_i32_1 = arith.constant 0 : i32
    return %c0_i32, %c0_i32_0 : i32, i32
  }
  func.func @transform_3(%arg0: i32, %arg1: i32, %arg2: i32) -> (i32, i32) {
    %c0_i32 = arith.constant 0 : i32
    %c0_i32_0 = arith.constant 0 : i32
    %c0_i32_1 = arith.constant 0 : i32
    return %c0_i32, %c0_i32_0 : i32, i32
  }
  func.func @transform_4(%arg0: i32, %arg1: i32, %arg2: i32) -> (i32, i32) {
    %c0_i32 = arith.constant 0 : i32
    return %arg0, %arg1 : i32, i32
  }
}

</mosaic_0001>

<llo_original>
// kernel: _lambda_.21
$region0: #{_lambda_.21}
  #allocation0 [shape = 'u32[]', space=smem, size = 0x4, offset = 0x4, fixed_abs, tag = 'smem constant byte address 0x4 - core index']
  #allocation1 [shape = 'u32[144,128]{1,0:T(1,128)}', space=vmem, size = 0x12000, scoped, tag = 'internal scratch']
  #allocation2 [shape = 'f32[16,32]{1,0:T(8,128)}', space=vmem, size = 0x2000, scoped, tag = 'scratch operand']
  %s0 = inlined_call_operand.vmem [shape: f32[16,192], index: 0, kind: input, shape index: {}]
  %s1 = inlined_call_operand.vmem [shape: bf16[192,32], index: 1, kind: input, shape index: {}]
  %s2 = inlined_call_operand.vmem [shape: f32[16,32], index: 2, kind: output, shape index: {}]
  %s3 = sld [smem:[#allocation0]]
  $region26: #{_lambda_.21} parent=0
    _
  %s5 = ssub.s32 1, %s3
  %s6 = scalar_select 0, %s5, %s3
  // Predicated region
  $region2: #{_lambda_.21} parent=0 // pred_check
    _
  $region3: #{_lambda_.21} parent=0 // pred_check_branch
    %8 = sbr.rel (0) target = $region5
  $region4: #{_lambda_.21} parent=0 // pred_region
    _
  $region5: #{_lambda_.21} parent=0 // pred_fallthru
    _
  // Predicated region
  $region6: #{_lambda_.21} parent=0 // pred_check
    _
  $region7: #{_lambda_.21} parent=0 // pred_check_branch
    %10 = sbr.rel (0) target = $region9
  $region8: #{_lambda_.21} parent=0 // pred_region
    _
  $region9: #{_lambda_.21} parent=0 // pred_fallthru
    _
  %v12 = vld [vmem:[%s0] sm:$0xff]
  %v13 = vld [vmem:[%s0 + $0x8] sm:$0xff]
  %v14 = vld [vmem:[%s0 + $0x10] sm:$0xff]
  %v15 = vld [vmem:[%s0 + $0x18] sm:$0xff]
  %p16 = scmp.eq.s32.totalorder 0, 0
  // Predicated region
  $region10: #{_lambda_.21} parent=0 // pred_check
    %p17 = pneg %p16
  $region11: #{_lambda_.21} parent=0 // pred_check_branch
    %19 = sbr.rel (%p17) target = $region13
  $region12: #{_lambda_.21} parent=0 // pred_region
    %vm20 = vcmask 261120
    %21 = vst.msk [vmem:[#allocation2] sm:$0xff] %vm20, 0.0
    %22 = vst.msk [vmem:[#allocation2 + $0x8] sm:$0xff] %vm20, 0.0
  $region13: #{_lambda_.21} parent=0 // pred_fallthru
    _
  %v23 = vld [vmem:[#allocation2] sm:$0xff]
  %v24 = vld [vmem:[#allocation2 + $0x8] sm:$0xff]
  %v25 = vpack.c.bf16 %v14, %v12
  %v26 = vpack.c.bf16 %v15, %v13
  %v27 = vld [vmem:[%s1] sm:$0xf]
  %v28 = vld [vmem:[%s1 + $0x4] sm:$0xf]
  %v29 = vld [vmem:[%s1 + $0x8] sm:$0xf]
  %v30 = vld [vmem:[%s1 + $0xc] sm:$0xf]
  %v31 = vld [vmem:[%s1 + $0x10] sm:$0xf]
  %v32 = vld [vmem:[%s1 + $0x14] sm:$0xf]
  %v33 = vld [vmem:[%s1 + $0x18] sm:$0xf]
  %v34 = vld [vmem:[%s1 + $0x1c] sm:$0xf]
  %v35 = vld [vmem:[%s1 + $0x20] sm:$0xf]
  %v36 = vld [vmem:[%s1 + $0x24] sm:$0xf]
  %v37 = vld [vmem:[%s1 + $0x28] sm:$0xf]
  %v38 = vld [vmem:[%s1 + $0x2c] sm:$0xf]
  %v39 = vld [vmem:[%s1 + $0x30] sm:$0xf]
  %v40 = vld [vmem:[%s1 + $0x34] sm:$0xf]
  %v41 = vld [vmem:[%s1 + $0x38] sm:$0xf]
  %v42 = vld [vmem:[%s1 + $0x3c] sm:$0xf]
  %v43 = vld [vmem:[%s1 + $0x40] sm:$0xf]
  %v44 = vld [vmem:[%s1 + $0x44] sm:$0xf]
  %v45 = vld [vmem:[%s1 + $0x48] sm:$0xf]
  %v46 = vld [vmem:[%s1 + $0x4c] sm:$0xf]
  %v47 = vld [vmem:[%s1 + $0x50] sm:$0xf]
  %v48 = vld [vmem:[%s1 + $0x54] sm:$0xf]
  %v49 = vld [vmem:[%s1 + $0x58] sm:$0xf]
  %v50 = vld [vmem:[%s1 + $0x5c] sm:$0xf]
  %v75 = vunpack.c.l.b16 %v27
  %v76 = vunpack.c.l.b16 %v28
  %v77 = vunpack.c.l.b16 %v29
  %v78 = vunpack.c.l.b16 %v30
  %v79 = vunpack.c.l.b16 %v31
  %v80 = vunpack.c.l.b16 %v32
  %v81 = vunpack.c.l.b16 %v33
  %v82 = vunpack.c.l.b16 %v34
  %v83 = vunpack.c.l.b16 %v35
  %v84 = vunpack.c.l.b16 %v36
  %v85 = vunpack.c.l.b16 %v37
  %v86 = vunpack.c.l.b16 %v38
  %v87 = vunpack.c.l.b16 %v39
  %v88 = vunpack.c.l.b16 %v40
  %v89 = vunpack.c.l.b16 %v41
  %v90 = vunpack.c.l.b16 %v42
  %v91 = vunpack.c.l.b16 %v43
  %v92 = vunpack.c.l.b16 %v44
  %v93 = vunpack.c.l.b16 %v45
  %v94 = vunpack.c.l.b16 %v46
  %v95 = vunpack.c.l.b16 %v47
  %v96 = vunpack.c.l.b16 %v48
  %v97 = vunpack.c.l.b16 %v49
  %v98 = vunpack.c.l.b16 %v50
  %v99 = vpack.c.b16 %v76, %v75
  %v100 = vpack.c.b16 %v78, %v77
  %v101 = vpack.c.b16 %v80, %v79
  %v102 = vpack.c.b16 %v82, %v81
  %v103 = vpack.c.b16 %v84, %v83
  %v104 = vpack.c.b16 %v86, %v85
  %v105 = vpack.c.b16 %v88, %v87
  %v106 = vpack.c.b16 %v90, %v89
  %v107 = vpack.c.b16 %v92, %v91
  %v108 = vpack.c.b16 %v94, %v93
  %v109 = vpack.c.b16 %v96, %v95
  %v110 = vpack.c.b16 %v98, %v97
  %vm123 = vcmask 523264
  %v125 = vsel %vm123, %v26, 0
  %127 = vmatprep.subr.bf16.mxu0 0
  %128 = vmatpush1.bf16.msra.mxu0 %v99
  %129 = vmatprep.subr.bf16.mxu0 0
  %130 = vmatpush1.bf16.msra.mxu0 %v100
  %131 = vmatprep.subr.bf16.mxu0 0
  %132 = vmatpush1.bf16.msra.mxu0 %v101
  %133 = vmatprep.subr.bf16.mxu0 0
  %134 = vmatpush1.bf16.msra.mxu0 %v102
  %135 = vmatprep.subr.bf16.mxu0 0
  %136 = vmatpush1.bf16.msra.mxu0 %v103
  %137 = vmatprep.subr.bf16.mxu0 0
  %138 = vmatpush1.bf16.msra.mxu0 %v104
  %139 = vmatprep.subr.bf16.mxu0 0
  %140 = vmatpush1.bf16.msra.mxu0 %v105
  %141 = vmatprep.subr.bf16.mxu0 0
  %142 = vmatpush1.bf16.msra.mxu0 %v106
  %143 = vmatprep.subr.bf16.mxu0 0
  %144 = vmatpush1.bf16.msra.mxu0 %v107
  %145 = vmatprep.subr.bf16.mxu0 0
  %146 = vmatpush1.bf16.msra.mxu0 %v108
  %147 = vmatprep.subr.bf16.mxu0 0
  %148 = vmatpush1.bf16.msra.mxu0 %v109
  %149 = vmatprep.subr.bf16.mxu0 0
  %150 = vmatpush1.bf16.msra.mxu0 %v110
  %151 = vmatprep.subr.bf16.mxu0 0
  %152 = vmatpush1.bf16.msra.mxu0 0
  %153 = vmatprep.subr.bf16.mxu0 0
  %154 = vmatpush1.bf16.msra.mxu0 0
  %155 = vmatprep.subr.bf16.mxu0 0
  %156 = vmatpush1.bf16.msra.mxu0 0
  %157 = vmatprep.subr.bf16.mxu0 0
  %158 = vmatpush1.bf16.msra.mxu0 0
  %159 = vmatprep.mubr.bf16.mxu0 %v125
  %160 = vmatmul.mubr.bf16.gmra.mrb[0].mxu0 %v25
  %v161 = vpop.f32.mrb[0].mxu0
  %v162 = vadd.f32 0.0, %v161
  %v163 = vpop.f32.mrb[0].mxu0
  %v164 = vpop.f32.mrb[0].mxu0
  %v165 = vadd.f32 0.0, %v164
  %v166 = vpop.f32.mrb[0].mxu0
  %167 = vdwg.mxu0
  %v168 = vadd.f32 %v23, %v162
  %v169 = vadd.f32 %v24, %v165
  %vm170 = vcmask 261120
  %171 = vst.msk [vmem:[#allocation2] sm:$0xff] %vm170, %v168
  %172 = vst.msk [vmem:[#allocation2 + $0x8] sm:$0xff] %vm170, %v169
  // Predicated region
  $region14: #{_lambda_.21} parent=0 // pred_check
    %p173 = pneg %p16
  $region15: #{_lambda_.21} parent=0 // pred_check_branch
    %175 = sbr.rel (%p173) target = $region17
  $region16: #{_lambda_.21} parent=0 // pred_region
    %v176 = vld [vmem:[#allocation2] sm:$0xff]
    %v177 = vld [vmem:[#allocation2 + $0x8] sm:$0xff]
    %178 = vst.msk [vmem:[%s2] sm:$0xff] %vm170, %v176
    %179 = vst.msk [vmem:[%s2 + $0x8] sm:$0xff] %vm170, %v177
  $region17: #{_lambda_.21} parent=0 // pred_fallthru
    _
  // Predicated region
  $region18: #{_lambda_.21} parent=0 // pred_check
    _
  $region19: #{_lambda_.21} parent=0 // pred_check_branch
    %181 = sbr.rel (0) target = $region21
  $region20: #{_lambda_.21} parent=0 // pred_region
    _
  $region21: #{_lambda_.21} parent=0 // pred_fallthru
    _
  // Predicated region
  $region22: #{_lambda_.21} parent=0 // pred_check
    _
  $region23: #{_lambda_.21} parent=0 // pred_check_branch
    %183 = sbr.rel (0) target = $region25
  $region24: #{_lambda_.21} parent=0 // pred_region
    _
  $region25: #{_lambda_.21} parent=0 // pred_fallthru
    _

// kernel: _lambda_.22
$region0: #{_lambda_.22}
  #allocation0 [shape = 'u32[]', space=smem, size = 0x4, offset = 0x4, fixed_abs, tag = 'smem constant byte address 0x4 - core index']
  #allocation1 [shape = 'u32[144,128]{1,0:T(1,128)}', space=vmem, size = 0x12000, scoped, tag = 'internal scratch']
  %s0 = inlined_call_operand.vmem [shape: f32[4,5,32], index: 0, kind: input, shape index: {}]
  %s1 = inlined_call_operand.vmem [shape: f32[5,32], index: 1, kind: input, shape index: {}]
  %s2 = inlined_call_operand.vmem [shape: f32[1,32], index: 2, kind: input, shape index: {}]
  %s3 = inlined_call_operand.vmem [shape: f32[1,32], index: 3, kind: input, shape index: {}]
  %s4 = inlined_call_operand.vmem [shape: f32[4,5,32], index: 4, kind: output, shape index: {}]
  %s5 = sld [smem:[#allocation0]]
  $region49: #{_lambda_.22} parent=0
    _
  %s7 = ssub.s32 1, %s5
  %s8 = scalar_select 0, %s7, %s5
  loop: start=0, step=1, limit=6
  $region2: #{_lambda_.22} parent=0 // loop_pre_header
    _
  $region3: #{_lambda_.22} parent=0 // loop_header
    %s10 = sphi 0, %s14
    %p11 = scmp.ge.s32.totalorder %s10, 6
    %s20 = sphi 0, %s22
    %s23 = sphi 0, %s20
    %s24 = sphi 0, %s23
    %s40 = sphi 0, %s24
    %s44 = sphi 0, %s44
    %s46 = sphi 0, %s44
    %s47 = sphi 0, %s46
    %s61 = sphi 0, %s47
    %s65 = sphi 0, %s65
    %s67 = sphi 0, %s65
    %s68 = sphi 0, %s67
    %s82 = sphi 0, %s68
    %s86 = sphi 0, %s86
    %s88 = sphi 0, %s86
    %s89 = sphi 0, %s88
    %s103 = sphi 0, %s89
    %s109 = sphi 0, %s111
    %s112 = sphi 0, %s109
    %s113 = sphi 0, %s112
    %s129 = sphi 0, %s113
  $region4: #{_lambda_.22} parent=0 // loop_header_branch
    %13 = sbr.rel (%p11) target = $region8
  $region5: #{_lambda_.22} parent=0 // loop_body
    %s15 = ssub.s32 %s10, 1
    %s16 = ssub.s32 %s10, 2
    %s17 = sadd.s32 %s10, 1
    %s18 = ssub.s32 %s10, %s17
    %p19 = scmp.eq.s32.totalorder %s18, 0
    %s21 = sadd.s32 %s20, 1
    %s22 = scalar_select %p19, %s20, %s21
    %p25 = pneg %p19
    %p26 = scmp.eq.s32.totalorder %s10, 3
    %p27 = por %p25, %p26
    %p28 = scmp.ne.s32.totalorder %s20, %s23
    %p29 = scmp.eq.s32.totalorder %s10, 0
    %p30 = por %p28, %p29
    %p31 = scmp.ne.s32.totalorder %s20, %s23
    %p32 = scmp.eq.s32.totalorder %s15, 3
    %p33 = por %p31, %p32
    %p34 = scmp.ne.s32.totalorder %s23, %s24
    %p35 = scmp.eq.s32.totalorder %s15, 0
    %p36 = por %p34, %p35
    %p37 = scmp.ne.s32.totalorder %s23, %s24
    %p38 = scmp.eq.s32.totalorder %s16, 3
    %p39 = por %p37, %p38
    %p41 = scmp.ne.s32.totalorder %s24, %s40
    %p42 = scmp.eq.s32.totalorder %s16, 0
    %p43 = por %p41, %p42
    %s45 = sadd.s32 %s44, 1
    %p48 = scmp.eq.s32.totalorder %s10, 3
    %p49 = scmp.ne.s32.totalorder %s44, %s46
    %p50 = scmp.eq.s32.totalorder %s10, 0
    %p51 = por %p49, %p50
    %p52 = scmp.ne.s32.totalorder %s44, %s46
    %p53 = scmp.eq.s32.totalorder %s15, 3
    %p54 = por %p52, %p53
    %p55 = scmp.ne.s32.totalorder %s46, %s47
    %p56 = scmp.eq.s32.totalorder %s15, 0
    %p57 = por %p55, %p56
    %p58 = scmp.ne.s32.totalorder %s46, %s47
    %p59 = scmp.eq.s32.totalorder %s16, 3
    %p60 = por %p58, %p59
    %p62 = scmp.ne.s32.totalorder %s47, %s61
    %p63 = scmp.eq.s32.totalorder %s16, 0
    %p64 = por %p62, %p63
    %s66 = sadd.s32 %s65, 1
    %p69 = scmp.eq.s32.totalorder %s10, 3
    %p70 = scmp.ne.s32.totalorder %s65, %s67
    %p71 = scmp.eq.s32.totalorder %s10, 0
    %p72 = por %p70, %p71
    %p73 = scmp.ne.s32.totalorder %s65, %s67
    %p74 = scmp.eq.s32.totalorder %s15, 3
    %p75 = por %p73, %p74
    %p76 = scmp.ne.s32.totalorder %s67, %s68
    %p77 = scmp.eq.s32.totalorder %s15, 0
    %p78 = por %p76, %p77
    %p79 = scmp.ne.s32.totalorder %s67, %s68
    %p80 = scmp.eq.s32.totalorder %s16, 3
    %p81 = por %p79, %p80
    %p83 = scmp.ne.s32.totalorder %s68, %s82
    %p84 = scmp.eq.s32.totalorder %s16, 0
    %p85 = por %p83, %p84
    %s87 = sadd.s32 %s86, 1
    %p90 = scmp.eq.s32.totalorder %s10, 3
    %p91 = scmp.ne.s32.totalorder %s86, %s88
    %p92 = scmp.eq.s32.totalorder %s10, 0
    %p93 = por %p91, %p92
    %p94 = scmp.ne.s32.totalorder %s86, %s88
    %p95 = scmp.eq.s32.totalorder %s15, 3
    %p96 = por %p94, %p95
    %p97 = scmp.ne.s32.totalorder %s88, %s89
    %p98 = scmp.eq.s32.totalorder %s15, 0
    %p99 = por %p97, %p98
    %p100 = scmp.ne.s32.totalorder %s88, %s89
    %p101 = scmp.eq.s32.totalorder %s16, 3
    %p102 = por %p100, %p101
    %p104 = scmp.ne.s32.totalorder %s89, %s103
    %p105 = scmp.eq.s32.totalorder %s16, 0
    %p106 = por %p104, %p105
    %s107 = ssub.s32 %s10, %s17
    %p108 = scmp.eq.s32.totalorder %s107, 0
    %s110 = sadd.s32 %s109, 1
    %s111 = scalar_select %p108, %s109, %s110
    %p114 = pneg %p108
    %p115 = scmp.eq.s32.totalorder %s10, 3
    %p116 = por %p114, %p115
    %p117 = scmp.ne.s32.totalorder %s109, %s112
    %p118 = scmp.eq.s32.totalorder %s10, 0
    %p119 = por %p117, %p118
    %p120 = scmp.ne.s32.totalorder %s109, %s112
    %p121 = scmp.eq.s32.totalorder %s15, 3
    %p122 = por %p120, %p121
    %p123 = scmp.ne.s32.totalorder %s112, %s113
    %p124 = scmp.eq.s32.totalorder %s15, 0
    %p125 = por %p123, %p124
    %p126 = scmp.ne.s32.totalorder %s112, %s113
    %p127 = scmp.eq.s32.totalorder %s16, 3
    %p128 = por %p126, %p127
    %p130 = scmp.ne.s32.totalorder %s113, %s129
    %p131 = scmp.eq.s32.totalorder %s16, 0
    %p132 = por %p130, %p131
    %p133 = scmp.le.s32.totalorder 1, %s10
    %p134 = scmp.lt.s32.totalorder %s10, 5
    %p135 = pnand %p133, %p134
    %p136 = pneg %p135
    // Predicated region
    $region9: #{_lambda_.22} parent=5 // pred_check
      _
    $region10: #{_lambda_.22} parent=5 // pred_check_branch
      %138 = sbr.rel (%p135) target = $region12
    $region11: #{_lambda_.22} parent=5 // pred_region
      %s139 = ssub.s32 %s10, 1
      // Predicated region
      $region13: #{_lambda_.22} parent=11 // pred_check
        %p140 = pneg %p57
      $region14: #{_lambda_.22} parent=11 // pred_check_branch
        %142 = sbr.rel (%p140) target = $region16
      $region15: #{_lambda_.22} parent=11 // pred_region
        _
      $region16: #{_lambda_.22} parent=11 // pred_fallthru
        _
      // Predicated region
      $region17: #{_lambda_.22} parent=11 // pred_check
        %p143 = pneg %p78
      $region18: #{_lambda_.22} parent=11 // pred_check_branch
        %145 = sbr.rel (%p143) target = $region20
      $region19: #{_lambda_.22} parent=11 // pred_region
        _
      $region20: #{_lambda_.22} parent=11 // pred_fallthru
        _
      // Predicated region
      $region21: #{_lambda_.22} parent=11 // pred_check
        %p146 = pneg %p99
      $region22: #{_lambda_.22} parent=11 // pred_check_branch
        %148 = sbr.rel (%p146) target = $region24
      $region23: #{_lambda_.22} parent=11 // pred_region
        _
      $region24: #{_lambda_.22} parent=11 // pred_fallthru
        _
    $region12: #{_lambda_.22} parent=5 // pred_fallthru
      _
    %p149 = scmp.lt.s32.totalorder %s10, 4
    // Predicated region
    $region25: #{_lambda_.22} parent=5 // pred_check
      %p150 = pneg %p149
    $region26: #{_lambda_.22} parent=5 // pred_check_branch
      %152 = sbr.rel (%p150) target = $region28
    $region27: #{_lambda_.22} parent=5 // pred_region
      // Predicated region
      $region29: #{_lambda_.22} parent=27 // pred_check
        %p153 = pneg %p30
      $region30: #{_lambda_.22} parent=27 // pred_check_branch
        %155 = sbr.rel (%p153) target = $region32
      $region31: #{_lambda_.22} parent=27 // pred_region
        %p156 = scmp.lt.s32.totalorder %s10, 3
        %s157 = scalar_select %p156, %s10, 3
        %s158 = smul.addr %s157, 8
        %s159 = scalar_lea.vmem %s0, %s158
      $region32: #{_lambda_.22} parent=27 // pred_fallthru
        _
    $region28: #{_lambda_.22} parent=5 // pred_fallthru
      _
    %p160 = scmp.le.s32.totalorder 1, %s10
    %p161 = scmp.lt.s32.totalorder %s10, 5
    %p162 = pnand %p160, %p161
    %p163 = pneg %p162
    // Predicated region
    $region33: #{_lambda_.22} parent=5 // pred_check
      _
    $region34: #{_lambda_.22} parent=5 // pred_check_branch
      %165 = sbr.rel (%p162) target = $region36
    $region35: #{_lambda_.22} parent=5 // pred_region
      %s166 = ssub.s32 %s10, 1
      %p167 = scmp.lt.s32.totalorder %s15, 3
      %s168 = scalar_select %p167, %s15, 3
      %s169 = smul.addr %s168, 8
      %s170 = scalar_lea.vmem %s0, %s169
      %p171 = pneg %p36
      %p172 = pneg %p33
      %p173 = pneg %p57
      %p174 = pneg %p54
      %p175 = pneg %p78
      %p176 = pneg %p75
      %p177 = pneg %p99
      %p178 = pneg %p96
      %p179 = pneg %p125
      %p180 = pneg %p122
      %p181 = scmp.lt.s32.totalorder %s15, 3
      %s182 = scalar_select %p181, %s15, 3
      %s183 = smul.addr %s182, 8
      %s184 = scalar_lea.vmem %s4, %s183
      %p185 = scmp.lt.s32.totalorder %s15, 3
      %s186 = scalar_select %p185, %s15, 3
      %s187 = smul.addr %s186, 8
      %s188 = scalar_lea.vmem %s0, %s187
      %p189 = scmp.lt.s32.totalorder %s15, 3
      %s190 = scalar_select %p189, %s15, 3
      %s191 = smul.addr %s190, 8
      %s192 = scalar_lea.vmem %s4, %s191
      %v193 = vld [vmem:[%s188] sm:$0x1f]
      %v194 = vld [vmem:[%s1] sm:$0x1f]
      %v195 = vadd.f32 %v193, %v194
      %v196 = vld [vmem:[%s2] sm:$0x1]
      %v197 = vld [vmem:[%s3] sm:$0x1]
      %vm198 = vcmask 258048
      %v199 = vsel %vm198, %v195, 0.0
      %200 = vadd.xlane.f32.xlu0 %v199
      %v201 = vpop.xlane.xlu0 %200
      %v202 = vrcp.pop 32.0
      %v203 = vmul.f32 %v201, %v202
      %v204 = vsub.f32 %v195, %v203
      %v205 = vmul.f32 %v204, %v204
      %v206 = vsel %vm198, %v205, 0.0
      %207 = vadd.xlane.f32.xlu0 %v206
      %v208 = vpop.xlane.xlu0 %207
      %v209 = vmul.f32 %v208, %v202
      %v210 = vadd.f32 %v209, 1e-05
      %v211 = vrsqrt.pop %v210
      %v212 = vmul.f32 %v204, %v211
      %v214 = vlaneseq
      %v215 = vshrl.u32 %v214, 7
      %v216 = vsub.s32 0, %v215
      %v217 = vrot.slane %v196, %v216
      %v219 = vmul.f32 %v212, %v217
      %v221 = vlaneseq
      %v222 = vshrl.u32 %v221, 7
      %v223 = vsub.s32 0, %v222
      %v224 = vrot.slane %v197, %v223
      %v226 = vadd.f32 %v219, %v224
      %227 = vst.msk [vmem:[%s192] sm:$0x1f] %vm198, %v226
      %p228 = scmp.lt.s32.totalorder %s15, 3
      %s229 = scalar_select %p228, %s15, 3
      %s230 = smul.addr %s229, 8
      %s231 = scalar_lea.vmem %s4, %s230
      // Predicated region
      $region37: #{_lambda_.22} parent=35 // pred_check
        %p232 = pneg %p122
      $region38: #{_lambda_.22} parent=35 // pred_check_branch
        %234 = sbr.rel (%p232) target = $region40
      $region39: #{_lambda_.22} parent=35 // pred_region
        _
      $region40: #{_lambda_.22} parent=35 // pred_fallthru
        _
    $region36: #{_lambda_.22} parent=5 // pred_fallthru
      _
    %p235 = scmp.le.s32.totalorder 2, %s10
    // Predicated region
    $region41: #{_lambda_.22} parent=5 // pred_check
      %p236 = pneg %p235
    $region42: #{_lambda_.22} parent=5 // pred_check_branch
      %238 = sbr.rel (%p236) target = $region44
    $region43: #{_lambda_.22} parent=5 // pred_region
      %s239 = ssub.s32 %s10, 2
      // Predicated region
      $region45: #{_lambda_.22} parent=43 // pred_check
        %p240 = pneg %p128
      $region46: #{_lambda_.22} parent=43 // pred_check_branch
        %242 = sbr.rel (%p240) target = $region48
      $region47: #{_lambda_.22} parent=43 // pred_region
        %p243 = scmp.lt.s32.totalorder %s16, 3
        %s244 = scalar_select %p243, %s16, 3
        %s245 = smul.addr %s244, 8
        %s246 = scalar_lea.vmem %s4, %s245
      $region48: #{_lambda_.22} parent=43 // pred_fallthru
        _
    $region44: #{_lambda_.22} parent=5 // pred_fallthru
      _
  $region6: #{_lambda_.22} parent=0 // loop_footer
    %s14 = sadd.s32 1, %s10
  $region7: #{_lambda_.22} parent=0 // loop_footer_branch
    %9 = sbr.rel target = $region3
  $region8: #{_lambda_.22} parent=0 // loop_exit
    _

// kernel: _lambda_.25
$region0: #{_lambda_.25}
  #allocation0 [shape = 'u32[]', space=smem, size = 0x4, offset = 0x4, fixed_abs, tag = 'smem constant byte address 0x4 - core index']
  #allocation1 [shape = 'u32[144,128]{1,0:T(1,128)}', space=vmem, size = 0x12000, scoped, tag = 'internal scratch']
  #allocation2 [shape = 'f32[20,32]{1,0:T(8,128)}', space=vmem, size = 0x3000, scoped, tag = 'scratch operand']
  %s0 = inlined_call_operand.vmem [shape: bf16[20,32], index: 0, kind: input, shape index: {}]
  %s1 = inlined_call_operand.vmem [shape: bf16[32,32], index: 1, kind: input, shape index: {}]
  %s2 = inlined_call_operand.vmem [shape: f32[1,32], index: 2, kind: input, shape index: {}]
  %s3 = inlined_call_operand.vmem [shape: f32[20,32], index: 3, kind: input, shape index: {}]
  %s4 = inlined_call_operand.vmem [shape: f32[20,32], index: 4, kind: output, shape index: {}]
  %s5 = sld [smem:[#allocation0]]
  $region34: #{_lambda_.25} parent=0
    _
  %s7 = ssub.s32 1, %s5
  %s8 = scalar_select 0, %s7, %s5
  // Predicated region
  $region2: #{_lambda_.25} parent=0 // pred_check
    _
  $region3: #{_lambda_.25} parent=0 // pred_check_branch
    %10 = sbr.rel (0) target = $region5
  $region4: #{_lambda_.25} parent=0 // pred_region
    _
  $region5: #{_lambda_.25} parent=0 // pred_fallthru
    _
  // Predicated region
  $region6: #{_lambda_.25} parent=0 // pred_check
    _
  $region7: #{_lambda_.25} parent=0 // pred_check_branch
    %12 = sbr.rel (0) target = $region9
  $region8: #{_lambda_.25} parent=0 // pred_region
    _
  $region9: #{_lambda_.25} parent=0 // pred_fallthru
    _
  // Predicated region
  $region10: #{_lambda_.25} parent=0 // pred_check
    _
  $region11: #{_lambda_.25} parent=0 // pred_check_branch
    %14 = sbr.rel (0) target = $region13
  $region12: #{_lambda_.25} parent=0 // pred_region
    _
  $region13: #{_lambda_.25} parent=0 // pred_fallthru
    _
  // Predicated region
  $region14: #{_lambda_.25} parent=0 // pred_check
    _
  $region15: #{_lambda_.25} parent=0 // pred_check_branch
    %16 = sbr.rel (0) target = $region17
  $region16: #{_lambda_.25} parent=0 // pred_region
    _
  $region17: #{_lambda_.25} parent=0 // pred_fallthru
    _
  %v18 = vld [vmem:[%s0] sm:$0xf]
  %v19 = vld [vmem:[%s0 + $0x4] sm:$0xf]
  %v20 = vld [vmem:[%s0 + $0x8] sm:$0x3]
  %p21 = scmp.eq.s32.totalorder 0, 0
  // Predicated region
  $region18: #{_lambda_.25} parent=0 // pred_check
    %p22 = pneg %p21
  $region19: #{_lambda_.25} parent=0 // pred_check_branch
    %24 = sbr.rel (%p22) target = $region21
  $region20: #{_lambda_.25} parent=0 // pred_region
    %vm25 = vcmask 261120
    %26 = vst.msk [vmem:[#allocation2] sm:$0xff] %vm25, 0.0
    %27 = vst.msk [vmem:[#allocation2 + $0x8] sm:$0xff] %vm25, 0.0
    %vm28 = vcmask 257024
    %29 = vst.msk [vmem:[#allocation2 + $0x10] sm:$0xf] %vm28, 0.0
  $region21: #{_lambda_.25} parent=0 // pred_fallthru
    _
  %v30 = vld [vmem:[#allocation2] sm:$0xff]
  %v31 = vld [vmem:[#allocation2 + $0x8] sm:$0xff]
  %v32 = vld [vmem:[#allocation2 + $0x10] sm:$0xf]
  %v33 = vld [vmem:[%s1] sm:$0xf]
  %v34 = vld [vmem:[%s1 + $0x4] sm:$0xf]
  %v35 = vld [vmem:[%s1 + $0x8] sm:$0xf]
  %v36 = vld [vmem:[%s1 + $0xc] sm:$0xf]
  %v40 = vunpack.c.l.b16 %v18
  %v41 = vunpack.c.l.b16 %v19
  %v42 = vunpack.c.l.b16 %v20
  %v43 = vpack.c.b16 %v41, %v40
  %v44 = vpack.c.b16 %v42, %v42
  %v49 = vunpack.c.l.b16 %v33
  %v50 = vunpack.c.l.b16 %v34
  %v51 = vunpack.c.l.b16 %v35
  %v52 = vunpack.c.l.b16 %v36
  %v53 = vpack.c.b16 %v50, %v49
  %v54 = vpack.c.b16 %v52, %v51
  %vm57 = vcmask 261120
  %v59 = vsel %vm57, %v43, 0
  %v62 = vsel %vm57, %v44, 0
  %64 = vmatprep.subr.bf16.mxu0 0
  %65 = vmatpush1.bf16.msra.mxu0 %v53
  %66 = vmatprep.subr.bf16.mxu0 0
  %67 = vmatpush1.bf16.msra.mxu0 %v54
  %68 = vmatprep.subr.bf16.mxu0 0
  %69 = vmatpush1.bf16.msra.mxu0 0
  %70 = vmatprep.subr.bf16.mxu0 0
  %71 = vmatpush1.bf16.msra.mxu0 0
  %72 = vmatprep.subr.bf16.mxu0 0
  %73 = vmatpush1.bf16.msra.mxu0 0
  %74 = vmatprep.subr.bf16.mxu0 0
  %75 = vmatpush1.bf16.msra.mxu0 0
  %76 = vmatprep.subr.bf16.mxu0 0
  %77 = vmatpush1.bf16.msra.mxu0 0
  %78 = vmatprep.subr.bf16.mxu0 0
  %79 = vmatpush1.bf16.msra.mxu0 0
  %80 = vmatprep.subr.bf16.mxu0 0
  %81 = vmatpush1.bf16.msra.mxu0 0
  %82 = vmatprep.subr.bf16.mxu0 0
  %83 = vmatpush1.bf16.msra.mxu0 0
  %84 = vmatprep.subr.bf16.mxu0 0
  %85 = vmatpush1.bf16.msra.mxu0 0
  %86 = vmatprep.subr.bf16.mxu0 0
  %87 = vmatpush1.bf16.msra.mxu0 0
  %88 = vmatprep.subr.bf16.mxu0 0
  %89 = vmatpush1.bf16.msra.mxu0 0
  %90 = vmatprep.subr.bf16.mxu0 0
  %91 = vmatpush1.bf16.msra.mxu0 0
  %92 = vmatprep.subr.bf16.mxu0 0
  %93 = vmatpush1.bf16.msra.mxu0 0
  %94 = vmatprep.subr.bf16.mxu0 0
  %95 = vmatpush1.bf16.msra.mxu0 0
  %96 = vmatprep.mubr.bf16.mxu0 0
  %97 = vmatmul.mubr.bf16.gmra.mrb[0].mxu0 %v59
  %v98 = vpop.f32.mrb[0].mxu0
  %v99 = vadd.f32 0.0, %v98
  %v100 = vpop.f32.mrb[0].mxu0
  %v101 = vpop.f32.mrb[0].mxu0
  %v102 = vadd.f32 0.0, %v101
  %v103 = vpop.f32.mrb[0].mxu0
  %104 = vmatprep.mubr.bf16.mxu0 0
  %105 = vmatmul.mubr.bf16.gmra.mrb[0].mxu0 %v62
  %v106 = vpop.f32.mrb[0].mxu0
  %v107 = vadd.f32 0.0, %v106
  %v108 = vpop.f32.mrb[0].mxu0
  %v109 = vpop.f32.mrb[0].mxu0
  %v110 = vpop.f32.mrb[0].mxu0
  %111 = vdwg.mxu0
  %v112 = vadd.f32 %v30, %v99
  %v113 = vadd.f32 %v31, %v102
  %v114 = vadd.f32 %v32, %v107
  %115 = vst.msk [vmem:[#allocation2] sm:$0xff] %vm57, %v112
  %116 = vst.msk [vmem:[#allocation2 + $0x8] sm:$0xff] %vm57, %v113
  %vm117 = vcmask 257024
  %118 = vst.msk [vmem:[#allocation2 + $0x10] sm:$0xf] %vm117, %v114
  // Predicated region
  $region22: #{_lambda_.25} parent=0 // pred_check
    %p119 = pneg %p21
  $region23: #{_lambda_.25} parent=0 // pred_check_branch
    %121 = sbr.rel (%p119) target = $region25
  $region24: #{_lambda_.25} parent=0 // pred_region
    %v122 = vld [vmem:[#allocation2] sm:$0xff]
    %v123 = vld [vmem:[#allocation2 + $0x8] sm:$0xff]
    %v124 = vld [vmem:[#allocation2 + $0x10] sm:$0xf]
    %v125 = vld [vmem:[%s2] sm:$0x1]
    %v127 = vlaneseq
    %v128 = vshrl.u32 %v127, 7
    %v129 = vsub.s32 0, %v128
    %v130 = vrot.slane %v125, %v129
    %v132 = vadd.f32 %v122, %v130
    %v133 = vadd.f32 %v123, %v130
    %v134 = vadd.f32 %v124, %v130
    %v135 = vld [vmem:[%s3] sm:$0xff]
    %v136 = vld [vmem:[%s3 + $0x8] sm:$0xff]
    %v137 = vld [vmem:[%s3 + $0x10] sm:$0xf]
    %v138 = vadd.f32 %v132, %v135
    %v139 = vadd.f32 %v133, %v136
    %v140 = vadd.f32 %v134, %v137
    %141 = vst.msk [vmem:[%s4] sm:$0xff] %vm57, %v138
    %142 = vst.msk [vmem:[%s4 + $0x8] sm:$0xff] %vm57, %v139
    %143 = vst.msk [vmem:[%s4 + $0x10] sm:$0xf] %vm117, %v140
  $region25: #{_lambda_.25} parent=0 // pred_fallthru
    _
  // Predicated region
  $region26: #{_lambda_.25} parent=0 // pred_check
    _
  $region27: #{_lambda_.25} parent=0 // pred_check_branch
    %145 = sbr.rel (0) target = $region29
  $region28: #{_lambda_.25} parent=0 // pred_region
    _
  $region29: #{_lambda_.25} parent=0 // pred_fallthru
    _
  // Predicated region
  $region30: #{_lambda_.25} parent=0 // pred_check
    _
  $region31: #{_lambda_.25} parent=0 // pred_check_branch
    %147 = sbr.rel (0) target = $region33
  $region32: #{_lambda_.25} parent=0 // pred_region
    _
  $region33: #{_lambda_.25} parent=0 // pred_fallthru
    _

// kernel: _lambda_.23
$region0: #{_lambda_.23}
  #allocation0 [shape = 'u32[]', space=smem, size = 0x4, offset = 0x4, fixed_abs, tag = 'smem constant byte address 0x4 - core index']
  #allocation1 [shape = 'u32[144,128]{1,0:T(1,128)}', space=vmem, size = 0x12000, scoped, tag = 'internal scratch']
  %s0 = inlined_call_operand.vmem [shape: f32[20,32], index: 0, kind: input, shape index: {}]
  %s1 = inlined_call_operand.vmem [shape: f32[1,32], index: 1, kind: input, shape index: {}]
  %s2 = inlined_call_operand.vmem [shape: f32[1,32], index: 2, kind: input, shape index: {}, may-alias: {2,6,7,8}]
  %s3 = inlined_call_operand.vmem [shape: bf16[32,32], index: 3, kind: input, shape index: {}]
  %s4 = inlined_call_operand.vmem [shape: bf16[32,32], index: 4, kind: input, shape index: {}]
  %s5 = inlined_call_operand.vmem [shape: bf16[32,32], index: 5, kind: input, shape index: {}]
  %s6 = inlined_call_operand.vmem [shape: f32[1,32], index: 6, kind: input, shape index: {}, may-alias: {2,6,7,8}]
  %s7 = inlined_call_operand.vmem [shape: f32[1,32], index: 7, kind: input, shape index: {}, may-alias: {2,6,7,8}]
  %s8 = inlined_call_operand.vmem [shape: f32[1,32], index: 8, kind: input, shape index: {}, may-alias: {2,6,7,8}]
  %s9 = inlined_call_operand.vmem [shape: bf16[20,32], index: 9, kind: output, shape index: {0}]
  %s10 = inlined_call_operand.vmem [shape: bf16[20,32], index: 10, kind: output, shape index: {1}]
  %s11 = inlined_call_operand.vmem [shape: bf16[20,32], index: 11, kind: output, shape index: {2}]
  %12 = xla_tuple %s9, %s10, %s11
  %s13 = sld [smem:[#allocation0]]
  $region62: #{_lambda_.23} parent=0
    _
  %s15 = ssub.s32 1, %s13
  %s16 = scalar_select 0, %s15, %s13
  // Predicated region
  $region2: #{_lambda_.23} parent=0 // pred_check
    _
  $region3: #{_lambda_.23} parent=0 // pred_check_branch
    %18 = sbr.rel (0) target = $region5
  $region4: #{_lambda_.23} parent=0 // pred_region
    _
  $region5: #{_lambda_.23} parent=0 // pred_fallthru
    _
  // Predicated region
  $region6: #{_lambda_.23} parent=0 // pred_check
    _
  $region7: #{_lambda_.23} parent=0 // pred_check_branch
    %20 = sbr.rel (0) target = $region9
  $region8: #{_lambda_.23} parent=0 // pred_region
    _
  $region9: #{_lambda_.23} parent=0 // pred_fallthru
    _
  // Predicated region
  $region10: #{_lambda_.23} parent=0 // pred_check
    _
  $region11: #{_lambda_.23} parent=0 // pred_check_branch
    %22 = sbr.rel (0) target = $region13
  $region12: #{_lambda_.23} parent=0 // pred_region
    _
  $region13: #{_lambda_.23} parent=0 // pred_fallthru
    _
  // Predicated region
  $region14: #{_lambda_.23} parent=0 // pred_check
    _
  $region15: #{_lambda_.23} parent=0 // pred_check_branch
    %24 = sbr.rel (0) target = $region17
  $region16: #{_lambda_.23} parent=0 // pred_region
    _
  $region17: #{_lambda_.23} parent=0 // pred_fallthru
    _
  // Predicated region
  $region18: #{_lambda_.23} parent=0 // pred_check
    _
  $region19: #{_lambda_.23} parent=0 // pred_check_branch
    %26 = sbr.rel (0) target = $region21
  $region20: #{_lambda_.23} parent=0 // pred_region
    _
  $region21: #{_lambda_.23} parent=0 // pred_fallthru
    _
  // Predicated region
  $region22: #{_lambda_.23} parent=0 // pred_check
    _
  $region23: #{_lambda_.23} parent=0 // pred_check_branch
    %28 = sbr.rel (0) target = $region25
  $region24: #{_lambda_.23} parent=0 // pred_region
    _
  $region25: #{_lambda_.23} parent=0 // pred_fallthru
    _
  // Predicated region
  $region26: #{_lambda_.23} parent=0 // pred_check
    _
  $region27: #{_lambda_.23} parent=0 // pred_check_branch
    %30 = sbr.rel (0) target = $region29
  $region28: #{_lambda_.23} parent=0 // pred_region
    _
  $region29: #{_lambda_.23} parent=0 // pred_fallthru
    _
  // Predicated region
  $region30: #{_lambda_.23} parent=0 // pred_check
    _
  $region31: #{_lambda_.23} parent=0 // pred_check_branch
    %32 = sbr.rel (0) target = $region33
  $region32: #{_lambda_.23} parent=0 // pred_region
    _
  $region33: #{_lambda_.23} parent=0 // pred_fallthru
    _
  // Predicated region
  $region34: #{_lambda_.23} parent=0 // pred_check
    _
  $region35: #{_lambda_.23} parent=0 // pred_check_branch
    %34 = sbr.rel (0) target = $region37
  $region36: #{_lambda_.23} parent=0 // pred_region
    _
  $region37: #{_lambda_.23} parent=0 // pred_fallthru
    _
  %v36 = vld [vmem:[%s0] sm:$0xff]
  %v37 = vld [vmem:[%s0 + $0x8] sm:$0xff]
  %v38 = vld [vmem:[%s0 + $0x10] sm:$0xf]
  %v39 = vld [vmem:[%s1] sm:$0x1]
  %v40 = vld [vmem:[%s2] sm:$0x1]
  %vm41 = vcmask 261120
  %v42 = vsel %vm41, %v36, 0.0
  %43 = vadd.xlane.f32.xlu0 %v42
  %v44 = vpop.xlane.xlu0 %43
  %v45 = vsel %vm41, %v37, 0.0
  %46 = vadd.xlane.f32.xlu0 %v45
  %v47 = vpop.xlane.xlu0 %46
  %vm48 = vcmask 257024
  %v49 = vsel %vm48, %v38, 0.0
  %50 = vadd.xlane.f32.xlu0 %v49
  %v51 = vpop.xlane.xlu0 %50
  %v52 = vrcp.pop 32.0
  %v53 = vmul.f32 %v44, %v52
  %v54 = vmul.f32 %v47, %v52
  %v55 = vmul.f32 %v51, %v52
  %v56 = vsub.f32 %v36, %v53
  %v57 = vsub.f32 %v37, %v54
  %v58 = vsub.f32 %v38, %v55
  %v59 = vmul.f32 %v56, %v56
  %v60 = vmul.f32 %v57, %v57
  %v61 = vmul.f32 %v58, %v58
  %v62 = vsel %vm41, %v59, 0.0
  %63 = vadd.xlane.f32.xlu0 %v62
  %v64 = vpop.xlane.xlu0 %63
  %v65 = vsel %vm41, %v60, 0.0
  %66 = vadd.xlane.f32.xlu0 %v65
  %v67 = vpop.xlane.xlu0 %66
  %v68 = vsel %vm48, %v61, 0.0
  %69 = vadd.xlane.f32.xlu0 %v68
  %v70 = vpop.xlane.xlu0 %69
  %v71 = vmul.f32 %v64, %v52
  %v72 = vmul.f32 %v67, %v52
  %v73 = vmul.f32 %v70, %v52
  %v74 = vadd.f32 %v71, 1e-05
  %v75 = vadd.f32 %v72, 1e-05
  %v76 = vadd.f32 %v73, 1e-05
  %v77 = vrsqrt.pop %v74
  %v78 = vrsqrt.pop %v75
  %v79 = vrsqrt.pop %v76
  %v80 = vmul.f32 %v56, %v77
  %v81 = vmul.f32 %v57, %v78
  %v82 = vmul.f32 %v58, %v79
  %v84 = vlaneseq
  %v85 = vshrl.u32 %v84, 7
  %v86 = vsub.s32 0, %v85
  %v87 = vrot.slane %v39, %v86
  %v89 = vmul.f32 %v80, %v87
  %v90 = vmul.f32 %v81, %v87
  %v91 = vmul.f32 %v82, %v87
  %v93 = vlaneseq
  %v94 = vshrl.u32 %v93, 7
  %v95 = vsub.s32 0, %v94
  %v96 = vrot.slane %v40, %v95
  %v98 = vadd.f32 %v89, %v96
  %v99 = vadd.f32 %v90, %v96
  %v100 = vadd.f32 %v91, %v96
  %v101 = vpack.c.bf16 %v99, %v98
  %v102 = vpack.c.bf16 %v100, %v100
  %v103 = vld [vmem:[%s3] sm:$0xf]
  %v104 = vld [vmem:[%s3 + $0x4] sm:$0xf]
  %v105 = vld [vmem:[%s3 + $0x8] sm:$0xf]
  %v106 = vld [vmem:[%s3 + $0xc] sm:$0xf]
  %v107 = vld [vmem:[%s6] sm:$0x1]
  %v109 = vlaneseq
  %v110 = vshrl.u32 %v109, 7
  %v111 = vsub.s32 0, %v110
  %v112 = vrot.slane %v107, %v111
  %v118 = vunpack.c.l.b16 %v103
  %v119 = vunpack.c.l.b16 %v104
  %v120 = vunpack.c.l.b16 %v105
  %v121 = vunpack.c.l.b16 %v106
  %v122 = vpack.c.b16 %v119, %v118
  %v123 = vpack.c.b16 %v121, %v120
  %v127 = vsel %vm41, %v101, 0
  %v130 = vsel %vm41, %v102, 0
  %132 = vmatprep.subr.bf16.mxu0 0
  %133 = vmatpush1.bf16.msra.mxu0 %v122
  %134 = vmatprep.subr.bf16.mxu0 0
  %135 = vmatpush1.bf16.msra.mxu0 %v123
  %136 = vmatprep.subr.bf16.mxu0 0
  %137 = vmatpush1.bf16.msra.mxu0 0
  %138 = vmatprep.subr.bf16.mxu0 0
  %139 = vmatpush1.bf16.msra.mxu0 0
  %140 = vmatprep.subr.bf16.mxu0 0
  %141 = vmatpush1.bf16.msra.mxu0 0
  %142 = vmatprep.subr.bf16.mxu0 0
  %143 = vmatpush1.bf16.msra.mxu0 0
  %144 = vmatprep.subr.bf16.mxu0 0
  %145 = vmatpush1.bf16.msra.mxu0 0
  %146 = vmatprep.subr.bf16.mxu0 0
  %147 = vmatpush1.bf16.msra.mxu0 0
  %148 = vmatprep.subr.bf16.mxu0 0
  %149 = vmatpush1.bf16.msra.mxu0 0
  %150 = vmatprep.subr.bf16.mxu0 0
  %151 = vmatpush1.bf16.msra.mxu0 0
  %152 = vmatprep.subr.bf16.mxu0 0
  %153 = vmatpush1.bf16.msra.mxu0 0
  %154 = vmatprep.subr.bf16.mxu0 0
  %155 = vmatpush1.bf16.msra.mxu0 0
  %156 = vmatprep.subr.bf16.mxu0 0
  %157 = vmatpush1.bf16.msra.mxu0 0
  %158 = vmatprep.subr.bf16.mxu0 0
  %159 = vmatpush1.bf16.msra.mxu0 0
  %160 = vmatprep.subr.bf16.mxu0 0
  %161 = vmatpush1.bf16.msra.mxu0 0
  %162 = vmatprep.subr.bf16.mxu0 0
  %163 = vmatpush1.bf16.msra.mxu0 0
  %164 = vmatprep.mubr.bf16.mxu0 0
  %165 = vmatmul.mubr.bf16.gmra.mrb[0].mxu0 %v127
  %v166 = vpop.f32.mrb[0].mxu0
  %v167 = vadd.f32 %v112, %v166
  %v168 = vpop.f32.mrb[0].mxu0
  %v169 = vpop.f32.mrb[0].mxu0
  %v170 = vadd.f32 %v112, %v169
  %v171 = vpop.f32.mrb[0].mxu0
  %172 = vmatprep.mubr.bf16.mxu0 0
  %173 = vmatmul.mubr.bf16.gmra.mrb[0].mxu0 %v130
  %v174 = vpop.f32.mrb[0].mxu0
  %v175 = vadd.f32 %v112, %v174
  %v176 = vpop.f32.mrb[0].mxu0
  %v177 = vpop.f32.mrb[0].mxu0
  %v178 = vpop.f32.mrb[0].mxu0
  %179 = vdwg.mxu0
  %v180 = vpack.c.bf16 %v170, %v167
  %v181 = vpack.c.bf16 %v175, %v175
  %v184 = vunpack.c.l.b16 %v180
  %v185 = vunpack.c.h.b16 %v180
  %v186 = vunpack.c.l.b16 %v181
  %v187 = vpack.c.b16 %v184, %v184
  %v188 = vpack.c.b16 %v185, %v185
  %v189 = vpack.c.b16 %v186, %v186
  %193 = vst.msk [vmem:[%s9] sm:$0xf] %vm48, %v187
  %194 = vst.msk [vmem:[%s9 + $0x4] sm:$0xf] %vm48, %v188
  %vm195 = vcmask 254976
  %196 = vst.msk [vmem:[%s9 + $0x8] sm:$0x3] %vm195, %v189
  %v197 = vld [vmem:[%s4] sm:$0xf]
  %v198 = vld [vmem:[%s4 + $0x4] sm:$0xf]
  %v199 = vld [vmem:[%s4 + $0x8] sm:$0xf]
  %v200 = vld [vmem:[%s4 + $0xc] sm:$0xf]
  %v201 = vld [vmem:[%s7] sm:$0x1]
  %v203 = vlaneseq
  %v204 = vshrl.u32 %v203, 7
  %v205 = vsub.s32 0, %v204
  %v206 = vrot.slane %v201, %v205
  %v212 = vunpack.c.l.b16 %v197
  %v213 = vunpack.c.l.b16 %v198
  %v214 = vunpack.c.l.b16 %v199
  %v215 = vunpack.c.l.b16 %v200
  %v216 = vpack.c.b16 %v213, %v212
  %v217 = vpack.c.b16 %v215, %v214
  %220 = vmatprep.subr.bf16.mxu0 0
  %221 = vmatpush1.bf16.msra.mxu0 %v216
  %222 = vmatprep.subr.bf16.mxu0 0
  %223 = vmatpush1.bf16.msra.mxu0 %v217
  %224 = vmatprep.subr.bf16.mxu0 0
  %225 = vmatpush1.bf16.msra.mxu0 0
  %226 = vmatprep.subr.bf16.mxu0 0
  %227 = vmatpush1.bf16.msra.mxu0 0
  %228 = vmatprep.subr.bf16.mxu0 0
  %229 = vmatpush1.bf16.msra.mxu0 0
  %230 = vmatprep.subr.bf16.mxu0 0
  %231 = vmatpush1.bf16.msra.mxu0 0
  %232 = vmatprep.subr.bf16.mxu0 0
  %233 = vmatpush1.bf16.msra.mxu0 0
  %234 = vmatprep.subr.bf16.mxu0 0
  %235 = vmatpush1.bf16.msra.mxu0 0
  %236 = vmatprep.subr.bf16.mxu0 0
  %237 = vmatpush1.bf16.msra.mxu0 0
  %238 = vmatprep.subr.bf16.mxu0 0
  %239 = vmatpush1.bf16.msra.mxu0 0
  %240 = vmatprep.subr.bf16.mxu0 0
  %241 = vmatpush1.bf16.msra.mxu0 0
  %242 = vmatprep.subr.bf16.mxu0 0
  %243 = vmatpush1.bf16.msra.mxu0 0
  %244 = vmatprep.subr.bf16.mxu0 0
  %245 = vmatpush1.bf16.msra.mxu0 0
  %246 = vmatprep.subr.bf16.mxu0 0
  %247 = vmatpush1.bf16.msra.mxu0 0
  %248 = vmatprep.subr.bf16.mxu0 0
  %249 = vmatpush1.bf16.msra.mxu0 0
  %250 = vmatprep.subr.bf16.mxu0 0
  %251 = vmatpush1.bf16.msra.mxu0 0
  %252 = vmatprep.mubr.bf16.mxu0 0
  %253 = vmatmul.mubr.bf16.gmra.mrb[0].mxu0 %v127
  %v254 = vpop.f32.mrb[0].mxu0
  %v255 = vadd.f32 %v206, %v254
  %v256 = vpop.f32.mrb[0].mxu0
  %v257 = vpop.f32.mrb[0].mxu0
  %v258 = vadd.f32 %v206, %v257
  %v259 = vpop.f32.mrb[0].mxu0
  %260 = vmatprep.mubr.bf16.mxu0 0
  %261 = vmatmul.mubr.bf16.gmra.mrb[0].mxu0 %v130
  %v262 = vpop.f32.mrb[0].mxu0
  %v263 = vadd.f32 %v206, %v262
  %v264 = vpop.f32.mrb[0].mxu0
  %v265 = vpop.f32.mrb[0].mxu0
  %v266 = vpop.f32.mrb[0].mxu0
  %267 = vdwg.mxu0
  %v268 = vpack.c.bf16 %v258, %v255
  %v269 = vpack.c.bf16 %v263, %v263
  %v272 = vunpack.c.l.b16 %v268
  %v273 = vunpack.c.h.b16 %v268
  %v274 = vunpack.c.l.b16 %v269
  %v275 = vpack.c.b16 %v272, %v272
  %v276 = vpack.c.b16 %v273, %v273
  %v277 = vpack.c.b16 %v274, %v274
  %281 = vst.msk [vmem:[%s10] sm:$0xf] %vm48, %v275
  %282 = vst.msk [vmem:[%s10 + $0x4] sm:$0xf] %vm48, %v276
  %283 = vst.msk [vmem:[%s10 + $0x8] sm:$0x3] %vm195, %v277
  %v284 = vld [vmem:[%s5] sm:$0xf]
  %v285 = vld [vmem:[%s5 + $0x4] sm:$0xf]
  %v286 = vld [vmem:[%s5 + $0x8] sm:$0xf]
  %v287 = vld [vmem:[%s5 + $0xc] sm:$0xf]
  %v288 = vld [vmem:[%s8] sm:$0x1]
  %v290 = vlaneseq
  %v291 = vshrl.u32 %v290, 7
  %v292 = vsub.s32 0, %v291
  %v293 = vrot.slane %v288, %v292
  %v299 = vunpack.c.l.b16 %v284
  %v300 = vunpack.c.l.b16 %v285
  %v301 = vunpack.c.l.b16 %v286
  %v302 = vunpack.c.l.b16 %v287
  %v303 = vpack.c.b16 %v300, %v299
  %v304 = vpack.c.b16 %v302, %v301
  %307 = vmatprep.subr.bf16.mxu0 0
  %308 = vmatpush1.bf16.msra.mxu0 %v303
  %309 = vmatprep.subr.bf16.mxu0 0
  %310 = vmatpush1.bf16.msra.mxu0 %v304
  %311 = vmatprep.subr.bf16.mxu0 0
  %312 = vmatpush1.bf16.msra.mxu0 0
  %313 = vmatprep.subr.bf16.mxu0 0
  %314 = vmatpush1.bf16.msra.mxu0 0
  %315 = vmatprep.subr.bf16.mxu0 0
  %316 = vmatpush1.bf16.msra.mxu0 0
  %317 = vmatprep.subr.bf16.mxu0 0
  %318 = vmatpush1.bf16.msra.mxu0 0
  %319 = vmatprep.subr.bf16.mxu0 0
  %320 = vmatpush1.bf16.msra.mxu0 0
  %321 = vmatprep.subr.bf16.mxu0 0
  %322 = vmatpush1.bf16.msra.mxu0 0
  %323 = vmatprep.subr.bf16.mxu0 0
  %324 = vmatpush1.bf16.msra.mxu0 0
  %325 = vmatprep.subr.bf16.mxu0 0
  %326 = vmatpush1.bf16.msra.mxu0 0
  %327 = vmatprep.subr.bf16.mxu0 0
  %328 = vmatpush1.bf16.msra.mxu0 0
  %329 = vmatprep.subr.bf16.mxu0 0
  %330 = vmatpush1.bf16.msra.mxu0 0
  %331 = vmatprep.subr.bf16.mxu0 0
  %332 = vmatpush1.bf16.msra.mxu0 0
  %333 = vmatprep.subr.bf16.mxu0 0
  %334 = vmatpush1.bf16.msra.mxu0 0
  %335 = vmatprep.subr.bf16.mxu0 0
  %336 = vmatpush1.bf16.msra.mxu0 0
  %337 = vmatprep.subr.bf16.mxu0 0
  %338 = vmatpush1.bf16.msra.mxu0 0
  %339 = vmatprep.mubr.bf16.mxu0 0
  %340 = vmatmul.mubr.bf16.gmra.mrb[0].mxu0 %v127
  %v341 = vpop.f32.mrb[0].mxu0
  %v342 = vadd.f32 %v293, %v341
  %v343 = vpop.f32.mrb[0].mxu0
  %v344 = vpop.f32.mrb[0].mxu0
  %v345 = vadd.f32 %v293, %v344
  %v346 = vpop.f32.mrb[0].mxu0
  %347 = vmatprep.mubr.bf16.mxu0 0
  %348 = vmatmul.mubr.bf16.gmra.mrb[0].mxu0 %v130
  %v349 = vpop.f32.mrb[0].mxu0
  %v350 = vadd.f32 %v293, %v349
  %v351 = vpop.f32.mrb[0].mxu0
  %v352 = vpop.f32.mrb[0].mxu0
  %v353 = vpop.f32.mrb[0].mxu0
  %354 = vdwg.mxu0
  %v355 = vpack.c.bf16 %v345, %v342
  %v356 = vpack.c.bf16 %v350, %v350
  %v359 = vunpack.c.l.b16 %v355
  %v360 = vunpack.c.h.b16 %v355
  %v361 = vunpack.c.l.b16 %v356
  %v362 = vpack.c.b16 %v359, %v359
  %v363 = vpack.c.b16 %v360, %v360
  %v364 = vpack.c.b16 %v361, %v361
  %368 = vst.msk [vmem:[%s11] sm:$0xf] %vm48, %v362
  %369 = vst.msk [vmem:[%s11 + $0x4] sm:$0xf] %vm48, %v363
  %370 = vst.msk [vmem:[%s11 + $0x8] sm:$0x3] %vm195, %v364
  // Predicated region
  $region38: #{_lambda_.23} parent=0 // pred_check
    _
  $region39: #{_lambda_.23} parent=0 // pred_check_branch
    %372 = sbr.rel (0) target = $region41
  $region40: #{_lambda_.23} parent=0 // pred_region
    _
  $region41: #{_lambda_.23} parent=0 // pred_fallthru
    _
  // Predicated region
  $region42: #{_lambda_.23} parent=0 // pred_check
    _
  $region43: #{_lambda_.23} parent=0 // pred_check_branch
    %374 = sbr.rel (0) target = $region45
  $region44: #{_lambda_.23} parent=0 // pred_region
    _
  $region45: #{_lambda_.23} parent=0 // pred_fallthru
    _
  // Predicated region
  $region46: #{_lambda_.23} parent=0 // pred_check
    _
  $region47: #{_lambda_.23} parent=0 // pred_check_branch
    %376 = sbr.rel (0) target = $region49
  $region48: #{_lambda_.23} parent=0 // pred_region
    _
  $region49: #{_lambda_.23} parent=0 // pred_fallthru
    _
  // Predicated region
  $region50: #{_lambda_.23} parent=0 // pred_check
    _
  $region51: #{_lambda_.23} parent=0 // pred_check_branch
    %378 = sbr.rel (0) target = $region53
  $region52: #{_lambda_.23} parent=0 // pred_region
    _
  $region53: #{_lambda_.23} parent=0 // pred_fallthru
    _
  // Predicated region
  $region54: #{_lambda_.23} parent=0 // pred_check
    _
  $region55: #{_lambda_.23} parent=0 // pred_check_branch
    %380 = sbr.rel (0) target = $region57
  $region56: #{_lambda_.23} parent=0 // pred_region
    _
  $region57: #{_lambda_.23} parent=0 // pred_fallthru
    _
  // Predicated region
  $region58: #{_lambda_.23} parent=0 // pred_check
    _
  $region59: #{_lambda_.23} parent=0 // pred_check_branch
    %382 = sbr.rel (0) target = $region61
  $region60: #{_lambda_.23} parent=0 // pred_region
    _
  $region61: #{_lambda_.23} parent=0 // pred_fallthru
    _

// kernel: _lambda_.24
$region0: #{_lambda_.24}
  #allocation0 [shape = 'u32[]', space=smem, size = 0x4, offset = 0x4, fixed_abs, tag = 'smem constant byte address 0x4 - core index']
  #allocation1 [shape = 'u32[144,128]{1,0:T(1,128)}', space=vmem, size = 0x12000, scoped, tag = 'internal scratch']
  #allocation2 [shape = 'f32[4,5,1]{2,1,0:T(8,128)}', space=vmem, size = 0x4000, scoped, tag = 'scratch operand']
  #allocation3 [shape = 'f32[4,5,1]{2,1,0:T(8,128)}', space=vmem, size = 0x4000, scoped, tag = 'scratch operand']
  #allocation4 [shape = 'f32[4,5,8]{2,1,0:T(8,128)}', space=vmem, size = 0x4000, scoped, tag = 'scratch operand']
  %s0 = inlined_call_operand.vmem [shape: bf16[4,5,32], index: 0, kind: input, shape index: {}]
  %s1 = inlined_call_operand.vmem [shape: bf16[4,5,32], index: 1, kind: input, shape index: {}]
  %s2 = inlined_call_operand.vmem [shape: bf16[4,5,32], index: 2, kind: input, shape index: {}]
  %s3 = inlined_call_operand.vmem [shape: bf16[4,5,32], index: 3, kind: output, shape index: {}]
  %s4 = sld [smem:[#allocation0]]
  $region53: #{_lambda_.24} parent=0
    _
  %s6 = ssub.s32 1, %s4
  %s7 = scalar_select 0, %s6, %s4
  loop: start=0, step=1, limit=6
  $region2: #{_lambda_.24} parent=0 // loop_pre_header
    _
  $region3: #{_lambda_.24} parent=0 // loop_header
    %s9 = sphi 0, %s13
    %p10 = scmp.ge.s32.totalorder %s9, 6
    %s16 = sphi 0, %s35
    %s17 = sphi 0, %s31
    %s18 = sphi 0, %s27
    %s19 = sphi 0, %s16
    %s20 = sphi 0, %s17
    %s21 = sphi 0, %s18
    %s22 = sphi 0, %s19
    %s23 = sphi 0, %s20
    %s24 = sphi 0, %s21
    %s40 = sphi 0, %s42
    %s43 = sphi 0, %s40
    %s44 = sphi 0, %s43
    %s60 = sphi 0, %s44
    %s68 = sphi 0, %s70
    %s71 = sphi 0, %s68
    %s72 = sphi 0, %s71
    %s88 = sphi 0, %s72
    %s96 = sphi 0, %s98
    %s99 = sphi 0, %s96
    %s100 = sphi 0, %s99
    %s116 = sphi 0, %s100
    %s124 = sphi 0, %s126
    %s127 = sphi 0, %s124
    %s128 = sphi 0, %s127
    %s144 = sphi 0, %s128
  $region4: #{_lambda_.24} parent=0 // loop_header_branch
    %12 = sbr.rel (%p10) target = $region8
  $region5: #{_lambda_.24} parent=0 // loop_body
    %s14 = ssub.s32 %s9, 1
    %s15 = ssub.s32 %s9, 2
    %s25 = sadd.s32 1, %s18
    %p26 = scmp.ge.s32.totalorder %s25, 1
    %s27 = scalar_select %p26, 0, %s25
    %s28 = sadd.s32 1, %s17
    %s29 = scalar_select %p26, %s28, %s17
    %p30 = scmp.ge.s32.totalorder %s29, 1
    %s31 = scalar_select %p30, 0, %s29
    %s32 = sadd.s32 1, %s16
    %s33 = scalar_select %p30, %s32, %s16
    %p34 = scmp.ge.s32.totalorder %s33, 4
    %s35 = scalar_select %p34, 0, %s33
    %s36 = ssub.s32 %s16, %s35
    %s37 = ssub.s32 %s17, %s31
    %s38 = sor.u32 %s36, %s37
    %p39 = scmp.eq.s32.totalorder %s38, 0
    %s41 = sadd.s32 %s40, 1
    %s42 = scalar_select %p39, %s40, %s41
    %p45 = pneg %p39
    %p46 = scmp.eq.s32.totalorder %s9, 3
    %p47 = por %p45, %p46
    %p48 = scmp.ne.s32.totalorder %s40, %s43
    %p49 = scmp.eq.s32.totalorder %s9, 0
    %p50 = por %p48, %p49
    %p51 = scmp.ne.s32.totalorder %s40, %s43
    %p52 = scmp.eq.s32.totalorder %s14, 3
    %p53 = por %p51, %p52
    %p54 = scmp.ne.s32.totalorder %s43, %s44
    %p55 = scmp.eq.s32.totalorder %s14, 0
    %p56 = por %p54, %p55
    %p57 = scmp.ne.s32.totalorder %s43, %s44
    %p58 = scmp.eq.s32.totalorder %s15, 3
    %p59 = por %p57, %p58
    %p61 = scmp.ne.s32.totalorder %s44, %s60
    %p62 = scmp.eq.s32.totalorder %s15, 0
    %p63 = por %p61, %p62
    %s64 = ssub.s32 %s16, %s35
    %s65 = ssub.s32 %s18, %s27
    %s66 = sor.u32 %s64, %s65
    %p67 = scmp.eq.s32.totalorder %s66, 0
    %s69 = sadd.s32 %s68, 1
    %s70 = scalar_select %p67, %s68, %s69
    %p73 = pneg %p67
    %p74 = scmp.eq.s32.totalorder %s9, 3
    %p75 = por %p73, %p74
    %p76 = scmp.ne.s32.totalorder %s68, %s71
    %p77 = scmp.eq.s32.totalorder %s9, 0
    %p78 = por %p76, %p77
    %p79 = scmp.ne.s32.totalorder %s68, %s71
    %p80 = scmp.eq.s32.totalorder %s14, 3
    %p81 = por %p79, %p80
    %p82 = scmp.ne.s32.totalorder %s71, %s72
    %p83 = scmp.eq.s32.totalorder %s14, 0
    %p84 = por %p82, %p83
    %p85 = scmp.ne.s32.totalorder %s71, %s72
    %p86 = scmp.eq.s32.totalorder %s15, 3
    %p87 = por %p85, %p86
    %p89 = scmp.ne.s32.totalorder %s72, %s88
    %p90 = scmp.eq.s32.totalorder %s15, 0
    %p91 = por %p89, %p90
    %s92 = ssub.s32 %s16, %s35
    %s93 = ssub.s32 %s18, %s27
    %s94 = sor.u32 %s92, %s93
    %p95 = scmp.eq.s32.totalorder %s94, 0
    %s97 = sadd.s32 %s96, 1
    %s98 = scalar_select %p95, %s96, %s97
    %p101 = pneg %p95
    %p102 = scmp.eq.s32.totalorder %s9, 3
    %p103 = por %p101, %p102
    %p104 = scmp.ne.s32.totalorder %s96, %s99
    %p105 = scmp.eq.s32.totalorder %s9, 0
    %p106 = por %p104, %p105
    %p107 = scmp.ne.s32.totalorder %s96, %s99
    %p108 = scmp.eq.s32.totalorder %s14, 3
    %p109 = por %p107, %p108
    %p110 = scmp.ne.s32.totalorder %s99, %s100
    %p111 = scmp.eq.s32.totalorder %s14, 0
    %p112 = por %p110, %p111
    %p113 = scmp.ne.s32.totalorder %s99, %s100
    %p114 = scmp.eq.s32.totalorder %s15, 3
    %p115 = por %p113, %p114
    %p117 = scmp.ne.s32.totalorder %s100, %s116
    %p118 = scmp.eq.s32.totalorder %s15, 0
    %p119 = por %p117, %p118
    %s120 = ssub.s32 %s16, %s35
    %s121 = ssub.s32 %s17, %s31
    %s122 = sor.u32 %s120, %s121
    %p123 = scmp.eq.s32.totalorder %s122, 0
    %s125 = sadd.s32 %s124, 1
    %s126 = scalar_select %p123, %s124, %s125
    %p129 = pneg %p123
    %p130 = scmp.eq.s32.totalorder %s9, 3
    %p131 = por %p129, %p130
    %p132 = scmp.ne.s32.totalorder %s124, %s127
    %p133 = scmp.eq.s32.totalorder %s9, 0
    %p134 = por %p132, %p133
    %p135 = scmp.ne.s32.totalorder %s124, %s127
    %p136 = scmp.eq.s32.totalorder %s14, 3
    %p137 = por %p135, %p136
    %p138 = scmp.ne.s32.totalorder %s127, %s128
    %p139 = scmp.eq.s32.totalorder %s14, 0
    %p140 = por %p138, %p139
    %p141 = scmp.ne.s32.totalorder %s127, %s128
    %p142 = scmp.eq.s32.totalorder %s15, 3
    %p143 = por %p141, %p142
    %p145 = scmp.ne.s32.totalorder %s128, %s144
    %p146 = scmp.eq.s32.totalorder %s15, 0
    %p147 = por %p145, %p146
    %p148 = scmp.le.s32.totalorder 1, %s9
    %p149 = scmp.lt.s32.totalorder %s9, 5
    %p150 = pnand %p148, %p149
    %p151 = pneg %p150
    // Predicated region
    $region9: #{_lambda_.24} parent=5 // pred_check
      _
    $region10: #{_lambda_.24} parent=5 // pred_check_branch
      %153 = sbr.rel (%p150) target = $region12
    $region11: #{_lambda_.24} parent=5 // pred_region
      %s154 = ssub.s32 %s9, 1
    $region12: #{_lambda_.24} parent=5 // pred_fallthru
      _
    %p155 = scmp.lt.s32.totalorder %s9, 4
    // Predicated region
    $region13: #{_lambda_.24} parent=5 // pred_check
      %p156 = pneg %p155
    $region14: #{_lambda_.24} parent=5 // pred_check_branch
      %158 = sbr.rel (%p156) target = $region16
    $region15: #{_lambda_.24} parent=5 // pred_region
      // Predicated region
      $region17: #{_lambda_.24} parent=15 // pred_check
        %p159 = pneg %p50
      $region18: #{_lambda_.24} parent=15 // pred_check_branch
        %161 = sbr.rel (%p159) target = $region20
      $region19: #{_lambda_.24} parent=15 // pred_region
        %p162 = scmp.lt.s32.totalorder %s16, 3
        %s163 = scalar_select %p162, %s16, 3
        %p164 = scmp.lt.s32.totalorder %s17, 0
        %s165 = scalar_select %p164, %s17, 0
        %s166 = sadd.s32 %s165, %s163
        %s167 = smul.addr %s166, 4
        %s168 = scalar_lea.vmem %s0, %s167
      $region20: #{_lambda_.24} parent=15 // pred_fallthru
        _
      // Predicated region
      $region21: #{_lambda_.24} parent=15 // pred_check
        %p169 = pneg %p78
      $region22: #{_lambda_.24} parent=15 // pred_check_branch
        %171 = sbr.rel (%p169) target = $region24
      $region23: #{_lambda_.24} parent=15 // pred_region
        %p172 = scmp.lt.s32.totalorder %s16, 3
        %s173 = scalar_select %p172, %s16, 3
        %p174 = scmp.lt.s32.totalorder %s18, 0
        %s175 = scalar_select %p174, %s18, 0
        %s176 = sadd.s32 %s175, %s173
        %s177 = smul.addr %s176, 4
        %s178 = scalar_lea.vmem %s1, %s177
      $region24: #{_lambda_.24} parent=15 // pred_fallthru
        _
      // Predicated region
      $region25: #{_lambda_.24} parent=15 // pred_check
        %p179 = pneg %p106
      $region26: #{_lambda_.24} parent=15 // pred_check_branch
        %181 = sbr.rel (%p179) target = $region28
      $region27: #{_lambda_.24} parent=15 // pred_region
        %p182 = scmp.lt.s32.totalorder %s16, 3
        %s183 = scalar_select %p182, %s16, 3
        %p184 = scmp.lt.s32.totalorder %s18, 0
        %s185 = scalar_select %p184, %s18, 0
        %s186 = sadd.s32 %s185, %s183
        %s187 = smul.addr %s186, 4
        %s188 = scalar_lea.vmem %s2, %s187
      $region28: #{_lambda_.24} parent=15 // pred_fallthru
        _
    $region16: #{_lambda_.24} parent=5 // pred_fallthru
      _
    %p189 = scmp.le.s32.totalorder 1, %s9
    %p190 = scmp.lt.s32.totalorder %s9, 5
    %p191 = pnand %p189, %p190
    %p192 = pneg %p191
    // Predicated region
    $region29: #{_lambda_.24} parent=5 // pred_check
      _
    $region30: #{_lambda_.24} parent=5 // pred_check_branch
      %194 = sbr.rel (%p191) target = $region32
    $region31: #{_lambda_.24} parent=5 // pred_region
      %s195 = ssub.s32 %s9, 1
      %p196 = scmp.lt.s32.totalorder %s19, 3
      %s197 = scalar_select %p196, %s19, 3
      %p198 = scmp.lt.s32.totalorder %s20, 0
      %s199 = scalar_select %p198, %s20, 0
      %s200 = sadd.s32 %s199, %s197
      %s201 = smul.addr %s200, 4
      %s202 = scalar_lea.vmem %s0, %s201
      %p203 = pneg %p56
      %p204 = pneg %p53
      %p205 = scmp.lt.s32.totalorder %s19, 3
      %s206 = scalar_select %p205, %s19, 3
      %p207 = scmp.lt.s32.totalorder %s21, 0
      %s208 = scalar_select %p207, %s21, 0
      %s209 = sadd.s32 %s208, %s206
      %s210 = smul.addr %s209, 4
      %s211 = scalar_lea.vmem %s1, %s210
      %p212 = pneg %p84
      %p213 = pneg %p81
      %p214 = scmp.lt.s32.totalorder %s19, 3
      %s215 = scalar_select %p214, %s19, 3
      %p216 = scmp.lt.s32.totalorder %s21, 0
      %s217 = scalar_select %p216, %s21, 0
      %s218 = sadd.s32 %s217, %s215
      %s219 = smul.addr %s218, 4
      %s220 = scalar_lea.vmem %s2, %s219
      %p221 = pneg %p112
      %p222 = pneg %p109
      %p223 = pneg %p140
      %p224 = pneg %p137
      %p225 = scmp.lt.s32.totalorder %s19, 3
      %s226 = scalar_select %p225, %s19, 3
      %p227 = scmp.lt.s32.totalorder %s20, 0
      %s228 = scalar_select %p227, %s20, 0
      %s229 = sadd.s32 %s228, %s226
      %s230 = smul.addr %s229, 4
      %s231 = scalar_lea.vmem %s3, %s230
      %p232 = scmp.lt.s32.totalorder %s19, 3
      %s233 = scalar_select %p232, %s19, 3
      %p234 = scmp.lt.s32.totalorder %s20, 0
      %s235 = scalar_select %p234, %s20, 0
      %s236 = sadd.s32 %s235, %s233
      %s237 = smul.addr %s236, 4
      %s238 = scalar_lea.vmem %s0, %s237
      %p239 = scmp.lt.s32.totalorder %s19, 3
      %s240 = scalar_select %p239, %s19, 3
      %p241 = scmp.lt.s32.totalorder %s21, 0
      %s242 = scalar_select %p241, %s21, 0
      %s243 = sadd.s32 %s242, %s240
      %s244 = smul.addr %s243, 4
      %s245 = scalar_lea.vmem %s1, %s244
      %p246 = scmp.lt.s32.totalorder %s19, 3
      %s247 = scalar_select %p246, %s19, 3
      %p248 = scmp.lt.s32.totalorder %s21, 0
      %s249 = scalar_select %p248, %s21, 0
      %s250 = sadd.s32 %s249, %s247
      %s251 = smul.addr %s250, 4
      %s252 = scalar_lea.vmem %s2, %s251
      %p253 = scmp.lt.s32.totalorder %s19, 3
      %s254 = scalar_select %p253, %s19, 3
      %p255 = scmp.lt.s32.totalorder %s20, 0
      %s256 = scalar_select %p255, %s20, 0
      %s257 = sadd.s32 %s256, %s254
      %s258 = smul.addr %s257, 4
      %s259 = scalar_lea.vmem %s3, %s258
      %p261 = scmp.eq.s32.totalorder %s21, 0
      // Predicated region
      $region33: #{_lambda_.24} parent=31 // pred_check
        %p262 = pneg %p261
      $region34: #{_lambda_.24} parent=31 // pred_check_branch
        %264 = sbr.rel (%p262) target = $region36
      $region35: #{_lambda_.24} parent=31 // pred_region
        %vm265 = vcmask 4096
        %266 = vst.msk [vmem:[#allocation2] sm:$0x1f] %vm265, -inf
        %267 = vst.msk [vmem:[#allocation2 + $0x8] sm:$0x1f] %vm265, -inf
        %268 = vst.msk [vmem:[#allocation2 + $0x10] sm:$0x1f] %vm265, -inf
        %269 = vst.msk [vmem:[#allocation2 + $0x18] sm:$0x1f] %vm265, -inf
        %270 = vst.msk [vmem:[#allocation3] sm:$0x1f] %vm265, 0.0
        %271 = vst.msk [vmem:[#allocation3 + $0x8] sm:$0x1f] %vm265, 0.0
        %272 = vst.msk [vmem:[#allocation3 + $0x10] sm:$0x1f] %vm265, 0.0
        %273 = vst.msk [vmem:[#allocation3 + $0x18] sm:$0x1f] %vm265, 0.0
        %vm274 = vcmask 61440
        %275 = vst.msk [vmem:[#allocation4] sm:$0x1f] %vm274, 0.0
        %276 = vst.msk [vmem:[#allocation4 + $0x8] sm:$0x1f] %vm274, 0.0
        %277 = vst.msk [vmem:[#allocation4 + $0x10] sm:$0x1f] %vm274, 0.0
        %278 = vst.msk [vmem:[#allocation4 + $0x18] sm:$0x1f] %vm274, 0.0
      $region36: #{_lambda_.24} parent=31 // pred_fallthru
        _
      %v279 = vld [vmem:[%s238] sm:$0x7]
      %v280 = vld [vmem:[%s245] sm:$0x7]
      %v281 = vld [vmem:[%s252] sm:$0x7]
      %vm282 = vcmask 64512
      %v284 = vsel %vm282, %v279, 0
      %v287 = vsel %vm282, %v280, 0
      %289 = vmatprep.subr.bf16.mxu0 0
      %290 = vmatpush1.bf16.xpose.msra.mxu0 %v287
      %291 = vmatprep.subr.bf16.mxu0 0
      %292 = vmatpush1.bf16.xpose.msra.mxu0 0
      %293 = vmatprep.subr.bf16.mxu0 0
      %294 = vmatpush1.bf16.xpose.msra.mxu0 0
      %295 = vmatprep.subr.bf16.mxu0 0
      %296 = vmatpush1.bf16.xpose.msra.mxu0 0
      %297 = vmatprep.subr.bf16.mxu0 0
      %298 = vmatpush1.bf16.xpose.msra.mxu0 0
      %299 = vmatprep.subr.bf16.mxu0 0
      %300 = vmatpush1.bf16.xpose.msra.mxu0 0
      %301 = vmatprep.subr.bf16.mxu0 0
      %302 = vmatpush1.bf16.xpose.msra.mxu0 0
      %303 = vmatprep.subr.bf16.mxu0 0
      %304 = vmatpush1.bf16.xpose.msra.mxu0 0
      %305 = vmatprep.subr.bf16.mxu0 0
      %306 = vmatpush1.bf16.xpose.msra.mxu0 0
      %307 = vmatprep.subr.bf16.mxu0 0
      %308 = vmatpush1.bf16.xpose.msra.mxu0 0
      %309 = vmatprep.subr.bf16.mxu0 0
      %310 = vmatpush1.bf16.xpose.msra.mxu0 0
      %311 = vmatprep.subr.bf16.mxu0 0
      %312 = vmatpush1.bf16.xpose.msra.mxu0 0
      %313 = vmatprep.subr.bf16.mxu0 0
      %314 = vmatpush1.bf16.xpose.msra.mxu0 0
      %315 = vmatprep.subr.bf16.mxu0 0
      %316 = vmatpush1.bf16.xpose.msra.mxu0 0
      %317 = vmatprep.subr.bf16.mxu0 0
      %318 = vmatpush1.bf16.xpose.msra.mxu0 0
      %319 = vmatprep.subr.bf16.mxu0 0
      %320 = vmatpush1.bf16.xpose.msra.mxu0 0
      %321 = vmatprep.mubr.bf16.mxu0 0
      %322 = vmatmul.mubr.bf16.gmra.mrb[0].mxu0 %v284
      %v323 = vpop.f32.mrb[0].mxu0
      %v324 = vadd.f32 0.0, %v323
      %v325 = vpop.f32.mrb[0].mxu0
      %v326 = vpop.f32.mrb[0].mxu0
      %v327 = vpop.f32.mrb[0].mxu0
      %328 = vdwg.mxu0
      %v329 = vmul.f32 %v324, 0.35355338
      %v330 = vld [vmem:[#allocation2] sm:$0x1f]
      %vm331 = vcmask 36864
      %v332 = vsel %vm331, %v329, -inf
      %333 = vmax.xlane.f32.xlu0 %v332
      %v334 = vpop.xlane.xlu0 %333
      %v335 = vmax.f32 %v330, %v334
      %v336 = vsub.f32 %v330, %v335
      %v337 = vmul.f32 %v336, 1.442695
      %v338 = vpow.pop %v337
      %340 = vset.pattern.permute.xlu0 0
      %341 = vperm.xlu0 %340, %v335
      %v342 = vpop.permute.xlu0 %341
      %v344 = vsub.f32 %v329, %v342
      %v345 = vmul.f32 %v344, 1.442695
      %v346 = vpow.pop %v345
      %v347 = vld [vmem:[#allocation3] sm:$0x1f]
      %v348 = vmul.f32 %v338, %v347
      %v349 = vsel %vm331, %v346, 0.0
      %350 = vadd.xlane.f32.xlu0 %v349
      %v351 = vpop.xlane.xlu0 %350
      %v352 = vadd.f32 %v348, %v351
      %vm353 = vcmask 4096
      %354 = vst.msk [vmem:[#allocation3] sm:$0x1f] %vm353, %v352
      %v355 = vld [vmem:[#allocation4] sm:$0x1f]
      %357 = vset.pattern.permute.xlu0 0
      %358 = vperm.xlu0 %357, %v338
      %v359 = vpop.permute.xlu0 %358
      %v361 = vmul.f32 %v359, %v355
      %v362 = vpack.c.bf16 %v346, %v346
      %vm363 = vcmask 39936
      %v365 = vsel %vm363, %v362, 0
      %vm367 = vcmask 1041408
      %vm368 = vcmask 1042432
      %v369 = vsel %vm367, 4294967295, 65535
      %v370 = vsel %vm368, %v369, 0
      %v372 = vand.u32 %v281, %v370
      %374 = vmatprep.subr.bf16.mxu0 0
      %375 = vmatpush1.bf16.msra.mxu0 %v372
      %376 = vmatprep.subr.bf16.mxu0 0
      %377 = vmatpush1.bf16.msra.mxu0 0
      %378 = vmatprep.subr.bf16.mxu0 0
      %379 = vmatpush1.bf16.msra.mxu0 0
      %380 = vmatprep.subr.bf16.mxu0 0
      %381 = vmatpush1.bf16.msra.mxu0 0
      %382 = vmatprep.subr.bf16.mxu0 0
      %383 = vmatpush1.bf16.msra.mxu0 0
      %384 = vmatprep.subr.bf16.mxu0 0
      %385 = vmatpush1.bf16.msra.mxu0 0
      %386 = vmatprep.subr.bf16.mxu0 0
      %387 = vmatpush1.bf16.msra.mxu0 0
      %388 = vmatprep.subr.bf16.mxu0 0
      %389 = vmatpush1.bf16.msra.mxu0 0
      %390 = vmatprep.subr.bf16.mxu0 0
      %391 = vmatpush1.bf16.msra.mxu0 0
      %392 = vmatprep.subr.bf16.mxu0 0
      %393 = vmatpush1.bf16.msra.mxu0 0
      %394 = vmatprep.subr.bf16.mxu0 0
      %395 = vmatpush1.bf16.msra.mxu0 0
      %396 = vmatprep.subr.bf16.mxu0 0
      %397 = vmatpush1.bf16.msra.mxu0 0
      %398 = vmatprep.subr.bf16.mxu0 0
      %399 = vmatpush1.bf16.msra.mxu0 0
      %400 = vmatprep.subr.bf16.mxu0 0
      %401 = vmatpush1.bf16.msra.mxu0 0
      %402 = vmatprep.subr.bf16.mxu0 0
      %403 = vmatpush1.bf16.msra.mxu0 0
      %404 = vmatprep.subr.bf16.mxu0 0
      %405 = vmatpush1.bf16.msra.mxu0 0
      %406 = vmatprep.mubr.bf16.mxu0 0
      %407 = vmatmul.mubr.bf16.gmra.mrb[0].mxu0 %v365
      %v408 = vpop.f32.mrb[0].mxu0
      %v409 = vadd.f32 0.0, %v408
      %v410 = vpop.f32.mrb[0].mxu0
      %v411 = vpop.f32.mrb[0].mxu0
      %v412 = vpop.f32.mrb[0].mxu0
      %413 = vdwg.mxu0
      %v414 = vadd.f32 %v361, %v409
      %vm415 = vcmask 61440
      %416 = vst.msk [vmem:[#allocation4] sm:$0x1f] %vm415, %v414
      %417 = vst.msk [vmem:[#allocation2] sm:$0x1f] %vm353, %v335
      %v419 = vunpack.c.l.b16 %v279
      %v420 = vpack.c.b16 %v419, %v419
      %421 = vrot.lane.b32.xlu0 %v420, 120
      %v422 = vpop.permute.xlu0 %421
      %v424 = vunpack.c.l.b16 %v280
      %v425 = vpack.c.b16 %v424, %v424
      %426 = vrot.lane.b32.xlu0 %v425, 120
      %v427 = vpop.permute.xlu0 %426
      %v429 = vsel %vm282, %v422, 0
      %v432 = vsel %vm282, %v427, 0
      %434 = vmatprep.subr.bf16.mxu0 0
      %435 = vmatpush1.bf16.xpose.msra.mxu0 %v432
      %436 = vmatprep.subr.bf16.mxu0 0
      %437 = vmatpush1.bf16.xpose.msra.mxu0 0
      %438 = vmatprep.subr.bf16.mxu0 0
      %439 = vmatpush1.bf16.xpose.msra.mxu0 0
      %440 = vmatprep.subr.bf16.mxu0 0
      %441 = vmatpush1.bf16.xpose.msra.mxu0 0
      %442 = vmatprep.subr.bf16.mxu0 0
      %443 = vmatpush1.bf16.xpose.msra.mxu0 0
      %444 = vmatprep.subr.bf16.mxu0 0
      %445 = vmatpush1.bf16.xpose.msra.mxu0 0
      %446 = vmatprep.subr.bf16.mxu0 0
      %447 = vmatpush1.bf16.xpose.msra.mxu0 0
      %448 = vmatprep.subr.bf16.mxu0 0
      %449 = vmatpush1.bf16.xpose.msra.mxu0 0
      %450 = vmatprep.subr.bf16.mxu0 0
      %451 = vmatpush1.bf16.xpose.msra.mxu0 0
      %452 = vmatprep.subr.bf16.mxu0 0
      %453 = vmatpush1.bf16.xpose.msra.mxu0 0
      %454 = vmatprep.subr.bf16.mxu0 0
      %455 = vmatpush1.bf16.xpose.msra.mxu0 0
      %456 = vmatprep.subr.bf16.mxu0 0
      %457 = vmatpush1.bf16.xpose.msra.mxu0 0
      %458 = vmatprep.subr.bf16.mxu0 0
      %459 = vmatpush1.bf16.xpose.msra.mxu0 0
      %460 = vmatprep.subr.bf16.mxu0 0
      %461 = vmatpush1.bf16.xpose.msra.mxu0 0
      %462 = vmatprep.subr.bf16.mxu0 0
      %463 = vmatpush1.bf16.xpose.msra.mxu0 0
      %464 = vmatprep.subr.bf16.mxu0 0
      %465 = vmatpush1.bf16.xpose.msra.mxu0 0
      %466 = vmatprep.mubr.bf16.mxu0 0
      %467 = vmatmul.mubr.bf16.gmra.mrb[0].mxu0 %v429
      %v468 = vpop.f32.mrb[0].mxu0
      %v469 = vadd.f32 0.0, %v468
      %v470 = vpop.f32.mrb[0].mxu0
      %v471 = vpop.f32.mrb[0].mxu0
      %v472 = vpop.f32.mrb[0].mxu0
      %473 = vdwg.mxu0
      %v474 = vmul.f32 %v469, 0.35355338
      %s475 = scalar_lea.vmem [#allocation2], 8
      %v476 = vld [vmem:[%s475] sm:$0x1f]
      %v477 = vsel %vm331, %v474, -inf
      %478 = vmax.xlane.f32.xlu0 %v477
      %v479 = vpop.xlane.xlu0 %478
      %v480 = vmax.f32 %v476, %v479
      %v481 = vsub.f32 %v476, %v480
      %v482 = vmul.f32 %v481, 1.442695
      %v483 = vpow.pop %v482
      %485 = vset.pattern.permute.xlu0 0
      %486 = vperm.xlu0 %485, %v480
      %v487 = vpop.permute.xlu0 %486
      %v489 = vsub.f32 %v474, %v487
      %v490 = vmul.f32 %v489, 1.442695
      %v491 = vpow.pop %v490
      %s492 = scalar_lea.vmem [#allocation3], 8
      %v493 = vld [vmem:[%s492] sm:$0x1f]
      %v494 = vmul.f32 %v483, %v493
      %v495 = vsel %vm331, %v491, 0.0
      %496 = vadd.xlane.f32.xlu0 %v495
      %v497 = vpop.xlane.xlu0 %496
      %v498 = vadd.f32 %v494, %v497
      %499 = vst.msk [vmem:[%s492] sm:$0x1f] %vm353, %v498
      %s500 = scalar_lea.vmem [#allocation4], 8
      %v501 = vld [vmem:[%s500] sm:$0x1f]
      %503 = vset.pattern.permute.xlu0 0
      %504 = vperm.xlu0 %503, %v483
      %v505 = vpop.permute.xlu0 %504
      %v507 = vmul.f32 %v505, %v501
      %v508 = vpack.c.bf16 %v491, %v491
      %v510 = vunpack.c.l.b16 %v281
      %v511 = vpack.c.b16 %v510, %v510
      %512 = vrot.lane.b32.xlu0 %v511, 120
      %v513 = vpop.permute.xlu0 %512
      %v515 = vsel %vm363, %v508, 0
      %v518 = vand.u32 %v513, %v370
      %520 = vmatprep.subr.bf16.mxu0 0
      %521 = vmatpush1.bf16.msra.mxu0 %v518
      %522 = vmatprep.subr.bf16.mxu0 0
      %523 = vmatpush1.bf16.msra.mxu0 0
      %524 = vmatprep.subr.bf16.mxu0 0
      %525 = vmatpush1.bf16.msra.mxu0 0
      %526 = vmatprep.subr.bf16.mxu0 0
      %527 = vmatpush1.bf16.msra.mxu0 0
      %528 = vmatprep.subr.bf16.mxu0 0
      %529 = vmatpush1.bf16.msra.mxu0 0
      %530 = vmatprep.subr.bf16.mxu0 0
      %531 = vmatpush1.bf16.msra.mxu0 0
      %532 = vmatprep.subr.bf16.mxu0 0
      %533 = vmatpush1.bf16.msra.mxu0 0
      %534 = vmatprep.subr.bf16.mxu0 0
      %535 = vmatpush1.bf16.msra.mxu0 0
      %536 = vmatprep.subr.bf16.mxu0 0
      %537 = vmatpush1.bf16.msra.mxu0 0
      %538 = vmatprep.subr.bf16.mxu0 0
      %539 = vmatpush1.bf16.msra.mxu0 0
      %540 = vmatprep.subr.bf16.mxu0 0
      %541 = vmatpush1.bf16.msra.mxu0 0
      %542 = vmatprep.subr.bf16.mxu0 0
      %543 = vmatpush1.bf16.msra.mxu0 0
      %544 = vmatprep.subr.bf16.mxu0 0
      %545 = vmatpush1.bf16.msra.mxu0 0
      %546 = vmatprep.subr.bf16.mxu0 0
      %547 = vmatpush1.bf16.msra.mxu0 0
      %548 = vmatprep.subr.bf16.mxu0 0
      %549 = vmatpush1.bf16.msra.mxu0 0
      %550 = vmatprep.subr.bf16.mxu0 0
      %551 = vmatpush1.bf16.msra.mxu0 0
      %552 = vmatprep.mubr.bf16.mxu0 0
      %553 = vmatmul.mubr.bf16.gmra.mrb[0].mxu0 %v515
      %v554 = vpop.f32.mrb[0].mxu0
      %v555 = vadd.f32 0.0, %v554
      %v556 = vpop.f32.mrb[0].mxu0
      %v557 = vpop.f32.mrb[0].mxu0
      %v558 = vpop.f32.mrb[0].mxu0
      %559 = vdwg.mxu0
      %v560 = vadd.f32 %v507, %v555
      %561 = vst.msk [vmem:[%s500] sm:$0x1f] %vm415, %v560
      %562 = vst.msk [vmem:[%s475] sm:$0x1f] %vm353, %v480
      %563 = vrot.lane.b32.xlu0 %v420, 112
      %v564 = vpop.permute.xlu0 %563
      %565 = vrot.lane.b32.xlu0 %v425, 112
      %v566 = vpop.permute.xlu0 %565
      %v568 = vsel %vm282, %v564, 0
      %v571 = vsel %vm282, %v566, 0
      %573 = vmatprep.subr.bf16.mxu0 0
      %574 = vmatpush1.bf16.xpose.msra.mxu0 %v571
      %575 = vmatprep.subr.bf16.mxu0 0
      %576 = vmatpush1.bf16.xpose.msra.mxu0 0
      %577 = vmatprep.subr.bf16.mxu0 0
      %578 = vmatpush1.bf16.xpose.msra.mxu0 0
      %579 = vmatprep.subr.bf16.mxu0 0
      %580 = vmatpush1.bf16.xpose.msra.mxu0 0
      %581 = vmatprep.subr.bf16.mxu0 0
      %582 = vmatpush1.bf16.xpose.msra.mxu0 0
      %583 = vmatprep.subr.bf16.mxu0 0
      %584 = vmatpush1.bf16.xpose.msra.mxu0 0
      %585 = vmatprep.subr.bf16.mxu0 0
      %586 = vmatpush1.bf16.xpose.msra.mxu0 0
      %587 = vmatprep.subr.bf16.mxu0 0
      %588 = vmatpush1.bf16.xpose.msra.mxu0 0
      %589 = vmatprep.subr.bf16.mxu0 0
      %590 = vmatpush1.bf16.xpose.msra.mxu0 0
      %591 = vmatprep.subr.bf16.mxu0 0
      %592 = vmatpush1.bf16.xpose.msra.mxu0 0
      %593 = vmatprep.subr.bf16.mxu0 0
      %594 = vmatpush1.bf16.xpose.msra.mxu0 0
      %595 = vmatprep.subr.bf16.mxu0 0
      %596 = vmatpush1.bf16.xpose.msra.mxu0 0
      %597 = vmatprep.subr.bf16.mxu0 0
      %598 = vmatpush1.bf16.xpose.msra.mxu0 0
      %599 = vmatprep.subr.bf16.mxu0 0
      %600 = vmatpush1.bf16.xpose.msra.mxu0 0
      %601 = vmatprep.subr.bf16.mxu0 0
      %602 = vmatpush1.bf16.xpose.msra.mxu0 0
      %603 = vmatprep.subr.bf16.mxu0 0
      %604 = vmatpush1.bf16.xpose.msra.mxu0 0
      %605 = vmatprep.mubr.bf16.mxu0 0
      %606 = vmatmul.mubr.bf16.gmra.mrb[0].mxu0 %v568
      %v607 = vpop.f32.mrb[0].mxu0
      %v608 = vadd.f32 0.0, %v607
      %v609 = vpop.f32.mrb[0].mxu0
      %v610 = vpop.f32.mrb[0].mxu0
      %v611 = vpop.f32.mrb[0].mxu0
      %612 = vdwg.mxu0
      %v613 = vmul.f32 %v608, 0.35355338
      %s614 = scalar_lea.vmem [#allocation2], 16
      %v615 = vld [vmem:[%s614] sm:$0x1f]
      %v616 = vsel %vm331, %v613, -inf
      %617 = vmax.xlane.f32.xlu0 %v616
      %v618 = vpop.xlane.xlu0 %617
      %v619 = vmax.f32 %v615, %v618
      %v620 = vsub.f32 %v615, %v619
      %v621 = vmul.f32 %v620, 1.442695
      %v622 = vpow.pop %v621
      %624 = vset.pattern.permute.xlu0 0
      %625 = vperm.xlu0 %624, %v619
      %v626 = vpop.permute.xlu0 %625
      %v628 = vsub.f32 %v613, %v626
      %v629 = vmul.f32 %v628, 1.442695
      %v630 = vpow.pop %v629
      %s631 = scalar_lea.vmem [#allocation3], 16
      %v632 = vld [vmem:[%s631] sm:$0x1f]
      %v633 = vmul.f32 %v622, %v632
      %v634 = vsel %vm331, %v630, 0.0
      %635 = vadd.xlane.f32.xlu0 %v634
      %v636 = vpop.xlane.xlu0 %635
      %v637 = vadd.f32 %v633, %v636
      %638 = vst.msk [vmem:[%s631] sm:$0x1f] %vm353, %v637
      %s639 = scalar_lea.vmem [#allocation4], 16
      %v640 = vld [vmem:[%s639] sm:$0x1f]
      %642 = vset.pattern.permute.xlu0 0
      %643 = vperm.xlu0 %642, %v622
      %v644 = vpop.permute.xlu0 %643
      %v646 = vmul.f32 %v644, %v640
      %v647 = vpack.c.bf16 %v630, %v630
      %648 = vrot.lane.b32.xlu0 %v511, 112
      %v649 = vpop.permute.xlu0 %648
      %v651 = vsel %vm363, %v647, 0
      %v654 = vand.u32 %v649, %v370
      %656 = vmatprep.subr.bf16.mxu0 0
      %657 = vmatpush1.bf16.msra.mxu0 %v654
      %658 = vmatprep.subr.bf16.mxu0 0
      %659 = vmatpush1.bf16.msra.mxu0 0
      %660 = vmatprep.subr.bf16.mxu0 0
      %661 = vmatpush1.bf16.msra.mxu0 0
      %662 = vmatprep.subr.bf16.mxu0 0
      %663 = vmatpush1.bf16.msra.mxu0 0
      %664 = vmatprep.subr.bf16.mxu0 0
      %665 = vmatpush1.bf16.msra.mxu0 0
      %666 = vmatprep.subr.bf16.mxu0 0
      %667 = vmatpush1.bf16.msra.mxu0 0
      %668 = vmatprep.subr.bf16.mxu0 0
      %669 = vmatpush1.bf16.msra.mxu0 0
      %670 = vmatprep.subr.bf16.mxu0 0
      %671 = vmatpush1.bf16.msra.mxu0 0
      %672 = vmatprep.subr.bf16.mxu0 0
      %673 = vmatpush1.bf16.msra.mxu0 0
      %674 = vmatprep.subr.bf16.mxu0 0
      %675 = vmatpush1.bf16.msra.mxu0 0
      %676 = vmatprep.subr.bf16.mxu0 0
      %677 = vmatpush1.bf16.msra.mxu0 0
      %678 = vmatprep.subr.bf16.mxu0 0
      %679 = vmatpush1.bf16.msra.mxu0 0
      %680 = vmatprep.subr.bf16.mxu0 0
      %681 = vmatpush1.bf16.msra.mxu0 0
      %682 = vmatprep.subr.bf16.mxu0 0
      %683 = vmatpush1.bf16.msra.mxu0 0
      %684 = vmatprep.subr.bf16.mxu0 0
      %685 = vmatpush1.bf16.msra.mxu0 0
      %686 = vmatprep.subr.bf16.mxu0 0
      %687 = vmatpush1.bf16.msra.mxu0 0
      %688 = vmatprep.mubr.bf16.mxu0 0
      %689 = vmatmul.mubr.bf16.gmra.mrb[0].mxu0 %v651
      %v690 = vpop.f32.mrb[0].mxu0
      %v691 = vadd.f32 0.0, %v690
      %v692 = vpop.f32.mrb[0].mxu0
      %v693 = vpop.f32.mrb[0].mxu0
      %v694 = vpop.f32.mrb[0].mxu0
      %695 = vdwg.mxu0
      %v696 = vadd.f32 %v646, %v691
      %697 = vst.msk [vmem:[%s639] sm:$0x1f] %vm415, %v696
      %698 = vst.msk [vmem:[%s614] sm:$0x1f] %vm353, %v619
      %699 = vrot.lane.b32.xlu0 %v420, 104
      %v700 = vpop.permute.xlu0 %699
      %701 = vrot.lane.b32.xlu0 %v425, 104
      %v702 = vpop.permute.xlu0 %701
      %v704 = vsel %vm282, %v700, 0
      %v707 = vsel %vm282, %v702, 0
      %709 = vmatprep.subr.bf16.mxu0 0
      %710 = vmatpush1.bf16.xpose.msra.mxu0 %v707
      %711 = vmatprep.subr.bf16.mxu0 0
      %712 = vmatpush1.bf16.xpose.msra.mxu0 0
      %713 = vmatprep.subr.bf16.mxu0 0
      %714 = vmatpush1.bf16.xpose.msra.mxu0 0
      %715 = vmatprep.subr.bf16.mxu0 0
      %716 = vmatpush1.bf16.xpose.msra.mxu0 0
      %717 = vmatprep.subr.bf16.mxu0 0
      %718 = vmatpush1.bf16.xpose.msra.mxu0 0
      %719 = vmatprep.subr.bf16.mxu0 0
      %720 = vmatpush1.bf16.xpose.msra.mxu0 0
      %721 = vmatprep.subr.bf16.mxu0 0
      %722 = vmatpush1.bf16.xpose.msra.mxu0 0
      %723 = vmatprep.subr.bf16.mxu0 0
      %724 = vmatpush1.bf16.xpose.msra.mxu0 0
      %725 = vmatprep.subr.bf16.mxu0 0
      %726 = vmatpush1.bf16.xpose.msra.mxu0 0
      %727 = vmatprep.subr.bf16.mxu0 0
      %728 = vmatpush1.bf16.xpose.msra.mxu0 0
      %729 = vmatprep.subr.bf16.mxu0 0
      %730 = vmatpush1.bf16.xpose.msra.mxu0 0
      %731 = vmatprep.subr.bf16.mxu0 0
      %732 = vmatpush1.bf16.xpose.msra.mxu0 0
      %733 = vmatprep.subr.bf16.mxu0 0
      %734 = vmatpush1.bf16.xpose.msra.mxu0 0
      %735 = vmatprep.subr.bf16.mxu0 0
      %736 = vmatpush1.bf16.xpose.msra.mxu0 0
      %737 = vmatprep.subr.bf16.mxu0 0
      %738 = vmatpush1.bf16.xpose.msra.mxu0 0
      %739 = vmatprep.subr.bf16.mxu0 0
      %740 = vmatpush1.bf16.xpose.msra.mxu0 0
      %741 = vmatprep.mubr.bf16.mxu0 0
      %742 = vmatmul.mubr.bf16.gmra.mrb[0].mxu0 %v704
      %v743 = vpop.f32.mrb[0].mxu0
      %v744 = vadd.f32 0.0, %v743
      %v745 = vpop.f32.mrb[0].mxu0
      %v746 = vpop.f32.mrb[0].mxu0
      %v747 = vpop.f32.mrb[0].mxu0
      %748 = vdwg.mxu0
      %v749 = vmul.f32 %v744, 0.35355338
      %s750 = scalar_lea.vmem [#allocation2], 24
      %v751 = vld [vmem:[%s750] sm:$0x1f]
      %v752 = vsel %vm331, %v749, -inf
      %753 = vmax.xlane.f32.xlu0 %v752
      %v754 = vpop.xlane.xlu0 %753
      %v755 = vmax.f32 %v751, %v754
      %v756 = vsub.f32 %v751, %v755
      %v757 = vmul.f32 %v756, 1.442695
      %v758 = vpow.pop %v757
      %760 = vset.pattern.permute.xlu0 0
      %761 = vperm.xlu0 %760, %v755
      %v762 = vpop.permute.xlu0 %761
      %v764 = vsub.f32 %v749, %v762
      %v765 = vmul.f32 %v764, 1.442695
      %v766 = vpow.pop %v765
      %s767 = scalar_lea.vmem [#allocation3], 24
      %v768 = vld [vmem:[%s767] sm:$0x1f]
      %v769 = vmul.f32 %v758, %v768
      %v770 = vsel %vm331, %v766, 0.0
      %771 = vadd.xlane.f32.xlu0 %v770
      %v772 = vpop.xlane.xlu0 %771
      %v773 = vadd.f32 %v769, %v772
      %774 = vst.msk [vmem:[%s767] sm:$0x1f] %vm353, %v773
      %s775 = scalar_lea.vmem [#allocation4], 24
      %v776 = vld [vmem:[%s775] sm:$0x1f]
      %778 = vset.pattern.permute.xlu0 0
      %779 = vperm.xlu0 %778, %v758
      %v780 = vpop.permute.xlu0 %779
      %v782 = vmul.f32 %v780, %v776
      %v783 = vpack.c.bf16 %v766, %v766
      %784 = vrot.lane.b32.xlu0 %v511, 104
      %v785 = vpop.permute.xlu0 %784
      %v787 = vsel %vm363, %v783, 0
      %v790 = vand.u32 %v785, %v370
      %792 = vmatprep.subr.bf16.mxu0 0
      %793 = vmatpush1.bf16.msra.mxu0 %v790
      %794 = vmatprep.subr.bf16.mxu0 0
      %795 = vmatpush1.bf16.msra.mxu0 0
      %796 = vmatprep.subr.bf16.mxu0 0
      %797 = vmatpush1.bf16.msra.mxu0 0
      %798 = vmatprep.subr.bf16.mxu0 0
      %799 = vmatpush1.bf16.msra.mxu0 0
      %800 = vmatprep.subr.bf16.mxu0 0
      %801 = vmatpush1.bf16.msra.mxu0 0
      %802 = vmatprep.subr.bf16.mxu0 0
      %803 = vmatpush1.bf16.msra.mxu0 0
      %804 = vmatprep.subr.bf16.mxu0 0
      %805 = vmatpush1.bf16.msra.mxu0 0
      %806 = vmatprep.subr.bf16.mxu0 0
      %807 = vmatpush1.bf16.msra.mxu0 0
      %808 = vmatprep.subr.bf16.mxu0 0
      %809 = vmatpush1.bf16.msra.mxu0 0
      %810 = vmatprep.subr.bf16.mxu0 0
      %811 = vmatpush1.bf16.msra.mxu0 0
      %812 = vmatprep.subr.bf16.mxu0 0
      %813 = vmatpush1.bf16.msra.mxu0 0
      %814 = vmatprep.subr.bf16.mxu0 0
      %815 = vmatpush1.bf16.msra.mxu0 0
      %816 = vmatprep.subr.bf16.mxu0 0
      %817 = vmatpush1.bf16.msra.mxu0 0
      %818 = vmatprep.subr.bf16.mxu0 0
      %819 = vmatpush1.bf16.msra.mxu0 0
      %820 = vmatprep.subr.bf16.mxu0 0
      %821 = vmatpush1.bf16.msra.mxu0 0
      %822 = vmatprep.subr.bf16.mxu0 0
      %823 = vmatpush1.bf16.msra.mxu0 0
      %824 = vmatprep.mubr.bf16.mxu0 0
      %825 = vmatmul.mubr.bf16.gmra.mrb[0].mxu0 %v787
      %v826 = vpop.f32.mrb[0].mxu0
      %v827 = vadd.f32 0.0, %v826
      %v828 = vpop.f32.mrb[0].mxu0
      %v829 = vpop.f32.mrb[0].mxu0
      %v830 = vpop.f32.mrb[0].mxu0
      %831 = vdwg.mxu0
      %v832 = vadd.f32 %v782, %v827
      %833 = vst.msk [vmem:[%s775] sm:$0x1f] %vm415, %v832
      %834 = vst.msk [vmem:[%s750] sm:$0x1f] %vm353, %v755
      // Predicated region
      $region37: #{_lambda_.24} parent=31 // pred_check
        %p835 = pneg %p261
      $region38: #{_lambda_.24} parent=31 // pred_check_branch
        %837 = sbr.rel (%p835) target = $region40
      $region39: #{_lambda_.24} parent=31 // pred_region
        %v838 = vld [vmem:[#allocation4] sm:$0x1f]
        %v839 = vld [vmem:[#allocation3] sm:$0x1f]
        %v840 = vrcp.pop %v839
        %842 = vset.pattern.permute.xlu0 0
        %843 = vperm.xlu0 %842, %v840
        %v844 = vpop.permute.xlu0 %843
        %v846 = vmul.f32 %v838, %v844
        %v847 = vld [vmem:[%s500] sm:$0x1f]
        %v848 = vld [vmem:[%s492] sm:$0x1f]
        %v849 = vrcp.pop %v848
        %851 = vset.pattern.permute.xlu0 0
        %852 = vperm.xlu0 %851, %v849
        %v853 = vpop.permute.xlu0 %852
        %v855 = vmul.f32 %v847, %v853
        %v856 = vld [vmem:[%s639] sm:$0x1f]
        %v857 = vld [vmem:[%s631] sm:$0x1f]
        %v858 = vrcp.pop %v857
        %860 = vset.pattern.permute.xlu0 0
        %861 = vperm.xlu0 %860, %v858
        %v862 = vpop.permute.xlu0 %861
        %v864 = vmul.f32 %v856, %v862
        %v865 = vld [vmem:[%s775] sm:$0x1f]
        %v866 = vld [vmem:[%s767] sm:$0x1f]
        %v867 = vrcp.pop %v866
        %869 = vset.pattern.permute.xlu0 0
        %870 = vperm.xlu0 %869, %v867
        %v871 = vpop.permute.xlu0 %870
        %v873 = vmul.f32 %v865, %v871
        %875 = vrot.lane.b32.xlu0 %v855, 8
        %v876 = vpop.permute.xlu0 %875
        %879 = vrot.lane.b32.xlu0 %v864, 16
        %v880 = vpop.permute.xlu0 %879
        %883 = vrot.lane.b32.xlu0 %v873, 24
        %v884 = vpop.permute.xlu0 %883
        %v886 = vsel %vm282, %v846, %v876
        %vm887 = vcmask 130048
        %v888 = vsel %vm887, %v886, %v880
        %vm889 = vcmask 195584
        %v890 = vsel %vm889, %v888, %v884
        %v891 = vpack.c.bf16 %v890, %v890
        %vm892 = vcmask 256000
        %vm893 = vsmask.f32 2304
        %vm894 = vmand %vm892, %vm893
        %v895 = vld [vmem:[%s259] sm:$0x7]
        %v896 = vsel %vm894, %v891, %v895
        %897 = vst [vmem:[%s259] sm:$0x7] %v896
      $region40: #{_lambda_.24} parent=31 // pred_fallthru
        _
      %p898 = scmp.lt.s32.totalorder %s19, 3
      %s899 = scalar_select %p898, %s19, 3
      %p900 = scmp.lt.s32.totalorder %s20, 0
      %s901 = scalar_select %p900, %s20, 0
      %s902 = sadd.s32 %s901, %s899
      %s903 = smul.addr %s902, 4
      %s904 = scalar_lea.vmem %s3, %s903
      // Predicated region
      $region41: #{_lambda_.24} parent=31 // pred_check
        %p905 = pneg %p137
      $region42: #{_lambda_.24} parent=31 // pred_check_branch
        %907 = sbr.rel (%p905) target = $region44
      $region43: #{_lambda_.24} parent=31 // pred_region
        _
      $region44: #{_lambda_.24} parent=31 // pred_fallthru
        _
    $region32: #{_lambda_.24} parent=5 // pred_fallthru
      _
    %p908 = scmp.le.s32.totalorder 2, %s9
    // Predicated region
    $region45: #{_lambda_.24} parent=5 // pred_check
      %p909 = pneg %p908
    $region46: #{_lambda_.24} parent=5 // pred_check_branch
      %911 = sbr.rel (%p909) target = $region48
    $region47: #{_lambda_.24} parent=5 // pred_region
      %s912 = ssub.s32 %s9, 2
      // Predicated region
      $region49: #{_lambda_.24} parent=47 // pred_check
        %p913 = pneg %p143
      $region50: #{_lambda_.24} parent=47 // pred_check_branch
        %915 = sbr.rel (%p913) target = $region52
      $region51: #{_lambda_.24} parent=47 // pred_region
        %p916 = scmp.lt.s32.totalorder %s22, 3
        %s917 = scalar_select %p916, %s22, 3
        %p918 = scmp.lt.s32.totalorder %s23, 0
        %s919 = scalar_select %p918, %s23, 0
        %s920 = sadd.s32 %s919, %s917
        %s921 = smul.addr %s920, 4
        %s922 = scalar_lea.vmem %s3, %s921
      $region52: #{_lambda_.24} parent=47 // pred_fallthru
        _
    $region48: #{_lambda_.24} parent=5 // pred_fallthru
      _
  $region6: #{_lambda_.24} parent=0 // loop_footer
    %s13 = sadd.s32 1, %s9
  $region7: #{_lambda_.24} parent=0 // loop_footer_branch
    %8 = sbr.rel target = $region3
  $region8: #{_lambda_.24} parent=0 // loop_exit
    _

// kernel: _lambda_.31
$region0: #{_lambda_.31}
  #allocation0 [shape = 'u32[]', space=smem, size = 0x4, offset = 0x4, fixed_abs, tag = 'smem constant byte address 0x4 - core index']
  #allocation1 [shape = 'u32[144,128]{1,0:T(1,128)}', space=vmem, size = 0x12000, scoped, tag = 'internal scratch']
  #allocation2 [shape = 'f32[4,32]{1,0:T(4,128)}', space=vmem, size = 0x800, scoped, tag = 'scratch operand']
  %s0 = inlined_call_operand.vmem [shape: f32[4,32], index: 0, kind: input, shape index: {}]
  %s1 = inlined_call_operand.vmem [shape: bf16[32,32], index: 1, kind: input, shape index: {}]
  %s2 = inlined_call_operand.vmem [shape: f32[1,32], index: 2, kind: input, shape index: {}]
  %s3 = inlined_call_operand.vmem [shape: f32[1,32], index: 3, kind: input, shape index: {}]
  %s4 = inlined_call_operand.vmem [shape: f32[4,32], index: 4, kind: output, shape index: {}]
  %s5 = sld [smem:[#allocation0]]
  $region34: #{_lambda_.31} parent=0
    _
  %s7 = ssub.s32 1, %s5
  %s8 = scalar_select 0, %s7, %s5
  // Predicated region
  $region2: #{_lambda_.31} parent=0 // pred_check
    _
  $region3: #{_lambda_.31} parent=0 // pred_check_branch
    %10 = sbr.rel (0) target = $region5
  $region4: #{_lambda_.31} parent=0 // pred_region
    _
  $region5: #{_lambda_.31} parent=0 // pred_fallthru
    _
  // Predicated region
  $region6: #{_lambda_.31} parent=0 // pred_check
    _
  $region7: #{_lambda_.31} parent=0 // pred_check_branch
    %12 = sbr.rel (0) target = $region9
  $region8: #{_lambda_.31} parent=0 // pred_region
    _
  $region9: #{_lambda_.31} parent=0 // pred_fallthru
    _
  // Predicated region
  $region10: #{_lambda_.31} parent=0 // pred_check
    _
  $region11: #{_lambda_.31} parent=0 // pred_check_branch
    %14 = sbr.rel (0) target = $region13
  $region12: #{_lambda_.31} parent=0 // pred_region
    _
  $region13: #{_lambda_.31} parent=0 // pred_fallthru
    _
  // Predicated region
  $region14: #{_lambda_.31} parent=0 // pred_check
    _
  $region15: #{_lambda_.31} parent=0 // pred_check_branch
    %16 = sbr.rel (0) target = $region17
  $region16: #{_lambda_.31} parent=0 // pred_region
    _
  $region17: #{_lambda_.31} parent=0 // pred_fallthru
    _
  %v18 = vld [vmem:[%s0] sm:$0xf]
  %v19 = vld [vmem:[%s2] sm:$0x1]
  %v20 = vld [vmem:[%s3] sm:$0x1]
  %vm21 = vcmask 257024
  %v22 = vsel %vm21, %v18, 0.0
  %23 = vadd.xlane.f32.xlu0 %v22
  %v24 = vpop.xlane.xlu0 %23
  %v25 = vrcp.pop 32.0
  %v26 = vmul.f32 %v24, %v25
  %v27 = vsub.f32 %v18, %v26
  %v28 = vmul.f32 %v27, %v27
  %v29 = vsel %vm21, %v28, 0.0
  %30 = vadd.xlane.f32.xlu0 %v29
  %v31 = vpop.xlane.xlu0 %30
  %v32 = vmul.f32 %v31, %v25
  %v33 = vadd.f32 %v32, 1e-05
  %v34 = vrsqrt.pop %v33
  %v35 = vmul.f32 %v27, %v34
  %v37 = vlaneseq
  %v38 = vshrl.u32 %v37, 7
  %v39 = vsub.s32 0, %v38
  %v40 = vrot.slane %v19, %v39
  %v42 = vmul.f32 %v35, %v40
  %v44 = vlaneseq
  %v45 = vshrl.u32 %v44, 7
  %v46 = vsub.s32 0, %v45
  %v47 = vrot.slane %v20, %v46
  %v49 = vadd.f32 %v42, %v47
  %p50 = scmp.eq.s32.totalorder 0, 0
  // Predicated region
  $region18: #{_lambda_.31} parent=0 // pred_check
    %p51 = pneg %p50
  $region19: #{_lambda_.31} parent=0 // pred_check_branch
    %53 = sbr.rel (%p51) target = $region21
  $region20: #{_lambda_.31} parent=0 // pred_region
    %54 = vst.msk [vmem:[#allocation2] sm:$0xf] %vm21, 0.0
  $region21: #{_lambda_.31} parent=0 // pred_fallthru
    _
  %v55 = vld [vmem:[#allocation2] sm:$0xf]
  %v56 = vpack.c.bf16 %v49, %v49
  %v57 = vld [vmem:[%s1] sm:$0xf]
  %v58 = vld [vmem:[%s1 + $0x4] sm:$0xf]
  %v59 = vld [vmem:[%s1 + $0x8] sm:$0xf]
  %v60 = vld [vmem:[%s1 + $0xc] sm:$0xf]
  %v65 = vunpack.c.l.b16 %v57
  %v66 = vunpack.c.l.b16 %v58
  %v67 = vunpack.c.l.b16 %v59
  %v68 = vunpack.c.l.b16 %v60
  %v69 = vpack.c.b16 %v66, %v65
  %v70 = vpack.c.b16 %v68, %v67
  %vm73 = vcmask 261120
  %v75 = vsel %vm73, %v56, 0
  %77 = vmatprep.subr.bf16.mxu0 0
  %78 = vmatpush1.bf16.msra.mxu0 %v69
  %79 = vmatprep.subr.bf16.mxu0 0
  %80 = vmatpush1.bf16.msra.mxu0 %v70
  %81 = vmatprep.subr.bf16.mxu0 0
  %82 = vmatpush1.bf16.msra.mxu0 0
  %83 = vmatprep.subr.bf16.mxu0 0
  %84 = vmatpush1.bf16.msra.mxu0 0
  %85 = vmatprep.subr.bf16.mxu0 0
  %86 = vmatpush1.bf16.msra.mxu0 0
  %87 = vmatprep.subr.bf16.mxu0 0
  %88 = vmatpush1.bf16.msra.mxu0 0
  %89 = vmatprep.subr.bf16.mxu0 0
  %90 = vmatpush1.bf16.msra.mxu0 0
  %91 = vmatprep.subr.bf16.mxu0 0
  %92 = vmatpush1.bf16.msra.mxu0 0
  %93 = vmatprep.subr.bf16.mxu0 0
  %94 = vmatpush1.bf16.msra.mxu0 0
  %95 = vmatprep.subr.bf16.mxu0 0
  %96 = vmatpush1.bf16.msra.mxu0 0
  %97 = vmatprep.subr.bf16.mxu0 0
  %98 = vmatpush1.bf16.msra.mxu0 0
  %99 = vmatprep.subr.bf16.mxu0 0
  %100 = vmatpush1.bf16.msra.mxu0 0
  %101 = vmatprep.subr.bf16.mxu0 0
  %102 = vmatpush1.bf16.msra.mxu0 0
  %103 = vmatprep.subr.bf16.mxu0 0
  %104 = vmatpush1.bf16.msra.mxu0 0
  %105 = vmatprep.subr.bf16.mxu0 0
  %106 = vmatpush1.bf16.msra.mxu0 0
  %107 = vmatprep.subr.bf16.mxu0 0
  %108 = vmatpush1.bf16.msra.mxu0 0
  %109 = vmatprep.mubr.bf16.mxu0 0
  %110 = vmatmul.mubr.bf16.gmra.mrb[0].mxu0 %v75
  %v111 = vpop.f32.mrb[0].mxu0
  %v112 = vadd.f32 0.0, %v111
  %v113 = vpop.f32.mrb[0].mxu0
  %v114 = vpop.f32.mrb[0].mxu0
  %v115 = vpop.f32.mrb[0].mxu0
  %116 = vdwg.mxu0
  %v117 = vadd.f32 %v55, %v112
  %118 = vst.msk [vmem:[#allocation2] sm:$0xf] %vm21, %v117
  // Predicated region
  $region22: #{_lambda_.31} parent=0 // pred_check
    %p119 = pneg %p50
  $region23: #{_lambda_.31} parent=0 // pred_check_branch
    %121 = sbr.rel (%p119) target = $region25
  $region24: #{_lambda_.31} parent=0 // pred_region
    %v122 = vld [vmem:[#allocation2] sm:$0xf]
    %123 = vst.msk [vmem:[%s4] sm:$0xf] %vm21, %v122
  $region25: #{_lambda_.31} parent=0 // pred_fallthru
    _
  // Predicated region
  $region26: #{_lambda_.31} parent=0 // pred_check
    _
  $region27: #{_lambda_.31} parent=0 // pred_check_branch
    %125 = sbr.rel (0) target = $region29
  $region28: #{_lambda_.31} parent=0 // pred_region
    _
  $region29: #{_lambda_.31} parent=0 // pred_fallthru
    _
  // Predicated region
  $region30: #{_lambda_.31} parent=0 // pred_check
    _
  $region31: #{_lambda_.31} parent=0 // pred_check_branch
    %127 = sbr.rel (0) target = $region33
  $region32: #{_lambda_.31} parent=0 // pred_region
    _
  $region33: #{_lambda_.31} parent=0 // pred_fallthru
    _

// kernel: _lambda_.32
$region0: #{_lambda_.32}
  #allocation0 [shape = 'u32[]', space=smem, size = 0x4, offset = 0x4, fixed_abs, tag = 'smem constant byte address 0x4 - core index']
  #allocation1 [shape = 'u32[144,128]{1,0:T(1,128)}', space=vmem, size = 0x12000, scoped, tag = 'internal scratch']
  %s0 = inlined_call_operand.vmem [shape: f32[2,2,32], index: 0, kind: input, shape index: {}]
  %s1 = inlined_call_operand.hbm [shape: f32[2,32], index: 1, kind: output, shape index: {}]
  %s2 = sld [smem:[#allocation0]]
  $region14: #{_lambda_.32} parent=0
    _
  %s4 = ssub.s32 1, %s2
  %s5 = scalar_select 0, %s4, %s2
  $region1: #{_lambda_.32} parent=0
    #allocation2 [shape = 'u8[1024]{0}', space=vmem, size = 0x400, scoped, tag = 'output window, operand 0, single buffered']
    #allocation3 [shape = 's32[1]{0}', space=sflag, size = 0x4, scoped, tag = 'scoped memory for _lambda_.32']
    %6 = vsyncpa [#allocation3], 0
    // Predicated region
    $region2: #{_lambda_.32} parent=1 // pred_check
      _
    $region3: #{_lambda_.32} parent=1 // pred_check_branch
      %8 = sbr.rel (0) target = $region5
    $region4: #{_lambda_.32} parent=1 // pred_region
      _
    $region5: #{_lambda_.32} parent=1 // pred_fallthru
      _
    %v9 = vld [vmem:[%s0] sm:$0x3]
    %v10 = vld [vmem:[%s0 + $0x2] sm:$0x3]
    %vm11 = vcmask 254976
    %v12 = vsel %vm11, %v9, 0.0
    %v13 = vrot.slane %v12, 4
    %v14 = vadd.f32 %v12, %v13
    %v15 = vrot.slane %v14, 2
    %v16 = vadd.f32 %v14, %v15
    %v17 = vrot.slane %v16, 1
    %v18 = vadd.f32 %v16, %v17
    %v19 = vsel %vm11, %v10, 0.0
    %v20 = vrot.slane %v19, 4
    %v21 = vadd.f32 %v19, %v20
    %v22 = vrot.slane %v21, 2
    %v23 = vadd.f32 %v21, %v22
    %v24 = vrot.slane %v23, 1
    %v25 = vadd.f32 %v23, %v24
    %v26 = vrcp.pop 2.0
    %v27 = vmul.f32 %v18, %v26
    %v28 = vmul.f32 %v25, %v26
    %v29 = vmul.f32 %v27, %v27
    %v30 = vmul.f32 %v28, %v28
    %vm33 = vcmask 1041409
    %v34 = vsel %vm33, %v30, %v29
    %v36 = vsel %vm11, %v34, 0.0
    %37 = vadd.xlane.f32.xlu0 %v36
    %v38 = vpop.xlane.xlu0 %37
    %v39 = vrsqrt.pop %v38
    %v41 = vrot.slane %v39, 1
    %v44 = vmul.f32 %v27, %v39
    %v45 = vmul.f32 %v28, %v41
    %v48 = vrot.slane %v45, 7
    %v49 = vsel %vm33, %v48, %v44
    %51 = vst.msk [vmem:[#allocation2] sm:$0x3] %vm11, %v49
    // Predicated region
    $region6: #{_lambda_.32} parent=1 // pred_check
      _
    $region7: #{_lambda_.32} parent=1 // pred_check_branch
      %53 = sbr.rel (0) target = $region9
    $region8: #{_lambda_.32} parent=1 // pred_region
      %s55 = ssub.s32 32, 32
      %56 = vsyncadd [#allocation3], %s55
      %s58 = sshll.u32 [#allocation2], 4
      %s59 = int_to_ptr.vmem [resolvable:$true] %s58
      %61 = dma.vmem_to_hbm [thread:$0]  %s59, 32, %s1, [#allocation3]
    $region9: #{_lambda_.32} parent=1 // pred_fallthru
      _
    // Predicated region
    $region10: #{_lambda_.32} parent=1 // pred_check
      _
    $region11: #{_lambda_.32} parent=1 // pred_check_branch
      %63 = sbr.rel (0) target = $region13
    $region12: #{_lambda_.32} parent=1 // pred_region
      %64 = dma.done [#allocation3], 32
    $region13: #{_lambda_.32} parent=1 // pred_fallthru
      _
    %65 = vsyncpa [#allocation3], 1

// kernel: _lambda_.26
$region0: #{_lambda_.26}
  #allocation0 [shape = 'u32[]', space=smem, size = 0x4, offset = 0x4, fixed_abs, tag = 'smem constant byte address 0x4 - core index']
  #allocation1 [shape = 'u32[144,128]{1,0:T(1,128)}', space=vmem, size = 0x12000, scoped, tag = 'internal scratch']
  #allocation2 [shape = 'f32[20,32]{1,0:T(8,128)}', space=vmem, size = 0x3000, scoped, tag = 'scratch operand']
  %s0 = inlined_call_operand.vmem [shape: f32[20,32], index: 0, kind: input, shape index: {}]
  %s1 = inlined_call_operand.vmem [shape: f32[1,32], index: 1, kind: input, shape index: {}]
  %s2 = inlined_call_operand.vmem [shape: f32[1,32], index: 2, kind: input, shape index: {}, may-alias: {2,6}]
  %s3 = inlined_call_operand.vmem [shape: bf16[32,128], index: 3, kind: input, shape index: {}]
  %s4 = inlined_call_operand.vmem [shape: f32[1,128], index: 4, kind: input, shape index: {}]
  %s5 = inlined_call_operand.vmem [shape: bf16[128,32], index: 5, kind: input, shape index: {}]
  %s6 = inlined_call_operand.vmem [shape: f32[1,32], index: 6, kind: input, shape index: {}, may-alias: {2,6}]
  %s7 = inlined_call_operand.vmem [shape: f32[20,32], index: 7, kind: output, shape index: {}]
  %s8 = sld [smem:[#allocation0]]
  $region46: #{_lambda_.26} parent=0
    _
  %s10 = ssub.s32 1, %s8
  %s11 = scalar_select 0, %s10, %s8
  // Predicated region
  $region2: #{_lambda_.26} parent=0 // pred_check
    _
  $region3: #{_lambda_.26} parent=0 // pred_check_branch
    %13 = sbr.rel (0) target = $region5
  $region4: #{_lambda_.26} parent=0 // pred_region
    _
  $region5: #{_lambda_.26} parent=0 // pred_fallthru
    _
  // Predicated region
  $region6: #{_lambda_.26} parent=0 // pred_check
    _
  $region7: #{_lambda_.26} parent=0 // pred_check_branch
    %15 = sbr.rel (0) target = $region9
  $region8: #{_lambda_.26} parent=0 // pred_region
    _
  $region9: #{_lambda_.26} parent=0 // pred_fallthru
    _
  // Predicated region
  $region10: #{_lambda_.26} parent=0 // pred_check
    _
  $region11: #{_lambda_.26} parent=0 // pred_check_branch
    %17 = sbr.rel (0) target = $region13
  $region12: #{_lambda_.26} parent=0 // pred_region
    _
  $region13: #{_lambda_.26} parent=0 // pred_fallthru
    _
  // Predicated region
  $region14: #{_lambda_.26} parent=0 // pred_check
    _
  $region15: #{_lambda_.26} parent=0 // pred_check_branch
    %19 = sbr.rel (0) target = $region17
  $region16: #{_lambda_.26} parent=0 // pred_region
    _
  $region17: #{_lambda_.26} parent=0 // pred_fallthru
    _
  // Predicated region
  $region18: #{_lambda_.26} parent=0 // pred_check
    _
  $region19: #{_lambda_.26} parent=0 // pred_check_branch
    %21 = sbr.rel (0) target = $region21
  $region20: #{_lambda_.26} parent=0 // pred_region
    _
  $region21: #{_lambda_.26} parent=0 // pred_fallthru
    _
  // Predicated region
  $region22: #{_lambda_.26} parent=0 // pred_check
    _
  $region23: #{_lambda_.26} parent=0 // pred_check_branch
    %23 = sbr.rel (0) target = $region25
  $region24: #{_lambda_.26} parent=0 // pred_region
    _
  $region25: #{_lambda_.26} parent=0 // pred_fallthru
    _
  // Predicated region
  $region26: #{_lambda_.26} parent=0 // pred_check
    _
  $region27: #{_lambda_.26} parent=0 // pred_check_branch
    %25 = sbr.rel (0) target = $region29
  $region28: #{_lambda_.26} parent=0 // pred_region
    _
  $region29: #{_lambda_.26} parent=0 // pred_fallthru
    _
  %v27 = vld [vmem:[%s0] sm:$0xff]
  %v28 = vld [vmem:[%s0 + $0x8] sm:$0xff]
  %v29 = vld [vmem:[%s0 + $0x10] sm:$0xf]
  %v30 = vld [vmem:[%s1] sm:$0x1]
  %v31 = vld [vmem:[%s2] sm:$0x1]
  %vm32 = vcmask 261120
  %v33 = vsel %vm32, %v27, 0.0
  %34 = vadd.xlane.f32.xlu0 %v33
  %v35 = vpop.xlane.xlu0 %34
  %v36 = vsel %vm32, %v28, 0.0
  %37 = vadd.xlane.f32.xlu0 %v36
  %v38 = vpop.xlane.xlu0 %37
  %vm39 = vcmask 257024
  %v40 = vsel %vm39, %v29, 0.0
  %41 = vadd.xlane.f32.xlu0 %v40
  %v42 = vpop.xlane.xlu0 %41
  %v43 = vrcp.pop 32.0
  %v44 = vmul.f32 %v35, %v43
  %v45 = vmul.f32 %v38, %v43
  %v46 = vmul.f32 %v42, %v43
  %v47 = vsub.f32 %v27, %v44
  %v48 = vsub.f32 %v28, %v45
  %v49 = vsub.f32 %v29, %v46
  %v50 = vmul.f32 %v47, %v47
  %v51 = vmul.f32 %v48, %v48
  %v52 = vmul.f32 %v49, %v49
  %v53 = vsel %vm32, %v50, 0.0
  %54 = vadd.xlane.f32.xlu0 %v53
  %v55 = vpop.xlane.xlu0 %54
  %v56 = vsel %vm32, %v51, 0.0
  %57 = vadd.xlane.f32.xlu0 %v56
  %v58 = vpop.xlane.xlu0 %57
  %v59 = vsel %vm39, %v52, 0.0
  %60 = vadd.xlane.f32.xlu0 %v59
  %v61 = vpop.xlane.xlu0 %60
  %v62 = vmul.f32 %v55, %v43
  %v63 = vmul.f32 %v58, %v43
  %v64 = vmul.f32 %v61, %v43
  %v65 = vadd.f32 %v62, 1e-05
  %v66 = vadd.f32 %v63, 1e-05
  %v67 = vadd.f32 %v64, 1e-05
  %v68 = vrsqrt.pop %v65
  %v69 = vrsqrt.pop %v66
  %v70 = vrsqrt.pop %v67
  %v71 = vmul.f32 %v47, %v68
  %v72 = vmul.f32 %v48, %v69
  %v73 = vmul.f32 %v49, %v70
  %v75 = vlaneseq
  %v76 = vshrl.u32 %v75, 7
  %v77 = vsub.s32 0, %v76
  %v78 = vrot.slane %v30, %v77
  %v80 = vmul.f32 %v71, %v78
  %v81 = vmul.f32 %v72, %v78
  %v82 = vmul.f32 %v73, %v78
  %v84 = vlaneseq
  %v85 = vshrl.u32 %v84, 7
  %v86 = vsub.s32 0, %v85
  %v87 = vrot.slane %v31, %v86
  %v89 = vadd.f32 %v80, %v87
  %v90 = vadd.f32 %v81, %v87
  %v91 = vadd.f32 %v82, %v87
  %v92 = vpack.c.bf16 %v90, %v89
  %v93 = vpack.c.bf16 %v91, %v91
  %p94 = scmp.eq.s32.totalorder 0, 0
  // Predicated region
  $region30: #{_lambda_.26} parent=0 // pred_check
    %p95 = pneg %p94
  $region31: #{_lambda_.26} parent=0 // pred_check_branch
    %97 = sbr.rel (%p95) target = $region33
  $region32: #{_lambda_.26} parent=0 // pred_region
    %98 = vst.msk [vmem:[#allocation2] sm:$0xff] %vm32, 0.0
    %99 = vst.msk [vmem:[#allocation2 + $0x8] sm:$0xff] %vm32, 0.0
    %100 = vst.msk [vmem:[#allocation2 + $0x10] sm:$0xf] %vm39, 0.0
  $region33: #{_lambda_.26} parent=0 // pred_fallthru
    _
  %v101 = vld [vmem:[%s3] sm:$0xf]
  %v102 = vld [vmem:[%s3 + $0x4] sm:$0xf]
  %v103 = vld [vmem:[%s3 + $0x8] sm:$0xf]
  %v104 = vld [vmem:[%s3 + $0xc] sm:$0xf]
  %v105 = vld [vmem:[%s4] sm:$0x1]
  %v107 = vlaneseq
  %v108 = vshrl.u32 %v107, 7
  %v109 = vsub.s32 0, %v108
  %v110 = vrot.slane %v105, %v109
  %v116 = vunpack.c.l.b16 %v101
  %v117 = vunpack.c.l.b16 %v102
  %v118 = vunpack.c.l.b16 %v103
  %v119 = vunpack.c.l.b16 %v104
  %v120 = vpack.c.b16 %v117, %v116
  %v121 = vpack.c.b16 %v119, %v118
  %v125 = vsel %vm32, %v92, 0
  %v128 = vsel %vm32, %v93, 0
  %130 = vmatprep.subr.bf16.mxu0 0
  %131 = vmatpush1.bf16.msra.mxu0 %v120
  %132 = vmatprep.subr.bf16.mxu0 0
  %133 = vmatpush1.bf16.msra.mxu0 %v121
  %134 = vmatprep.subr.bf16.mxu0 0
  %135 = vmatpush1.bf16.msra.mxu0 0
  %136 = vmatprep.subr.bf16.mxu0 0
  %137 = vmatpush1.bf16.msra.mxu0 0
  %138 = vmatprep.subr.bf16.mxu0 0
  %139 = vmatpush1.bf16.msra.mxu0 0
  %140 = vmatprep.subr.bf16.mxu0 0
  %141 = vmatpush1.bf16.msra.mxu0 0
  %142 = vmatprep.subr.bf16.mxu0 0
  %143 = vmatpush1.bf16.msra.mxu0 0
  %144 = vmatprep.subr.bf16.mxu0 0
  %145 = vmatpush1.bf16.msra.mxu0 0
  %146 = vmatprep.subr.bf16.mxu0 0
  %147 = vmatpush1.bf16.msra.mxu0 0
  %148 = vmatprep.subr.bf16.mxu0 0
  %149 = vmatpush1.bf16.msra.mxu0 0
  %150 = vmatprep.subr.bf16.mxu0 0
  %151 = vmatpush1.bf16.msra.mxu0 0
  %152 = vmatprep.subr.bf16.mxu0 0
  %153 = vmatpush1.bf16.msra.mxu0 0
  %154 = vmatprep.subr.bf16.mxu0 0
  %155 = vmatpush1.bf16.msra.mxu0 0
  %156 = vmatprep.subr.bf16.mxu0 0
  %157 = vmatpush1.bf16.msra.mxu0 0
  %158 = vmatprep.subr.bf16.mxu0 0
  %159 = vmatpush1.bf16.msra.mxu0 0
  %160 = vmatprep.subr.bf16.mxu0 0
  %161 = vmatpush1.bf16.msra.mxu0 0
  %162 = vmatprep.mubr.bf16.mxu0 0
  %163 = vmatmul.mubr.bf16.gmra.mrb[0].mxu0 %v125
  %v164 = vpop.f32.mrb[0].mxu0
  %v165 = vadd.f32 %v110, %v164
  %v166 = vpop.f32.mrb[0].mxu0
  %v167 = vpop.f32.mrb[0].mxu0
  %v168 = vadd.f32 %v110, %v167
  %v169 = vpop.f32.mrb[0].mxu0
  %170 = vmatprep.mubr.bf16.mxu0 0
  %171 = vmatmul.mubr.bf16.gmra.mrb[0].mxu0 %v128
  %v172 = vpop.f32.mrb[0].mxu0
  %v173 = vadd.f32 %v110, %v172
  %v174 = vpop.f32.mrb[0].mxu0
  %v175 = vpop.f32.mrb[0].mxu0
  %v176 = vpop.f32.mrb[0].mxu0
  %177 = vdwg.mxu0
  %v178 = vmul.f32 %v165, 1.702
  %v179 = vmul.f32 %v168, 1.702
  %v180 = vmul.f32 %v173, 1.702
  %v181 = vxor.u32 %v178, 2147483648
  %v182 = vxor.u32 %v179, 2147483648
  %v183 = vxor.u32 %v180, 2147483648
  %v184 = vmul.f32 %v181, 1.442695
  %v185 = vpow.pop %v184
  %v186 = vmul.f32 %v182, 1.442695
  %v187 = vpow.pop %v186
  %v188 = vmul.f32 %v183, 1.442695
  %v189 = vpow.pop %v188
  %v190 = vadd.f32 %v185, 1.0
  %v191 = vadd.f32 %v187, 1.0
  %v192 = vadd.f32 %v189, 1.0
  %v193 = vrcp.pop %v190
  %v194 = vmul.f32 1.0, %v193
  %v195 = vrcp.pop %v191
  %v196 = vmul.f32 1.0, %v195
  %v197 = vrcp.pop %v192
  %v198 = vmul.f32 1.0, %v197
  %v199 = vmul.f32 %v165, %v194
  %v200 = vmul.f32 %v168, %v196
  %v201 = vmul.f32 %v173, %v198
  %v202 = vld [vmem:[#allocation2] sm:$0xff]
  %v203 = vld [vmem:[#allocation2 + $0x8] sm:$0xff]
  %v204 = vld [vmem:[#allocation2 + $0x10] sm:$0xf]
  %v205 = vpack.c.bf16 %v200, %v199
  %v206 = vpack.c.bf16 %v201, %v201
  %v207 = vld [vmem:[%s5] sm:$0xf]
  %v208 = vld [vmem:[%s5 + $0x4] sm:$0xf]
  %v209 = vld [vmem:[%s5 + $0x8] sm:$0xf]
  %v210 = vld [vmem:[%s5 + $0xc] sm:$0xf]
  %v211 = vld [vmem:[%s5 + $0x10] sm:$0xf]
  %v212 = vld [vmem:[%s5 + $0x14] sm:$0xf]
  %v213 = vld [vmem:[%s5 + $0x18] sm:$0xf]
  %v214 = vld [vmem:[%s5 + $0x1c] sm:$0xf]
  %v215 = vld [vmem:[%s5 + $0x20] sm:$0xf]
  %v216 = vld [vmem:[%s5 + $0x24] sm:$0xf]
  %v217 = vld [vmem:[%s5 + $0x28] sm:$0xf]
  %v218 = vld [vmem:[%s5 + $0x2c] sm:$0xf]
  %v219 = vld [vmem:[%s5 + $0x30] sm:$0xf]
  %v220 = vld [vmem:[%s5 + $0x34] sm:$0xf]
  %v221 = vld [vmem:[%s5 + $0x38] sm:$0xf]
  %v222 = vld [vmem:[%s5 + $0x3c] sm:$0xf]
  %v239 = vunpack.c.l.b16 %v207
  %v240 = vunpack.c.l.b16 %v208
  %v241 = vunpack.c.l.b16 %v209
  %v242 = vunpack.c.l.b16 %v210
  %v243 = vunpack.c.l.b16 %v211
  %v244 = vunpack.c.l.b16 %v212
  %v245 = vunpack.c.l.b16 %v213
  %v246 = vunpack.c.l.b16 %v214
  %v247 = vunpack.c.l.b16 %v215
  %v248 = vunpack.c.l.b16 %v216
  %v249 = vunpack.c.l.b16 %v217
  %v250 = vunpack.c.l.b16 %v218
  %v251 = vunpack.c.l.b16 %v219
  %v252 = vunpack.c.l.b16 %v220
  %v253 = vunpack.c.l.b16 %v221
  %v254 = vunpack.c.l.b16 %v222
  %v255 = vpack.c.b16 %v240, %v239
  %v256 = vpack.c.b16 %v242, %v241
  %v257 = vpack.c.b16 %v244, %v243
  %v258 = vpack.c.b16 %v246, %v245
  %v259 = vpack.c.b16 %v248, %v247
  %v260 = vpack.c.b16 %v250, %v249
  %v261 = vpack.c.b16 %v252, %v251
  %v262 = vpack.c.b16 %v254, %v253
  %271 = vmatprep.subr.bf16.mxu0 0
  %272 = vmatpush1.bf16.msra.mxu0 %v255
  %273 = vmatprep.subr.bf16.mxu0 0
  %274 = vmatpush1.bf16.msra.mxu0 %v256
  %275 = vmatprep.subr.bf16.mxu0 0
  %276 = vmatpush1.bf16.msra.mxu0 %v257
  %277 = vmatprep.subr.bf16.mxu0 0
  %278 = vmatpush1.bf16.msra.mxu0 %v258
  %279 = vmatprep.subr.bf16.mxu0 0
  %280 = vmatpush1.bf16.msra.mxu0 %v259
  %281 = vmatprep.subr.bf16.mxu0 0
  %282 = vmatpush1.bf16.msra.mxu0 %v260
  %283 = vmatprep.subr.bf16.mxu0 0
  %284 = vmatpush1.bf16.msra.mxu0 %v261
  %285 = vmatprep.subr.bf16.mxu0 0
  %286 = vmatpush1.bf16.msra.mxu0 %v262
  %287 = vmatprep.subr.bf16.mxu0 0
  %288 = vmatpush1.bf16.msra.mxu0 0
  %289 = vmatprep.subr.bf16.mxu0 0
  %290 = vmatpush1.bf16.msra.mxu0 0
  %291 = vmatprep.subr.bf16.mxu0 0
  %292 = vmatpush1.bf16.msra.mxu0 0
  %293 = vmatprep.subr.bf16.mxu0 0
  %294 = vmatpush1.bf16.msra.mxu0 0
  %295 = vmatprep.subr.bf16.mxu0 0
  %296 = vmatpush1.bf16.msra.mxu0 0
  %297 = vmatprep.subr.bf16.mxu0 0
  %298 = vmatpush1.bf16.msra.mxu0 0
  %299 = vmatprep.subr.bf16.mxu0 0
  %300 = vmatpush1.bf16.msra.mxu0 0
  %301 = vmatprep.subr.bf16.mxu0 0
  %302 = vmatpush1.bf16.msra.mxu0 0
  %303 = vmatprep.mubr.bf16.mxu0 0
  %304 = vmatmul.mubr.bf16.gmra.mrb[0].mxu0 %v205
  %v305 = vpop.f32.mrb[0].mxu0
  %v306 = vadd.f32 0.0, %v305
  %v307 = vpop.f32.mrb[0].mxu0
  %v308 = vpop.f32.mrb[0].mxu0
  %v309 = vadd.f32 0.0, %v308
  %v310 = vpop.f32.mrb[0].mxu0
  %311 = vmatprep.mubr.bf16.mxu0 0
  %312 = vmatmul.mubr.bf16.gmra.mrb[0].mxu0 %v206
  %v313 = vpop.f32.mrb[0].mxu0
  %v314 = vadd.f32 0.0, %v313
  %v315 = vpop.f32.mrb[0].mxu0
  %v316 = vpop.f32.mrb[0].mxu0
  %v317 = vpop.f32.mrb[0].mxu0
  %318 = vdwg.mxu0
  %v319 = vadd.f32 %v202, %v306
  %v320 = vadd.f32 %v203, %v309
  %v321 = vadd.f32 %v204, %v314
  %322 = vst.msk [vmem:[#allocation2] sm:$0xff] %vm32, %v319
  %323 = vst.msk [vmem:[#allocation2 + $0x8] sm:$0xff] %vm32, %v320
  %324 = vst.msk [vmem:[#allocation2 + $0x10] sm:$0xf] %vm39, %v321
  // Predicated region
  $region34: #{_lambda_.26} parent=0 // pred_check
    %p325 = pneg %p94
  $region35: #{_lambda_.26} parent=0 // pred_check_branch
    %327 = sbr.rel (%p325) target = $region37
  $region36: #{_lambda_.26} parent=0 // pred_region
    %v328 = vld [vmem:[#allocation2] sm:$0xff]
    %v329 = vld [vmem:[#allocation2 + $0x8] sm:$0xff]
    %v330 = vld [vmem:[#allocation2 + $0x10] sm:$0xf]
    %v331 = vld [vmem:[%s6] sm:$0x1]
    %v333 = vlaneseq
    %v334 = vshrl.u32 %v333, 7
    %v335 = vsub.s32 0, %v334
    %v336 = vrot.slane %v331, %v335
    %v338 = vadd.f32 %v328, %v336
    %v339 = vadd.f32 %v329, %v336
    %v340 = vadd.f32 %v330, %v336
    %v341 = vadd.f32 %v338, %v27
    %v342 = vadd.f32 %v339, %v28
    %v343 = vadd.f32 %v340, %v29
    %344 = vst.msk [vmem:[%s7] sm:$0xff] %vm32, %v341
    %345 = vst.msk [vmem:[%s7 + $0x8] sm:$0xff] %vm32, %v342
    %346 = vst.msk [vmem:[%s7 + $0x10] sm:$0xf] %vm39, %v343
  $region37: #{_lambda_.26} parent=0 // pred_fallthru
    _
  // Predicated region
  $region38: #{_lambda_.26} parent=0 // pred_check
    _
  $region39: #{_lambda_.26} parent=0 // pred_check_branch
    %348 = sbr.rel (0) target = $region41
  $region40: #{_lambda_.26} parent=0 // pred_region
    _
  $region41: #{_lambda_.26} parent=0 // pred_fallthru
    _
  // Predicated region
  $region42: #{_lambda_.26} parent=0 // pred_check
    _
  $region43: #{_lambda_.26} parent=0 // pred_check_branch
    %350 = sbr.rel (0) target = $region45
  $region44: #{_lambda_.26} parent=0 // pred_region
    _
  $region45: #{_lambda_.26} parent=0 // pred_fallthru
    _

// kernel: _lambda_.35
$region0: #{_lambda_.35}
  #allocation0 [shape = 'u32[]', space=smem, size = 0x4, offset = 0x4, fixed_abs, tag = 'smem constant byte address 0x4 - core index']
  #allocation1 [shape = 'u32[144,128]{1,0:T(1,128)}', space=vmem, size = 0x12000, scoped, tag = 'internal scratch']
  #allocation2 [shape = 'f32[8,32]{1,0:T(8,128)}', space=vmem, size = 0x1000, scoped, tag = 'scratch operand']
  %s0 = inlined_call_operand.vmem [shape: bf16[24,32], index: 0, kind: input, shape index: {}]
  %s1 = inlined_call_operand.vmem [shape: bf16[32,32], index: 1, kind: input, shape index: {}]
  %s2 = inlined_call_operand.vmem [shape: f32[1,32], index: 2, kind: input, shape index: {}]
  %s3 = inlined_call_operand.vmem [shape: f32[24,32], index: 3, kind: input, shape index: {}]
  %s4 = inlined_call_operand.vmem [shape: f32[24,32], index: 4, kind: output, shape index: {}]
  %s5 = sld [smem:[#allocation0]]
  $region57: #{_lambda_.35} parent=0
    _
  %s7 = ssub.s32 1, %s5
  %s8 = scalar_select 0, %s7, %s5
  loop: start=0, step=1, limit=5
  $region2: #{_lambda_.35} parent=0 // loop_pre_header
    _
  $region3: #{_lambda_.35} parent=0 // loop_header
    %s10 = sphi 0, %s14
    %p11 = scmp.ge.s32.totalorder %s10, 5
    %s17 = sphi 0, %s36
    %s18 = sphi 0, %s32
    %s19 = sphi 0, %s28
    %s20 = sphi 0, %s17
    %s21 = sphi 0, %s18
    %s22 = sphi 0, %s19
    %s23 = sphi 0, %s20
    %s24 = sphi 0, %s21
    %s25 = sphi 0, %s22
    %s41 = sphi 0, %s43
    %s44 = sphi 0, %s41
    %s45 = sphi 0, %s44
    %s61 = sphi 0, %s45
    %s69 = sphi 0, %s71
    %s72 = sphi 0, %s69
    %s73 = sphi 0, %s72
    %s89 = sphi 0, %s73
    %s95 = sphi 0, %s97
    %s98 = sphi 0, %s95
    %s99 = sphi 0, %s98
    %s115 = sphi 0, %s99
    %s123 = sphi 0, %s125
    %s126 = sphi 0, %s123
    %s127 = sphi 0, %s126
    %s143 = sphi 0, %s127
    %s151 = sphi 0, %s153
    %s154 = sphi 0, %s151
    %s155 = sphi 0, %s154
    %s171 = sphi 0, %s155
  $region4: #{_lambda_.35} parent=0 // loop_header_branch
    %13 = sbr.rel (%p11) target = $region8
  $region5: #{_lambda_.35} parent=0 // loop_body
    %s15 = ssub.s32 %s10, 1
    %s16 = ssub.s32 %s10, 2
    %s26 = sadd.s32 1, %s19
    %p27 = scmp.ge.s32.totalorder %s26, 1
    %s28 = scalar_select %p27, 0, %s26
    %s29 = sadd.s32 1, %s18
    %s30 = scalar_select %p27, %s29, %s18
    %p31 = scmp.ge.s32.totalorder %s30, 1
    %s32 = scalar_select %p31, 0, %s30
    %s33 = sadd.s32 1, %s17
    %s34 = scalar_select %p31, %s33, %s17
    %p35 = scmp.ge.s32.totalorder %s34, 3
    %s36 = scalar_select %p35, 0, %s34
    %s37 = ssub.s32 %s17, %s36
    %s38 = ssub.s32 %s19, %s28
    %s39 = sor.u32 %s37, %s38
    %p40 = scmp.eq.s32.totalorder %s39, 0
    %s42 = sadd.s32 %s41, 1
    %s43 = scalar_select %p40, %s41, %s42
    %p46 = pneg %p40
    %p47 = scmp.eq.s32.totalorder %s10, 2
    %p48 = por %p46, %p47
    %p49 = scmp.ne.s32.totalorder %s41, %s44
    %p50 = scmp.eq.s32.totalorder %s10, 0
    %p51 = por %p49, %p50
    %p52 = scmp.ne.s32.totalorder %s41, %s44
    %p53 = scmp.eq.s32.totalorder %s15, 2
    %p54 = por %p52, %p53
    %p55 = scmp.ne.s32.totalorder %s44, %s45
    %p56 = scmp.eq.s32.totalorder %s15, 0
    %p57 = por %p55, %p56
    %p58 = scmp.ne.s32.totalorder %s44, %s45
    %p59 = scmp.eq.s32.totalorder %s16, 2
    %p60 = por %p58, %p59
    %p62 = scmp.ne.s32.totalorder %s45, %s61
    %p63 = scmp.eq.s32.totalorder %s16, 0
    %p64 = por %p62, %p63
    %s65 = ssub.s32 %s19, %s28
    %s66 = ssub.s32 %s18, %s32
    %s67 = sor.u32 %s65, %s66
    %p68 = scmp.eq.s32.totalorder %s67, 0
    %s70 = sadd.s32 %s69, 1
    %s71 = scalar_select %p68, %s69, %s70
    %p74 = pneg %p68
    %p75 = scmp.eq.s32.totalorder %s10, 2
    %p76 = por %p74, %p75
    %p77 = scmp.ne.s32.totalorder %s69, %s72
    %p78 = scmp.eq.s32.totalorder %s10, 0
    %p79 = por %p77, %p78
    %p80 = scmp.ne.s32.totalorder %s69, %s72
    %p81 = scmp.eq.s32.totalorder %s15, 2
    %p82 = por %p80, %p81
    %p83 = scmp.ne.s32.totalorder %s72, %s73
    %p84 = scmp.eq.s32.totalorder %s15, 0
    %p85 = por %p83, %p84
    %p86 = scmp.ne.s32.totalorder %s72, %s73
    %p87 = scmp.eq.s32.totalorder %s16, 2
    %p88 = por %p86, %p87
    %p90 = scmp.ne.s32.totalorder %s73, %s89
    %p91 = scmp.eq.s32.totalorder %s16, 0
    %p92 = por %p90, %p91
    %s93 = ssub.s32 %s18, %s32
    %p94 = scmp.eq.s32.totalorder %s93, 0
    %s96 = sadd.s32 %s95, 1
    %s97 = scalar_select %p94, %s95, %s96
    %p100 = pneg %p94
    %p101 = scmp.eq.s32.totalorder %s10, 2
    %p102 = por %p100, %p101
    %p103 = scmp.ne.s32.totalorder %s95, %s98
    %p104 = scmp.eq.s32.totalorder %s10, 0
    %p105 = por %p103, %p104
    %p106 = scmp.ne.s32.totalorder %s95, %s98
    %p107 = scmp.eq.s32.totalorder %s15, 2
    %p108 = por %p106, %p107
    %p109 = scmp.ne.s32.totalorder %s98, %s99
    %p110 = scmp.eq.s32.totalorder %s15, 0
    %p111 = por %p109, %p110
    %p112 = scmp.ne.s32.totalorder %s98, %s99
    %p113 = scmp.eq.s32.totalorder %s16, 2
    %p114 = por %p112, %p113
    %p116 = scmp.ne.s32.totalorder %s99, %s115
    %p117 = scmp.eq.s32.totalorder %s16, 0
    %p118 = por %p116, %p117
    %s119 = ssub.s32 %s17, %s36
    %s120 = ssub.s32 %s18, %s32
    %s121 = sor.u32 %s119, %s120
    %p122 = scmp.eq.s32.totalorder %s121, 0
    %s124 = sadd.s32 %s123, 1
    %s125 = scalar_select %p122, %s123, %s124
    %p128 = pneg %p122
    %p129 = scmp.eq.s32.totalorder %s10, 2
    %p130 = por %p128, %p129
    %p131 = scmp.ne.s32.totalorder %s123, %s126
    %p132 = scmp.eq.s32.totalorder %s10, 0
    %p133 = por %p131, %p132
    %p134 = scmp.ne.s32.totalorder %s123, %s126
    %p135 = scmp.eq.s32.totalorder %s15, 2
    %p136 = por %p134, %p135
    %p137 = scmp.ne.s32.totalorder %s126, %s127
    %p138 = scmp.eq.s32.totalorder %s15, 0
    %p139 = por %p137, %p138
    %p140 = scmp.ne.s32.totalorder %s126, %s127
    %p141 = scmp.eq.s32.totalorder %s16, 2
    %p142 = por %p140, %p141
    %p144 = scmp.ne.s32.totalorder %s127, %s143
    %p145 = scmp.eq.s32.totalorder %s16, 0
    %p146 = por %p144, %p145
    %s147 = ssub.s32 %s17, %s36
    %s148 = ssub.s32 %s18, %s32
    %s149 = sor.u32 %s147, %s148
    %p150 = scmp.eq.s32.totalorder %s149, 0
    %s152 = sadd.s32 %s151, 1
    %s153 = scalar_select %p150, %s151, %s152
    %p156 = pneg %p150
    %p157 = scmp.eq.s32.totalorder %s10, 2
    %p158 = por %p156, %p157
    %p159 = scmp.ne.s32.totalorder %s151, %s154
    %p160 = scmp.eq.s32.totalorder %s10, 0
    %p161 = por %p159, %p160
    %p162 = scmp.ne.s32.totalorder %s151, %s154
    %p163 = scmp.eq.s32.totalorder %s15, 2
    %p164 = por %p162, %p163
    %p165 = scmp.ne.s32.totalorder %s154, %s155
    %p166 = scmp.eq.s32.totalorder %s15, 0
    %p167 = por %p165, %p166
    %p168 = scmp.ne.s32.totalorder %s154, %s155
    %p169 = scmp.eq.s32.totalorder %s16, 2
    %p170 = por %p168, %p169
    %p172 = scmp.ne.s32.totalorder %s155, %s171
    %p173 = scmp.eq.s32.totalorder %s16, 0
    %p174 = por %p172, %p173
    %p175 = scmp.le.s32.totalorder 1, %s10
    %p176 = scmp.lt.s32.totalorder %s10, 4
    %p177 = pnand %p175, %p176
    %p178 = pneg %p177
    // Predicated region
    $region9: #{_lambda_.35} parent=5 // pred_check
      _
    $region10: #{_lambda_.35} parent=5 // pred_check_branch
      %180 = sbr.rel (%p177) target = $region12
    $region11: #{_lambda_.35} parent=5 // pred_region
      %s181 = ssub.s32 %s10, 1
      // Predicated region
      $region13: #{_lambda_.35} parent=11 // pred_check
        %p182 = pneg %p85
      $region14: #{_lambda_.35} parent=11 // pred_check_branch
        %184 = sbr.rel (%p182) target = $region16
      $region15: #{_lambda_.35} parent=11 // pred_region
        %s185 = smul.u32 4, %s22
        %p186 = scmp.lt.s32.totalorder %s185, 3
        %s187 = scalar_select %p186, %s185, 3
        %p188 = scmp.lt.s32.totalorder %s21, 0
        %s189 = scalar_select %p188, %s21, 0
        %s190 = sadd.s32 %s189, %s187
        %s191 = smul.addr %s190, 4
        %s192 = scalar_lea.vmem %s1, %s191
        %s193 = smul.u32 4, %s22
      $region16: #{_lambda_.35} parent=11 // pred_fallthru
        _
      // Predicated region
      $region17: #{_lambda_.35} parent=11 // pred_check
        %p194 = pneg %p111
      $region18: #{_lambda_.35} parent=11 // pred_check_branch
        %196 = sbr.rel (%p194) target = $region20
      $region19: #{_lambda_.35} parent=11 // pred_region
        %p197 = scmp.lt.s32.totalorder %s21, 0
        %s198 = scalar_select %p197, %s21, 0
        %s199 = scalar_lea.vmem %s2, %s198
      $region20: #{_lambda_.35} parent=11 // pred_fallthru
        _
    $region12: #{_lambda_.35} parent=5 // pred_fallthru
      _
    %p200 = scmp.lt.s32.totalorder %s10, 3
    // Predicated region
    $region21: #{_lambda_.35} parent=5 // pred_check
      %p201 = pneg %p200
    $region22: #{_lambda_.35} parent=5 // pred_check_branch
      %203 = sbr.rel (%p201) target = $region24
    $region23: #{_lambda_.35} parent=5 // pred_region
      // Predicated region
      $region25: #{_lambda_.35} parent=23 // pred_check
        %p204 = pneg %p51
      $region26: #{_lambda_.35} parent=23 // pred_check_branch
        %206 = sbr.rel (%p204) target = $region28
      $region27: #{_lambda_.35} parent=23 // pred_region
        %p207 = scmp.lt.s32.totalorder %s17, 2
        %s208 = scalar_select %p207, %s17, 2
        %p209 = scmp.lt.s32.totalorder %s19, 0
        %s210 = scalar_select %p209, %s19, 0
        %s211 = sadd.s32 %s210, %s208
        %s212 = smul.addr %s211, 4
        %s213 = scalar_lea.vmem %s0, %s212
      $region28: #{_lambda_.35} parent=23 // pred_fallthru
        _
      // Predicated region
      $region29: #{_lambda_.35} parent=23 // pred_check
        %p214 = pneg %p133
      $region30: #{_lambda_.35} parent=23 // pred_check_branch
        %216 = sbr.rel (%p214) target = $region32
      $region31: #{_lambda_.35} parent=23 // pred_region
        %p217 = scmp.lt.s32.totalorder %s17, 2
        %s218 = scalar_select %p217, %s17, 2
        %p219 = scmp.lt.s32.totalorder %s18, 0
        %s220 = scalar_select %p219, %s18, 0
        %s221 = sadd.s32 %s220, %s218
        %s222 = smul.addr %s221, 8
        %s223 = scalar_lea.vmem %s3, %s222
      $region32: #{_lambda_.35} parent=23 // pred_fallthru
        _
    $region24: #{_lambda_.35} parent=5 // pred_fallthru
      _
    %p224 = scmp.le.s32.totalorder 1, %s10
    %p225 = scmp.lt.s32.totalorder %s10, 4
    %p226 = pnand %p224, %p225
    %p227 = pneg %p226
    // Predicated region
    $region33: #{_lambda_.35} parent=5 // pred_check
      _
    $region34: #{_lambda_.35} parent=5 // pred_check_branch
      %229 = sbr.rel (%p226) target = $region36
    $region35: #{_lambda_.35} parent=5 // pred_region
      %s230 = ssub.s32 %s10, 1
      %p231 = scmp.lt.s32.totalorder %s20, 2
      %s232 = scalar_select %p231, %s20, 2
      %p233 = scmp.lt.s32.totalorder %s22, 0
      %s234 = scalar_select %p233, %s22, 0
      %s235 = sadd.s32 %s234, %s232
      %s236 = smul.addr %s235, 4
      %s237 = scalar_lea.vmem %s0, %s236
      %p238 = pneg %p57
      %p239 = pneg %p54
      %s240 = smul.u32 4, %s22
      %p241 = scmp.lt.s32.totalorder %s240, 3
      %s242 = scalar_select %p241, %s240, 3
      %p243 = scmp.lt.s32.totalorder %s21, 0
      %s244 = scalar_select %p243, %s21, 0
      %s245 = sadd.s32 %s244, %s242
      %s246 = smul.addr %s245, 4
      %s247 = scalar_lea.vmem %s1, %s246
      %p248 = pneg %p85
      %p249 = pneg %p82
      %p250 = scmp.lt.s32.totalorder %s21, 0
      %s251 = scalar_select %p250, %s21, 0
      %s252 = scalar_lea.vmem %s2, %s251
      %p253 = pneg %p111
      %p254 = pneg %p108
      %p255 = scmp.lt.s32.totalorder %s20, 2
      %s256 = scalar_select %p255, %s20, 2
      %p257 = scmp.lt.s32.totalorder %s21, 0
      %s258 = scalar_select %p257, %s21, 0
      %s259 = sadd.s32 %s258, %s256
      %s260 = smul.addr %s259, 8
      %s261 = scalar_lea.vmem %s3, %s260
      %p262 = pneg %p139
      %p263 = pneg %p136
      %p264 = pneg %p167
      %p265 = pneg %p164
      %p266 = scmp.lt.s32.totalorder %s20, 2
      %s267 = scalar_select %p266, %s20, 2
      %p268 = scmp.lt.s32.totalorder %s21, 0
      %s269 = scalar_select %p268, %s21, 0
      %s270 = sadd.s32 %s269, %s267
      %s271 = smul.addr %s270, 8
      %s272 = scalar_lea.vmem %s4, %s271
      %p273 = scmp.lt.s32.totalorder %s20, 2
      %s274 = scalar_select %p273, %s20, 2
      %p275 = scmp.lt.s32.totalorder %s22, 0
      %s276 = scalar_select %p275, %s22, 0
      %s277 = sadd.s32 %s276, %s274
      %s278 = smul.addr %s277, 4
      %s279 = scalar_lea.vmem %s0, %s278
      %s280 = smul.u32 4, %s22
      %p281 = scmp.lt.s32.totalorder %s280, 3
      %s282 = scalar_select %p281, %s280, 3
      %p283 = scmp.lt.s32.totalorder %s21, 0
      %s284 = scalar_select %p283, %s21, 0
      %s285 = sadd.s32 %s284, %s282
      %s286 = smul.addr %s285, 4
      %s287 = scalar_lea.vmem %s1, %s286
      %s288 = smul.u32 4, %s22
      %p289 = scmp.lt.s32.totalorder %s21, 0
      %s290 = scalar_select %p289, %s21, 0
      %s291 = scalar_lea.vmem %s2, %s290
      %p292 = scmp.lt.s32.totalorder %s20, 2
      %s293 = scalar_select %p292, %s20, 2
      %p294 = scmp.lt.s32.totalorder %s21, 0
      %s295 = scalar_select %p294, %s21, 0
      %s296 = sadd.s32 %s295, %s293
      %s297 = smul.addr %s296, 8
      %s298 = scalar_lea.vmem %s3, %s297
      %p299 = scmp.lt.s32.totalorder %s20, 2
      %s300 = scalar_select %p299, %s20, 2
      %p301 = scmp.lt.s32.totalorder %s21, 0
      %s302 = scalar_select %p301, %s21, 0
      %s303 = sadd.s32 %s302, %s300
      %s304 = smul.addr %s303, 8
      %s305 = scalar_lea.vmem %s4, %s304
      %v307 = vld [vmem:[%s279] sm:$0xf]
      %p308 = scmp.eq.s32.totalorder %s22, 0
      // Predicated region
      $region37: #{_lambda_.35} parent=35 // pred_check
        %p309 = pneg %p308
      $region38: #{_lambda_.35} parent=35 // pred_check_branch
        %311 = sbr.rel (%p309) target = $region40
      $region39: #{_lambda_.35} parent=35 // pred_region
        %vm312 = vcmask 261120
        %313 = vst.msk [vmem:[#allocation2] sm:$0xff] %vm312, 0.0
      $region40: #{_lambda_.35} parent=35 // pred_fallthru
        _
      %v314 = vld [vmem:[#allocation2] sm:$0xff]
      %v315 = vld [vmem:[%s287] sm:$0xf]
      %v316 = vld [vmem:[%s287 + $0x4] sm:$0xf]
      %v317 = vld [vmem:[%s287 + $0x8] sm:$0xf]
      %v318 = vld [vmem:[%s287 + $0xc] sm:$0xf]
      %v323 = vunpack.c.l.b16 %v315
      %v324 = vunpack.c.l.b16 %v316
      %v325 = vunpack.c.l.b16 %v317
      %v326 = vunpack.c.l.b16 %v318
      %v327 = vpack.c.b16 %v324, %v323
      %v328 = vpack.c.b16 %v326, %v325
      %vm331 = vcmask 261120
      %v333 = vsel %vm331, %v307, 0
      %335 = vmatprep.subr.bf16.mxu0 0
      %336 = vmatpush1.bf16.msra.mxu0 %v327
      %337 = vmatprep.subr.bf16.mxu0 0
      %338 = vmatpush1.bf16.msra.mxu0 %v328
      %339 = vmatprep.subr.bf16.mxu0 0
      %340 = vmatpush1.bf16.msra.mxu0 0
      %341 = vmatprep.subr.bf16.mxu0 0
      %342 = vmatpush1.bf16.msra.mxu0 0
      %343 = vmatprep.subr.bf16.mxu0 0
      %344 = vmatpush1.bf16.msra.mxu0 0
      %345 = vmatprep.subr.bf16.mxu0 0
      %346 = vmatpush1.bf16.msra.mxu0 0
      %347 = vmatprep.subr.bf16.mxu0 0
      %348 = vmatpush1.bf16.msra.mxu0 0
      %349 = vmatprep.subr.bf16.mxu0 0
      %350 = vmatpush1.bf16.msra.mxu0 0
      %351 = vmatprep.subr.bf16.mxu0 0
      %352 = vmatpush1.bf16.msra.mxu0 0
      %353 = vmatprep.subr.bf16.mxu0 0
      %354 = vmatpush1.bf16.msra.mxu0 0
      %355 = vmatprep.subr.bf16.mxu0 0
      %356 = vmatpush1.bf16.msra.mxu0 0
      %357 = vmatprep.subr.bf16.mxu0 0
      %358 = vmatpush1.bf16.msra.mxu0 0
      %359 = vmatprep.subr.bf16.mxu0 0
      %360 = vmatpush1.bf16.msra.mxu0 0
      %361 = vmatprep.subr.bf16.mxu0 0
      %362 = vmatpush1.bf16.msra.mxu0 0
      %363 = vmatprep.subr.bf16.mxu0 0
      %364 = vmatpush1.bf16.msra.mxu0 0
      %365 = vmatprep.subr.bf16.mxu0 0
      %366 = vmatpush1.bf16.msra.mxu0 0
      %367 = vmatprep.mubr.bf16.mxu0 0
      %368 = vmatmul.mubr.bf16.gmra.mrb[0].mxu0 %v333
      %v369 = vpop.f32.mrb[0].mxu0
      %v370 = vadd.f32 0.0, %v369
      %v371 = vpop.f32.mrb[0].mxu0
      %v372 = vpop.f32.mrb[0].mxu0
      %v373 = vpop.f32.mrb[0].mxu0
      %374 = vdwg.mxu0
      %v375 = vadd.f32 %v314, %v370
      %376 = vst.msk [vmem:[#allocation2] sm:$0xff] %vm331, %v375
      // Predicated region
      $region41: #{_lambda_.35} parent=35 // pred_check
        %p377 = pneg %p308
      $region42: #{_lambda_.35} parent=35 // pred_check_branch
        %379 = sbr.rel (%p377) target = $region44
      $region43: #{_lambda_.35} parent=35 // pred_region
        %v380 = vld [vmem:[#allocation2] sm:$0xff]
        %v381 = vld [vmem:[%s291] sm:$0x1]
        %v383 = vlaneseq
        %v384 = vshrl.u32 %v383, 7
        %v385 = vsub.s32 0, %v384
        %v386 = vrot.slane %v381, %v385
        %v388 = vadd.f32 %v380, %v386
        %v389 = vld [vmem:[%s298] sm:$0xff]
        %v390 = vadd.f32 %v388, %v389
        %391 = vst.msk [vmem:[%s305] sm:$0xff] %vm331, %v390
      $region44: #{_lambda_.35} parent=35 // pred_fallthru
        _
      %p392 = scmp.lt.s32.totalorder %s20, 2
      %s393 = scalar_select %p392, %s20, 2
      %p394 = scmp.lt.s32.totalorder %s21, 0
      %s395 = scalar_select %p394, %s21, 0
      %s396 = sadd.s32 %s395, %s393
      %s397 = smul.addr %s396, 8
      %s398 = scalar_lea.vmem %s4, %s397
      // Predicated region
      $region45: #{_lambda_.35} parent=35 // pred_check
        %p399 = pneg %p164
      $region46: #{_lambda_.35} parent=35 // pred_check_branch
        %401 = sbr.rel (%p399) target = $region48
      $region47: #{_lambda_.35} parent=35 // pred_region
        _
      $region48: #{_lambda_.35} parent=35 // pred_fallthru
        _
    $region36: #{_lambda_.35} parent=5 // pred_fallthru
      _
    %p402 = scmp.le.s32.totalorder 2, %s10
    // Predicated region
    $region49: #{_lambda_.35} parent=5 // pred_check
      %p403 = pneg %p402
    $region50: #{_lambda_.35} parent=5 // pred_check_branch
      %405 = sbr.rel (%p403) target = $region52
    $region51: #{_lambda_.35} parent=5 // pred_region
      %s406 = ssub.s32 %s10, 2
      // Predicated region
      $region53: #{_lambda_.35} parent=51 // pred_check
        %p407 = pneg %p170
      $region54: #{_lambda_.35} parent=51 // pred_check_branch
        %409 = sbr.rel (%p407) target = $region56
      $region55: #{_lambda_.35} parent=51 // pred_region
        %p410 = scmp.lt.s32.totalorder %s23, 2
        %s411 = scalar_select %p410, %s23, 2
        %p412 = scmp.lt.s32.totalorder %s24, 0
        %s413 = scalar_select %p412, %s24, 0
        %s414 = sadd.s32 %s413, %s411
        %s415 = smul.addr %s414, 8
        %s416 = scalar_lea.vmem %s4, %s415
      $region56: #{_lambda_.35} parent=51 // pred_fallthru
        _
    $region52: #{_lambda_.35} parent=5 // pred_fallthru
      _
  $region6: #{_lambda_.35} parent=0 // loop_footer
    %s14 = sadd.s32 1, %s10
  $region7: #{_lambda_.35} parent=0 // loop_footer_branch
    %9 = sbr.rel target = $region3
  $region8: #{_lambda_.35} parent=0 // loop_exit
    _

// kernel: _lambda_.33
$region0: #{_lambda_.33}
  #allocation0 [shape = 'u32[]', space=smem, size = 0x4, offset = 0x4, fixed_abs, tag = 'smem constant byte address 0x4 - core index']
  #allocation1 [shape = 'u32[144,128]{1,0:T(1,128)}', space=vmem, size = 0x12000, scoped, tag = 'internal scratch']
  %s0 = inlined_call_operand.vmem [shape: f32[24,32], index: 0, kind: input, shape index: {}]
  %s1 = inlined_call_operand.vmem [shape: f32[1,32], index: 1, kind: input, shape index: {}]
  %s2 = inlined_call_operand.vmem [shape: f32[1,32], index: 2, kind: input, shape index: {}, may-alias: {2,6,7,8}]
  %s3 = inlined_call_operand.vmem [shape: bf16[32,32], index: 3, kind: input, shape index: {}]
  %s4 = inlined_call_operand.vmem [shape: bf16[32,32], index: 4, kind: input, shape index: {}]
  %s5 = inlined_call_operand.vmem [shape: bf16[32,32], index: 5, kind: input, shape index: {}]
  %s6 = inlined_call_operand.vmem [shape: f32[1,32], index: 6, kind: input, shape index: {}, may-alias: {2,6,7,8}]
  %s7 = inlined_call_operand.vmem [shape: f32[1,32], index: 7, kind: input, shape index: {}, may-alias: {2,6,7,8}]
  %s8 = inlined_call_operand.vmem [shape: f32[1,32], index: 8, kind: input, shape index: {}, may-alias: {2,6,7,8}]
  %s9 = inlined_call_operand.vmem [shape: bf16[24,32], index: 9, kind: output, shape index: {0}]
  %s10 = inlined_call_operand.vmem [shape: bf16[24,32], index: 10, kind: output, shape index: {1}]
  %s11 = inlined_call_operand.vmem [shape: bf16[24,32], index: 11, kind: output, shape index: {2}]
  %12 = xla_tuple %s9, %s10, %s11
  %s13 = sld [smem:[#allocation0]]
  $region85: #{_lambda_.33} parent=0
    _
  %s15 = ssub.s32 1, %s13
  %s16 = scalar_select 0, %s15, %s13
  loop: start=0, step=1, limit=5
  $region2: #{_lambda_.33} parent=0 // loop_pre_header
    _
  $region3: #{_lambda_.33} parent=0 // loop_header
    %s18 = sphi 0, %s22
    %p19 = scmp.ge.s32.totalorder %s18, 5
    %s25 = sphi 0, %s37
    %s26 = sphi 0, %s33
    %s27 = sphi 0, %s25
    %s28 = sphi 0, %s26
    %s29 = sphi 0, %s27
    %s30 = sphi 0, %s28
    %s40 = sphi 0, %s42
    %s43 = sphi 0, %s40
    %s44 = sphi 0, %s43
    %s60 = sphi 0, %s44
    %s64 = sphi 0, %s64
    %s66 = sphi 0, %s64
    %s67 = sphi 0, %s66
    %s81 = sphi 0, %s67
    %s85 = sphi 0, %s85
    %s87 = sphi 0, %s85
    %s88 = sphi 0, %s87
    %s102 = sphi 0, %s88
    %s108 = sphi 0, %s110
    %s111 = sphi 0, %s108
    %s112 = sphi 0, %s111
    %s128 = sphi 0, %s112
    %s134 = sphi 0, %s136
    %s137 = sphi 0, %s134
    %s138 = sphi 0, %s137
    %s154 = sphi 0, %s138
    %s160 = sphi 0, %s162
    %s163 = sphi 0, %s160
    %s164 = sphi 0, %s163
    %s180 = sphi 0, %s164
    %s186 = sphi 0, %s188
    %s189 = sphi 0, %s186
    %s190 = sphi 0, %s189
    %s206 = sphi 0, %s190
    %s212 = sphi 0, %s214
    %s215 = sphi 0, %s212
    %s216 = sphi 0, %s215
    %s232 = sphi 0, %s216
    %s238 = sphi 0, %s240
    %s241 = sphi 0, %s238
    %s242 = sphi 0, %s241
    %s258 = sphi 0, %s242
    %s266 = sphi 0, %s268
    %s269 = sphi 0, %s266
    %s270 = sphi 0, %s269
    %s286 = sphi 0, %s270
    %s294 = sphi 0, %s296
    %s297 = sphi 0, %s294
    %s298 = sphi 0, %s297
    %s314 = sphi 0, %s298
    %s322 = sphi 0, %s324
    %s325 = sphi 0, %s322
    %s326 = sphi 0, %s325
    %s342 = sphi 0, %s326
  $region4: #{_lambda_.33} parent=0 // loop_header_branch
    %21 = sbr.rel (%p19) target = $region8
  $region5: #{_lambda_.33} parent=0 // loop_body
    %s23 = ssub.s32 %s18, 1
    %s24 = ssub.s32 %s18, 2
    %s31 = sadd.s32 1, %s26
    %p32 = scmp.ge.s32.totalorder %s31, 1
    %s33 = scalar_select %p32, 0, %s31
    %s34 = sadd.s32 1, %s25
    %s35 = scalar_select %p32, %s34, %s25
    %p36 = scmp.ge.s32.totalorder %s35, 3
    %s37 = scalar_select %p36, 0, %s35
    %s38 = ssub.s32 %s25, %s37
    %p39 = scmp.eq.s32.totalorder %s38, 0
    %s41 = sadd.s32 %s40, 1
    %s42 = scalar_select %p39, %s40, %s41
    %p45 = pneg %p39
    %p46 = scmp.eq.s32.totalorder %s18, 2
    %p47 = por %p45, %p46
    %p48 = scmp.ne.s32.totalorder %s40, %s43
    %p49 = scmp.eq.s32.totalorder %s18, 0
    %p50 = por %p48, %p49
    %p51 = scmp.ne.s32.totalorder %s40, %s43
    %p52 = scmp.eq.s32.totalorder %s23, 2
    %p53 = por %p51, %p52
    %p54 = scmp.ne.s32.totalorder %s43, %s44
    %p55 = scmp.eq.s32.totalorder %s23, 0
    %p56 = por %p54, %p55
    %p57 = scmp.ne.s32.totalorder %s43, %s44
    %p58 = scmp.eq.s32.totalorder %s24, 2
    %p59 = por %p57, %p58
    %p61 = scmp.ne.s32.totalorder %s44, %s60
    %p62 = scmp.eq.s32.totalorder %s24, 0
    %p63 = por %p61, %p62
    %s65 = sadd.s32 %s64, 1
    %p68 = scmp.eq.s32.totalorder %s18, 2
    %p69 = scmp.ne.s32.totalorder %s64, %s66
    %p70 = scmp.eq.s32.totalorder %s18, 0
    %p71 = por %p69, %p70
    %p72 = scmp.ne.s32.totalorder %s64, %s66
    %p73 = scmp.eq.s32.totalorder %s23, 2
    %p74 = por %p72, %p73
    %p75 = scmp.ne.s32.totalorder %s66, %s67
    %p76 = scmp.eq.s32.totalorder %s23, 0
    %p77 = por %p75, %p76
    %p78 = scmp.ne.s32.totalorder %s66, %s67
    %p79 = scmp.eq.s32.totalorder %s24, 2
    %p80 = por %p78, %p79
    %p82 = scmp.ne.s32.totalorder %s67, %s81
    %p83 = scmp.eq.s32.totalorder %s24, 0
    %p84 = por %p82, %p83
    %s86 = sadd.s32 %s85, 1
    %p89 = scmp.eq.s32.totalorder %s18, 2
    %p90 = scmp.ne.s32.totalorder %s85, %s87
    %p91 = scmp.eq.s32.totalorder %s18, 0
    %p92 = por %p90, %p91
    %p93 = scmp.ne.s32.totalorder %s85, %s87
    %p94 = scmp.eq.s32.totalorder %s23, 2
    %p95 = por %p93, %p94
    %p96 = scmp.ne.s32.totalorder %s87, %s88
    %p97 = scmp.eq.s32.totalorder %s23, 0
    %p98 = por %p96, %p97
    %p99 = scmp.ne.s32.totalorder %s87, %s88
    %p100 = scmp.eq.s32.totalorder %s24, 2
    %p101 = por %p99, %p100
    %p103 = scmp.ne.s32.totalorder %s88, %s102
    %p104 = scmp.eq.s32.totalorder %s24, 0
    %p105 = por %p103, %p104
    %s106 = ssub.s32 %s26, %s33
    %p107 = scmp.eq.s32.totalorder %s106, 0
    %s109 = sadd.s32 %s108, 1
    %s110 = scalar_select %p107, %s108, %s109
    %p113 = pneg %p107
    %p114 = scmp.eq.s32.totalorder %s18, 2
    %p115 = por %p113, %p114
    %p116 = scmp.ne.s32.totalorder %s108, %s111
    %p117 = scmp.eq.s32.totalorder %s18, 0
    %p118 = por %p116, %p117
    %p119 = scmp.ne.s32.totalorder %s108, %s111
    %p120 = scmp.eq.s32.totalorder %s23, 2
    %p121 = por %p119, %p120
    %p122 = scmp.ne.s32.totalorder %s111, %s112
    %p123 = scmp.eq.s32.totalorder %s23, 0
    %p124 = por %p122, %p123
    %p125 = scmp.ne.s32.totalorder %s111, %s112
    %p126 = scmp.eq.s32.totalorder %s24, 2
    %p127 = por %p125, %p126
    %p129 = scmp.ne.s32.totalorder %s112, %s128
    %p130 = scmp.eq.s32.totalorder %s24, 0
    %p131 = por %p129, %p130
    %s132 = ssub.s32 %s26, %s33
    %p133 = scmp.eq.s32.totalorder %s132, 0
    %s135 = sadd.s32 %s134, 1
    %s136 = scalar_select %p133, %s134, %s135
    %p139 = pneg %p133
    %p140 = scmp.eq.s32.totalorder %s18, 2
    %p141 = por %p139, %p140
    %p142 = scmp.ne.s32.totalorder %s134, %s137
    %p143 = scmp.eq.s32.totalorder %s18, 0
    %p144 = por %p142, %p143
    %p145 = scmp.ne.s32.totalorder %s134, %s137
    %p146 = scmp.eq.s32.totalorder %s23, 2
    %p147 = por %p145, %p146
    %p148 = scmp.ne.s32.totalorder %s137, %s138
    %p149 = scmp.eq.s32.totalorder %s23, 0
    %p150 = por %p148, %p149
    %p151 = scmp.ne.s32.totalorder %s137, %s138
    %p152 = scmp.eq.s32.totalorder %s24, 2
    %p153 = por %p151, %p152
    %p155 = scmp.ne.s32.totalorder %s138, %s154
    %p156 = scmp.eq.s32.totalorder %s24, 0
    %p157 = por %p155, %p156
    %s158 = ssub.s32 %s26, %s33
    %p159 = scmp.eq.s32.totalorder %s158, 0
    %s161 = sadd.s32 %s160, 1
    %s162 = scalar_select %p159, %s160, %s161
    %p165 = pneg %p159
    %p166 = scmp.eq.s32.totalorder %s18, 2
    %p167 = por %p165, %p166
    %p168 = scmp.ne.s32.totalorder %s160, %s163
    %p169 = scmp.eq.s32.totalorder %s18, 0
    %p170 = por %p168, %p169
    %p171 = scmp.ne.s32.totalorder %s160, %s163
    %p172 = scmp.eq.s32.totalorder %s23, 2
    %p173 = por %p171, %p172
    %p174 = scmp.ne.s32.totalorder %s163, %s164
    %p175 = scmp.eq.s32.totalorder %s23, 0
    %p176 = por %p174, %p175
    %p177 = scmp.ne.s32.totalorder %s163, %s164
    %p178 = scmp.eq.s32.totalorder %s24, 2
    %p179 = por %p177, %p178
    %p181 = scmp.ne.s32.totalorder %s164, %s180
    %p182 = scmp.eq.s32.totalorder %s24, 0
    %p183 = por %p181, %p182
    %s184 = ssub.s32 %s26, %s33
    %p185 = scmp.eq.s32.totalorder %s184, 0
    %s187 = sadd.s32 %s186, 1
    %s188 = scalar_select %p185, %s186, %s187
    %p191 = pneg %p185
    %p192 = scmp.eq.s32.totalorder %s18, 2
    %p193 = por %p191, %p192
    %p194 = scmp.ne.s32.totalorder %s186, %s189
    %p195 = scmp.eq.s32.totalorder %s18, 0
    %p196 = por %p194, %p195
    %p197 = scmp.ne.s32.totalorder %s186, %s189
    %p198 = scmp.eq.s32.totalorder %s23, 2
    %p199 = por %p197, %p198
    %p200 = scmp.ne.s32.totalorder %s189, %s190
    %p201 = scmp.eq.s32.totalorder %s23, 0
    %p202 = por %p200, %p201
    %p203 = scmp.ne.s32.totalorder %s189, %s190
    %p204 = scmp.eq.s32.totalorder %s24, 2
    %p205 = por %p203, %p204
    %p207 = scmp.ne.s32.totalorder %s190, %s206
    %p208 = scmp.eq.s32.totalorder %s24, 0
    %p209 = por %p207, %p208
    %s210 = ssub.s32 %s26, %s33
    %p211 = scmp.eq.s32.totalorder %s210, 0
    %s213 = sadd.s32 %s212, 1
    %s214 = scalar_select %p211, %s212, %s213
    %p217 = pneg %p211
    %p218 = scmp.eq.s32.totalorder %s18, 2
    %p219 = por %p217, %p218
    %p220 = scmp.ne.s32.totalorder %s212, %s215
    %p221 = scmp.eq.s32.totalorder %s18, 0
    %p222 = por %p220, %p221
    %p223 = scmp.ne.s32.totalorder %s212, %s215
    %p224 = scmp.eq.s32.totalorder %s23, 2
    %p225 = por %p223, %p224
    %p226 = scmp.ne.s32.totalorder %s215, %s216
    %p227 = scmp.eq.s32.totalorder %s23, 0
    %p228 = por %p226, %p227
    %p229 = scmp.ne.s32.totalorder %s215, %s216
    %p230 = scmp.eq.s32.totalorder %s24, 2
    %p231 = por %p229, %p230
    %p233 = scmp.ne.s32.totalorder %s216, %s232
    %p234 = scmp.eq.s32.totalorder %s24, 0
    %p235 = por %p233, %p234
    %s236 = ssub.s32 %s26, %s33
    %p237 = scmp.eq.s32.totalorder %s236, 0
    %s239 = sadd.s32 %s238, 1
    %s240 = scalar_select %p237, %s238, %s239
    %p243 = pneg %p237
    %p244 = scmp.eq.s32.totalorder %s18, 2
    %p245 = por %p243, %p244
    %p246 = scmp.ne.s32.totalorder %s238, %s241
    %p247 = scmp.eq.s32.totalorder %s18, 0
    %p248 = por %p246, %p247
    %p249 = scmp.ne.s32.totalorder %s238, %s241
    %p250 = scmp.eq.s32.totalorder %s23, 2
    %p251 = por %p249, %p250
    %p252 = scmp.ne.s32.totalorder %s241, %s242
    %p253 = scmp.eq.s32.totalorder %s23, 0
    %p254 = por %p252, %p253
    %p255 = scmp.ne.s32.totalorder %s241, %s242
    %p256 = scmp.eq.s32.totalorder %s24, 2
    %p257 = por %p255, %p256
    %p259 = scmp.ne.s32.totalorder %s242, %s258
    %p260 = scmp.eq.s32.totalorder %s24, 0
    %p261 = por %p259, %p260
    %s262 = ssub.s32 %s25, %s37
    %s263 = ssub.s32 %s26, %s33
    %s264 = sor.u32 %s262, %s263
    %p265 = scmp.eq.s32.totalorder %s264, 0
    %s267 = sadd.s32 %s266, 1
    %s268 = scalar_select %p265, %s266, %s267
    %p271 = pneg %p265
    %p272 = scmp.eq.s32.totalorder %s18, 2
    %p273 = por %p271, %p272
    %p274 = scmp.ne.s32.totalorder %s266, %s269
    %p275 = scmp.eq.s32.totalorder %s18, 0
    %p276 = por %p274, %p275
    %p277 = scmp.ne.s32.totalorder %s266, %s269
    %p278 = scmp.eq.s32.totalorder %s23, 2
    %p279 = por %p277, %p278
    %p280 = scmp.ne.s32.totalorder %s269, %s270
    %p281 = scmp.eq.s32.totalorder %s23, 0
    %p282 = por %p280, %p281
    %p283 = scmp.ne.s32.totalorder %s269, %s270
    %p284 = scmp.eq.s32.totalorder %s24, 2
    %p285 = por %p283, %p284
    %p287 = scmp.ne.s32.totalorder %s270, %s286
    %p288 = scmp.eq.s32.totalorder %s24, 0
    %p289 = por %p287, %p288
    %s290 = ssub.s32 %s25, %s37
    %s291 = ssub.s32 %s26, %s33
    %s292 = sor.u32 %s290, %s291
    %p293 = scmp.eq.s32.totalorder %s292, 0
    %s295 = sadd.s32 %s294, 1
    %s296 = scalar_select %p293, %s294, %s295
    %p299 = pneg %p293
    %p300 = scmp.eq.s32.totalorder %s18, 2
    %p301 = por %p299, %p300
    %p302 = scmp.ne.s32.totalorder %s294, %s297
    %p303 = scmp.eq.s32.totalorder %s18, 0
    %p304 = por %p302, %p303
    %p305 = scmp.ne.s32.totalorder %s294, %s297
    %p306 = scmp.eq.s32.totalorder %s23, 2
    %p307 = por %p305, %p306
    %p308 = scmp.ne.s32.totalorder %s297, %s298
    %p309 = scmp.eq.s32.totalorder %s23, 0
    %p310 = por %p308, %p309
    %p311 = scmp.ne.s32.totalorder %s297, %s298
    %p312 = scmp.eq.s32.totalorder %s24, 2
    %p313 = por %p311, %p312
    %p315 = scmp.ne.s32.totalorder %s298, %s314
    %p316 = scmp.eq.s32.totalorder %s24, 0
    %p317 = por %p315, %p316
    %s318 = ssub.s32 %s25, %s37
    %s319 = ssub.s32 %s26, %s33
    %s320 = sor.u32 %s318, %s319
    %p321 = scmp.eq.s32.totalorder %s320, 0
    %s323 = sadd.s32 %s322, 1
    %s324 = scalar_select %p321, %s322, %s323
    %p327 = pneg %p321
    %p328 = scmp.eq.s32.totalorder %s18, 2
    %p329 = por %p327, %p328
    %p330 = scmp.ne.s32.totalorder %s322, %s325
    %p331 = scmp.eq.s32.totalorder %s18, 0
    %p332 = por %p330, %p331
    %p333 = scmp.ne.s32.totalorder %s322, %s325
    %p334 = scmp.eq.s32.totalorder %s23, 2
    %p335 = por %p333, %p334
    %p336 = scmp.ne.s32.totalorder %s325, %s326
    %p337 = scmp.eq.s32.totalorder %s23, 0
    %p338 = por %p336, %p337
    %p339 = scmp.ne.s32.totalorder %s325, %s326
    %p340 = scmp.eq.s32.totalorder %s24, 2
    %p341 = por %p339, %p340
    %p343 = scmp.ne.s32.totalorder %s326, %s342
    %p344 = scmp.eq.s32.totalorder %s24, 0
    %p345 = por %p343, %p344
    %p346 = scmp.le.s32.totalorder 1, %s18
    %p347 = scmp.lt.s32.totalorder %s18, 4
    %p348 = pnand %p346, %p347
    %p349 = pneg %p348
    // Predicated region
    $region9: #{_lambda_.33} parent=5 // pred_check
      _
    $region10: #{_lambda_.33} parent=5 // pred_check_branch
      %351 = sbr.rel (%p348) target = $region12
    $region11: #{_lambda_.33} parent=5 // pred_region
      %s352 = ssub.s32 %s18, 1
      // Predicated region
      $region13: #{_lambda_.33} parent=11 // pred_check
        %p353 = pneg %p77
      $region14: #{_lambda_.33} parent=11 // pred_check_branch
        %355 = sbr.rel (%p353) target = $region16
      $region15: #{_lambda_.33} parent=11 // pred_region
        _
      $region16: #{_lambda_.33} parent=11 // pred_fallthru
        _
      // Predicated region
      $region17: #{_lambda_.33} parent=11 // pred_check
        %p356 = pneg %p98
      $region18: #{_lambda_.33} parent=11 // pred_check_branch
        %358 = sbr.rel (%p356) target = $region20
      $region19: #{_lambda_.33} parent=11 // pred_region
        _
      $region20: #{_lambda_.33} parent=11 // pred_fallthru
        _
      // Predicated region
      $region21: #{_lambda_.33} parent=11 // pred_check
        %p359 = pneg %p124
      $region22: #{_lambda_.33} parent=11 // pred_check_branch
        %361 = sbr.rel (%p359) target = $region24
      $region23: #{_lambda_.33} parent=11 // pred_region
        %p362 = scmp.lt.s32.totalorder %s28, 0
        %s363 = scalar_select %p362, %s28, 0
        %s364 = smul.addr %s363, 4
        %s365 = scalar_lea.vmem %s3, %s364
      $region24: #{_lambda_.33} parent=11 // pred_fallthru
        _
      // Predicated region
      $region25: #{_lambda_.33} parent=11 // pred_check
        %p366 = pneg %p150
      $region26: #{_lambda_.33} parent=11 // pred_check_branch
        %368 = sbr.rel (%p366) target = $region28
      $region27: #{_lambda_.33} parent=11 // pred_region
        %p369 = scmp.lt.s32.totalorder %s28, 0
        %s370 = scalar_select %p369, %s28, 0
        %s371 = smul.addr %s370, 4
        %s372 = scalar_lea.vmem %s4, %s371
      $region28: #{_lambda_.33} parent=11 // pred_fallthru
        _
      // Predicated region
      $region29: #{_lambda_.33} parent=11 // pred_check
        %p373 = pneg %p176
      $region30: #{_lambda_.33} parent=11 // pred_check_branch
        %375 = sbr.rel (%p373) target = $region32
      $region31: #{_lambda_.33} parent=11 // pred_region
        %p376 = scmp.lt.s32.totalorder %s28, 0
        %s377 = scalar_select %p376, %s28, 0
        %s378 = smul.addr %s377, 4
        %s379 = scalar_lea.vmem %s5, %s378
      $region32: #{_lambda_.33} parent=11 // pred_fallthru
        _
      // Predicated region
      $region33: #{_lambda_.33} parent=11 // pred_check
        %p380 = pneg %p202
      $region34: #{_lambda_.33} parent=11 // pred_check_branch
        %382 = sbr.rel (%p380) target = $region36
      $region35: #{_lambda_.33} parent=11 // pred_region
        %p383 = scmp.lt.s32.totalorder %s28, 0
        %s384 = scalar_select %p383, %s28, 0
        %s385 = scalar_lea.vmem %s6, %s384
      $region36: #{_lambda_.33} parent=11 // pred_fallthru
        _
      // Predicated region
      $region37: #{_lambda_.33} parent=11 // pred_check
        %p386 = pneg %p228
      $region38: #{_lambda_.33} parent=11 // pred_check_branch
        %388 = sbr.rel (%p386) target = $region40
      $region39: #{_lambda_.33} parent=11 // pred_region
        %p389 = scmp.lt.s32.totalorder %s28, 0
        %s390 = scalar_select %p389, %s28, 0
        %s391 = scalar_lea.vmem %s7, %s390
      $region40: #{_lambda_.33} parent=11 // pred_fallthru
        _
      // Predicated region
      $region41: #{_lambda_.33} parent=11 // pred_check
        %p392 = pneg %p254
      $region42: #{_lambda_.33} parent=11 // pred_check_branch
        %394 = sbr.rel (%p392) target = $region44
      $region43: #{_lambda_.33} parent=11 // pred_region
        %p395 = scmp.lt.s32.totalorder %s28, 0
        %s396 = scalar_select %p395, %s28, 0
        %s397 = scalar_lea.vmem %s8, %s396
      $region44: #{_lambda_.33} parent=11 // pred_fallthru
        _
    $region12: #{_lambda_.33} parent=5 // pred_fallthru
      _
    %p398 = scmp.lt.s32.totalorder %s18, 3
    // Predicated region
    $region45: #{_lambda_.33} parent=5 // pred_check
      %p399 = pneg %p398
    $region46: #{_lambda_.33} parent=5 // pred_check_branch
      %401 = sbr.rel (%p399) target = $region48
    $region47: #{_lambda_.33} parent=5 // pred_region
      // Predicated region
      $region49: #{_lambda_.33} parent=47 // pred_check
        %p402 = pneg %p50
      $region50: #{_lambda_.33} parent=47 // pred_check_branch
        %404 = sbr.rel (%p402) target = $region52
      $region51: #{_lambda_.33} parent=47 // pred_region
        %p405 = scmp.lt.s32.totalorder %s25, 2
        %s406 = scalar_select %p405, %s25, 2
        %s407 = smul.addr %s406, 8
        %s408 = scalar_lea.vmem %s0, %s407
      $region52: #{_lambda_.33} parent=47 // pred_fallthru
        _
    $region48: #{_lambda_.33} parent=5 // pred_fallthru
      _
    %p409 = scmp.le.s32.totalorder 1, %s18
    %p410 = scmp.lt.s32.totalorder %s18, 4
    %p411 = pnand %p409, %p410
    %p412 = pneg %p411
    // Predicated region
    $region53: #{_lambda_.33} parent=5 // pred_check
      _
    $region54: #{_lambda_.33} parent=5 // pred_check_branch
      %414 = sbr.rel (%p411) target = $region56
    $region55: #{_lambda_.33} parent=5 // pred_region
      %s415 = ssub.s32 %s18, 1
      %p416 = scmp.lt.s32.totalorder %s27, 2
      %s417 = scalar_select %p416, %s27, 2
      %s418 = smul.addr %s417, 8
      %s419 = scalar_lea.vmem %s0, %s418
      %p420 = pneg %p56
      %p421 = pneg %p53
      %p422 = pneg %p77
      %p423 = pneg %p74
      %p424 = pneg %p98
      %p425 = pneg %p95
      %p426 = scmp.lt.s32.totalorder %s28, 0
      %s427 = scalar_select %p426, %s28, 0
      %s428 = smul.addr %s427, 4
      %s429 = scalar_lea.vmem %s3, %s428
      %p430 = pneg %p124
      %p431 = pneg %p121
      %p432 = scmp.lt.s32.totalorder %s28, 0
      %s433 = scalar_select %p432, %s28, 0
      %s434 = smul.addr %s433, 4
      %s435 = scalar_lea.vmem %s4, %s434
      %p436 = pneg %p150
      %p437 = pneg %p147
      %p438 = scmp.lt.s32.totalorder %s28, 0
      %s439 = scalar_select %p438, %s28, 0
      %s440 = smul.addr %s439, 4
      %s441 = scalar_lea.vmem %s5, %s440
      %p442 = pneg %p176
      %p443 = pneg %p173
      %p444 = scmp.lt.s32.totalorder %s28, 0
      %s445 = scalar_select %p444, %s28, 0
      %s446 = scalar_lea.vmem %s6, %s445
      %p447 = pneg %p202
      %p448 = pneg %p199
      %p449 = scmp.lt.s32.totalorder %s28, 0
      %s450 = scalar_select %p449, %s28, 0
      %s451 = scalar_lea.vmem %s7, %s450
      %p452 = pneg %p228
      %p453 = pneg %p225
      %p454 = scmp.lt.s32.totalorder %s28, 0
      %s455 = scalar_select %p454, %s28, 0
      %s456 = scalar_lea.vmem %s8, %s455
      %p457 = pneg %p254
      %p458 = pneg %p251
      %p459 = pneg %p282
      %p460 = pneg %p279
      %p461 = scmp.lt.s32.totalorder %s27, 2
      %s462 = scalar_select %p461, %s27, 2
      %p463 = scmp.lt.s32.totalorder %s28, 0
      %s464 = scalar_select %p463, %s28, 0
      %s465 = sadd.s32 %s464, %s462
      %s466 = smul.addr %s465, 4
      %s467 = scalar_lea.vmem %s9, %s466
      %p468 = pneg %p310
      %p469 = pneg %p307
      %p470 = scmp.lt.s32.totalorder %s27, 2
      %s471 = scalar_select %p470, %s27, 2
      %p472 = scmp.lt.s32.totalorder %s28, 0
      %s473 = scalar_select %p472, %s28, 0
      %s474 = sadd.s32 %s473, %s471
      %s475 = smul.addr %s474, 4
      %s476 = scalar_lea.vmem %s10, %s475
      %p477 = pneg %p338
      %p478 = pneg %p335
      %p479 = scmp.lt.s32.totalorder %s27, 2
      %s480 = scalar_select %p479, %s27, 2
      %p481 = scmp.lt.s32.totalorder %s28, 0
      %s482 = scalar_select %p481, %s28, 0
      %s483 = sadd.s32 %s482, %s480
      %s484 = smul.addr %s483, 4
      %s485 = scalar_lea.vmem %s11, %s484
      %p486 = scmp.lt.s32.totalorder %s27, 2
      %s487 = scalar_select %p486, %s27, 2
      %s488 = smul.addr %s487, 8
      %s489 = scalar_lea.vmem %s0, %s488
      %p490 = scmp.lt.s32.totalorder %s28, 0
      %s491 = scalar_select %p490, %s28, 0
      %s492 = smul.addr %s491, 4
      %s493 = scalar_lea.vmem %s3, %s492
      %p494 = scmp.lt.s32.totalorder %s28, 0
      %s495 = scalar_select %p494, %s28, 0
      %s496 = smul.addr %s495, 4
      %s497 = scalar_lea.vmem %s4, %s496
      %p498 = scmp.lt.s32.totalorder %s28, 0
      %s499 = scalar_select %p498, %s28, 0
      %s500 = smul.addr %s499, 4
      %s501 = scalar_lea.vmem %s5, %s500
      %p502 = scmp.lt.s32.totalorder %s28, 0
      %s503 = scalar_select %p502, %s28, 0
      %s504 = scalar_lea.vmem %s6, %s503
      %p505 = scmp.lt.s32.totalorder %s28, 0
      %s506 = scalar_select %p505, %s28, 0
      %s507 = scalar_lea.vmem %s7, %s506
      %p508 = scmp.lt.s32.totalorder %s28, 0
      %s509 = scalar_select %p508, %s28, 0
      %s510 = scalar_lea.vmem %s8, %s509
      %p511 = scmp.lt.s32.totalorder %s27, 2
      %s512 = scalar_select %p511, %s27, 2
      %p513 = scmp.lt.s32.totalorder %s28, 0
      %s514 = scalar_select %p513, %s28, 0
      %s515 = sadd.s32 %s514, %s512
      %s516 = smul.addr %s515, 4
      %s517 = scalar_lea.vmem %s9, %s516
      %p518 = scmp.lt.s32.totalorder %s27, 2
      %s519 = scalar_select %p518, %s27, 2
      %p520 = scmp.lt.s32.totalorder %s28, 0
      %s521 = scalar_select %p520, %s28, 0
      %s522 = sadd.s32 %s521, %s519
      %s523 = smul.addr %s522, 4
      %s524 = scalar_lea.vmem %s10, %s523
      %p525 = scmp.lt.s32.totalorder %s27, 2
      %s526 = scalar_select %p525, %s27, 2
      %p527 = scmp.lt.s32.totalorder %s28, 0
      %s528 = scalar_select %p527, %s28, 0
      %s529 = sadd.s32 %s528, %s526
      %s530 = smul.addr %s529, 4
      %s531 = scalar_lea.vmem %s11, %s530
      %v533 = vld [vmem:[%s489] sm:$0xff]
      %v534 = vld [vmem:[%s1] sm:$0x1]
      %v535 = vld [vmem:[%s2] sm:$0x1]
      %vm536 = vcmask 261120
      %v537 = vsel %vm536, %v533, 0.0
      %538 = vadd.xlane.f32.xlu0 %v537
      %v539 = vpop.xlane.xlu0 %538
      %v540 = vrcp.pop 32.0
      %v541 = vmul.f32 %v539, %v540
      %v542 = vsub.f32 %v533, %v541
      %v543 = vmul.f32 %v542, %v542
      %v544 = vsel %vm536, %v543, 0.0
      %545 = vadd.xlane.f32.xlu0 %v544
      %v546 = vpop.xlane.xlu0 %545
      %v547 = vmul.f32 %v546, %v540
      %v548 = vadd.f32 %v547, 1e-05
      %v549 = vrsqrt.pop %v548
      %v550 = vmul.f32 %v542, %v549
      %v552 = vlaneseq
      %v553 = vshrl.u32 %v552, 7
      %v554 = vsub.s32 0, %v553
      %v555 = vrot.slane %v534, %v554
      %v557 = vmul.f32 %v550, %v555
      %v559 = vlaneseq
      %v560 = vshrl.u32 %v559, 7
      %v561 = vsub.s32 0, %v560
      %v562 = vrot.slane %v535, %v561
      %v564 = vadd.f32 %v557, %v562
      %v565 = vpack.c.bf16 %v564, %v564
      %v566 = vld [vmem:[%s493] sm:$0xf]
      %v567 = vld [vmem:[%s493 + $0x4] sm:$0xf]
      %v568 = vld [vmem:[%s493 + $0x8] sm:$0xf]
      %v569 = vld [vmem:[%s493 + $0xc] sm:$0xf]
      %v570 = vld [vmem:[%s504] sm:$0x1]
      %v572 = vlaneseq
      %v573 = vshrl.u32 %v572, 7
      %v574 = vsub.s32 0, %v573
      %v575 = vrot.slane %v570, %v574
      %v581 = vunpack.c.l.b16 %v566
      %v582 = vunpack.c.l.b16 %v567
      %v583 = vunpack.c.l.b16 %v568
      %v584 = vunpack.c.l.b16 %v569
      %v585 = vpack.c.b16 %v582, %v581
      %v586 = vpack.c.b16 %v584, %v583
      %v590 = vsel %vm536, %v565, 0
      %592 = vmatprep.subr.bf16.mxu0 0
      %593 = vmatpush1.bf16.msra.mxu0 %v585
      %594 = vmatprep.subr.bf16.mxu0 0
      %595 = vmatpush1.bf16.msra.mxu0 %v586
      %596 = vmatprep.subr.bf16.mxu0 0
      %597 = vmatpush1.bf16.msra.mxu0 0
      %598 = vmatprep.subr.bf16.mxu0 0
      %599 = vmatpush1.bf16.msra.mxu0 0
      %600 = vmatprep.subr.bf16.mxu0 0
      %601 = vmatpush1.bf16.msra.mxu0 0
      %602 = vmatprep.subr.bf16.mxu0 0
      %603 = vmatpush1.bf16.msra.mxu0 0
      %604 = vmatprep.subr.bf16.mxu0 0
      %605 = vmatpush1.bf16.msra.mxu0 0
      %606 = vmatprep.subr.bf16.mxu0 0
      %607 = vmatpush1.bf16.msra.mxu0 0
      %608 = vmatprep.subr.bf16.mxu0 0
      %609 = vmatpush1.bf16.msra.mxu0 0
      %610 = vmatprep.subr.bf16.mxu0 0
      %611 = vmatpush1.bf16.msra.mxu0 0
      %612 = vmatprep.subr.bf16.mxu0 0
      %613 = vmatpush1.bf16.msra.mxu0 0
      %614 = vmatprep.subr.bf16.mxu0 0
      %615 = vmatpush1.bf16.msra.mxu0 0
      %616 = vmatprep.subr.bf16.mxu0 0
      %617 = vmatpush1.bf16.msra.mxu0 0
      %618 = vmatprep.subr.bf16.mxu0 0
      %619 = vmatpush1.bf16.msra.mxu0 0
      %620 = vmatprep.subr.bf16.mxu0 0
      %621 = vmatpush1.bf16.msra.mxu0 0
      %622 = vmatprep.subr.bf16.mxu0 0
      %623 = vmatpush1.bf16.msra.mxu0 0
      %624 = vmatprep.mubr.bf16.mxu0 0
      %625 = vmatmul.mubr.bf16.gmra.mrb[0].mxu0 %v590
      %v626 = vpop.f32.mrb[0].mxu0
      %v627 = vadd.f32 %v575, %v626
      %v628 = vpop.f32.mrb[0].mxu0
      %v629 = vpop.f32.mrb[0].mxu0
      %v630 = vpop.f32.mrb[0].mxu0
      %631 = vdwg.mxu0
      %v632 = vpack.c.bf16 %v627, %v627
      %vm633 = vcmask 257024
      %634 = vst.msk [vmem:[%s517] sm:$0xf] %vm633, %v632
      %v635 = vld [vmem:[%s497] sm:$0xf]
      %v636 = vld [vmem:[%s497 + $0x4] sm:$0xf]
      %v637 = vld [vmem:[%s497 + $0x8] sm:$0xf]
      %v638 = vld [vmem:[%s497 + $0xc] sm:$0xf]
      %v639 = vld [vmem:[%s507] sm:$0x1]
      %v641 = vlaneseq
      %v642 = vshrl.u32 %v641, 7
      %v643 = vsub.s32 0, %v642
      %v644 = vrot.slane %v639, %v643
      %v650 = vunpack.c.l.b16 %v635
      %v651 = vunpack.c.l.b16 %v636
      %v652 = vunpack.c.l.b16 %v637
      %v653 = vunpack.c.l.b16 %v638
      %v654 = vpack.c.b16 %v651, %v650
      %v655 = vpack.c.b16 %v653, %v652
      %658 = vmatprep.subr.bf16.mxu0 0
      %659 = vmatpush1.bf16.msra.mxu0 %v654
      %660 = vmatprep.subr.bf16.mxu0 0
      %661 = vmatpush1.bf16.msra.mxu0 %v655
      %662 = vmatprep.subr.bf16.mxu0 0
      %663 = vmatpush1.bf16.msra.mxu0 0
      %664 = vmatprep.subr.bf16.mxu0 0
      %665 = vmatpush1.bf16.msra.mxu0 0
      %666 = vmatprep.subr.bf16.mxu0 0
      %667 = vmatpush1.bf16.msra.mxu0 0
      %668 = vmatprep.subr.bf16.mxu0 0
      %669 = vmatpush1.bf16.msra.mxu0 0
      %670 = vmatprep.subr.bf16.mxu0 0
      %671 = vmatpush1.bf16.msra.mxu0 0
      %672 = vmatprep.subr.bf16.mxu0 0
      %673 = vmatpush1.bf16.msra.mxu0 0
      %674 = vmatprep.subr.bf16.mxu0 0
      %675 = vmatpush1.bf16.msra.mxu0 0
      %676 = vmatprep.subr.bf16.mxu0 0
      %677 = vmatpush1.bf16.msra.mxu0 0
      %678 = vmatprep.subr.bf16.mxu0 0
      %679 = vmatpush1.bf16.msra.mxu0 0
      %680 = vmatprep.subr.bf16.mxu0 0
      %681 = vmatpush1.bf16.msra.mxu0 0
      %682 = vmatprep.subr.bf16.mxu0 0
      %683 = vmatpush1.bf16.msra.mxu0 0
      %684 = vmatprep.subr.bf16.mxu0 0
      %685 = vmatpush1.bf16.msra.mxu0 0
      %686 = vmatprep.subr.bf16.mxu0 0
      %687 = vmatpush1.bf16.msra.mxu0 0
      %688 = vmatprep.subr.bf16.mxu0 0
      %689 = vmatpush1.bf16.msra.mxu0 0
      %690 = vmatprep.mubr.bf16.mxu0 0
      %691 = vmatmul.mubr.bf16.gmra.mrb[0].mxu0 %v590
      %v692 = vpop.f32.mrb[0].mxu0
      %v693 = vadd.f32 %v644, %v692
      %v694 = vpop.f32.mrb[0].mxu0
      %v695 = vpop.f32.mrb[0].mxu0
      %v696 = vpop.f32.mrb[0].mxu0
      %697 = vdwg.mxu0
      %v698 = vpack.c.bf16 %v693, %v693
      %699 = vst.msk [vmem:[%s524] sm:$0xf] %vm633, %v698
      %v700 = vld [vmem:[%s501] sm:$0xf]
      %v701 = vld [vmem:[%s501 + $0x4] sm:$0xf]
      %v702 = vld [vmem:[%s501 + $0x8] sm:$0xf]
      %v703 = vld [vmem:[%s501 + $0xc] sm:$0xf]
      %v704 = vld [vmem:[%s510] sm:$0x1]
      %v706 = vlaneseq
      %v707 = vshrl.u32 %v706, 7
      %v708 = vsub.s32 0, %v707
      %v709 = vrot.slane %v704, %v708
      %v715 = vunpack.c.l.b16 %v700
      %v716 = vunpack.c.l.b16 %v701
      %v717 = vunpack.c.l.b16 %v702
      %v718 = vunpack.c.l.b16 %v703
      %v719 = vpack.c.b16 %v716, %v715
      %v720 = vpack.c.b16 %v718, %v717
      %723 = vmatprep.subr.bf16.mxu0 0
      %724 = vmatpush1.bf16.msra.mxu0 %v719
      %725 = vmatprep.subr.bf16.mxu0 0
      %726 = vmatpush1.bf16.msra.mxu0 %v720
      %727 = vmatprep.subr.bf16.mxu0 0
      %728 = vmatpush1.bf16.msra.mxu0 0
      %729 = vmatprep.subr.bf16.mxu0 0
      %730 = vmatpush1.bf16.msra.mxu0 0
      %731 = vmatprep.subr.bf16.mxu0 0
      %732 = vmatpush1.bf16.msra.mxu0 0
      %733 = vmatprep.subr.bf16.mxu0 0
      %734 = vmatpush1.bf16.msra.mxu0 0
      %735 = vmatprep.subr.bf16.mxu0 0
      %736 = vmatpush1.bf16.msra.mxu0 0
      %737 = vmatprep.subr.bf16.mxu0 0
      %738 = vmatpush1.bf16.msra.mxu0 0
      %739 = vmatprep.subr.bf16.mxu0 0
      %740 = vmatpush1.bf16.msra.mxu0 0
      %741 = vmatprep.subr.bf16.mxu0 0
      %742 = vmatpush1.bf16.msra.mxu0 0
      %743 = vmatprep.subr.bf16.mxu0 0
      %744 = vmatpush1.bf16.msra.mxu0 0
      %745 = vmatprep.subr.bf16.mxu0 0
      %746 = vmatpush1.bf16.msra.mxu0 0
      %747 = vmatprep.subr.bf16.mxu0 0
      %748 = vmatpush1.bf16.msra.mxu0 0
      %749 = vmatprep.subr.bf16.mxu0 0
      %750 = vmatpush1.bf16.msra.mxu0 0
      %751 = vmatprep.subr.bf16.mxu0 0
      %752 = vmatpush1.bf16.msra.mxu0 0
      %753 = vmatprep.subr.bf16.mxu0 0
      %754 = vmatpush1.bf16.msra.mxu0 0
      %755 = vmatprep.mubr.bf16.mxu0 0
      %756 = vmatmul.mubr.bf16.gmra.mrb[0].mxu0 %v590
      %v757 = vpop.f32.mrb[0].mxu0
      %v758 = vadd.f32 %v709, %v757
      %v759 = vpop.f32.mrb[0].mxu0
      %v760 = vpop.f32.mrb[0].mxu0
      %v761 = vpop.f32.mrb[0].mxu0
      %762 = vdwg.mxu0
      %v763 = vpack.c.bf16 %v758, %v758
      %764 = vst.msk [vmem:[%s531] sm:$0xf] %vm633, %v763
      %p765 = scmp.lt.s32.totalorder %s27, 2
      %s766 = scalar_select %p765, %s27, 2
      %p767 = scmp.lt.s32.totalorder %s28, 0
      %s768 = scalar_select %p767, %s28, 0
      %s769 = sadd.s32 %s768, %s766
      %s770 = smul.addr %s769, 4
      %s771 = scalar_lea.vmem %s9, %s770
      %p772 = scmp.lt.s32.totalorder %s27, 2
      %s773 = scalar_select %p772, %s27, 2
      %p774 = scmp.lt.s32.totalorder %s28, 0
      %s775 = scalar_select %p774, %s28, 0
      %s776 = sadd.s32 %s775, %s773
      %s777 = smul.addr %s776, 4
      %s778 = scalar_lea.vmem %s10, %s777
      %p779 = scmp.lt.s32.totalorder %s27, 2
      %s780 = scalar_select %p779, %s27, 2
      %p781 = scmp.lt.s32.totalorder %s28, 0
      %s782 = scalar_select %p781, %s28, 0
      %s783 = sadd.s32 %s782, %s780
      %s784 = smul.addr %s783, 4
      %s785 = scalar_lea.vmem %s11, %s784
      // Predicated region
      $region57: #{_lambda_.33} parent=55 // pred_check
        %p786 = pneg %p279
      $region58: #{_lambda_.33} parent=55 // pred_check_branch
        %788 = sbr.rel (%p786) target = $region60
      $region59: #{_lambda_.33} parent=55 // pred_region
        _
      $region60: #{_lambda_.33} parent=55 // pred_fallthru
        _
      // Predicated region
      $region61: #{_lambda_.33} parent=55 // pred_check
        %p789 = pneg %p307
      $region62: #{_lambda_.33} parent=55 // pred_check_branch
        %791 = sbr.rel (%p789) target = $region64
      $region63: #{_lambda_.33} parent=55 // pred_region
        _
      $region64: #{_lambda_.33} parent=55 // pred_fallthru
        _
      // Predicated region
      $region65: #{_lambda_.33} parent=55 // pred_check
        %p792 = pneg %p335
      $region66: #{_lambda_.33} parent=55 // pred_check_branch
        %794 = sbr.rel (%p792) target = $region68
      $region67: #{_lambda_.33} parent=55 // pred_region
        _
      $region68: #{_lambda_.33} parent=55 // pred_fallthru
        _
    $region56: #{_lambda_.33} parent=5 // pred_fallthru
      _
    %p795 = scmp.le.s32.totalorder 2, %s18
    // Predicated region
    $region69: #{_lambda_.33} parent=5 // pred_check
      %p796 = pneg %p795
    $region70: #{_lambda_.33} parent=5 // pred_check_branch
      %798 = sbr.rel (%p796) target = $region72
    $region71: #{_lambda_.33} parent=5 // pred_region
      %s799 = ssub.s32 %s18, 2
      // Predicated region
      $region73: #{_lambda_.33} parent=71 // pred_check
        %p800 = pneg %p285
      $region74: #{_lambda_.33} parent=71 // pred_check_branch
        %802 = sbr.rel (%p800) target = $region76
      $region75: #{_lambda_.33} parent=71 // pred_region
        %p803 = scmp.lt.s32.totalorder %s29, 2
        %s804 = scalar_select %p803, %s29, 2
        %p805 = scmp.lt.s32.totalorder %s30, 0
        %s806 = scalar_select %p805, %s30, 0
        %s807 = sadd.s32 %s806, %s804
        %s808 = smul.addr %s807, 4
        %s809 = scalar_lea.vmem %s9, %s808
      $region76: #{_lambda_.33} parent=71 // pred_fallthru
        _
      // Predicated region
      $region77: #{_lambda_.33} parent=71 // pred_check
        %p810 = pneg %p313
      $region78: #{_lambda_.33} parent=71 // pred_check_branch
        %812 = sbr.rel (%p810) target = $region80
      $region79: #{_lambda_.33} parent=71 // pred_region
        %p813 = scmp.lt.s32.totalorder %s29, 2
        %s814 = scalar_select %p813, %s29, 2
        %p815 = scmp.lt.s32.totalorder %s30, 0
        %s816 = scalar_select %p815, %s30, 0
        %s817 = sadd.s32 %s816, %s814
        %s818 = smul.addr %s817, 4
        %s819 = scalar_lea.vmem %s10, %s818
      $region80: #{_lambda_.33} parent=71 // pred_fallthru
        _
      // Predicated region
      $region81: #{_lambda_.33} parent=71 // pred_check
        %p820 = pneg %p341
      $region82: #{_lambda_.33} parent=71 // pred_check_branch
        %822 = sbr.rel (%p820) target = $region84
      $region83: #{_lambda_.33} parent=71 // pred_region
        %p823 = scmp.lt.s32.totalorder %s29, 2
        %s824 = scalar_select %p823, %s29, 2
        %p825 = scmp.lt.s32.totalorder %s30, 0
        %s826 = scalar_select %p825, %s30, 0
        %s827 = sadd.s32 %s826, %s824
        %s828 = smul.addr %s827, 4
        %s829 = scalar_lea.vmem %s11, %s828
      $region84: #{_lambda_.33} parent=71 // pred_fallthru
        _
    $region72: #{_lambda_.33} parent=5 // pred_fallthru
      _
  $region6: #{_lambda_.33} parent=0 // loop_footer
    %s22 = sadd.s32 1, %s18
  $region7: #{_lambda_.33} parent=0 // loop_footer_branch
    %17 = sbr.rel target = $region3
  $region8: #{_lambda_.33} parent=0 // loop_exit
    _

// kernel: _lambda_.36
$region0: #{_lambda_.36}
  #allocation0 [shape = 'u32[]', space=smem, size = 0x4, offset = 0x4, fixed_abs, tag = 'smem constant byte address 0x4 - core index']
  #allocation1 [shape = 'u32[144,128]{1,0:T(1,128)}', space=vmem, size = 0x12000, scoped, tag = 'internal scratch']
  #allocation2 [shape = 'f32[8,32]{1,0:T(8,128)}', space=vmem, size = 0x1000, scoped, tag = 'scratch operand']
  %s0 = inlined_call_operand.vmem [shape: f32[24,32], index: 0, kind: input, shape index: {}]
  %s1 = inlined_call_operand.vmem [shape: f32[1,32], index: 1, kind: input, shape index: {}]
  %s2 = inlined_call_operand.vmem [shape: f32[1,32], index: 2, kind: input, shape index: {}, may-alias: {2,6}]
  %s3 = inlined_call_operand.vmem [shape: bf16[32,128], index: 3, kind: input, shape index: {}]
  %s4 = inlined_call_operand.vmem [shape: f32[1,128], index: 4, kind: input, shape index: {}]
  %s5 = inlined_call_operand.vmem [shape: bf16[128,32], index: 5, kind: input, shape index: {}]
  %s6 = inlined_call_operand.vmem [shape: f32[1,32], index: 6, kind: input, shape index: {}, may-alias: {2,6}]
  %s7 = inlined_call_operand.vmem [shape: f32[24,32], index: 7, kind: output, shape index: {}]
  %s8 = sld [smem:[#allocation0]]
  $region69: #{_lambda_.36} parent=0
    _
  %s10 = ssub.s32 1, %s8
  %s11 = scalar_select 0, %s10, %s8
  loop: start=0, step=1, limit=5
  $region2: #{_lambda_.36} parent=0 // loop_pre_header
    _
  $region3: #{_lambda_.36} parent=0 // loop_header
    %s13 = sphi 0, %s17
    %p14 = scmp.ge.s32.totalorder %s13, 5
    %s20 = sphi 0, %s32
    %s21 = sphi 0, %s28
    %s22 = sphi 0, %s20
    %s23 = sphi 0, %s21
    %s24 = sphi 0, %s22
    %s25 = sphi 0, %s23
    %s35 = sphi 0, %s37
    %s38 = sphi 0, %s35
    %s39 = sphi 0, %s38
    %s55 = sphi 0, %s39
    %s59 = sphi 0, %s59
    %s61 = sphi 0, %s59
    %s62 = sphi 0, %s61
    %s76 = sphi 0, %s62
    %s80 = sphi 0, %s80
    %s82 = sphi 0, %s80
    %s83 = sphi 0, %s82
    %s97 = sphi 0, %s83
    %s103 = sphi 0, %s105
    %s106 = sphi 0, %s103
    %s107 = sphi 0, %s106
    %s123 = sphi 0, %s107
    %s129 = sphi 0, %s131
    %s132 = sphi 0, %s129
    %s133 = sphi 0, %s132
    %s149 = sphi 0, %s133
    %s155 = sphi 0, %s157
    %s158 = sphi 0, %s155
    %s159 = sphi 0, %s158
    %s175 = sphi 0, %s159
    %s179 = sphi 0, %s179
    %s181 = sphi 0, %s179
    %s182 = sphi 0, %s181
    %s196 = sphi 0, %s182
    %s202 = sphi 0, %s204
    %s205 = sphi 0, %s202
    %s206 = sphi 0, %s205
    %s222 = sphi 0, %s206
  $region4: #{_lambda_.36} parent=0 // loop_header_branch
    %16 = sbr.rel (%p14) target = $region8
  $region5: #{_lambda_.36} parent=0 // loop_body
    %s18 = ssub.s32 %s13, 1
    %s19 = ssub.s32 %s13, 2
    %s26 = sadd.s32 1, %s21
    %p27 = scmp.ge.s32.totalorder %s26, 1
    %s28 = scalar_select %p27, 0, %s26
    %s29 = sadd.s32 1, %s20
    %s30 = scalar_select %p27, %s29, %s20
    %p31 = scmp.ge.s32.totalorder %s30, 3
    %s32 = scalar_select %p31, 0, %s30
    %s33 = ssub.s32 %s20, %s32
    %p34 = scmp.eq.s32.totalorder %s33, 0
    %s36 = sadd.s32 %s35, 1
    %s37 = scalar_select %p34, %s35, %s36
    %p40 = pneg %p34
    %p41 = scmp.eq.s32.totalorder %s13, 2
    %p42 = por %p40, %p41
    %p43 = scmp.ne.s32.totalorder %s35, %s38
    %p44 = scmp.eq.s32.totalorder %s13, 0
    %p45 = por %p43, %p44
    %p46 = scmp.ne.s32.totalorder %s35, %s38
    %p47 = scmp.eq.s32.totalorder %s18, 2
    %p48 = por %p46, %p47
    %p49 = scmp.ne.s32.totalorder %s38, %s39
    %p50 = scmp.eq.s32.totalorder %s18, 0
    %p51 = por %p49, %p50
    %p52 = scmp.ne.s32.totalorder %s38, %s39
    %p53 = scmp.eq.s32.totalorder %s19, 2
    %p54 = por %p52, %p53
    %p56 = scmp.ne.s32.totalorder %s39, %s55
    %p57 = scmp.eq.s32.totalorder %s19, 0
    %p58 = por %p56, %p57
    %s60 = sadd.s32 %s59, 1
    %p63 = scmp.eq.s32.totalorder %s13, 2
    %p64 = scmp.ne.s32.totalorder %s59, %s61
    %p65 = scmp.eq.s32.totalorder %s13, 0
    %p66 = por %p64, %p65
    %p67 = scmp.ne.s32.totalorder %s59, %s61
    %p68 = scmp.eq.s32.totalorder %s18, 2
    %p69 = por %p67, %p68
    %p70 = scmp.ne.s32.totalorder %s61, %s62
    %p71 = scmp.eq.s32.totalorder %s18, 0
    %p72 = por %p70, %p71
    %p73 = scmp.ne.s32.totalorder %s61, %s62
    %p74 = scmp.eq.s32.totalorder %s19, 2
    %p75 = por %p73, %p74
    %p77 = scmp.ne.s32.totalorder %s62, %s76
    %p78 = scmp.eq.s32.totalorder %s19, 0
    %p79 = por %p77, %p78
    %s81 = sadd.s32 %s80, 1
    %p84 = scmp.eq.s32.totalorder %s13, 2
    %p85 = scmp.ne.s32.totalorder %s80, %s82
    %p86 = scmp.eq.s32.totalorder %s13, 0
    %p87 = por %p85, %p86
    %p88 = scmp.ne.s32.totalorder %s80, %s82
    %p89 = scmp.eq.s32.totalorder %s18, 2
    %p90 = por %p88, %p89
    %p91 = scmp.ne.s32.totalorder %s82, %s83
    %p92 = scmp.eq.s32.totalorder %s18, 0
    %p93 = por %p91, %p92
    %p94 = scmp.ne.s32.totalorder %s82, %s83
    %p95 = scmp.eq.s32.totalorder %s19, 2
    %p96 = por %p94, %p95
    %p98 = scmp.ne.s32.totalorder %s83, %s97
    %p99 = scmp.eq.s32.totalorder %s19, 0
    %p100 = por %p98, %p99
    %s101 = ssub.s32 %s21, %s28
    %p102 = scmp.eq.s32.totalorder %s101, 0
    %s104 = sadd.s32 %s103, 1
    %s105 = scalar_select %p102, %s103, %s104
    %p108 = pneg %p102
    %p109 = scmp.eq.s32.totalorder %s13, 2
    %p110 = por %p108, %p109
    %p111 = scmp.ne.s32.totalorder %s103, %s106
    %p112 = scmp.eq.s32.totalorder %s13, 0
    %p113 = por %p111, %p112
    %p114 = scmp.ne.s32.totalorder %s103, %s106
    %p115 = scmp.eq.s32.totalorder %s18, 2
    %p116 = por %p114, %p115
    %p117 = scmp.ne.s32.totalorder %s106, %s107
    %p118 = scmp.eq.s32.totalorder %s18, 0
    %p119 = por %p117, %p118
    %p120 = scmp.ne.s32.totalorder %s106, %s107
    %p121 = scmp.eq.s32.totalorder %s19, 2
    %p122 = por %p120, %p121
    %p124 = scmp.ne.s32.totalorder %s107, %s123
    %p125 = scmp.eq.s32.totalorder %s19, 0
    %p126 = por %p124, %p125
    %s127 = ssub.s32 %s21, %s28
    %p128 = scmp.eq.s32.totalorder %s127, 0
    %s130 = sadd.s32 %s129, 1
    %s131 = scalar_select %p128, %s129, %s130
    %p134 = pneg %p128
    %p135 = scmp.eq.s32.totalorder %s13, 2
    %p136 = por %p134, %p135
    %p137 = scmp.ne.s32.totalorder %s129, %s132
    %p138 = scmp.eq.s32.totalorder %s13, 0
    %p139 = por %p137, %p138
    %p140 = scmp.ne.s32.totalorder %s129, %s132
    %p141 = scmp.eq.s32.totalorder %s18, 2
    %p142 = por %p140, %p141
    %p143 = scmp.ne.s32.totalorder %s132, %s133
    %p144 = scmp.eq.s32.totalorder %s18, 0
    %p145 = por %p143, %p144
    %p146 = scmp.ne.s32.totalorder %s132, %s133
    %p147 = scmp.eq.s32.totalorder %s19, 2
    %p148 = por %p146, %p147
    %p150 = scmp.ne.s32.totalorder %s133, %s149
    %p151 = scmp.eq.s32.totalorder %s19, 0
    %p152 = por %p150, %p151
    %s153 = ssub.s32 %s21, %s28
    %p154 = scmp.eq.s32.totalorder %s153, 0
    %s156 = sadd.s32 %s155, 1
    %s157 = scalar_select %p154, %s155, %s156
    %p160 = pneg %p154
    %p161 = scmp.eq.s32.totalorder %s13, 2
    %p162 = por %p160, %p161
    %p163 = scmp.ne.s32.totalorder %s155, %s158
    %p164 = scmp.eq.s32.totalorder %s13, 0
    %p165 = por %p163, %p164
    %p166 = scmp.ne.s32.totalorder %s155, %s158
    %p167 = scmp.eq.s32.totalorder %s18, 2
    %p168 = por %p166, %p167
    %p169 = scmp.ne.s32.totalorder %s158, %s159
    %p170 = scmp.eq.s32.totalorder %s18, 0
    %p171 = por %p169, %p170
    %p172 = scmp.ne.s32.totalorder %s158, %s159
    %p173 = scmp.eq.s32.totalorder %s19, 2
    %p174 = por %p172, %p173
    %p176 = scmp.ne.s32.totalorder %s159, %s175
    %p177 = scmp.eq.s32.totalorder %s19, 0
    %p178 = por %p176, %p177
    %s180 = sadd.s32 %s179, 1
    %p183 = scmp.eq.s32.totalorder %s13, 2
    %p184 = scmp.ne.s32.totalorder %s179, %s181
    %p185 = scmp.eq.s32.totalorder %s13, 0
    %p186 = por %p184, %p185
    %p187 = scmp.ne.s32.totalorder %s179, %s181
    %p188 = scmp.eq.s32.totalorder %s18, 2
    %p189 = por %p187, %p188
    %p190 = scmp.ne.s32.totalorder %s181, %s182
    %p191 = scmp.eq.s32.totalorder %s18, 0
    %p192 = por %p190, %p191
    %p193 = scmp.ne.s32.totalorder %s181, %s182
    %p194 = scmp.eq.s32.totalorder %s19, 2
    %p195 = por %p193, %p194
    %p197 = scmp.ne.s32.totalorder %s182, %s196
    %p198 = scmp.eq.s32.totalorder %s19, 0
    %p199 = por %p197, %p198
    %s200 = ssub.s32 %s20, %s32
    %p201 = scmp.eq.s32.totalorder %s200, 0
    %s203 = sadd.s32 %s202, 1
    %s204 = scalar_select %p201, %s202, %s203
    %p207 = pneg %p201
    %p208 = scmp.eq.s32.totalorder %s13, 2
    %p209 = por %p207, %p208
    %p210 = scmp.ne.s32.totalorder %s202, %s205
    %p211 = scmp.eq.s32.totalorder %s13, 0
    %p212 = por %p210, %p211
    %p213 = scmp.ne.s32.totalorder %s202, %s205
    %p214 = scmp.eq.s32.totalorder %s18, 2
    %p215 = por %p213, %p214
    %p216 = scmp.ne.s32.totalorder %s205, %s206
    %p217 = scmp.eq.s32.totalorder %s18, 0
    %p218 = por %p216, %p217
    %p219 = scmp.ne.s32.totalorder %s205, %s206
    %p220 = scmp.eq.s32.totalorder %s19, 2
    %p221 = por %p219, %p220
    %p223 = scmp.ne.s32.totalorder %s206, %s222
    %p224 = scmp.eq.s32.totalorder %s19, 0
    %p225 = por %p223, %p224
    %p226 = scmp.le.s32.totalorder 1, %s13
    %p227 = scmp.lt.s32.totalorder %s13, 4
    %p228 = pnand %p226, %p227
    %p229 = pneg %p228
    // Predicated region
    $region9: #{_lambda_.36} parent=5 // pred_check
      _
    $region10: #{_lambda_.36} parent=5 // pred_check_branch
      %231 = sbr.rel (%p228) target = $region12
    $region11: #{_lambda_.36} parent=5 // pred_region
      %s232 = ssub.s32 %s13, 1
      // Predicated region
      $region13: #{_lambda_.36} parent=11 // pred_check
        %p233 = pneg %p72
      $region14: #{_lambda_.36} parent=11 // pred_check_branch
        %235 = sbr.rel (%p233) target = $region16
      $region15: #{_lambda_.36} parent=11 // pred_region
        _
      $region16: #{_lambda_.36} parent=11 // pred_fallthru
        _
      // Predicated region
      $region17: #{_lambda_.36} parent=11 // pred_check
        %p236 = pneg %p93
      $region18: #{_lambda_.36} parent=11 // pred_check_branch
        %238 = sbr.rel (%p236) target = $region20
      $region19: #{_lambda_.36} parent=11 // pred_region
        _
      $region20: #{_lambda_.36} parent=11 // pred_fallthru
        _
      // Predicated region
      $region21: #{_lambda_.36} parent=11 // pred_check
        %p239 = pneg %p119
      $region22: #{_lambda_.36} parent=11 // pred_check_branch
        %241 = sbr.rel (%p239) target = $region24
      $region23: #{_lambda_.36} parent=11 // pred_region
        %p242 = scmp.lt.s32.totalorder %s23, 0
        %s243 = scalar_select %p242, %s23, 0
        %s244 = smul.addr %s243, 4
        %s245 = scalar_lea.vmem %s3, %s244
      $region24: #{_lambda_.36} parent=11 // pred_fallthru
        _
      // Predicated region
      $region25: #{_lambda_.36} parent=11 // pred_check
        %p246 = pneg %p145
      $region26: #{_lambda_.36} parent=11 // pred_check_branch
        %248 = sbr.rel (%p246) target = $region28
      $region27: #{_lambda_.36} parent=11 // pred_region
        %p249 = scmp.lt.s32.totalorder %s23, 0
        %s250 = scalar_select %p249, %s23, 0
        %s251 = scalar_lea.vmem %s4, %s250
      $region28: #{_lambda_.36} parent=11 // pred_fallthru
        _
      // Predicated region
      $region29: #{_lambda_.36} parent=11 // pred_check
        %p252 = pneg %p171
      $region30: #{_lambda_.36} parent=11 // pred_check_branch
        %254 = sbr.rel (%p252) target = $region32
      $region31: #{_lambda_.36} parent=11 // pred_region
        %s255 = smul.u32 16, %s23
        %p256 = scmp.lt.s32.totalorder %s255, 15
        %s257 = scalar_select %p256, %s255, 15
        %s258 = smul.addr %s257, 4
        %s259 = scalar_lea.vmem %s5, %s258
        %s260 = smul.u32 16, %s23
      $region32: #{_lambda_.36} parent=11 // pred_fallthru
        _
      // Predicated region
      $region33: #{_lambda_.36} parent=11 // pred_check
        %p261 = pneg %p192
      $region34: #{_lambda_.36} parent=11 // pred_check_branch
        %263 = sbr.rel (%p261) target = $region36
      $region35: #{_lambda_.36} parent=11 // pred_region
        _
      $region36: #{_lambda_.36} parent=11 // pred_fallthru
        _
    $region12: #{_lambda_.36} parent=5 // pred_fallthru
      _
    %p264 = scmp.lt.s32.totalorder %s13, 3
    // Predicated region
    $region37: #{_lambda_.36} parent=5 // pred_check
      %p265 = pneg %p264
    $region38: #{_lambda_.36} parent=5 // pred_check_branch
      %267 = sbr.rel (%p265) target = $region40
    $region39: #{_lambda_.36} parent=5 // pred_region
      // Predicated region
      $region41: #{_lambda_.36} parent=39 // pred_check
        %p268 = pneg %p45
      $region42: #{_lambda_.36} parent=39 // pred_check_branch
        %270 = sbr.rel (%p268) target = $region44
      $region43: #{_lambda_.36} parent=39 // pred_region
        %p271 = scmp.lt.s32.totalorder %s20, 2
        %s272 = scalar_select %p271, %s20, 2
        %s273 = smul.addr %s272, 8
        %s274 = scalar_lea.vmem %s0, %s273
      $region44: #{_lambda_.36} parent=39 // pred_fallthru
        _
    $region40: #{_lambda_.36} parent=5 // pred_fallthru
      _
    %p275 = scmp.le.s32.totalorder 1, %s13
    %p276 = scmp.lt.s32.totalorder %s13, 4
    %p277 = pnand %p275, %p276
    %p278 = pneg %p277
    // Predicated region
    $region45: #{_lambda_.36} parent=5 // pred_check
      _
    $region46: #{_lambda_.36} parent=5 // pred_check_branch
      %280 = sbr.rel (%p277) target = $region48
    $region47: #{_lambda_.36} parent=5 // pred_region
      %s281 = ssub.s32 %s13, 1
      %p282 = scmp.lt.s32.totalorder %s22, 2
      %s283 = scalar_select %p282, %s22, 2
      %s284 = smul.addr %s283, 8
      %s285 = scalar_lea.vmem %s0, %s284
      %p286 = pneg %p51
      %p287 = pneg %p48
      %p288 = pneg %p72
      %p289 = pneg %p69
      %p290 = pneg %p93
      %p291 = pneg %p90
      %p292 = scmp.lt.s32.totalorder %s23, 0
      %s293 = scalar_select %p292, %s23, 0
      %s294 = smul.addr %s293, 4
      %s295 = scalar_lea.vmem %s3, %s294
      %p296 = pneg %p119
      %p297 = pneg %p116
      %p298 = scmp.lt.s32.totalorder %s23, 0
      %s299 = scalar_select %p298, %s23, 0
      %s300 = scalar_lea.vmem %s4, %s299
      %p301 = pneg %p145
      %p302 = pneg %p142
      %s303 = smul.u32 16, %s23
      %p304 = scmp.lt.s32.totalorder %s303, 15
      %s305 = scalar_select %p304, %s303, 15
      %s306 = smul.addr %s305, 4
      %s307 = scalar_lea.vmem %s5, %s306
      %p308 = pneg %p171
      %p309 = pneg %p168
      %p310 = pneg %p192
      %p311 = pneg %p189
      %p312 = pneg %p218
      %p313 = pneg %p215
      %p314 = scmp.lt.s32.totalorder %s22, 2
      %s315 = scalar_select %p314, %s22, 2
      %s316 = smul.addr %s315, 8
      %s317 = scalar_lea.vmem %s7, %s316
      %p318 = scmp.lt.s32.totalorder %s22, 2
      %s319 = scalar_select %p318, %s22, 2
      %s320 = smul.addr %s319, 8
      %s321 = scalar_lea.vmem %s0, %s320
      %p322 = scmp.lt.s32.totalorder %s23, 0
      %s323 = scalar_select %p322, %s23, 0
      %s324 = smul.addr %s323, 4
      %s325 = scalar_lea.vmem %s3, %s324
      %p326 = scmp.lt.s32.totalorder %s23, 0
      %s327 = scalar_select %p326, %s23, 0
      %s328 = scalar_lea.vmem %s4, %s327
      %s329 = smul.u32 16, %s23
      %p330 = scmp.lt.s32.totalorder %s329, 15
      %s331 = scalar_select %p330, %s329, 15
      %s332 = smul.addr %s331, 4
      %s333 = scalar_lea.vmem %s5, %s332
      %s334 = smul.u32 16, %s23
      %p335 = scmp.lt.s32.totalorder %s22, 2
      %s336 = scalar_select %p335, %s22, 2
      %s337 = smul.addr %s336, 8
      %s338 = scalar_lea.vmem %s7, %s337
      %v340 = vld [vmem:[%s321] sm:$0xff]
      %v341 = vld [vmem:[%s1] sm:$0x1]
      %v342 = vld [vmem:[%s2] sm:$0x1]
      %vm343 = vcmask 261120
      %v344 = vsel %vm343, %v340, 0.0
      %345 = vadd.xlane.f32.xlu0 %v344
      %v346 = vpop.xlane.xlu0 %345
      %v347 = vrcp.pop 32.0
      %v348 = vmul.f32 %v346, %v347
      %v349 = vsub.f32 %v340, %v348
      %v350 = vmul.f32 %v349, %v349
      %v351 = vsel %vm343, %v350, 0.0
      %352 = vadd.xlane.f32.xlu0 %v351
      %v353 = vpop.xlane.xlu0 %352
      %v354 = vmul.f32 %v353, %v347
      %v355 = vadd.f32 %v354, 1e-05
      %v356 = vrsqrt.pop %v355
      %v357 = vmul.f32 %v349, %v356
      %v359 = vlaneseq
      %v360 = vshrl.u32 %v359, 7
      %v361 = vsub.s32 0, %v360
      %v362 = vrot.slane %v341, %v361
      %v364 = vmul.f32 %v357, %v362
      %v366 = vlaneseq
      %v367 = vshrl.u32 %v366, 7
      %v368 = vsub.s32 0, %v367
      %v369 = vrot.slane %v342, %v368
      %v371 = vadd.f32 %v364, %v369
      %v372 = vpack.c.bf16 %v371, %v371
      %p373 = scmp.eq.s32.totalorder %s23, 0
      // Predicated region
      $region49: #{_lambda_.36} parent=47 // pred_check
        %p374 = pneg %p373
      $region50: #{_lambda_.36} parent=47 // pred_check_branch
        %376 = sbr.rel (%p374) target = $region52
      $region51: #{_lambda_.36} parent=47 // pred_region
        %377 = vst.msk [vmem:[#allocation2] sm:$0xff] %vm343, 0.0
      $region52: #{_lambda_.36} parent=47 // pred_fallthru
        _
      %v378 = vld [vmem:[%s325] sm:$0xf]
      %v379 = vld [vmem:[%s325 + $0x4] sm:$0xf]
      %v380 = vld [vmem:[%s325 + $0x8] sm:$0xf]
      %v381 = vld [vmem:[%s325 + $0xc] sm:$0xf]
      %v382 = vld [vmem:[%s328] sm:$0x1]
      %v384 = vlaneseq
      %v385 = vshrl.u32 %v384, 7
      %v386 = vsub.s32 0, %v385
      %v387 = vrot.slane %v382, %v386
      %v393 = vunpack.c.l.b16 %v378
      %v394 = vunpack.c.l.b16 %v379
      %v395 = vunpack.c.l.b16 %v380
      %v396 = vunpack.c.l.b16 %v381
      %v397 = vpack.c.b16 %v394, %v393
      %v398 = vpack.c.b16 %v396, %v395
      %v402 = vsel %vm343, %v372, 0
      %404 = vmatprep.subr.bf16.mxu0 0
      %405 = vmatpush1.bf16.msra.mxu0 %v397
      %406 = vmatprep.subr.bf16.mxu0 0
      %407 = vmatpush1.bf16.msra.mxu0 %v398
      %408 = vmatprep.subr.bf16.mxu0 0
      %409 = vmatpush1.bf16.msra.mxu0 0
      %410 = vmatprep.subr.bf16.mxu0 0
      %411 = vmatpush1.bf16.msra.mxu0 0
      %412 = vmatprep.subr.bf16.mxu0 0
      %413 = vmatpush1.bf16.msra.mxu0 0
      %414 = vmatprep.subr.bf16.mxu0 0
      %415 = vmatpush1.bf16.msra.mxu0 0
      %416 = vmatprep.subr.bf16.mxu0 0
      %417 = vmatpush1.bf16.msra.mxu0 0
      %418 = vmatprep.subr.bf16.mxu0 0
      %419 = vmatpush1.bf16.msra.mxu0 0
      %420 = vmatprep.subr.bf16.mxu0 0
      %421 = vmatpush1.bf16.msra.mxu0 0
      %422 = vmatprep.subr.bf16.mxu0 0
      %423 = vmatpush1.bf16.msra.mxu0 0
      %424 = vmatprep.subr.bf16.mxu0 0
      %425 = vmatpush1.bf16.msra.mxu0 0
      %426 = vmatprep.subr.bf16.mxu0 0
      %427 = vmatpush1.bf16.msra.mxu0 0
      %428 = vmatprep.subr.bf16.mxu0 0
      %429 = vmatpush1.bf16.msra.mxu0 0
      %430 = vmatprep.subr.bf16.mxu0 0
      %431 = vmatpush1.bf16.msra.mxu0 0
      %432 = vmatprep.subr.bf16.mxu0 0
      %433 = vmatpush1.bf16.msra.mxu0 0
      %434 = vmatprep.subr.bf16.mxu0 0
      %435 = vmatpush1.bf16.msra.mxu0 0
      %436 = vmatprep.mubr.bf16.mxu0 0
      %437 = vmatmul.mubr.bf16.gmra.mrb[0].mxu0 %v402
      %v438 = vpop.f32.mrb[0].mxu0
      %v439 = vadd.f32 %v387, %v438
      %v440 = vpop.f32.mrb[0].mxu0
      %v441 = vpop.f32.mrb[0].mxu0
      %v442 = vpop.f32.mrb[0].mxu0
      %443 = vdwg.mxu0
      %v444 = vmul.f32 %v439, 1.702
      %v445 = vxor.u32 %v444, 2147483648
      %v446 = vmul.f32 %v445, 1.442695
      %v447 = vpow.pop %v446
      %v448 = vadd.f32 %v447, 1.0
      %v449 = vrcp.pop %v448
      %v450 = vmul.f32 1.0, %v449
      %v451 = vmul.f32 %v439, %v450
      %v452 = vld [vmem:[#allocation2] sm:$0xff]
      %v453 = vpack.c.bf16 %v451, %v451
      %v454 = vld [vmem:[%s333] sm:$0xf]
      %v455 = vld [vmem:[%s333 + $0x4] sm:$0xf]
      %v456 = vld [vmem:[%s333 + $0x8] sm:$0xf]
      %v457 = vld [vmem:[%s333 + $0xc] sm:$0xf]
      %v458 = vld [vmem:[%s333 + $0x10] sm:$0xf]
      %v459 = vld [vmem:[%s333 + $0x14] sm:$0xf]
      %v460 = vld [vmem:[%s333 + $0x18] sm:$0xf]
      %v461 = vld [vmem:[%s333 + $0x1c] sm:$0xf]
      %v462 = vld [vmem:[%s333 + $0x20] sm:$0xf]
      %v463 = vld [vmem:[%s333 + $0x24] sm:$0xf]
      %v464 = vld [vmem:[%s333 + $0x28] sm:$0xf]
      %v465 = vld [vmem:[%s333 + $0x2c] sm:$0xf]
      %v466 = vld [vmem:[%s333 + $0x30] sm:$0xf]
      %v467 = vld [vmem:[%s333 + $0x34] sm:$0xf]
      %v468 = vld [vmem:[%s333 + $0x38] sm:$0xf]
      %v469 = vld [vmem:[%s333 + $0x3c] sm:$0xf]
      %v486 = vunpack.c.l.b16 %v454
      %v487 = vunpack.c.l.b16 %v455
      %v488 = vunpack.c.l.b16 %v456
      %v489 = vunpack.c.l.b16 %v457
      %v490 = vunpack.c.l.b16 %v458
      %v491 = vunpack.c.l.b16 %v459
      %v492 = vunpack.c.l.b16 %v460
      %v493 = vunpack.c.l.b16 %v461
      %v494 = vunpack.c.l.b16 %v462
      %v495 = vunpack.c.l.b16 %v463
      %v496 = vunpack.c.l.b16 %v464
      %v497 = vunpack.c.l.b16 %v465
      %v498 = vunpack.c.l.b16 %v466
      %v499 = vunpack.c.l.b16 %v467
      %v500 = vunpack.c.l.b16 %v468
      %v501 = vunpack.c.l.b16 %v469
      %v502 = vpack.c.b16 %v487, %v486
      %v503 = vpack.c.b16 %v489, %v488
      %v504 = vpack.c.b16 %v491, %v490
      %v505 = vpack.c.b16 %v493, %v492
      %v506 = vpack.c.b16 %v495, %v494
      %v507 = vpack.c.b16 %v497, %v496
      %v508 = vpack.c.b16 %v499, %v498
      %v509 = vpack.c.b16 %v501, %v500
      %518 = vmatprep.subr.bf16.mxu0 0
      %519 = vmatpush1.bf16.msra.mxu0 %v502
      %520 = vmatprep.subr.bf16.mxu0 0
      %521 = vmatpush1.bf16.msra.mxu0 %v503
      %522 = vmatprep.subr.bf16.mxu0 0
      %523 = vmatpush1.bf16.msra.mxu0 %v504
      %524 = vmatprep.subr.bf16.mxu0 0
      %525 = vmatpush1.bf16.msra.mxu0 %v505
      %526 = vmatprep.subr.bf16.mxu0 0
      %527 = vmatpush1.bf16.msra.mxu0 %v506
      %528 = vmatprep.subr.bf16.mxu0 0
      %529 = vmatpush1.bf16.msra.mxu0 %v507
      %530 = vmatprep.subr.bf16.mxu0 0
      %531 = vmatpush1.bf16.msra.mxu0 %v508
      %532 = vmatprep.subr.bf16.mxu0 0
      %533 = vmatpush1.bf16.msra.mxu0 %v509
      %534 = vmatprep.subr.bf16.mxu0 0
      %535 = vmatpush1.bf16.msra.mxu0 0
      %536 = vmatprep.subr.bf16.mxu0 0
      %537 = vmatpush1.bf16.msra.mxu0 0
      %538 = vmatprep.subr.bf16.mxu0 0
      %539 = vmatpush1.bf16.msra.mxu0 0
      %540 = vmatprep.subr.bf16.mxu0 0
      %541 = vmatpush1.bf16.msra.mxu0 0
      %542 = vmatprep.subr.bf16.mxu0 0
      %543 = vmatpush1.bf16.msra.mxu0 0
      %544 = vmatprep.subr.bf16.mxu0 0
      %545 = vmatpush1.bf16.msra.mxu0 0
      %546 = vmatprep.subr.bf16.mxu0 0
      %547 = vmatpush1.bf16.msra.mxu0 0
      %548 = vmatprep.subr.bf16.mxu0 0
      %549 = vmatpush1.bf16.msra.mxu0 0
      %550 = vmatprep.mubr.bf16.mxu0 0
      %551 = vmatmul.mubr.bf16.gmra.mrb[0].mxu0 %v453
      %v552 = vpop.f32.mrb[0].mxu0
      %v553 = vadd.f32 0.0, %v552
      %v554 = vpop.f32.mrb[0].mxu0
      %v555 = vpop.f32.mrb[0].mxu0
      %v556 = vpop.f32.mrb[0].mxu0
      %557 = vdwg.mxu0
      %v558 = vadd.f32 %v452, %v553
      %559 = vst.msk [vmem:[#allocation2] sm:$0xff] %vm343, %v558
      // Predicated region
      $region53: #{_lambda_.36} parent=47 // pred_check
        %p560 = pneg %p373
      $region54: #{_lambda_.36} parent=47 // pred_check_branch
        %562 = sbr.rel (%p560) target = $region56
      $region55: #{_lambda_.36} parent=47 // pred_region
        %v563 = vld [vmem:[#allocation2] sm:$0xff]
        %v564 = vld [vmem:[%s6] sm:$0x1]
        %v566 = vlaneseq
        %v567 = vshrl.u32 %v566, 7
        %v568 = vsub.s32 0, %v567
        %v569 = vrot.slane %v564, %v568
        %v571 = vadd.f32 %v563, %v569
        %v572 = vadd.f32 %v571, %v340
        %573 = vst.msk [vmem:[%s338] sm:$0xff] %vm343, %v572
      $region56: #{_lambda_.36} parent=47 // pred_fallthru
        _
      %p574 = scmp.lt.s32.totalorder %s22, 2
      %s575 = scalar_select %p574, %s22, 2
      %s576 = smul.addr %s575, 8
      %s577 = scalar_lea.vmem %s7, %s576
      // Predicated region
      $region57: #{_lambda_.36} parent=47 // pred_check
        %p578 = pneg %p215
      $region58: #{_lambda_.36} parent=47 // pred_check_branch
        %580 = sbr.rel (%p578) target = $region60
      $region59: #{_lambda_.36} parent=47 // pred_region
        _
      $region60: #{_lambda_.36} parent=47 // pred_fallthru
        _
    $region48: #{_lambda_.36} parent=5 // pred_fallthru
      _
    %p581 = scmp.le.s32.totalorder 2, %s13
    // Predicated region
    $region61: #{_lambda_.36} parent=5 // pred_check
      %p582 = pneg %p581
    $region62: #{_lambda_.36} parent=5 // pred_check_branch
      %584 = sbr.rel (%p582) target = $region64
    $region63: #{_lambda_.36} parent=5 // pred_region
      %s585 = ssub.s32 %s13, 2
      // Predicated region
      $region65: #{_lambda_.36} parent=63 // pred_check
        %p586 = pneg %p221
      $region66: #{_lambda_.36} parent=63 // pred_check_branch
        %588 = sbr.rel (%p586) target = $region68
      $region67: #{_lambda_.36} parent=63 // pred_region
        %p589 = scmp.lt.s32.totalorder %s24, 2
        %s590 = scalar_select %p589, %s24, 2
        %s591 = smul.addr %s590, 8
        %s592 = scalar_lea.vmem %s7, %s591
      $region68: #{_lambda_.36} parent=63 // pred_fallthru
        _
    $region64: #{_lambda_.36} parent=5 // pred_fallthru
      _
  $region6: #{_lambda_.36} parent=0 // loop_footer
    %s17 = sadd.s32 1, %s13
  $region7: #{_lambda_.36} parent=0 // loop_footer_branch
    %12 = sbr.rel target = $region3
  $region8: #{_lambda_.36} parent=0 // loop_exit
    _

// kernel: _lambda_.34
$region0: #{_lambda_.34}
  #allocation0 [shape = 'u32[]', space=smem, size = 0x4, offset = 0x4, fixed_abs, tag = 'smem constant byte address 0x4 - core index']
  #allocation1 [shape = 'u32[144,128]{1,0:T(1,128)}', space=vmem, size = 0x12000, scoped, tag = 'internal scratch']
  #allocation2 [shape = 'f32[4,8,1]{2,1,0:T(8,128)}', space=vmem, size = 0x4000, scoped, tag = 'scratch operand']
  #allocation3 [shape = 'f32[4,8,1]{2,1,0:T(8,128)}', space=vmem, size = 0x4000, scoped, tag = 'scratch operand']
  #allocation4 [shape = 'f32[4,8,8]{2,1,0:T(8,128)}', space=vmem, size = 0x4000, scoped, tag = 'scratch operand']
  %s0 = inlined_call_operand.vmem [shape: bf16[3,8,32], index: 0, kind: input, shape index: {}]
  %s1 = inlined_call_operand.vmem [shape: bf16[3,8,32], index: 1, kind: input, shape index: {}]
  %s2 = inlined_call_operand.vmem [shape: bf16[3,8,32], index: 2, kind: input, shape index: {}]
  %s3 = inlined_call_operand.vmem [shape: bf16[3,8,32], index: 3, kind: output, shape index: {}]
  %s4 = sld [smem:[#allocation0]]
  $region53: #{_lambda_.34} parent=0
    _
  %s6 = ssub.s32 1, %s4
  %s7 = scalar_select 0, %s6, %s4
  loop: start=0, step=1, limit=5
  $region2: #{_lambda_.34} parent=0 // loop_pre_header
    _
  $region3: #{_lambda_.34} parent=0 // loop_header
    %s9 = sphi 0, %s13
    %p10 = scmp.ge.s32.totalorder %s9, 5
    %s16 = sphi 0, %s35
    %s17 = sphi 0, %s31
    %s18 = sphi 0, %s27
    %s19 = sphi 0, %s16
    %s20 = sphi 0, %s17
    %s21 = sphi 0, %s18
    %s22 = sphi 0, %s19
    %s23 = sphi 0, %s20
    %s24 = sphi 0, %s21
    %s40 = sphi 0, %s42
    %s43 = sphi 0, %s40
    %s44 = sphi 0, %s43
    %s60 = sphi 0, %s44
    %s68 = sphi 0, %s70
    %s71 = sphi 0, %s68
    %s72 = sphi 0, %s71
    %s88 = sphi 0, %s72
    %s96 = sphi 0, %s98
    %s99 = sphi 0, %s96
    %s100 = sphi 0, %s99
    %s116 = sphi 0, %s100
    %s124 = sphi 0, %s126
    %s127 = sphi 0, %s124
    %s128 = sphi 0, %s127
    %s144 = sphi 0, %s128
  $region4: #{_lambda_.34} parent=0 // loop_header_branch
    %12 = sbr.rel (%p10) target = $region8
  $region5: #{_lambda_.34} parent=0 // loop_body
    %s14 = ssub.s32 %s9, 1
    %s15 = ssub.s32 %s9, 2
    %s25 = sadd.s32 1, %s18
    %p26 = scmp.ge.s32.totalorder %s25, 1
    %s27 = scalar_select %p26, 0, %s25
    %s28 = sadd.s32 1, %s17
    %s29 = scalar_select %p26, %s28, %s17
    %p30 = scmp.ge.s32.totalorder %s29, 1
    %s31 = scalar_select %p30, 0, %s29
    %s32 = sadd.s32 1, %s16
    %s33 = scalar_select %p30, %s32, %s16
    %p34 = scmp.ge.s32.totalorder %s33, 3
    %s35 = scalar_select %p34, 0, %s33
    %s36 = ssub.s32 %s16, %s35
    %s37 = ssub.s32 %s17, %s31
    %s38 = sor.u32 %s36, %s37
    %p39 = scmp.eq.s32.totalorder %s38, 0
    %s41 = sadd.s32 %s40, 1
    %s42 = scalar_select %p39, %s40, %s41
    %p45 = pneg %p39
    %p46 = scmp.eq.s32.totalorder %s9, 2
    %p47 = por %p45, %p46
    %p48 = scmp.ne.s32.totalorder %s40, %s43
    %p49 = scmp.eq.s32.totalorder %s9, 0
    %p50 = por %p48, %p49
    %p51 = scmp.ne.s32.totalorder %s40, %s43
    %p52 = scmp.eq.s32.totalorder %s14, 2
    %p53 = por %p51, %p52
    %p54 = scmp.ne.s32.totalorder %s43, %s44
    %p55 = scmp.eq.s32.totalorder %s14, 0
    %p56 = por %p54, %p55
    %p57 = scmp.ne.s32.totalorder %s43, %s44
    %p58 = scmp.eq.s32.totalorder %s15, 2
    %p59 = por %p57, %p58
    %p61 = scmp.ne.s32.totalorder %s44, %s60
    %p62 = scmp.eq.s32.totalorder %s15, 0
    %p63 = por %p61, %p62
    %s64 = ssub.s32 %s16, %s35
    %s65 = ssub.s32 %s18, %s27
    %s66 = sor.u32 %s64, %s65
    %p67 = scmp.eq.s32.totalorder %s66, 0
    %s69 = sadd.s32 %s68, 1
    %s70 = scalar_select %p67, %s68, %s69
    %p73 = pneg %p67
    %p74 = scmp.eq.s32.totalorder %s9, 2
    %p75 = por %p73, %p74
    %p76 = scmp.ne.s32.totalorder %s68, %s71
    %p77 = scmp.eq.s32.totalorder %s9, 0
    %p78 = por %p76, %p77
    %p79 = scmp.ne.s32.totalorder %s68, %s71
    %p80 = scmp.eq.s32.totalorder %s14, 2
    %p81 = por %p79, %p80
    %p82 = scmp.ne.s32.totalorder %s71, %s72
    %p83 = scmp.eq.s32.totalorder %s14, 0
    %p84 = por %p82, %p83
    %p85 = scmp.ne.s32.totalorder %s71, %s72
    %p86 = scmp.eq.s32.totalorder %s15, 2
    %p87 = por %p85, %p86
    %p89 = scmp.ne.s32.totalorder %s72, %s88
    %p90 = scmp.eq.s32.totalorder %s15, 0
    %p91 = por %p89, %p90
    %s92 = ssub.s32 %s16, %s35
    %s93 = ssub.s32 %s18, %s27
    %s94 = sor.u32 %s92, %s93
    %p95 = scmp.eq.s32.totalorder %s94, 0
    %s97 = sadd.s32 %s96, 1
    %s98 = scalar_select %p95, %s96, %s97
    %p101 = pneg %p95
    %p102 = scmp.eq.s32.totalorder %s9, 2
    %p103 = por %p101, %p102
    %p104 = scmp.ne.s32.totalorder %s96, %s99
    %p105 = scmp.eq.s32.totalorder %s9, 0
    %p106 = por %p104, %p105
    %p107 = scmp.ne.s32.totalorder %s96, %s99
    %p108 = scmp.eq.s32.totalorder %s14, 2
    %p109 = por %p107, %p108
    %p110 = scmp.ne.s32.totalorder %s99, %s100
    %p111 = scmp.eq.s32.totalorder %s14, 0
    %p112 = por %p110, %p111
    %p113 = scmp.ne.s32.totalorder %s99, %s100
    %p114 = scmp.eq.s32.totalorder %s15, 2
    %p115 = por %p113, %p114
    %p117 = scmp.ne.s32.totalorder %s100, %s116
    %p118 = scmp.eq.s32.totalorder %s15, 0
    %p119 = por %p117, %p118
    %s120 = ssub.s32 %s16, %s35
    %s121 = ssub.s32 %s17, %s31
    %s122 = sor.u32 %s120, %s121
    %p123 = scmp.eq.s32.totalorder %s122, 0
    %s125 = sadd.s32 %s124, 1
    %s126 = scalar_select %p123, %s124, %s125
    %p129 = pneg %p123
    %p130 = scmp.eq.s32.totalorder %s9, 2
    %p131 = por %p129, %p130
    %p132 = scmp.ne.s32.totalorder %s124, %s127
    %p133 = scmp.eq.s32.totalorder %s9, 0
    %p134 = por %p132, %p133
    %p135 = scmp.ne.s32.totalorder %s124, %s127
    %p136 = scmp.eq.s32.totalorder %s14, 2
    %p137 = por %p135, %p136
    %p138 = scmp.ne.s32.totalorder %s127, %s128
    %p139 = scmp.eq.s32.totalorder %s14, 0
    %p140 = por %p138, %p139
    %p141 = scmp.ne.s32.totalorder %s127, %s128
    %p142 = scmp.eq.s32.totalorder %s15, 2
    %p143 = por %p141, %p142
    %p145 = scmp.ne.s32.totalorder %s128, %s144
    %p146 = scmp.eq.s32.totalorder %s15, 0
    %p147 = por %p145, %p146
    %p148 = scmp.le.s32.totalorder 1, %s9
    %p149 = scmp.lt.s32.totalorder %s9, 4
    %p150 = pnand %p148, %p149
    %p151 = pneg %p150
    // Predicated region
    $region9: #{_lambda_.34} parent=5 // pred_check
      _
    $region10: #{_lambda_.34} parent=5 // pred_check_branch
      %153 = sbr.rel (%p150) target = $region12
    $region11: #{_lambda_.34} parent=5 // pred_region
      %s154 = ssub.s32 %s9, 1
    $region12: #{_lambda_.34} parent=5 // pred_fallthru
      _
    %p155 = scmp.lt.s32.totalorder %s9, 3
    // Predicated region
    $region13: #{_lambda_.34} parent=5 // pred_check
      %p156 = pneg %p155
    $region14: #{_lambda_.34} parent=5 // pred_check_branch
      %158 = sbr.rel (%p156) target = $region16
    $region15: #{_lambda_.34} parent=5 // pred_region
      // Predicated region
      $region17: #{_lambda_.34} parent=15 // pred_check
        %p159 = pneg %p50
      $region18: #{_lambda_.34} parent=15 // pred_check_branch
        %161 = sbr.rel (%p159) target = $region20
      $region19: #{_lambda_.34} parent=15 // pred_region
        %p162 = scmp.lt.s32.totalorder %s16, 2
        %s163 = scalar_select %p162, %s16, 2
        %p164 = scmp.lt.s32.totalorder %s17, 0
        %s165 = scalar_select %p164, %s17, 0
        %s166 = sadd.s32 %s165, %s163
        %s167 = smul.addr %s166, 4
        %s168 = scalar_lea.vmem %s0, %s167
      $region20: #{_lambda_.34} parent=15 // pred_fallthru
        _
      // Predicated region
      $region21: #{_lambda_.34} parent=15 // pred_check
        %p169 = pneg %p78
      $region22: #{_lambda_.34} parent=15 // pred_check_branch
        %171 = sbr.rel (%p169) target = $region24
      $region23: #{_lambda_.34} parent=15 // pred_region
        %p172 = scmp.lt.s32.totalorder %s16, 2
        %s173 = scalar_select %p172, %s16, 2
        %p174 = scmp.lt.s32.totalorder %s18, 0
        %s175 = scalar_select %p174, %s18, 0
        %s176 = sadd.s32 %s175, %s173
        %s177 = smul.addr %s176, 4
        %s178 = scalar_lea.vmem %s1, %s177
      $region24: #{_lambda_.34} parent=15 // pred_fallthru
        _
      // Predicated region
      $region25: #{_lambda_.34} parent=15 // pred_check
        %p179 = pneg %p106
      $region26: #{_lambda_.34} parent=15 // pred_check_branch
        %181 = sbr.rel (%p179) target = $region28
      $region27: #{_lambda_.34} parent=15 // pred_region
        %p182 = scmp.lt.s32.totalorder %s16, 2
        %s183 = scalar_select %p182, %s16, 2
        %p184 = scmp.lt.s32.totalorder %s18, 0
        %s185 = scalar_select %p184, %s18, 0
        %s186 = sadd.s32 %s185, %s183
        %s187 = smul.addr %s186, 4
        %s188 = scalar_lea.vmem %s2, %s187
      $region28: #{_lambda_.34} parent=15 // pred_fallthru
        _
    $region16: #{_lambda_.34} parent=5 // pred_fallthru
      _
    %p189 = scmp.le.s32.totalorder 1, %s9
    %p190 = scmp.lt.s32.totalorder %s9, 4
    %p191 = pnand %p189, %p190
    %p192 = pneg %p191
    // Predicated region
    $region29: #{_lambda_.34} parent=5 // pred_check
      _
    $region30: #{_lambda_.34} parent=5 // pred_check_branch
      %194 = sbr.rel (%p191) target = $region32
    $region31: #{_lambda_.34} parent=5 // pred_region
      %s195 = ssub.s32 %s9, 1
      %p196 = scmp.lt.s32.totalorder %s19, 2
      %s197 = scalar_select %p196, %s19, 2
      %p198 = scmp.lt.s32.totalorder %s20, 0
      %s199 = scalar_select %p198, %s20, 0
      %s200 = sadd.s32 %s199, %s197
      %s201 = smul.addr %s200, 4
      %s202 = scalar_lea.vmem %s0, %s201
      %p203 = pneg %p56
      %p204 = pneg %p53
      %p205 = scmp.lt.s32.totalorder %s19, 2
      %s206 = scalar_select %p205, %s19, 2
      %p207 = scmp.lt.s32.totalorder %s21, 0
      %s208 = scalar_select %p207, %s21, 0
      %s209 = sadd.s32 %s208, %s206
      %s210 = smul.addr %s209, 4
      %s211 = scalar_lea.vmem %s1, %s210
      %p212 = pneg %p84
      %p213 = pneg %p81
      %p214 = scmp.lt.s32.totalorder %s19, 2
      %s215 = scalar_select %p214, %s19, 2
      %p216 = scmp.lt.s32.totalorder %s21, 0
      %s217 = scalar_select %p216, %s21, 0
      %s218 = sadd.s32 %s217, %s215
      %s219 = smul.addr %s218, 4
      %s220 = scalar_lea.vmem %s2, %s219
      %p221 = pneg %p112
      %p222 = pneg %p109
      %p223 = pneg %p140
      %p224 = pneg %p137
      %p225 = scmp.lt.s32.totalorder %s19, 2
      %s226 = scalar_select %p225, %s19, 2
      %p227 = scmp.lt.s32.totalorder %s20, 0
      %s228 = scalar_select %p227, %s20, 0
      %s229 = sadd.s32 %s228, %s226
      %s230 = smul.addr %s229, 4
      %s231 = scalar_lea.vmem %s3, %s230
      %p232 = scmp.lt.s32.totalorder %s19, 2
      %s233 = scalar_select %p232, %s19, 2
      %p234 = scmp.lt.s32.totalorder %s20, 0
      %s235 = scalar_select %p234, %s20, 0
      %s236 = sadd.s32 %s235, %s233
      %s237 = smul.addr %s236, 4
      %s238 = scalar_lea.vmem %s0, %s237
      %p239 = scmp.lt.s32.totalorder %s19, 2
      %s240 = scalar_select %p239, %s19, 2
      %p241 = scmp.lt.s32.totalorder %s21, 0
      %s242 = scalar_select %p241, %s21, 0
      %s243 = sadd.s32 %s242, %s240
      %s244 = smul.addr %s243, 4
      %s245 = scalar_lea.vmem %s1, %s244
      %p246 = scmp.lt.s32.totalorder %s19, 2
      %s247 = scalar_select %p246, %s19, 2
      %p248 = scmp.lt.s32.totalorder %s21, 0
      %s249 = scalar_select %p248, %s21, 0
      %s250 = sadd.s32 %s249, %s247
      %s251 = smul.addr %s250, 4
      %s252 = scalar_lea.vmem %s2, %s251
      %p253 = scmp.lt.s32.totalorder %s19, 2
      %s254 = scalar_select %p253, %s19, 2
      %p255 = scmp.lt.s32.totalorder %s20, 0
      %s256 = scalar_select %p255, %s20, 0
      %s257 = sadd.s32 %s256, %s254
      %s258 = smul.addr %s257, 4
      %s259 = scalar_lea.vmem %s3, %s258
      %p261 = scmp.eq.s32.totalorder %s21, 0
      // Predicated region
      $region33: #{_lambda_.34} parent=31 // pred_check
        %p262 = pneg %p261
      $region34: #{_lambda_.34} parent=31 // pred_check_branch
        %264 = sbr.rel (%p262) target = $region36
      $region35: #{_lambda_.34} parent=31 // pred_region
        %vm265 = vcmask 7168
        %266 = vst.msk [vmem:[#allocation2] sm:$0xff] %vm265, -inf
        %267 = vst.msk [vmem:[#allocation2 + $0x8] sm:$0xff] %vm265, -inf
        %268 = vst.msk [vmem:[#allocation2 + $0x10] sm:$0xff] %vm265, -inf
        %269 = vst.msk [vmem:[#allocation2 + $0x18] sm:$0xff] %vm265, -inf
        %270 = vst.msk [vmem:[#allocation3] sm:$0xff] %vm265, 0.0
        %271 = vst.msk [vmem:[#allocation3 + $0x8] sm:$0xff] %vm265, 0.0
        %272 = vst.msk [vmem:[#allocation3 + $0x10] sm:$0xff] %vm265, 0.0
        %273 = vst.msk [vmem:[#allocation3 + $0x18] sm:$0xff] %vm265, 0.0
        %vm274 = vcmask 64512
        %275 = vst.msk [vmem:[#allocation4] sm:$0xff] %vm274, 0.0
        %276 = vst.msk [vmem:[#allocation4 + $0x8] sm:$0xff] %vm274, 0.0
        %277 = vst.msk [vmem:[#allocation4 + $0x10] sm:$0xff] %vm274, 0.0
        %278 = vst.msk [vmem:[#allocation4 + $0x18] sm:$0xff] %vm274, 0.0
      $region36: #{_lambda_.34} parent=31 // pred_fallthru
        _
      %v279 = vld [vmem:[%s238] sm:$0xf]
      %v280 = vld [vmem:[%s245] sm:$0xf]
      %v281 = vld [vmem:[%s252] sm:$0xf]
      %s282 = smul.u32 %s20, 8
      %v283 = vlaneseq
      %v284 = vshrl.u32 %v283, 7
      %v285 = vstv %s282
      %v286 = vadd.s32 %v285, %v284
      %s287 = smul.u32 %s21, 8
      %v288 = vlaneseq
      %v289 = vand.u32 %v288, 127
      %v290 = vstv %s287
      %v291 = vadd.s32 %v290, %v289
      %vm292 = vcmp.gt.s32.totalorder %v291, %v286
      %v293 = vsel %vm292, -1e+30, 0.0
      %vm294 = vcmask 64512
      %v296 = vsel %vm294, %v279, 0
      %v299 = vsel %vm294, %v280, 0
      %301 = vmatprep.subr.bf16.mxu0 0
      %302 = vmatpush1.bf16.xpose.msra.mxu0 %v299
      %303 = vmatprep.subr.bf16.mxu0 0
      %304 = vmatpush1.bf16.xpose.msra.mxu0 0
      %305 = vmatprep.subr.bf16.mxu0 0
      %306 = vmatpush1.bf16.xpose.msra.mxu0 0
      %307 = vmatprep.subr.bf16.mxu0 0
      %308 = vmatpush1.bf16.xpose.msra.mxu0 0
      %309 = vmatprep.subr.bf16.mxu0 0
      %310 = vmatpush1.bf16.xpose.msra.mxu0 0
      %311 = vmatprep.subr.bf16.mxu0 0
      %312 = vmatpush1.bf16.xpose.msra.mxu0 0
      %313 = vmatprep.subr.bf16.mxu0 0
      %314 = vmatpush1.bf16.xpose.msra.mxu0 0
      %315 = vmatprep.subr.bf16.mxu0 0
      %316 = vmatpush1.bf16.xpose.msra.mxu0 0
      %317 = vmatprep.subr.bf16.mxu0 0
      %318 = vmatpush1.bf16.xpose.msra.mxu0 0
      %319 = vmatprep.subr.bf16.mxu0 0
      %320 = vmatpush1.bf16.xpose.msra.mxu0 0
      %321 = vmatprep.subr.bf16.mxu0 0
      %322 = vmatpush1.bf16.xpose.msra.mxu0 0
      %323 = vmatprep.subr.bf16.mxu0 0
      %324 = vmatpush1.bf16.xpose.msra.mxu0 0
      %325 = vmatprep.subr.bf16.mxu0 0
      %326 = vmatpush1.bf16.xpose.msra.mxu0 0
      %327 = vmatprep.subr.bf16.mxu0 0
      %328 = vmatpush1.bf16.xpose.msra.mxu0 0
      %329 = vmatprep.subr.bf16.mxu0 0
      %330 = vmatpush1.bf16.xpose.msra.mxu0 0
      %331 = vmatprep.subr.bf16.mxu0 0
      %332 = vmatpush1.bf16.xpose.msra.mxu0 0
      %333 = vmatprep.mubr.bf16.mxu0 0
      %334 = vmatmul.mubr.bf16.gmra.mrb[0].mxu0 %v296
      %v335 = vpop.f32.mrb[0].mxu0
      %v336 = vadd.f32 0.0, %v335
      %v337 = vpop.f32.mrb[0].mxu0
      %v338 = vpop.f32.mrb[0].mxu0
      %v339 = vpop.f32.mrb[0].mxu0
      %340 = vdwg.mxu0
      %v341 = vmul.f32 %v336, 0.35355338
      %v342 = vadd.f32 %v341, %v293
      %v343 = vld [vmem:[#allocation2] sm:$0xff]
      %v344 = vsel %vm294, %v342, -inf
      %345 = vmax.xlane.f32.xlu0 %v344
      %v346 = vpop.xlane.xlu0 %345
      %v347 = vmax.f32 %v343, %v346
      %v348 = vsub.f32 %v343, %v347
      %v349 = vmul.f32 %v348, 1.442695
      %v350 = vpow.pop %v349
      %352 = vset.pattern.permute.xlu0 0
      %353 = vperm.xlu0 %352, %v347
      %v354 = vpop.permute.xlu0 %353
      %v356 = vsub.f32 %v342, %v354
      %v357 = vmul.f32 %v356, 1.442695
      %v358 = vpow.pop %v357
      %v359 = vld [vmem:[#allocation3] sm:$0xff]
      %v360 = vmul.f32 %v350, %v359
      %v361 = vsel %vm294, %v358, 0.0
      %362 = vadd.xlane.f32.xlu0 %v361
      %v363 = vpop.xlane.xlu0 %362
      %v364 = vadd.f32 %v360, %v363
      %vm365 = vcmask 7168
      %366 = vst.msk [vmem:[#allocation3] sm:$0xff] %vm365, %v364
      %v367 = vld [vmem:[#allocation4] sm:$0xff]
      %369 = vset.pattern.permute.xlu0 0
      %370 = vperm.xlu0 %369, %v350
      %v371 = vpop.permute.xlu0 %370
      %v373 = vmul.f32 %v371, %v367
      %v374 = vpack.c.bf16 %v358, %v358
      %v376 = vsel %vm294, %v374, 0
      %vm378 = vcmask 1043456
      %v380 = vsel %vm378, %v281, 0
      %382 = vmatprep.subr.bf16.mxu0 0
      %383 = vmatpush1.bf16.msra.mxu0 %v380
      %384 = vmatprep.subr.bf16.mxu0 0
      %385 = vmatpush1.bf16.msra.mxu0 0
      %386 = vmatprep.subr.bf16.mxu0 0
      %387 = vmatpush1.bf16.msra.mxu0 0
      %388 = vmatprep.subr.bf16.mxu0 0
      %389 = vmatpush1.bf16.msra.mxu0 0
      %390 = vmatprep.subr.bf16.mxu0 0
      %391 = vmatpush1.bf16.msra.mxu0 0
      %392 = vmatprep.subr.bf16.mxu0 0
      %393 = vmatpush1.bf16.msra.mxu0 0
      %394 = vmatprep.subr.bf16.mxu0 0
      %395 = vmatpush1.bf16.msra.mxu0 0
      %396 = vmatprep.subr.bf16.mxu0 0
      %397 = vmatpush1.bf16.msra.mxu0 0
      %398 = vmatprep.subr.bf16.mxu0 0
      %399 = vmatpush1.bf16.msra.mxu0 0
      %400 = vmatprep.subr.bf16.mxu0 0
      %401 = vmatpush1.bf16.msra.mxu0 0
      %402 = vmatprep.subr.bf16.mxu0 0
      %403 = vmatpush1.bf16.msra.mxu0 0
      %404 = vmatprep.subr.bf16.mxu0 0
      %405 = vmatpush1.bf16.msra.mxu0 0
      %406 = vmatprep.subr.bf16.mxu0 0
      %407 = vmatpush1.bf16.msra.mxu0 0
      %408 = vmatprep.subr.bf16.mxu0 0
      %409 = vmatpush1.bf16.msra.mxu0 0
      %410 = vmatprep.subr.bf16.mxu0 0
      %411 = vmatpush1.bf16.msra.mxu0 0
      %412 = vmatprep.subr.bf16.mxu0 0
      %413 = vmatpush1.bf16.msra.mxu0 0
      %414 = vmatprep.mubr.bf16.mxu0 0
      %415 = vmatmul.mubr.bf16.gmra.mrb[0].mxu0 %v376
      %v416 = vpop.f32.mrb[0].mxu0
      %v417 = vadd.f32 0.0, %v416
      %v418 = vpop.f32.mrb[0].mxu0
      %v419 = vpop.f32.mrb[0].mxu0
      %v420 = vpop.f32.mrb[0].mxu0
      %421 = vdwg.mxu0
      %v422 = vadd.f32 %v373, %v417
      %423 = vst.msk [vmem:[#allocation4] sm:$0xff] %vm294, %v422
      %424 = vst.msk [vmem:[#allocation2] sm:$0xff] %vm365, %v347
      %v426 = vunpack.c.l.b16 %v279
      %v427 = vpack.c.b16 %v426, %v426
      %428 = vrot.lane.b32.xlu0 %v427, 120
      %v429 = vpop.permute.xlu0 %428
      %v431 = vunpack.c.l.b16 %v280
      %v432 = vpack.c.b16 %v431, %v431
      %433 = vrot.lane.b32.xlu0 %v432, 120
      %v434 = vpop.permute.xlu0 %433
      %v436 = vsel %vm294, %v429, 0
      %v439 = vsel %vm294, %v434, 0
      %441 = vmatprep.subr.bf16.mxu0 0
      %442 = vmatpush1.bf16.xpose.msra.mxu0 %v439
      %443 = vmatprep.subr.bf16.mxu0 0
      %444 = vmatpush1.bf16.xpose.msra.mxu0 0
      %445 = vmatprep.subr.bf16.mxu0 0
      %446 = vmatpush1.bf16.xpose.msra.mxu0 0
      %447 = vmatprep.subr.bf16.mxu0 0
      %448 = vmatpush1.bf16.xpose.msra.mxu0 0
      %449 = vmatprep.subr.bf16.mxu0 0
      %450 = vmatpush1.bf16.xpose.msra.mxu0 0
      %451 = vmatprep.subr.bf16.mxu0 0
      %452 = vmatpush1.bf16.xpose.msra.mxu0 0
      %453 = vmatprep.subr.bf16.mxu0 0
      %454 = vmatpush1.bf16.xpose.msra.mxu0 0
      %455 = vmatprep.subr.bf16.mxu0 0
      %456 = vmatpush1.bf16.xpose.msra.mxu0 0
      %457 = vmatprep.subr.bf16.mxu0 0
      %458 = vmatpush1.bf16.xpose.msra.mxu0 0
      %459 = vmatprep.subr.bf16.mxu0 0
      %460 = vmatpush1.bf16.xpose.msra.mxu0 0
      %461 = vmatprep.subr.bf16.mxu0 0
      %462 = vmatpush1.bf16.xpose.msra.mxu0 0
      %463 = vmatprep.subr.bf16.mxu0 0
      %464 = vmatpush1.bf16.xpose.msra.mxu0 0
      %465 = vmatprep.subr.bf16.mxu0 0
      %466 = vmatpush1.bf16.xpose.msra.mxu0 0
      %467 = vmatprep.subr.bf16.mxu0 0
      %468 = vmatpush1.bf16.xpose.msra.mxu0 0
      %469 = vmatprep.subr.bf16.mxu0 0
      %470 = vmatpush1.bf16.xpose.msra.mxu0 0
      %471 = vmatprep.subr.bf16.mxu0 0
      %472 = vmatpush1.bf16.xpose.msra.mxu0 0
      %473 = vmatprep.mubr.bf16.mxu0 0
      %474 = vmatmul.mubr.bf16.gmra.mrb[0].mxu0 %v436
      %v475 = vpop.f32.mrb[0].mxu0
      %v476 = vadd.f32 0.0, %v475
      %v477 = vpop.f32.mrb[0].mxu0
      %v478 = vpop.f32.mrb[0].mxu0
      %v479 = vpop.f32.mrb[0].mxu0
      %480 = vdwg.mxu0
      %v481 = vmul.f32 %v476, 0.35355338
      %v482 = vadd.f32 %v481, %v293
      %s483 = scalar_lea.vmem [#allocation2], 8
      %v484 = vld [vmem:[%s483] sm:$0xff]
      %v485 = vsel %vm294, %v482, -inf
      %486 = vmax.xlane.f32.xlu0 %v485
      %v487 = vpop.xlane.xlu0 %486
      %v488 = vmax.f32 %v484, %v487
      %v489 = vsub.f32 %v484, %v488
      %v490 = vmul.f32 %v489, 1.442695
      %v491 = vpow.pop %v490
      %493 = vset.pattern.permute.xlu0 0
      %494 = vperm.xlu0 %493, %v488
      %v495 = vpop.permute.xlu0 %494
      %v497 = vsub.f32 %v482, %v495
      %v498 = vmul.f32 %v497, 1.442695
      %v499 = vpow.pop %v498
      %s500 = scalar_lea.vmem [#allocation3], 8
      %v501 = vld [vmem:[%s500] sm:$0xff]
      %v502 = vmul.f32 %v491, %v501
      %v503 = vsel %vm294, %v499, 0.0
      %504 = vadd.xlane.f32.xlu0 %v503
      %v505 = vpop.xlane.xlu0 %504
      %v506 = vadd.f32 %v502, %v505
      %507 = vst.msk [vmem:[%s500] sm:$0xff] %vm365, %v506
      %s508 = scalar_lea.vmem [#allocation4], 8
      %v509 = vld [vmem:[%s508] sm:$0xff]
      %511 = vset.pattern.permute.xlu0 0
      %512 = vperm.xlu0 %511, %v491
      %v513 = vpop.permute.xlu0 %512
      %v515 = vmul.f32 %v513, %v509
      %v516 = vpack.c.bf16 %v499, %v499
      %v518 = vunpack.c.l.b16 %v281
      %v519 = vpack.c.b16 %v518, %v518
      %520 = vrot.lane.b32.xlu0 %v519, 120
      %v521 = vpop.permute.xlu0 %520
      %v523 = vsel %vm294, %v516, 0
      %v526 = vsel %vm378, %v521, 0
      %528 = vmatprep.subr.bf16.mxu0 0
      %529 = vmatpush1.bf16.msra.mxu0 %v526
      %530 = vmatprep.subr.bf16.mxu0 0
      %531 = vmatpush1.bf16.msra.mxu0 0
      %532 = vmatprep.subr.bf16.mxu0 0
      %533 = vmatpush1.bf16.msra.mxu0 0
      %534 = vmatprep.subr.bf16.mxu0 0
      %535 = vmatpush1.bf16.msra.mxu0 0
      %536 = vmatprep.subr.bf16.mxu0 0
      %537 = vmatpush1.bf16.msra.mxu0 0
      %538 = vmatprep.subr.bf16.mxu0 0
      %539 = vmatpush1.bf16.msra.mxu0 0
      %540 = vmatprep.subr.bf16.mxu0 0
      %541 = vmatpush1.bf16.msra.mxu0 0
      %542 = vmatprep.subr.bf16.mxu0 0
      %543 = vmatpush1.bf16.msra.mxu0 0
      %544 = vmatprep.subr.bf16.mxu0 0
      %545 = vmatpush1.bf16.msra.mxu0 0
      %546 = vmatprep.subr.bf16.mxu0 0
      %547 = vmatpush1.bf16.msra.mxu0 0
      %548 = vmatprep.subr.bf16.mxu0 0
      %549 = vmatpush1.bf16.msra.mxu0 0
      %550 = vmatprep.subr.bf16.mxu0 0
      %551 = vmatpush1.bf16.msra.mxu0 0
      %552 = vmatprep.subr.bf16.mxu0 0
      %553 = vmatpush1.bf16.msra.mxu0 0
      %554 = vmatprep.subr.bf16.mxu0 0
      %555 = vmatpush1.bf16.msra.mxu0 0
      %556 = vmatprep.subr.bf16.mxu0 0
      %557 = vmatpush1.bf16.msra.mxu0 0
      %558 = vmatprep.subr.bf16.mxu0 0
      %559 = vmatpush1.bf16.msra.mxu0 0
      %560 = vmatprep.mubr.bf16.mxu0 0
      %561 = vmatmul.mubr.bf16.gmra.mrb[0].mxu0 %v523
      %v562 = vpop.f32.mrb[0].mxu0
      %v563 = vadd.f32 0.0, %v562
      %v564 = vpop.f32.mrb[0].mxu0
      %v565 = vpop.f32.mrb[0].mxu0
      %v566 = vpop.f32.mrb[0].mxu0
      %567 = vdwg.mxu0
      %v568 = vadd.f32 %v515, %v563
      %569 = vst.msk [vmem:[%s508] sm:$0xff] %vm294, %v568
      %570 = vst.msk [vmem:[%s483] sm:$0xff] %vm365, %v488
      %571 = vrot.lane.b32.xlu0 %v427, 112
      %v572 = vpop.permute.xlu0 %571
      %573 = vrot.lane.b32.xlu0 %v432, 112
      %v574 = vpop.permute.xlu0 %573
      %v576 = vsel %vm294, %v572, 0
      %v579 = vsel %vm294, %v574, 0
      %581 = vmatprep.subr.bf16.mxu0 0
      %582 = vmatpush1.bf16.xpose.msra.mxu0 %v579
      %583 = vmatprep.subr.bf16.mxu0 0
      %584 = vmatpush1.bf16.xpose.msra.mxu0 0
      %585 = vmatprep.subr.bf16.mxu0 0
      %586 = vmatpush1.bf16.xpose.msra.mxu0 0
      %587 = vmatprep.subr.bf16.mxu0 0
      %588 = vmatpush1.bf16.xpose.msra.mxu0 0
      %589 = vmatprep.subr.bf16.mxu0 0
      %590 = vmatpush1.bf16.xpose.msra.mxu0 0
      %591 = vmatprep.subr.bf16.mxu0 0
      %592 = vmatpush1.bf16.xpose.msra.mxu0 0
      %593 = vmatprep.subr.bf16.mxu0 0
      %594 = vmatpush1.bf16.xpose.msra.mxu0 0
      %595 = vmatprep.subr.bf16.mxu0 0
      %596 = vmatpush1.bf16.xpose.msra.mxu0 0
      %597 = vmatprep.subr.bf16.mxu0 0
      %598 = vmatpush1.bf16.xpose.msra.mxu0 0
      %599 = vmatprep.subr.bf16.mxu0 0
      %600 = vmatpush1.bf16.xpose.msra.mxu0 0
      %601 = vmatprep.subr.bf16.mxu0 0
      %602 = vmatpush1.bf16.xpose.msra.mxu0 0
      %603 = vmatprep.subr.bf16.mxu0 0
      %604 = vmatpush1.bf16.xpose.msra.mxu0 0
      %605 = vmatprep.subr.bf16.mxu0 0
      %606 = vmatpush1.bf16.xpose.msra.mxu0 0
      %607 = vmatprep.subr.bf16.mxu0 0
      %608 = vmatpush1.bf16.xpose.msra.mxu0 0
      %609 = vmatprep.subr.bf16.mxu0 0
      %610 = vmatpush1.bf16.xpose.msra.mxu0 0
      %611 = vmatprep.subr.bf16.mxu0 0
      %612 = vmatpush1.bf16.xpose.msra.mxu0 0
      %613 = vmatprep.mubr.bf16.mxu0 0
      %614 = vmatmul.mubr.bf16.gmra.mrb[0].mxu0 %v576
      %v615 = vpop.f32.mrb[0].mxu0
      %v616 = vadd.f32 0.0, %v615
      %v617 = vpop.f32.mrb[0].mxu0
      %v618 = vpop.f32.mrb[0].mxu0
      %v619 = vpop.f32.mrb[0].mxu0
      %620 = vdwg.mxu0
      %v621 = vmul.f32 %v616, 0.35355338
      %v622 = vadd.f32 %v621, %v293
      %s623 = scalar_lea.vmem [#allocation2], 16
      %v624 = vld [vmem:[%s623] sm:$0xff]
      %v625 = vsel %vm294, %v622, -inf
      %626 = vmax.xlane.f32.xlu0 %v625
      %v627 = vpop.xlane.xlu0 %626
      %v628 = vmax.f32 %v624, %v627
      %v629 = vsub.f32 %v624, %v628
      %v630 = vmul.f32 %v629, 1.442695
      %v631 = vpow.pop %v630
      %633 = vset.pattern.permute.xlu0 0
      %634 = vperm.xlu0 %633, %v628
      %v635 = vpop.permute.xlu0 %634
      %v637 = vsub.f32 %v622, %v635
      %v638 = vmul.f32 %v637, 1.442695
      %v639 = vpow.pop %v638
      %s640 = scalar_lea.vmem [#allocation3], 16
      %v641 = vld [vmem:[%s640] sm:$0xff]
      %v642 = vmul.f32 %v631, %v641
      %v643 = vsel %vm294, %v639, 0.0
      %644 = vadd.xlane.f32.xlu0 %v643
      %v645 = vpop.xlane.xlu0 %644
      %v646 = vadd.f32 %v642, %v645
      %647 = vst.msk [vmem:[%s640] sm:$0xff] %vm365, %v646
      %s648 = scalar_lea.vmem [#allocation4], 16
      %v649 = vld [vmem:[%s648] sm:$0xff]
      %651 = vset.pattern.permute.xlu0 0
      %652 = vperm.xlu0 %651, %v631
      %v653 = vpop.permute.xlu0 %652
      %v655 = vmul.f32 %v653, %v649
      %v656 = vpack.c.bf16 %v639, %v639
      %657 = vrot.lane.b32.xlu0 %v519, 112
      %v658 = vpop.permute.xlu0 %657
      %v660 = vsel %vm294, %v656, 0
      %v663 = vsel %vm378, %v658, 0
      %665 = vmatprep.subr.bf16.mxu0 0
      %666 = vmatpush1.bf16.msra.mxu0 %v663
      %667 = vmatprep.subr.bf16.mxu0 0
      %668 = vmatpush1.bf16.msra.mxu0 0
      %669 = vmatprep.subr.bf16.mxu0 0
      %670 = vmatpush1.bf16.msra.mxu0 0
      %671 = vmatprep.subr.bf16.mxu0 0
      %672 = vmatpush1.bf16.msra.mxu0 0
      %673 = vmatprep.subr.bf16.mxu0 0
      %674 = vmatpush1.bf16.msra.mxu0 0
      %675 = vmatprep.subr.bf16.mxu0 0
      %676 = vmatpush1.bf16.msra.mxu0 0
      %677 = vmatprep.subr.bf16.mxu0 0
      %678 = vmatpush1.bf16.msra.mxu0 0
      %679 = vmatprep.subr.bf16.mxu0 0
      %680 = vmatpush1.bf16.msra.mxu0 0
      %681 = vmatprep.subr.bf16.mxu0 0
      %682 = vmatpush1.bf16.msra.mxu0 0
      %683 = vmatprep.subr.bf16.mxu0 0
      %684 = vmatpush1.bf16.msra.mxu0 0
      %685 = vmatprep.subr.bf16.mxu0 0
      %686 = vmatpush1.bf16.msra.mxu0 0
      %687 = vmatprep.subr.bf16.mxu0 0
      %688 = vmatpush1.bf16.msra.mxu0 0
      %689 = vmatprep.subr.bf16.mxu0 0
      %690 = vmatpush1.bf16.msra.mxu0 0
      %691 = vmatprep.subr.bf16.mxu0 0
      %692 = vmatpush1.bf16.msra.mxu0 0
      %693 = vmatprep.subr.bf16.mxu0 0
      %694 = vmatpush1.bf16.msra.mxu0 0
      %695 = vmatprep.subr.bf16.mxu0 0
      %696 = vmatpush1.bf16.msra.mxu0 0
      %697 = vmatprep.mubr.bf16.mxu0 0
      %698 = vmatmul.mubr.bf16.gmra.mrb[0].mxu0 %v660
      %v699 = vpop.f32.mrb[0].mxu0
      %v700 = vadd.f32 0.0, %v699
      %v701 = vpop.f32.mrb[0].mxu0
      %v702 = vpop.f32.mrb[0].mxu0
      %v703 = vpop.f32.mrb[0].mxu0
      %704 = vdwg.mxu0
      %v705 = vadd.f32 %v655, %v700
      %706 = vst.msk [vmem:[%s648] sm:$0xff] %vm294, %v705
      %707 = vst.msk [vmem:[%s623] sm:$0xff] %vm365, %v628
      %708 = vrot.lane.b32.xlu0 %v427, 104
      %v709 = vpop.permute.xlu0 %708
      %710 = vrot.lane.b32.xlu0 %v432, 104
      %v711 = vpop.permute.xlu0 %710
      %v713 = vsel %vm294, %v709, 0
      %v716 = vsel %vm294, %v711, 0
      %718 = vmatprep.subr.bf16.mxu0 0
      %719 = vmatpush1.bf16.xpose.msra.mxu0 %v716
      %720 = vmatprep.subr.bf16.mxu0 0
      %721 = vmatpush1.bf16.xpose.msra.mxu0 0
      %722 = vmatprep.subr.bf16.mxu0 0
      %723 = vmatpush1.bf16.xpose.msra.mxu0 0
      %724 = vmatprep.subr.bf16.mxu0 0
      %725 = vmatpush1.bf16.xpose.msra.mxu0 0
      %726 = vmatprep.subr.bf16.mxu0 0
      %727 = vmatpush1.bf16.xpose.msra.mxu0 0
      %728 = vmatprep.subr.bf16.mxu0 0
      %729 = vmatpush1.bf16.xpose.msra.mxu0 0
      %730 = vmatprep.subr.bf16.mxu0 0
      %731 = vmatpush1.bf16.xpose.msra.mxu0 0
      %732 = vmatprep.subr.bf16.mxu0 0
      %733 = vmatpush1.bf16.xpose.msra.mxu0 0
      %734 = vmatprep.subr.bf16.mxu0 0
      %735 = vmatpush1.bf16.xpose.msra.mxu0 0
      %736 = vmatprep.subr.bf16.mxu0 0
      %737 = vmatpush1.bf16.xpose.msra.mxu0 0
      %738 = vmatprep.subr.bf16.mxu0 0
      %739 = vmatpush1.bf16.xpose.msra.mxu0 0
      %740 = vmatprep.subr.bf16.mxu0 0
      %741 = vmatpush1.bf16.xpose.msra.mxu0 0
      %742 = vmatprep.subr.bf16.mxu0 0
      %743 = vmatpush1.bf16.xpose.msra.mxu0 0
      %744 = vmatprep.subr.bf16.mxu0 0
      %745 = vmatpush1.bf16.xpose.msra.mxu0 0
      %746 = vmatprep.subr.bf16.mxu0 0
      %747 = vmatpush1.bf16.xpose.msra.mxu0 0
      %748 = vmatprep.subr.bf16.mxu0 0
      %749 = vmatpush1.bf16.xpose.msra.mxu0 0
      %750 = vmatprep.mubr.bf16.mxu0 0
      %751 = vmatmul.mubr.bf16.gmra.mrb[0].mxu0 %v713
      %v752 = vpop.f32.mrb[0].mxu0
      %v753 = vadd.f32 0.0, %v752
      %v754 = vpop.f32.mrb[0].mxu0
      %v755 = vpop.f32.mrb[0].mxu0
      %v756 = vpop.f32.mrb[0].mxu0
      %757 = vdwg.mxu0
      %v758 = vmul.f32 %v753, 0.35355338
      %v759 = vadd.f32 %v758, %v293
      %s760 = scalar_lea.vmem [#allocation2], 24
      %v761 = vld [vmem:[%s760] sm:$0xff]
      %v762 = vsel %vm294, %v759, -inf
      %763 = vmax.xlane.f32.xlu0 %v762
      %v764 = vpop.xlane.xlu0 %763
      %v765 = vmax.f32 %v761, %v764
      %v766 = vsub.f32 %v761, %v765
      %v767 = vmul.f32 %v766, 1.442695
      %v768 = vpow.pop %v767
      %770 = vset.pattern.permute.xlu0 0
      %771 = vperm.xlu0 %770, %v765
      %v772 = vpop.permute.xlu0 %771
      %v774 = vsub.f32 %v759, %v772
      %v775 = vmul.f32 %v774, 1.442695
      %v776 = vpow.pop %v775
      %s777 = scalar_lea.vmem [#allocation3], 24
      %v778 = vld [vmem:[%s777] sm:$0xff]
      %v779 = vmul.f32 %v768, %v778
      %v780 = vsel %vm294, %v776, 0.0
      %781 = vadd.xlane.f32.xlu0 %v780
      %v782 = vpop.xlane.xlu0 %781
      %v783 = vadd.f32 %v779, %v782
      %784 = vst.msk [vmem:[%s777] sm:$0xff] %vm365, %v783
      %s785 = scalar_lea.vmem [#allocation4], 24
      %v786 = vld [vmem:[%s785] sm:$0xff]
      %788 = vset.pattern.permute.xlu0 0
      %789 = vperm.xlu0 %788, %v768
      %v790 = vpop.permute.xlu0 %789
      %v792 = vmul.f32 %v790, %v786
      %v793 = vpack.c.bf16 %v776, %v776
      %794 = vrot.lane.b32.xlu0 %v519, 104
      %v795 = vpop.permute.xlu0 %794
      %v797 = vsel %vm294, %v793, 0
      %v800 = vsel %vm378, %v795, 0
      %802 = vmatprep.subr.bf16.mxu0 0
      %803 = vmatpush1.bf16.msra.mxu0 %v800
      %804 = vmatprep.subr.bf16.mxu0 0
      %805 = vmatpush1.bf16.msra.mxu0 0
      %806 = vmatprep.subr.bf16.mxu0 0
      %807 = vmatpush1.bf16.msra.mxu0 0
      %808 = vmatprep.subr.bf16.mxu0 0
      %809 = vmatpush1.bf16.msra.mxu0 0
      %810 = vmatprep.subr.bf16.mxu0 0
      %811 = vmatpush1.bf16.msra.mxu0 0
      %812 = vmatprep.subr.bf16.mxu0 0
      %813 = vmatpush1.bf16.msra.mxu0 0
      %814 = vmatprep.subr.bf16.mxu0 0
      %815 = vmatpush1.bf16.msra.mxu0 0
      %816 = vmatprep.subr.bf16.mxu0 0
      %817 = vmatpush1.bf16.msra.mxu0 0
      %818 = vmatprep.subr.bf16.mxu0 0
      %819 = vmatpush1.bf16.msra.mxu0 0
      %820 = vmatprep.subr.bf16.mxu0 0
      %821 = vmatpush1.bf16.msra.mxu0 0
      %822 = vmatprep.subr.bf16.mxu0 0
      %823 = vmatpush1.bf16.msra.mxu0 0
      %824 = vmatprep.subr.bf16.mxu0 0
      %825 = vmatpush1.bf16.msra.mxu0 0
      %826 = vmatprep.subr.bf16.mxu0 0
      %827 = vmatpush1.bf16.msra.mxu0 0
      %828 = vmatprep.subr.bf16.mxu0 0
      %829 = vmatpush1.bf16.msra.mxu0 0
      %830 = vmatprep.subr.bf16.mxu0 0
      %831 = vmatpush1.bf16.msra.mxu0 0
      %832 = vmatprep.subr.bf16.mxu0 0
      %833 = vmatpush1.bf16.msra.mxu0 0
      %834 = vmatprep.mubr.bf16.mxu0 0
      %835 = vmatmul.mubr.bf16.gmra.mrb[0].mxu0 %v797
      %v836 = vpop.f32.mrb[0].mxu0
      %v837 = vadd.f32 0.0, %v836
      %v838 = vpop.f32.mrb[0].mxu0
      %v839 = vpop.f32.mrb[0].mxu0
      %v840 = vpop.f32.mrb[0].mxu0
      %841 = vdwg.mxu0
      %v842 = vadd.f32 %v792, %v837
      %843 = vst.msk [vmem:[%s785] sm:$0xff] %vm294, %v842
      %844 = vst.msk [vmem:[%s760] sm:$0xff] %vm365, %v765
      // Predicated region
      $region37: #{_lambda_.34} parent=31 // pred_check
        %p845 = pneg %p261
      $region38: #{_lambda_.34} parent=31 // pred_check_branch
        %847 = sbr.rel (%p845) target = $region40
      $region39: #{_lambda_.34} parent=31 // pred_region
        %v848 = vld [vmem:[#allocation4] sm:$0xff]
        %v849 = vld [vmem:[#allocation3] sm:$0xff]
        %v850 = vrcp.pop %v849
        %852 = vset.pattern.permute.xlu0 0
        %853 = vperm.xlu0 %852, %v850
        %v854 = vpop.permute.xlu0 %853
        %v856 = vmul.f32 %v848, %v854
        %v857 = vld [vmem:[%s508] sm:$0xff]
        %v858 = vld [vmem:[%s500] sm:$0xff]
        %v859 = vrcp.pop %v858
        %861 = vset.pattern.permute.xlu0 0
        %862 = vperm.xlu0 %861, %v859
        %v863 = vpop.permute.xlu0 %862
        %v865 = vmul.f32 %v857, %v863
        %v866 = vld [vmem:[%s648] sm:$0xff]
        %v867 = vld [vmem:[%s640] sm:$0xff]
        %v868 = vrcp.pop %v867
        %870 = vset.pattern.permute.xlu0 0
        %871 = vperm.xlu0 %870, %v868
        %v872 = vpop.permute.xlu0 %871
        %v874 = vmul.f32 %v866, %v872
        %v875 = vld [vmem:[%s785] sm:$0xff]
        %v876 = vld [vmem:[%s777] sm:$0xff]
        %v877 = vrcp.pop %v876
        %879 = vset.pattern.permute.xlu0 0
        %880 = vperm.xlu0 %879, %v877
        %v881 = vpop.permute.xlu0 %880
        %v883 = vmul.f32 %v875, %v881
        %885 = vrot.lane.b32.xlu0 %v865, 8
        %v886 = vpop.permute.xlu0 %885
        %889 = vrot.lane.b32.xlu0 %v874, 16
        %v890 = vpop.permute.xlu0 %889
        %893 = vrot.lane.b32.xlu0 %v883, 24
        %v894 = vpop.permute.xlu0 %893
        %v896 = vsel %vm294, %v856, %v886
        %vm897 = vcmask 130048
        %v898 = vsel %vm897, %v896, %v890
        %vm899 = vcmask 195584
        %v900 = vsel %vm899, %v898, %v894
        %v901 = vpack.c.bf16 %v900, %v900
        %vm902 = vcmask 257024
        %903 = vst.msk [vmem:[%s259] sm:$0xf] %vm902, %v901
      $region40: #{_lambda_.34} parent=31 // pred_fallthru
        _
      %p904 = scmp.lt.s32.totalorder %s19, 2
      %s905 = scalar_select %p904, %s19, 2
      %p906 = scmp.lt.s32.totalorder %s20, 0
      %s907 = scalar_select %p906, %s20, 0
      %s908 = sadd.s32 %s907, %s905
      %s909 = smul.addr %s908, 4
      %s910 = scalar_lea.vmem %s3, %s909
      // Predicated region
      $region41: #{_lambda_.34} parent=31 // pred_check
        %p911 = pneg %p137
      $region42: #{_lambda_.34} parent=31 // pred_check_branch
        %913 = sbr.rel (%p911) target = $region44
      $region43: #{_lambda_.34} parent=31 // pred_region
        _
      $region44: #{_lambda_.34} parent=31 // pred_fallthru
        _
    $region32: #{_lambda_.34} parent=5 // pred_fallthru
      _
    %p914 = scmp.le.s32.totalorder 2, %s9
    // Predicated region
    $region45: #{_lambda_.34} parent=5 // pred_check
      %p915 = pneg %p914
    $region46: #{_lambda_.34} parent=5 // pred_check_branch
      %917 = sbr.rel (%p915) target = $region48
    $region47: #{_lambda_.34} parent=5 // pred_region
      %s918 = ssub.s32 %s9, 2
      // Predicated region
      $region49: #{_lambda_.34} parent=47 // pred_check
        %p919 = pneg %p143
      $region50: #{_lambda_.34} parent=47 // pred_check_branch
        %921 = sbr.rel (%p919) target = $region52
      $region51: #{_lambda_.34} parent=47 // pred_region
        %p922 = scmp.lt.s32.totalorder %s22, 2
        %s923 = scalar_select %p922, %s22, 2
        %p924 = scmp.lt.s32.totalorder %s23, 0
        %s925 = scalar_select %p924, %s23, 0
        %s926 = sadd.s32 %s925, %s923
        %s927 = smul.addr %s926, 4
        %s928 = scalar_lea.vmem %s3, %s927
      $region52: #{_lambda_.34} parent=47 // pred_fallthru
        _
    $region48: #{_lambda_.34} parent=5 // pred_fallthru
      _
  $region6: #{_lambda_.34} parent=0 // loop_footer
    %s13 = sadd.s32 1, %s9
  $region7: #{_lambda_.34} parent=0 // loop_footer_branch
    %8 = sbr.rel target = $region3
  $region8: #{_lambda_.34} parent=0 // loop_exit
    _

// kernel: _lambda_.41
$region0: #{_lambda_.41}
  #allocation0 [shape = 'u32[]', space=smem, size = 0x4, offset = 0x4, fixed_abs, tag = 'smem constant byte address 0x4 - core index']
  #allocation1 [shape = 'u32[144,128]{1,0:T(1,128)}', space=vmem, size = 0x12000, scoped, tag = 'internal scratch']
  #allocation2 [shape = 'f32[3,32]{1,0:T(4,128)}', space=vmem, size = 0x800, scoped, tag = 'scratch operand']
  %s0 = inlined_call_operand.vmem [shape: f32[3,32], index: 0, kind: input, shape index: {}]
  %s1 = inlined_call_operand.vmem [shape: bf16[32,32], index: 1, kind: input, shape index: {}]
  %s2 = inlined_call_operand.vmem [shape: f32[1,32], index: 2, kind: input, shape index: {}]
  %s3 = inlined_call_operand.vmem [shape: f32[1,32], index: 3, kind: input, shape index: {}]
  %s4 = inlined_call_operand.hbm [shape: f32[3,32], index: 4, kind: output, shape index: {}]
  %s5 = sld [smem:[#allocation0]]
  $region34: #{_lambda_.41} parent=0
    _
  %s7 = ssub.s32 1, %s5
  %s8 = scalar_select 0, %s7, %s5
  $region1: #{_lambda_.41} parent=0
    #allocation3 [shape = 'u8[2048]{0}', space=vmem, size = 0x800, scoped, tag = 'output window, operand 0, single buffered']
    #allocation4 [shape = 's32[1]{0}', space=sflag, size = 0x4, scoped, tag = 'scoped memory for _lambda_.41']
    %9 = vsyncpa [#allocation4], 0
    // Predicated region
    $region2: #{_lambda_.41} parent=1 // pred_check
      _
    $region3: #{_lambda_.41} parent=1 // pred_check_branch
      %11 = sbr.rel (0) target = $region5
    $region4: #{_lambda_.41} parent=1 // pred_region
      _
    $region5: #{_lambda_.41} parent=1 // pred_fallthru
      _
    // Predicated region
    $region6: #{_lambda_.41} parent=1 // pred_check
      _
    $region7: #{_lambda_.41} parent=1 // pred_check_branch
      %13 = sbr.rel (0) target = $region9
    $region8: #{_lambda_.41} parent=1 // pred_region
      _
    $region9: #{_lambda_.41} parent=1 // pred_fallthru
      _
    // Predicated region
    $region10: #{_lambda_.41} parent=1 // pred_check
      _
    $region11: #{_lambda_.41} parent=1 // pred_check_branch
      %15 = sbr.rel (0) target = $region13
    $region12: #{_lambda_.41} parent=1 // pred_region
      _
    $region13: #{_lambda_.41} parent=1 // pred_fallthru
      _
    // Predicated region
    $region14: #{_lambda_.41} parent=1 // pred_check
      _
    $region15: #{_lambda_.41} parent=1 // pred_check_branch
      %17 = sbr.rel (0) target = $region17
    $region16: #{_lambda_.41} parent=1 // pred_region
      _
    $region17: #{_lambda_.41} parent=1 // pred_fallthru
      _
    %v19 = vld [vmem:[%s0] sm:$0x7]
    %v20 = vld [vmem:[%s2] sm:$0x1]
    %v21 = vld [vmem:[%s3] sm:$0x1]
    %vm22 = vcmask 256000
    %v23 = vsel %vm22, %v19, 0.0
    %24 = vadd.xlane.f32.xlu0 %v23
    %v25 = vpop.xlane.xlu0 %24
    %v26 = vrcp.pop 32.0
    %v27 = vmul.f32 %v25, %v26
    %v28 = vsub.f32 %v19, %v27
    %v29 = vmul.f32 %v28, %v28
    %v30 = vsel %vm22, %v29, 0.0
    %31 = vadd.xlane.f32.xlu0 %v30
    %v32 = vpop.xlane.xlu0 %31
    %v33 = vmul.f32 %v32, %v26
    %v34 = vadd.f32 %v33, 1e-05
    %v35 = vrsqrt.pop %v34
    %v36 = vmul.f32 %v28, %v35
    %v38 = vlaneseq
    %v39 = vshrl.u32 %v38, 7
    %v40 = vsub.s32 0, %v39
    %v41 = vrot.slane %v20, %v40
    %v43 = vmul.f32 %v36, %v41
    %v45 = vlaneseq
    %v46 = vshrl.u32 %v45, 7
    %v47 = vsub.s32 0, %v46
    %v48 = vrot.slane %v21, %v47
    %v50 = vadd.f32 %v43, %v48
    %p51 = scmp.eq.s32.totalorder 0, 0
    // Predicated region
    $region18: #{_lambda_.41} parent=1 // pred_check
      %p52 = pneg %p51
    $region19: #{_lambda_.41} parent=1 // pred_check_branch
      %54 = sbr.rel (%p52) target = $region21
    $region20: #{_lambda_.41} parent=1 // pred_region
      %55 = vst.msk [vmem:[#allocation2] sm:$0x7] %vm22, 0.0
    $region21: #{_lambda_.41} parent=1 // pred_fallthru
      _
    %v56 = vld [vmem:[#allocation2] sm:$0x7]
    %v57 = vpack.c.bf16 %v50, %v50
    %v58 = vld [vmem:[%s1] sm:$0xf]
    %v59 = vld [vmem:[%s1 + $0x4] sm:$0xf]
    %v60 = vld [vmem:[%s1 + $0x8] sm:$0xf]
    %v61 = vld [vmem:[%s1 + $0xc] sm:$0xf]
    %v66 = vunpack.c.l.b16 %v58
    %v67 = vunpack.c.l.b16 %v59
    %v68 = vunpack.c.l.b16 %v60
    %v69 = vunpack.c.l.b16 %v61
    %v70 = vpack.c.b16 %v67, %v66
    %v71 = vpack.c.b16 %v69, %v68
    %vm74 = vcmask 261120
    %v76 = vsel %vm74, %v57, 0
    %78 = vmatprep.subr.bf16.mxu0 0
    %79 = vmatpush1.bf16.msra.mxu0 %v70
    %80 = vmatprep.subr.bf16.mxu0 0
    %81 = vmatpush1.bf16.msra.mxu0 %v71
    %82 = vmatprep.subr.bf16.mxu0 0
    %83 = vmatpush1.bf16.msra.mxu0 0
    %84 = vmatprep.subr.bf16.mxu0 0
    %85 = vmatpush1.bf16.msra.mxu0 0
    %86 = vmatprep.subr.bf16.mxu0 0
    %87 = vmatpush1.bf16.msra.mxu0 0
    %88 = vmatprep.subr.bf16.mxu0 0
    %89 = vmatpush1.bf16.msra.mxu0 0
    %90 = vmatprep.subr.bf16.mxu0 0
    %91 = vmatpush1.bf16.msra.mxu0 0
    %92 = vmatprep.subr.bf16.mxu0 0
    %93 = vmatpush1.bf16.msra.mxu0 0
    %94 = vmatprep.subr.bf16.mxu0 0
    %95 = vmatpush1.bf16.msra.mxu0 0
    %96 = vmatprep.subr.bf16.mxu0 0
    %97 = vmatpush1.bf16.msra.mxu0 0
    %98 = vmatprep.subr.bf16.mxu0 0
    %99 = vmatpush1.bf16.msra.mxu0 0
    %100 = vmatprep.subr.bf16.mxu0 0
    %101 = vmatpush1.bf16.msra.mxu0 0
    %102 = vmatprep.subr.bf16.mxu0 0
    %103 = vmatpush1.bf16.msra.mxu0 0
    %104 = vmatprep.subr.bf16.mxu0 0
    %105 = vmatpush1.bf16.msra.mxu0 0
    %106 = vmatprep.subr.bf16.mxu0 0
    %107 = vmatpush1.bf16.msra.mxu0 0
    %108 = vmatprep.subr.bf16.mxu0 0
    %109 = vmatpush1.bf16.msra.mxu0 0
    %110 = vmatprep.mubr.bf16.mxu0 0
    %111 = vmatmul.mubr.bf16.gmra.mrb[0].mxu0 %v76
    %v112 = vpop.f32.mrb[0].mxu0
    %v113 = vadd.f32 0.0, %v112
    %v114 = vpop.f32.mrb[0].mxu0
    %v115 = vpop.f32.mrb[0].mxu0
    %v116 = vpop.f32.mrb[0].mxu0
    %117 = vdwg.mxu0
    %v118 = vadd.f32 %v56, %v113
    %119 = vst.msk [vmem:[#allocation2] sm:$0x7] %vm22, %v118
    // Predicated region
    $region22: #{_lambda_.41} parent=1 // pred_check
      %p120 = pneg %p51
    $region23: #{_lambda_.41} parent=1 // pred_check_branch
      %122 = sbr.rel (%p120) target = $region25
    $region24: #{_lambda_.41} parent=1 // pred_region
      %v123 = vld [vmem:[#allocation2] sm:$0x7]
      %v124 = vmul.f32 %v123, %v123
      %v125 = vsel %vm22, %v124, 0.0
      %126 = vadd.xlane.f32.xlu0 %v125
      %v127 = vpop.xlane.xlu0 %126
      %v128 = vrsqrt.pop %v127
      %v129 = vmul.f32 %v123, %v128
      %130 = vst.msk [vmem:[#allocation3] sm:$0x7] %vm22, %v129
    $region25: #{_lambda_.41} parent=1 // pred_fallthru
      _
    // Predicated region
    $region26: #{_lambda_.41} parent=1 // pred_check
      _
    $region27: #{_lambda_.41} parent=1 // pred_check_branch
      %132 = sbr.rel (0) target = $region29
    $region28: #{_lambda_.41} parent=1 // pred_region
      %s134 = ssub.s32 64, 64
      %135 = vsyncadd [#allocation4], %s134
      %s137 = sshll.u32 [#allocation3], 4
      %s138 = int_to_ptr.vmem [resolvable:$true] %s137
      %140 = dma.vmem_to_hbm [thread:$0]  %s138, 64, %s4, [#allocation4]
    $region29: #{_lambda_.41} parent=1 // pred_fallthru
      _
    // Predicated region
    $region30: #{_lambda_.41} parent=1 // pred_check
      _
    $region31: #{_lambda_.41} parent=1 // pred_check_branch
      %142 = sbr.rel (0) target = $region33
    $region32: #{_lambda_.41} parent=1 // pred_region
      %143 = dma.done [#allocation4], 64
    $region33: #{_lambda_.41} parent=1 // pred_fallthru
      _
    %144 = vsyncpa [#allocation4], 1

</llo_original>
